<compile_context>
chip_gen: v7x
topology: tpu7x:2x2x1
jax: 0.10.0
libtpu: 0.0.40
codegen_flags: <defaults>
</compile_context>

<pallas_src>
import functools
import math

import jax
import jax.numpy as jnp
from jax.experimental import pallas as pl
from jax.experimental.pallas import tpu as pltpu


# -----------------------------------------------------------------------------
# small helpers
# -----------------------------------------------------------------------------
def _const_spec(shape):
    zeros = (0,) * len(shape)
    return pl.BlockSpec(shape, lambda i, _z=zeros: _z)


def _ln(x, g, b, eps=1e-5):
    mu = jnp.mean(x, axis=-1, keepdims=True)
    xc = x - mu
    var = jnp.mean(xc * xc, axis=-1, keepdims=True)
    return xc * jax.lax.rsqrt(var + eps) * g + b


def _bn_fold(bn, eps=1e-5):
    inv = 1.0 / jnp.sqrt(bn["var"] + eps)
    scale = bn["gamma"] * inv
    shift = bn["beta"] - bn["mean"] * scale
    return scale, shift


# -----------------------------------------------------------------------------
# Kernel 1: frontend  (embedding select + coord_to_feature + fusion)
# -----------------------------------------------------------------------------
def _frontend_kernel(coord_ref, cat_ref, emb_ref,
                     w1_ref, s1_ref, t1_ref,
                     w2_ref, s2_ref, t2_ref,
                     wfa_ref, wfb_ref, s3_ref, t3_ref, o_ref):
    # coord_to_feature: Linear(no bias)+BN+ReLU  x2  (BN folded into scale/shift)
    h1 = jnp.dot(coord_ref[...], w1_ref[...], preferred_element_type=jnp.float32)
    h1 = jnp.maximum(h1 * s1_ref[...] + t1_ref[...], 0.0)
    h2 = jnp.dot(h1, w2_ref[...], preferred_element_type=jnp.float32)
    h2 = jnp.maximum(h2 * s2_ref[...] + t2_ref[...], 0.0)

    # nn.Embedding(3, D//2, padding_idx=0) as a VPU 3-way select (no one-hot matmul)
    cat = cat_ref[...]                                   # (M, 1) int32
    tab = emb_ref[...]                                   # (3, D//2)
    emb = ((cat == 0).astype(jnp.float32) * tab[0:1, :]
           + (cat == 1).astype(jnp.float32) * tab[1:2, :]
           + (cat == 2).astype(jnp.float32) * tab[2:3, :])

    # coord_category_fusion on concat([h2, emb]) == h2 @ Wa + emb @ Wb  (BN folded)
    f = (jnp.dot(h2, wfa_ref[...], preferred_element_type=jnp.float32)
         + jnp.dot(emb, wfb_ref[...], preferred_element_type=jnp.float32))
    o_ref[...] = jnp.maximum(f * s3_ref[...] + t3_ref[...], 0.0)


def frontend(coords, cats, embed, w1, s1, t1, w2, s2, t2, wfa, wfb, s3, t3):
    M = coords.shape[0]
    D = wfa.shape[1]
    f32 = lambda a: jnp.asarray(a, jnp.float32)
    args = [f32(coords), jnp.asarray(cats, jnp.int32), f32(embed),
            f32(w1), f32(s1).reshape(1, -1), f32(t1).reshape(1, -1),
            f32(w2), f32(s2).reshape(1, -1), f32(t2).reshape(1, -1),
            f32(wfa), f32(wfb), f32(s3).reshape(1, -1), f32(t3).reshape(1, -1)]
    return pl.pallas_call(
        _frontend_kernel,
        out_shape=jax.ShapeDtypeStruct((M, D), jnp.float32),
        grid=(1,),
        in_specs=[_const_spec(a.shape) for a in args],
        out_specs=_const_spec((M, D)),
    )(*args)


# -----------------------------------------------------------------------------
# Kernel 2/4: full transformer-encoder stack (all layers in one pallas_call)
# -----------------------------------------------------------------------------
def _encoder_stack_kernel(x_ref, bias_ref, wqkv_ref, bqkv_ref, wo_ref, bo_ref,
                          ln1g_ref, ln1b_ref, w1_ref, b1_ref, w2_ref, b2_ref,
                          ln2g_ref, ln2b_ref, o_ref, attn_ref, *, n_head, scale):
    # Activation lives in the (VMEM-resident) output block across the layer axis.
    @pl.when(pl.program_id(1) == 0)
    def _():
        o_ref[...] = x_ref[...]

    x = o_ref[...]                                       # (Rb, D)
    D = x.shape[-1]
    dh = D // n_head

    # Fused QKV projection: one (Rb,D)x(D,3D) MXU pass.
    qkv = jnp.dot(x, wqkv_ref[...], preferred_element_type=jnp.float32) + bqkv_ref[...]
    bias = bias_ref[...]                                 # block-diagonal mask (0 / -1e30)

    # Multi-head attention via per-head 2-D dots over the whole row block; the
    # additive block-diagonal bias restricts attention to each length-`seq`
    # sequence, so no per-(batch,head) grid and no in-kernel transposes/reshapes.
    for h in range(n_head):
        q = qkv[:, h * dh:(h + 1) * dh]
        k = qkv[:, D + h * dh:D + (h + 1) * dh]
        v = qkv[:, 2 * D + h * dh:2 * D + (h + 1) * dh]
        s = jnp.dot(q, k.T, preferred_element_type=jnp.float32) * scale + bias
        s = s - jnp.max(s, axis=-1, keepdims=True)
        p = jnp.exp(s)
        p = p * pl.reciprocal(jnp.sum(p, axis=-1, keepdims=True), approx=True)
        attn_ref[:, h * dh:(h + 1) * dh] = jnp.dot(
            p, v, preferred_element_type=jnp.float32)

    a = jnp.dot(attn_ref[...], wo_ref[...], preferred_element_type=jnp.float32) + bo_ref[...]
    h1 = _ln(a + x, ln1g_ref[...], ln1b_ref[...])
    f = jnp.maximum(
        jnp.dot(h1, w1_ref[...], preferred_element_type=jnp.float32) + b1_ref[...], 0.0)
    f = jnp.dot(f, w2_ref[...], preferred_element_type=jnp.float32) + b2_ref[...]
    o_ref[...] = _ln(f + h1, ln2g_ref[...], ln2b_ref[...])


def encoder_stack(x, layers, *, n_head, seq):
    # TODO(synk): the `Encoder` class is not in the reference snippet; implemented
    # as a standard post-LN transformer encoder (MHA + residual + LN, FFN(width=D)
    # + residual + LN, dropout=0), matching the previous accepted version.
    x = jnp.asarray(x, jnp.float32)
    R, D = x.shape
    L = len(layers)
    dh = D // n_head

    # Two row blocks -> the "parallel" grid axis lets the two v7x TensorCores each
    # take half the sequences; on 1-TC chips it is a near-no-op.
    n_rb = 2 if (R % 2 == 0 and (R // 2) % seq == 0 and (R // 2) % 8 == 0) else 1
    Rb = R // n_rb

    f32 = lambda a: jnp.asarray(a, jnp.float32)
    wqkv = f32(jnp.stack([jnp.concatenate([l["wq"], l["wk"], l["wv"]], axis=1)
                          for l in layers]))                                # (L, D, 3D)
    bqkv = f32(jnp.stack([jnp.concatenate([l["bq"], l["bk"], l["bv"]])[None, :]
                          for l in layers]))                                # (L, 1, 3D)
    wo = f32(jnp.stack([l["wo"] for l in layers]))
    bo = f32(jnp.stack([l["bo"][None, :] for l in layers]))
    ln1g = f32(jnp.stack([l["ln1_g"][None, :] for l in layers]))
    ln1b = f32(jnp.stack([l["ln1_b"][None, :] for l in layers]))
    w1 = f32(jnp.stack([l["w1"] for l in layers]))
    b1 = f32(jnp.stack([l["b1"][None, :] for l in layers]))
    w2 = f32(jnp.stack([l["w2"] for l in layers]))
    b2 = f32(jnp.stack([l["b2"][None, :] for l in layers]))
    ln2g = f32(jnp.stack([l["ln2_g"][None, :] for l in layers]))
    ln2b = f32(jnp.stack([l["ln2_b"][None, :] for l in layers]))
    dff = w1.shape[-1]

    grp = jnp.arange(Rb) // seq
    bias = jnp.where(grp[:, None] == grp[None, :], 0.0, -1e30).astype(jnp.float32)

    def wmap(i, l):          # stacked weights: select layer l, full trailing block
        return (l, 0, 0)

    in_specs = [
        pl.BlockSpec((Rb, D), lambda i, l: (i, 0)),        # x (only read at l == 0)
        pl.BlockSpec((Rb, Rb), lambda i, l: (0, 0)),       # attention mask bias
        pl.BlockSpec((None, D, 3 * D), wmap),              # wqkv
        pl.BlockSpec((None, 1, 3 * D), wmap),              # bqkv
        pl.BlockSpec((None, D, D), wmap),                  # wo
        pl.BlockSpec((None, 1, D), wmap),                  # bo
        pl.BlockSpec((None, 1, D), wmap),                  # ln1_g
        pl.BlockSpec((None, 1, D), wmap),                  # ln1_b
        pl.BlockSpec((None, D, dff), wmap),                # w1
        pl.BlockSpec((None, 1, dff), wmap),                # b1
        pl.BlockSpec((None, dff, D), wmap),                # w2
        pl.BlockSpec((None, 1, D), wmap),                  # b2
        pl.BlockSpec((None, 1, D), wmap),                  # ln2_g
        pl.BlockSpec((None, 1, D), wmap),                  # ln2_b
    ]

    return pl.pallas_call(
        functools.partial(_encoder_stack_kernel, n_head=n_head,
                          scale=1.0 / math.sqrt(dh)),
        out_shape=jax.ShapeDtypeStruct((R, D), jnp.float32),
        grid=(n_rb, L),
        in_specs=in_specs,
        out_specs=pl.BlockSpec((Rb, D), lambda i, l: (i, 0)),
        scratch_shapes=[pltpu.VMEM((Rb, D), jnp.float32)],
        compiler_params=pltpu.CompilerParams(
            dimension_semantics=("parallel", "arbitrary")),
    )(x, bias, wqkv, bqkv, wo, bo, ln1g, ln1b, w1, b1, w2, b2, ln2g, ln2b)


# -----------------------------------------------------------------------------
# Kernel 3: spatial_ff (2 fused linears)
# -----------------------------------------------------------------------------
def _mlp2_kernel(x_ref, w1_ref, b1_ref, w2_ref, b2_ref, o_ref):
    h = jnp.maximum(
        jnp.dot(x_ref[...], w1_ref[...], preferred_element_type=jnp.float32)
        + b1_ref[...], 0.0)
    o_ref[...] = jnp.dot(h, w2_ref[...], preferred_element_type=jnp.float32) + b2_ref[...]


def mlp2(x, w1, b1, w2, b2):
    x = jnp.asarray(x, jnp.float32)
    M = x.shape[0]
    N = w2.shape[1]
    f32 = lambda a: jnp.asarray(a, jnp.float32)
    args = [x, f32(w1), f32(b1).reshape(1, -1), f32(w2), f32(b2).reshape(1, -1)]
    return pl.pallas_call(
        _mlp2_kernel,
        out_shape=jax.ShapeDtypeStruct((M, N), jnp.float32),
        grid=(1,),
        in_specs=[_const_spec(a.shape) for a in args],
        out_specs=_const_spec((M, N)),
    )(*args)


# -----------------------------------------------------------------------------
# Kernel 5: temporal_ff (+folded BN) + classifier, fused
# -----------------------------------------------------------------------------
def _tail_kernel(x_ref, w1_ref, b1_ref, w2_ref, s2_ref, t2_ref,
                 cw1_ref, cb1_ref, cw2_ref, cb2_ref, cw3_ref, cb3_ref, o_ref):
    h = jnp.maximum(
        jnp.dot(x_ref[...], w1_ref[...], preferred_element_type=jnp.float32)
        + b1_ref[...], 0.0)
    # Linear(+bias) -> BN -> ReLU, with BN (and the linear bias) folded into s2/t2
    h = jnp.maximum(
        jnp.dot(h, w2_ref[...], preferred_element_type=jnp.float32)
        * s2_ref[...] + t2_ref[...], 0.0)
    h = jnp.maximum(
        jnp.dot(h, cw1_ref[...], preferred_element_type=jnp.float32) + cb1_ref[...], 0.0)
    h = jnp.maximum(
        jnp.dot(h, cw2_ref[...], preferred_element_type=jnp.float32) + cb2_ref[...], 0.0)
    o_ref[...] = jnp.dot(h, cw3_ref[...], preferred_element_type=jnp.float32) + cb3_ref[...]


def tail(x, w1, b1, w2, s2, t2, cw1, cb1, cw2, cb2, cw3, cb3):
    x = jnp.asarray(x, jnp.float32)
    M = x.shape[0]
    N = cw3.shape[1]
    f32 = lambda a: jnp.asarray(a, jnp.float32)
    args = [x, f32(w1), f32(b1).reshape(1, -1), f32(w2),
            f32(s2).reshape(1, -1), f32(t2).reshape(1, -1),
            f32(cw1), f32(cb1).reshape(1, -1), f32(cw2), f32(cb2).reshape(1, -1),
            f32(cw3), f32(cb3).reshape(1, -1)]
    return pl.pallas_call(
        _tail_kernel,
        out_shape=jax.ShapeDtypeStruct((M, N), jnp.float32),
        grid=(1,),
        in_specs=[_const_spec(a.shape) for a in args],
        out_specs=_const_spec((M, N)),
    )(*args)


# -----------------------------------------------------------------------------
# Model forward (glue: parameter folding + reshapes only; compute is in kernels)
# -----------------------------------------------------------------------------
def forward(params, global_img_input, box_categories, box_input, video_label,
            *, nr_boxes, nr_frames, coord_dim, n_head, is_inference=True):
    del global_img_input, video_label, is_inference   # unused in the reference forward
    b = box_input.shape[0]
    D = coord_dim
    M = b * nr_boxes * nr_frames

    # PyTorch: transpose(2,1).contiguous().view(b*nr_boxes*nr_frames, 4)
    bi = jnp.swapaxes(box_input.astype(jnp.float32), 1, 2).reshape(M, 4)
    bc = jnp.swapaxes(box_categories.astype(jnp.int32), 1, 2).reshape(M, 1)

    s1, t1 = _bn_fold(params["c2f_bn1"])
    s2, t2 = _bn_fold(params["c2f_bn2"])
    s3, t3 = _bn_fold(params["fuse_bn"])
    wfa = params["fuse_w"][:D, :]          # multiplies the coord features
    wfb = params["fuse_w"][D:, :]          # multiplies the category embedding

    bf = frontend(bi, bc, params["embed"],
                  params["c2f_w1"], s1, t1,
                  params["c2f_w2"], s2, t2,
                  wfa, wfb, s3, t3)                         # (M, D)

    # Mirrors torch `.view(b, nr_frames, nr_boxes, D)` on the (b, box, frame)-ordered
    # rows exactly (no re-transpose); the spatial transformer then attends within
    # groups of `nr_boxes` consecutive rows.
    x = encoder_stack(bf, params["spatial_enc"], n_head=n_head, seq=nr_boxes)

    # spatial_ff on (b*nr_frames, nr_boxes*D)
    x = x.reshape(b * nr_frames, nr_boxes * D)
    x = mlp2(x, params["sff_w1"], params["sff_b1"], params["sff_w2"], params["sff_b2"])

    # temporal transformer over frames: rows are already (b*nr_frames, D)
    x = encoder_stack(x, params["temporal_enc"], n_head=n_head, seq=nr_frames)

    # temporal_ff (BN folded, linear bias folded into the shift) + classifier
    x = x.reshape(b, nr_frames * D)
    st, tt = _bn_fold(params["tff_bn"])
    out = tail(x, params["tff_w1"], params["tff_b1"],
               params["tff_w2"], st, params["tff_b2"] * st + tt,
               params["cls_w1"], params["cls_b1"],
               params["cls_w2"], params["cls_b2"],
               params["cls_w3"], params["cls_b3"])
    return out


# -----------------------------------------------------------------------------
# Deterministic parameter initialization (shapes follow the module __init__)
# -----------------------------------------------------------------------------
def init_params(key, *, nr_boxes, nr_frames, coord_dim, n_classes, n_layers=6):
    D = coord_dim
    it = iter(jax.random.split(key, 1024))
    nk = lambda: next(it)

    def dense(fi, fo):
        return jax.random.normal(nk(), (fi, fo), jnp.float32) / math.sqrt(fi)

    def bias(fo):
        return 0.02 * jax.random.normal(nk(), (fo,), jnp.float32)

    def bn(n):
        return dict(
            gamma=1.0 + 0.1 * jax.random.normal(nk(), (n,), jnp.float32),
            beta=0.1 * jax.random.normal(nk(), (n,), jnp.float32),
            mean=0.1 * jax.random.normal(nk(), (n,), jnp.float32),
            var=1.0 + 0.1 * jnp.abs(jax.random.normal(nk(), (n,), jnp.float32)),
        )

    def enc_layer():
        return dict(
            wq=dense(D, D), wk=dense(D, D), wv=dense(D, D), wo=dense(D, D),
            bq=bias(D), bk=bias(D), bv=bias(D), bo=bias(D),
            ln1_g=1.0 + 0.1 * jax.random.normal(nk(), (D,), jnp.float32),
            ln1_b=0.1 * jax.random.normal(nk(), (D,), jnp.float32),
            w1=dense(D, D), b1=bias(D), w2=dense(D, D), b2=bias(D),
            ln2_g=1.0 + 0.1 * jax.random.normal(nk(), (D,), jnp.float32),
            ln2_b=0.1 * jax.random.normal(nk(), (D,), jnp.float32),
        )

    embed = 0.1 * jax.random.normal(nk(), (3, D // 2), jnp.float32)
    embed = embed.at[0].set(0.0)   # padding_idx=0

    return dict(
        embed=embed,
        c2f_w1=dense(4, D // 2), c2f_bn1=bn(D // 2),
        c2f_w2=dense(D // 2, D), c2f_bn2=bn(D),
        fuse_w=dense(D + D // 2, D), fuse_bn=bn(D),
        spatial_enc=[enc_layer() for _ in range(n_layers)],
        temporal_enc=[enc_layer() for _ in range(n_layers)],
        sff_w1=dense(nr_boxes * D, nr_boxes * D // 2), sff_b1=bias(nr_boxes * D // 2),
        sff_w2=dense(nr_boxes * D // 2, D), sff_b2=bias(D),
        tff_w1=dense(nr_frames * D, nr_frames // 2 * D), tff_b1=bias(nr_frames // 2 * D),
        tff_w2=dense(nr_frames // 2 * D, D), tff_b2=bias(D), tff_bn=bn(D),
        cls_w1=dense(D, D), cls_b1=bias(D),
        cls_w2=dense(D, 512), cls_b2=bias(512),
        cls_w3=dense(512, n_classes), cls_b3=bias(n_classes),
    )


if __name__ == "__main__":
    # opt
    num_boxes = 4
    num_classes = 16
    num_frames = 16
    coord_feature_dim = 64
    nr_frames = num_frames // 2          # 8
    n_head = 8
    b = 2

    key = jax.random.PRNGKey(0)
    kp, k1, k2, k3 = jax.random.split(key, 4)
    params = init_params(kp, nr_boxes=num_boxes, nr_frames=nr_frames,
                         coord_dim=coord_feature_dim, n_classes=num_classes, n_layers=6)

    box_input = jax.random.uniform(k1, (b, nr_frames, num_boxes, 4), jnp.float32)
    box_categories = jax.random.randint(k2, (b, nr_frames, num_boxes), 0, 3)
    global_img_input = jax.random.normal(k3, (b, nr_frames, 32), jnp.float32)  # unused by forward
    video_label = jnp.zeros((b,), jnp.int32)

    fwd = jax.jit(functools.partial(
        forward, nr_boxes=num_boxes, nr_frames=nr_frames,
        coord_dim=coord_feature_dim, n_head=n_head))

    out = fwd(params, global_img_input, box_categories, box_input, video_label)
    out = jax.block_until_ready(out)
    assert out.shape == (b, num_classes), out.shape
    assert bool(jnp.all(jnp.isfinite(out)))
    print("KERNEL_OK")
</pallas_src>

<mosaic_0001>
module attributes {stable_mosaic.version = 11 : i64} {
  func.func @_frontend_kernel(%arg0: i32, %arg1: memref<64x4xf32, #tpu.memory_space<vmem>>, %arg2: memref<64x1xi32, #tpu.memory_space<vmem>>, %arg3: memref<3x32xf32, #tpu.memory_space<vmem>>, %arg4: memref<4x32xf32, #tpu.memory_space<vmem>>, %arg5: memref<1x32xf32, #tpu.memory_space<vmem>>, %arg6: memref<1x32xf32, #tpu.memory_space<vmem>>, %arg7: memref<32x64xf32, #tpu.memory_space<vmem>>, %arg8: memref<1x64xf32, #tpu.memory_space<vmem>>, %arg9: memref<1x64xf32, #tpu.memory_space<vmem>>, %arg10: memref<64x64xf32, #tpu.memory_space<vmem>>, %arg11: memref<32x64xf32, #tpu.memory_space<vmem>>, %arg12: memref<1x64xf32, #tpu.memory_space<vmem>>, %arg13: memref<1x64xf32, #tpu.memory_space<vmem>>, %arg14: memref<64x64xf32, #tpu.memory_space<vmem>>) attributes {dimension_semantics = [#tpu.dimension_semantics<arbitrary>], iteration_bounds = array<i64: 1>, scalar_prefetch = 0 : i64, scratch_operands = 0 : i64, tpu.core_type = #tpu.core_type<tc>, window_params = [{pipeline_mode = #tpu.pipeline_mode<synchronous>, transform_indices = @transform_0, window_bounds = array<i64: 64, 4>}, {pipeline_mode = #tpu.pipeline_mode<synchronous>, transform_indices = @transform_1, window_bounds = array<i64: 64, 1>}, {pipeline_mode = #tpu.pipeline_mode<synchronous>, transform_indices = @transform_2, window_bounds = array<i64: 3, 32>}, {pipeline_mode = #tpu.pipeline_mode<synchronous>, transform_indices = @transform_3, window_bounds = array<i64: 4, 32>}, {pipeline_mode = #tpu.pipeline_mode<synchronous>, transform_indices = @transform_4, window_bounds = array<i64: 1, 32>}, {pipeline_mode = #tpu.pipeline_mode<synchronous>, transform_indices = @transform_5, window_bounds = array<i64: 1, 32>}, {pipeline_mode = #tpu.pipeline_mode<synchronous>, transform_indices = @transform_6, window_bounds = array<i64: 32, 64>}, {pipeline_mode = #tpu.pipeline_mode<synchronous>, transform_indices = @transform_7, window_bounds = array<i64: 1, 64>}, {pipeline_mode = #tpu.pipeline_mode<synchronous>, transform_indices = @transform_8, window_bounds = array<i64: 1, 64>}, {pipeline_mode = #tpu.pipeline_mode<synchronous>, transform_indices = @transform_9, window_bounds = array<i64: 64, 64>}, {pipeline_mode = #tpu.pipeline_mode<synchronous>, transform_indices = @transform_10, window_bounds = array<i64: 32, 64>}, {pipeline_mode = #tpu.pipeline_mode<synchronous>, transform_indices = @transform_11, window_bounds = array<i64: 1, 64>}, {pipeline_mode = #tpu.pipeline_mode<synchronous>, transform_indices = @transform_12, window_bounds = array<i64: 1, 64>}, {pipeline_mode = #tpu.pipeline_mode<synchronous>, transform_indices = @transform_13, window_bounds = array<i64: 64, 64>}]} {
    %c0 = arith.constant 0 : index
    %c0_0 = arith.constant 0 : index
    %0 = vector.load %arg1[%c0, %c0_0] : memref<64x4xf32, #tpu.memory_space<vmem>>, vector<64x4xf32>
    %c0_1 = arith.constant 0 : index
    %c0_2 = arith.constant 0 : index
    %1 = vector.load %arg4[%c0_1, %c0_2] : memref<4x32xf32, #tpu.memory_space<vmem>>, vector<4x32xf32>
    %cst = arith.constant dense<0.000000e+00> : vector<64x32xf32>
    %2 = tpu.matmul %0, %1, %cst {dimension_numbers = #tpu.dot_dimension_numbers<[1], [0], [0], [1], [0, 0, 1, 1], [], []>} : vector<64x4xf32>, vector<4x32xf32>, vector<64x32xf32> -> vector<64x32xf32>
    %c0_3 = arith.constant 0 : index
    %c0_4 = arith.constant 0 : index
    %3 = vector.load %arg5[%c0_3, %c0_4] : memref<1x32xf32, #tpu.memory_space<vmem>>, vector<1x32xf32>
    %4 = vector.broadcast %3 : vector<1x32xf32> to vector<64x32xf32>
    %5 = arith.mulf %2, %4 : vector<64x32xf32>
    %c0_5 = arith.constant 0 : index
    %c0_6 = arith.constant 0 : index
    %6 = vector.load %arg6[%c0_5, %c0_6] : memref<1x32xf32, #tpu.memory_space<vmem>>, vector<1x32xf32>
    %7 = vector.broadcast %6 : vector<1x32xf32> to vector<64x32xf32>
    %8 = arith.addf %5, %7 : vector<64x32xf32>
    %cst_7 = arith.constant 0.000000e+00 : f32
    %9 = vector.broadcast %cst_7 : f32 to vector<64x32xf32>
    %10 = arith.maximumf %8, %9 : vector<64x32xf32>
    %c0_8 = arith.constant 0 : index
    %c0_9 = arith.constant 0 : index
    %11 = vector.load %arg7[%c0_8, %c0_9] : memref<32x64xf32, #tpu.memory_space<vmem>>, vector<32x64xf32>
    %cst_10 = arith.constant dense<0.000000e+00> : vector<64x64xf32>
    %12 = tpu.matmul %10, %11, %cst_10 {dimension_numbers = #tpu.dot_dimension_numbers<[1], [0], [0], [1], [0, 0, 1, 1], [], []>} : vector<64x32xf32>, vector<32x64xf32>, vector<64x64xf32> -> vector<64x64xf32>
    %c0_11 = arith.constant 0 : index
    %c0_12 = arith.constant 0 : index
    %13 = vector.load %arg8[%c0_11, %c0_12] : memref<1x64xf32, #tpu.memory_space<vmem>>, vector<1x64xf32>
    %14 = vector.broadcast %13 : vector<1x64xf32> to vector<64x64xf32>
    %15 = arith.mulf %12, %14 : vector<64x64xf32>
    %c0_13 = arith.constant 0 : index
    %c0_14 = arith.constant 0 : index
    %16 = vector.load %arg9[%c0_13, %c0_14] : memref<1x64xf32, #tpu.memory_space<vmem>>, vector<1x64xf32>
    %17 = vector.broadcast %16 : vector<1x64xf32> to vector<64x64xf32>
    %18 = arith.addf %15, %17 : vector<64x64xf32>
    %cst_15 = arith.constant 0.000000e+00 : f32
    %19 = vector.broadcast %cst_15 : f32 to vector<64x64xf32>
    %20 = arith.maximumf %18, %19 : vector<64x64xf32>
    %c0_16 = arith.constant 0 : index
    %c0_17 = arith.constant 0 : index
    %21 = vector.load %arg2[%c0_16, %c0_17] : memref<64x1xi32, #tpu.memory_space<vmem>>, vector<64x1xi32>
    %c0_18 = arith.constant 0 : index
    %c0_19 = arith.constant 0 : index
    %22 = vector.load %arg3[%c0_18, %c0_19] : memref<3x32xf32, #tpu.memory_space<vmem>>, vector<3x32xf32>
    %c0_i32 = arith.constant 0 : i32
    %23 = vector.broadcast %c0_i32 : i32 to vector<64x1xi32>
    %24 = arith.cmpi eq, %21, %23 : vector<64x1xi32>
    %25 = arith.extui %24 : vector<64x1xi1> to vector<64x1xi32>
    %26 = arith.sitofp %25 : vector<64x1xi32> to vector<64x1xf32>
    %27 = vector.extract_strided_slice %22 {offsets = [0, 0], sizes = [1, 32], strides = [1, 1]} : vector<3x32xf32> to vector<1x32xf32>
    %28 = vector.broadcast %26 : vector<64x1xf32> to vector<64x32xf32>
    %29 = vector.broadcast %27 : vector<1x32xf32> to vector<64x32xf32>
    %30 = arith.mulf %28, %29 : vector<64x32xf32>
    %c1_i32 = arith.constant 1 : i32
    %31 = vector.broadcast %c1_i32 : i32 to vector<64x1xi32>
    %32 = arith.cmpi eq, %21, %31 : vector<64x1xi32>
    %33 = arith.extui %32 : vector<64x1xi1> to vector<64x1xi32>
    %34 = arith.sitofp %33 : vector<64x1xi32> to vector<64x1xf32>
    %35 = vector.extract_strided_slice %22 {offsets = [1, 0], sizes = [1, 32], strides = [1, 1]} : vector<3x32xf32> to vector<1x32xf32>
    %36 = vector.broadcast %34 : vector<64x1xf32> to vector<64x32xf32>
    %37 = vector.broadcast %35 : vector<1x32xf32> to vector<64x32xf32>
    %38 = arith.mulf %36, %37 : vector<64x32xf32>
    %39 = arith.addf %30, %38 : vector<64x32xf32>
    %c2_i32 = arith.constant 2 : i32
    %40 = vector.broadcast %c2_i32 : i32 to vector<64x1xi32>
    %41 = arith.cmpi eq, %21, %40 : vector<64x1xi32>
    %42 = arith.extui %41 : vector<64x1xi1> to vector<64x1xi32>
    %43 = arith.sitofp %42 : vector<64x1xi32> to vector<64x1xf32>
    %44 = vector.extract_strided_slice %22 {offsets = [2, 0], sizes = [1, 32], strides = [1, 1]} : vector<3x32xf32> to vector<1x32xf32>
    %45 = vector.broadcast %43 : vector<64x1xf32> to vector<64x32xf32>
    %46 = vector.broadcast %44 : vector<1x32xf32> to vector<64x32xf32>
    %47 = arith.mulf %45, %46 : vector<64x32xf32>
    %48 = arith.addf %39, %47 : vector<64x32xf32>
    %c0_20 = arith.constant 0 : index
    %c0_21 = arith.constant 0 : index
    %49 = vector.load %arg10[%c0_20, %c0_21] : memref<64x64xf32, #tpu.memory_space<vmem>>, vector<64x64xf32>
    %cst_22 = arith.constant dense<0.000000e+00> : vector<64x64xf32>
    %50 = tpu.matmul %20, %49, %cst_22 {dimension_numbers = #tpu.dot_dimension_numbers<[1], [0], [0], [1], [0, 0, 1, 1], [], []>} : vector<64x64xf32>, vector<64x64xf32>, vector<64x64xf32> -> vector<64x64xf32>
    %c0_23 = arith.constant 0 : index
    %c0_24 = arith.constant 0 : index
    %51 = vector.load %arg11[%c0_23, %c0_24] : memref<32x64xf32, #tpu.memory_space<vmem>>, vector<32x64xf32>
    %cst_25 = arith.constant dense<0.000000e+00> : vector<64x64xf32>
    %52 = tpu.matmul %48, %51, %cst_25 {dimension_numbers = #tpu.dot_dimension_numbers<[1], [0], [0], [1], [0, 0, 1, 1], [], []>} : vector<64x32xf32>, vector<32x64xf32>, vector<64x64xf32> -> vector<64x64xf32>
    %53 = arith.addf %50, %52 : vector<64x64xf32>
    %c0_26 = arith.constant 0 : index
    %c0_27 = arith.constant 0 : index
    %54 = vector.load %arg12[%c0_26, %c0_27] : memref<1x64xf32, #tpu.memory_space<vmem>>, vector<1x64xf32>
    %55 = vector.broadcast %54 : vector<1x64xf32> to vector<64x64xf32>
    %56 = arith.mulf %53, %55 : vector<64x64xf32>
    %c0_28 = arith.constant 0 : index
    %c0_29 = arith.constant 0 : index
    %57 = vector.load %arg13[%c0_28, %c0_29] : memref<1x64xf32, #tpu.memory_space<vmem>>, vector<1x64xf32>
    %58 = vector.broadcast %57 : vector<1x64xf32> to vector<64x64xf32>
    %59 = arith.addf %56, %58 : vector<64x64xf32>
    %cst_30 = arith.constant 0.000000e+00 : f32
    %60 = vector.broadcast %cst_30 : f32 to vector<64x64xf32>
    %61 = arith.maximumf %59, %60 : vector<64x64xf32>
    %c0_31 = arith.constant 0 : index
    %c0_32 = arith.constant 0 : index
    %62 = vector.load %arg14[%c0_31, %c0_32] : memref<64x64xf32, #tpu.memory_space<vmem>>, vector<64x64xf32>
    tpu.vector_store %arg14[%c0_31, %c0_32], %61 {strides = array<i32>} : memref<64x64xf32, #tpu.memory_space<vmem>>, vector<64x64xf32>,
    return
  }
  func.func @transform_0(%arg0: i32) -> (i32, i32) {
    %c0_i32 = arith.constant 0 : i32
    %c0_i32_0 = arith.constant 0 : i32
    %c0_i32_1 = arith.constant 0 : i32
    return %c0_i32, %c0_i32_0 : i32, i32
  }
  func.func @transform_1(%arg0: i32) -> (i32, i32) {
    %c0_i32 = arith.constant 0 : i32
    %c0_i32_0 = arith.constant 0 : i32
    %c0_i32_1 = arith.constant 0 : i32
    return %c0_i32, %c0_i32_0 : i32, i32
  }
  func.func @transform_2(%arg0: i32) -> (i32, i32) {
    %c0_i32 = arith.constant 0 : i32
    %c0_i32_0 = arith.constant 0 : i32
    %c0_i32_1 = arith.constant 0 : i32
    return %c0_i32, %c0_i32_0 : i32, i32
  }
  func.func @transform_3(%arg0: i32) -> (i32, i32) {
    %c0_i32 = arith.constant 0 : i32
    %c0_i32_0 = arith.constant 0 : i32
    %c0_i32_1 = arith.constant 0 : i32
    return %c0_i32, %c0_i32_0 : i32, i32
  }
  func.func @transform_4(%arg0: i32) -> (i32, i32) {
    %c0_i32 = arith.constant 0 : i32
    %c0_i32_0 = arith.constant 0 : i32
    %c0_i32_1 = arith.constant 0 : i32
    return %c0_i32, %c0_i32_0 : i32, i32
  }
  func.func @transform_5(%arg0: i32) -> (i32, i32) {
    %c0_i32 = arith.constant 0 : i32
    %c0_i32_0 = arith.constant 0 : i32
    %c0_i32_1 = arith.constant 0 : i32
    return %c0_i32, %c0_i32_0 : i32, i32
  }
  func.func @transform_6(%arg0: i32) -> (i32, i32) {
    %c0_i32 = arith.constant 0 : i32
    %c0_i32_0 = arith.constant 0 : i32
    %c0_i32_1 = arith.constant 0 : i32
    return %c0_i32, %c0_i32_0 : i32, i32
  }
  func.func @transform_7(%arg0: i32) -> (i32, i32) {
    %c0_i32 = arith.constant 0 : i32
    %c0_i32_0 = arith.constant 0 : i32
    %c0_i32_1 = arith.constant 0 : i32
    return %c0_i32, %c0_i32_0 : i32, i32
  }
  func.func @transform_8(%arg0: i32) -> (i32, i32) {
    %c0_i32 = arith.constant 0 : i32
    %c0_i32_0 = arith.constant 0 : i32
    %c0_i32_1 = arith.constant 0 : i32
    return %c0_i32, %c0_i32_0 : i32, i32
  }
  func.func @transform_9(%arg0: i32) -> (i32, i32) {
    %c0_i32 = arith.constant 0 : i32
    %c0_i32_0 = arith.constant 0 : i32
    %c0_i32_1 = arith.constant 0 : i32
    return %c0_i32, %c0_i32_0 : i32, i32
  }
  func.func @transform_10(%arg0: i32) -> (i32, i32) {
    %c0_i32 = arith.constant 0 : i32
    %c0_i32_0 = arith.constant 0 : i32
    %c0_i32_1 = arith.constant 0 : i32
    return %c0_i32, %c0_i32_0 : i32, i32
  }
  func.func @transform_11(%arg0: i32) -> (i32, i32) {
    %c0_i32 = arith.constant 0 : i32
    %c0_i32_0 = arith.constant 0 : i32
    %c0_i32_1 = arith.constant 0 : i32
    return %c0_i32, %c0_i32_0 : i32, i32
  }
  func.func @transform_12(%arg0: i32) -> (i32, i32) {
    %c0_i32 = arith.constant 0 : i32
    %c0_i32_0 = arith.constant 0 : i32
    %c0_i32_1 = arith.constant 0 : i32
    return %c0_i32, %c0_i32_0 : i32, i32
  }
  func.func @transform_13(%arg0: i32) -> (i32, i32) {
    %c0_i32 = arith.constant 0 : i32
    %c0_i32_0 = arith.constant 0 : i32
    %c0_i32_1 = arith.constant 0 : i32
    return %c0_i32, %c0_i32_0 : i32, i32
  }
}

module attributes {stable_mosaic.version = 11 : i64} {
  func.func @_mlp2_kernel(%arg0: i32, %arg1: memref<16x256xf32, #tpu.memory_space<vmem>>, %arg2: memref<256x128xf32, #tpu.memory_space<vmem>>, %arg3: memref<1x128xf32, #tpu.memory_space<vmem>>, %arg4: memref<128x64xf32, #tpu.memory_space<vmem>>, %arg5: memref<1x64xf32, #tpu.memory_space<vmem>>, %arg6: memref<16x64xf32, #tpu.memory_space<vmem>>) attributes {dimension_semantics = [#tpu.dimension_semantics<arbitrary>], iteration_bounds = array<i64: 1>, scalar_prefetch = 0 : i64, scratch_operands = 0 : i64, tpu.core_type = #tpu.core_type<tc>, window_params = [{pipeline_mode = #tpu.pipeline_mode<synchronous>, transform_indices = @transform_0, window_bounds = array<i64: 16, 256>}, {pipeline_mode = #tpu.pipeline_mode<synchronous>, transform_indices = @transform_1, window_bounds = array<i64: 256, 128>}, {pipeline_mode = #tpu.pipeline_mode<synchronous>, transform_indices = @transform_2, window_bounds = array<i64: 1, 128>}, {pipeline_mode = #tpu.pipeline_mode<synchronous>, transform_indices = @transform_3, window_bounds = array<i64: 128, 64>}, {pipeline_mode = #tpu.pipeline_mode<synchronous>, transform_indices = @transform_4, window_bounds = array<i64: 1, 64>}, {pipeline_mode = #tpu.pipeline_mode<synchronous>, transform_indices = @transform_5, window_bounds = array<i64: 16, 64>}]} {
    %c0 = arith.constant 0 : index
    %c0_0 = arith.constant 0 : index
    %0 = vector.load %arg1[%c0, %c0_0] : memref<16x256xf32, #tpu.memory_space<vmem>>, vector<16x256xf32>
    %c0_1 = arith.constant 0 : index
    %c0_2 = arith.constant 0 : index
    %1 = vector.load %arg2[%c0_1, %c0_2] : memref<256x128xf32, #tpu.memory_space<vmem>>, vector<256x128xf32>
    %cst = arith.constant dense<0.000000e+00> : vector<16x128xf32>
    %2 = tpu.matmul %0, %1, %cst {dimension_numbers = #tpu.dot_dimension_numbers<[1], [0], [0], [1], [0, 0, 1, 1], [], []>} : vector<16x256xf32>, vector<256x128xf32>, vector<16x128xf32> -> vector<16x128xf32>
    %c0_3 = arith.constant 0 : index
    %c0_4 = arith.constant 0 : index
    %3 = vector.load %arg3[%c0_3, %c0_4] : memref<1x128xf32, #tpu.memory_space<vmem>>, vector<1x128xf32>
    %4 = vector.broadcast %3 : vector<1x128xf32> to vector<16x128xf32>
    %5 = arith.addf %2, %4 : vector<16x128xf32>
    %cst_5 = arith.constant 0.000000e+00 : f32
    %6 = vector.broadcast %cst_5 : f32 to vector<16x128xf32>
    %7 = arith.maximumf %5, %6 : vector<16x128xf32>
    %c0_6 = arith.constant 0 : index
    %c0_7 = arith.constant 0 : index
    %8 = vector.load %arg4[%c0_6, %c0_7] : memref<128x64xf32, #tpu.memory_space<vmem>>, vector<128x64xf32>
    %cst_8 = arith.constant dense<0.000000e+00> : vector<16x64xf32>
    %9 = tpu.matmul %7, %8, %cst_8 {dimension_numbers = #tpu.dot_dimension_numbers<[1], [0], [0], [1], [0, 0, 1, 1], [], []>} : vector<16x128xf32>, vector<128x64xf32>, vector<16x64xf32> -> vector<16x64xf32>
    %c0_9 = arith.constant 0 : index
    %c0_10 = arith.constant 0 : index
    %10 = vector.load %arg5[%c0_9, %c0_10] : memref<1x64xf32, #tpu.memory_space<vmem>>, vector<1x64xf32>
    %11 = vector.broadcast %10 : vector<1x64xf32> to vector<16x64xf32>
    %12 = arith.addf %9, %11 : vector<16x64xf32>
    %c0_11 = arith.constant 0 : index
    %c0_12 = arith.constant 0 : index
    %13 = vector.load %arg6[%c0_11, %c0_12] : memref<16x64xf32, #tpu.memory_space<vmem>>, vector<16x64xf32>
    tpu.vector_store %arg6[%c0_11, %c0_12], %12 {strides = array<i32>} : memref<16x64xf32, #tpu.memory_space<vmem>>, vector<16x64xf32>,
    return
  }
  func.func @transform_0(%arg0: i32) -> (i32, i32) {
    %c0_i32 = arith.constant 0 : i32
    %c0_i32_0 = arith.constant 0 : i32
    %c0_i32_1 = arith.constant 0 : i32
    return %c0_i32, %c0_i32_0 : i32, i32
  }
  func.func @transform_1(%arg0: i32) -> (i32, i32) {
    %c0_i32 = arith.constant 0 : i32
    %c0_i32_0 = arith.constant 0 : i32
    %c0_i32_1 = arith.constant 0 : i32
    return %c0_i32, %c0_i32_0 : i32, i32
  }
  func.func @transform_2(%arg0: i32) -> (i32, i32) {
    %c0_i32 = arith.constant 0 : i32
    %c0_i32_0 = arith.constant 0 : i32
    %c0_i32_1 = arith.constant 0 : i32
    return %c0_i32, %c0_i32_0 : i32, i32
  }
  func.func @transform_3(%arg0: i32) -> (i32, i32) {
    %c0_i32 = arith.constant 0 : i32
    %c0_i32_0 = arith.constant 0 : i32
    %c0_i32_1 = arith.constant 0 : i32
    return %c0_i32, %c0_i32_0 : i32, i32
  }
  func.func @transform_4(%arg0: i32) -> (i32, i32) {
    %c0_i32 = arith.constant 0 : i32
    %c0_i32_0 = arith.constant 0 : i32
    %c0_i32_1 = arith.constant 0 : i32
    return %c0_i32, %c0_i32_0 : i32, i32
  }
  func.func @transform_5(%arg0: i32) -> (i32, i32) {
    %c0_i32 = arith.constant 0 : i32
    %c0_i32_0 = arith.constant 0 : i32
    %c0_i32_1 = arith.constant 0 : i32
    return %c0_i32, %c0_i32_0 : i32, i32
  }
}

module attributes {stable_mosaic.version = 11 : i64} {
  func.func @_encoder_stack_kernel(%arg0: i32, %arg1: i32, %arg2: memref<32x64xf32, #tpu.memory_space<vmem>>, %arg3: memref<32x32xf32, #tpu.memory_space<vmem>>, %arg4: memref<1x64x192xf32, #tpu.memory_space<vmem>>, %arg5: memref<1x1x192xf32, #tpu.memory_space<vmem>>, %arg6: memref<1x64x64xf32, #tpu.memory_space<vmem>>, %arg7: memref<1x1x64xf32, #tpu.memory_space<vmem>>, %arg8: memref<1x1x64xf32, #tpu.memory_space<vmem>>, %arg9: memref<1x1x64xf32, #tpu.memory_space<vmem>>, %arg10: memref<1x64x64xf32, #tpu.memory_space<vmem>>, %arg11: memref<1x1x64xf32, #tpu.memory_space<vmem>>, %arg12: memref<1x64x64xf32, #tpu.memory_space<vmem>>, %arg13: memref<1x1x64xf32, #tpu.memory_space<vmem>>, %arg14: memref<1x1x64xf32, #tpu.memory_space<vmem>>, %arg15: memref<1x1x64xf32, #tpu.memory_space<vmem>>, %arg16: memref<32x64xf32, #tpu.memory_space<vmem>>, %arg17: memref<32x64xf32, #tpu.memory_space<vmem>>) attributes {dimension_semantics = [#tpu.dimension_semantics<parallel>, #tpu.dimension_semantics<arbitrary>], iteration_bounds = array<i64: 2, 6>, scalar_prefetch = 0 : i64, scratch_operands = 1 : i64, tpu.core_type = #tpu.core_type<tc>, window_params = [{transform_indices = @transform_0, window_bounds = array<i64: 32, 64>}, {pipeline_mode = #tpu.pipeline_mode<synchronous>, transform_indices = @transform_1, window_bounds = array<i64: 32, 32>}, {transform_indices = @transform_2, window_bounds = array<i64: 1, 64, 192>}, {transform_indices = @transform_3, window_bounds = array<i64: 1, 1, 192>}, {transform_indices = @transform_4, window_bounds = array<i64: 1, 64, 64>}, {transform_indices = @transform_5, window_bounds = array<i64: 1, 1, 64>}, {transform_indices = @transform_6, window_bounds = array<i64: 1, 1, 64>}, {transform_indices = @transform_7, window_bounds = array<i64: 1, 1, 64>}, {transform_indices = @transform_8, window_bounds = array<i64: 1, 64, 64>}, {transform_indices = @transform_9, window_bounds = array<i64: 1, 1, 64>}, {transform_indices = @transform_10, window_bounds = array<i64: 1, 64, 64>}, {transform_indices = @transform_11, window_bounds = array<i64: 1, 1, 64>}, {transform_indices = @transform_12, window_bounds = array<i64: 1, 1, 64>}, {transform_indices = @transform_13, window_bounds = array<i64: 1, 1, 64>}, {transform_indices = @transform_14, window_bounds = array<i64: 32, 64>}]} {
    %c0_i32 = arith.constant 0 : i32
    %0 = arith.cmpi eq, %arg1, %c0_i32 : i32
    %1 = arith.extui %0 : i1 to i32
    %c0_i32_0 = arith.constant 0 : i32
    %2 = arith.cmpi ne, %1, %c0_i32_0 : i32
    scf.if %2 {
      %c0_107 = arith.constant 0 : index
      %c0_108 = arith.constant 0 : index
      %247 = vector.load %arg2[%c0_107, %c0_108] : memref<32x64xf32, #tpu.memory_space<vmem>>, vector<32x64xf32>
      %c0_109 = arith.constant 0 : index
      %c0_110 = arith.constant 0 : index
      %248 = vector.load %arg16[%c0_109, %c0_110] : memref<32x64xf32, #tpu.memory_space<vmem>>, vector<32x64xf32>
      tpu.vector_store %arg16[%c0_109, %c0_110], %247 {strides = array<i32>} : memref<32x64xf32, #tpu.memory_space<vmem>>, vector<32x64xf32>,
    } else {
    }
    %c0 = arith.constant 0 : index
    %c0_1 = arith.constant 0 : index
    %3 = vector.load %arg16[%c0, %c0_1] : memref<32x64xf32, #tpu.memory_space<vmem>>, vector<32x64xf32>
    %c0_2 = arith.constant 0 : index
    %c0_3 = arith.constant 0 : index
    %c0_4 = arith.constant 0 : index
    %4 = vector.load %arg4[%c0_2, %c0_3, %c0_4] : memref<1x64x192xf32, #tpu.memory_space<vmem>>, vector<1x64x192xf32>
    %5 = vector.shape_cast %4 : vector<1x64x192xf32> to vector<64x192xf32>
    %cst = arith.constant dense<0.000000e+00> : vector<32x192xf32>
    %6 = tpu.matmul %3, %5, %cst {dimension_numbers = #tpu.dot_dimension_numbers<[1], [0], [0], [1], [0, 0, 1, 1], [], []>} : vector<32x64xf32>, vector<64x192xf32>, vector<32x192xf32> -> vector<32x192xf32>
    %c0_5 = arith.constant 0 : index
    %c0_6 = arith.constant 0 : index
    %c0_7 = arith.constant 0 : index
    %7 = vector.load %arg5[%c0_5, %c0_6, %c0_7] : memref<1x1x192xf32, #tpu.memory_space<vmem>>, vector<1x1x192xf32>
    %8 = vector.shape_cast %7 : vector<1x1x192xf32> to vector<1x192xf32>
    %9 = vector.broadcast %8 : vector<1x192xf32> to vector<32x192xf32>
    %10 = arith.addf %6, %9 : vector<32x192xf32>
    %c0_8 = arith.constant 0 : index
    %c0_9 = arith.constant 0 : index
    %11 = vector.load %arg3[%c0_8, %c0_9] : memref<32x32xf32, #tpu.memory_space<vmem>>, vector<32x32xf32>
    %12 = vector.extract_strided_slice %10 {offsets = [0, 0], sizes = [32, 8], strides = [1, 1]} : vector<32x192xf32> to vector<32x8xf32>
    %13 = vector.extract_strided_slice %10 {offsets = [0, 64], sizes = [32, 8], strides = [1, 1]} : vector<32x192xf32> to vector<32x8xf32>
    %14 = vector.extract_strided_slice %10 {offsets = [0, 128], sizes = [32, 8], strides = [1, 1]} : vector<32x192xf32> to vector<32x8xf32>
    %15 = tpu.transpose %13, [1, 0] : vector<32x8xf32> -> vector<8x32xf32>
    %cst_10 = arith.constant dense<0.000000e+00> : vector<32x32xf32>
    %16 = tpu.matmul %12, %15, %cst_10 {dimension_numbers = #tpu.dot_dimension_numbers<[1], [0], [0], [1], [0, 0, 1, 1], [], []>} : vector<32x8xf32>, vector<8x32xf32>, vector<32x32xf32> -> vector<32x32xf32>
    %cst_11 = arith.constant 0.353553385 : f32
    %17 = vector.broadcast %cst_11 : f32 to vector<32x32xf32>
    %18 = arith.mulf %16, %17 : vector<32x32xf32>
    %19 = arith.addf %18, %11 : vector<32x32xf32>
    %cst_12 = arith.constant dense<0xFF800000> : vector<32xf32>
    %20 = vector.multi_reduction <maximumf>, %19, %cst_12 [1] : vector<32x32xf32> to vector<32xf32>
    %21 = vector.shape_cast %20 : vector<32xf32> to vector<32x1xf32>
    %22 = vector.broadcast %21 : vector<32x1xf32> to vector<32x32xf32>
    %23 = arith.subf %19, %22 : vector<32x32xf32>
    %24 = math.exp %23 : vector<32x32xf32>
    %cst_13 = arith.constant dense<0.000000e+00> : vector<32xf32>
    %25 = vector.multi_reduction <add>, %24, %cst_13 [1] : vector<32x32xf32> to vector<32xf32>
    %26 = vector.shape_cast %25 : vector<32xf32> to vector<32x1xf32>
    %27 = tpu.reciprocal %26 {approx = true} : vector<32x1xf32> -> vector<32x1xf32>
    %28 = vector.broadcast %27 : vector<32x1xf32> to vector<32x32xf32>
    %29 = arith.mulf %24, %28 : vector<32x32xf32>
    %cst_14 = arith.constant dense<0.000000e+00> : vector<32x8xf32>
    %30 = tpu.matmul %29, %14, %cst_14 {dimension_numbers = #tpu.dot_dimension_numbers<[1], [0], [0], [1], [0, 0, 1, 1], [], []>} : vector<32x32xf32>, vector<32x8xf32>, vector<32x8xf32> -> vector<32x8xf32>
    %c0_15 = arith.constant 0 : index
    %c0_16 = arith.constant 0 : index
    %31 = vector.load %arg17[%c0_15, %c0_16] : memref<32x64xf32, #tpu.memory_space<vmem>>, vector<32x8xf32>
    tpu.vector_store %arg17[%c0_15, %c0_16], %30 {strides = array<i32>} : memref<32x64xf32, #tpu.memory_space<vmem>>, vector<32x8xf32>,
    %32 = vector.extract_strided_slice %10 {offsets = [0, 8], sizes = [32, 8], strides = [1, 1]} : vector<32x192xf32> to vector<32x8xf32>
    %33 = vector.extract_strided_slice %10 {offsets = [0, 72], sizes = [32, 8], strides = [1, 1]} : vector<32x192xf32> to vector<32x8xf32>
    %34 = vector.extract_strided_slice %10 {offsets = [0, 136], sizes = [32, 8], strides = [1, 1]} : vector<32x192xf32> to vector<32x8xf32>
    %35 = tpu.transpose %33, [1, 0] : vector<32x8xf32> -> vector<8x32xf32>
    %cst_17 = arith.constant dense<0.000000e+00> : vector<32x32xf32>
    %36 = tpu.matmul %32, %35, %cst_17 {dimension_numbers = #tpu.dot_dimension_numbers<[1], [0], [0], [1], [0, 0, 1, 1], [], []>} : vector<32x8xf32>, vector<8x32xf32>, vector<32x32xf32> -> vector<32x32xf32>
    %cst_18 = arith.constant 0.353553385 : f32
    %37 = vector.broadcast %cst_18 : f32 to vector<32x32xf32>
    %38 = arith.mulf %36, %37 : vector<32x32xf32>
    %39 = arith.addf %38, %11 : vector<32x32xf32>
    %cst_19 = arith.constant dense<0xFF800000> : vector<32xf32>
    %40 = vector.multi_reduction <maximumf>, %39, %cst_19 [1] : vector<32x32xf32> to vector<32xf32>
    %41 = vector.shape_cast %40 : vector<32xf32> to vector<32x1xf32>
    %42 = vector.broadcast %41 : vector<32x1xf32> to vector<32x32xf32>
    %43 = arith.subf %39, %42 : vector<32x32xf32>
    %44 = math.exp %43 : vector<32x32xf32>
    %cst_20 = arith.constant dense<0.000000e+00> : vector<32xf32>
    %45 = vector.multi_reduction <add>, %44, %cst_20 [1] : vector<32x32xf32> to vector<32xf32>
    %46 = vector.shape_cast %45 : vector<32xf32> to vector<32x1xf32>
    %47 = tpu.reciprocal %46 {approx = true} : vector<32x1xf32> -> vector<32x1xf32>
    %48 = vector.broadcast %47 : vector<32x1xf32> to vector<32x32xf32>
    %49 = arith.mulf %44, %48 : vector<32x32xf32>
    %cst_21 = arith.constant dense<0.000000e+00> : vector<32x8xf32>
    %50 = tpu.matmul %49, %34, %cst_21 {dimension_numbers = #tpu.dot_dimension_numbers<[1], [0], [0], [1], [0, 0, 1, 1], [], []>} : vector<32x32xf32>, vector<32x8xf32>, vector<32x8xf32> -> vector<32x8xf32>
    %c0_22 = arith.constant 0 : index
    %c8 = arith.constant 8 : index
    %51 = vector.load %arg17[%c0_22, %c8] : memref<32x64xf32, #tpu.memory_space<vmem>>, vector<32x8xf32>
    tpu.vector_store %arg17[%c0_22, %c8], %50 {strides = array<i32>} : memref<32x64xf32, #tpu.memory_space<vmem>>, vector<32x8xf32>,
    %52 = vector.extract_strided_slice %10 {offsets = [0, 16], sizes = [32, 8], strides = [1, 1]} : vector<32x192xf32> to vector<32x8xf32>
    %53 = vector.extract_strided_slice %10 {offsets = [0, 80], sizes = [32, 8], strides = [1, 1]} : vector<32x192xf32> to vector<32x8xf32>
    %54 = vector.extract_strided_slice %10 {offsets = [0, 144], sizes = [32, 8], strides = [1, 1]} : vector<32x192xf32> to vector<32x8xf32>
    %55 = tpu.transpose %53, [1, 0] : vector<32x8xf32> -> vector<8x32xf32>
    %cst_23 = arith.constant dense<0.000000e+00> : vector<32x32xf32>
    %56 = tpu.matmul %52, %55, %cst_23 {dimension_numbers = #tpu.dot_dimension_numbers<[1], [0], [0], [1], [0, 0, 1, 1], [], []>} : vector<32x8xf32>, vector<8x32xf32>, vector<32x32xf32> -> vector<32x32xf32>
    %cst_24 = arith.constant 0.353553385 : f32
    %57 = vector.broadcast %cst_24 : f32 to vector<32x32xf32>
    %58 = arith.mulf %56, %57 : vector<32x32xf32>
    %59 = arith.addf %58, %11 : vector<32x32xf32>
    %cst_25 = arith.constant dense<0xFF800000> : vector<32xf32>
    %60 = vector.multi_reduction <maximumf>, %59, %cst_25 [1] : vector<32x32xf32> to vector<32xf32>
    %61 = vector.shape_cast %60 : vector<32xf32> to vector<32x1xf32>
    %62 = vector.broadcast %61 : vector<32x1xf32> to vector<32x32xf32>
    %63 = arith.subf %59, %62 : vector<32x32xf32>
    %64 = math.exp %63 : vector<32x32xf32>
    %cst_26 = arith.constant dense<0.000000e+00> : vector<32xf32>
    %65 = vector.multi_reduction <add>, %64, %cst_26 [1] : vector<32x32xf32> to vector<32xf32>
    %66 = vector.shape_cast %65 : vector<32xf32> to vector<32x1xf32>
    %67 = tpu.reciprocal %66 {approx = true} : vector<32x1xf32> -> vector<32x1xf32>
    %68 = vector.broadcast %67 : vector<32x1xf32> to vector<32x32xf32>
    %69 = arith.mulf %64, %68 : vector<32x32xf32>
    %cst_27 = arith.constant dense<0.000000e+00> : vector<32x8xf32>
    %70 = tpu.matmul %69, %54, %cst_27 {dimension_numbers = #tpu.dot_dimension_numbers<[1], [0], [0], [1], [0, 0, 1, 1], [], []>} : vector<32x32xf32>, vector<32x8xf32>, vector<32x8xf32> -> vector<32x8xf32>
    %c0_28 = arith.constant 0 : index
    %c16 = arith.constant 16 : index
    %71 = vector.load %arg17[%c0_28, %c16] : memref<32x64xf32, #tpu.memory_space<vmem>>, vector<32x8xf32>
    tpu.vector_store %arg17[%c0_28, %c16], %70 {strides = array<i32>} : memref<32x64xf32, #tpu.memory_space<vmem>>, vector<32x8xf32>,
    %72 = vector.extract_strided_slice %10 {offsets = [0, 24], sizes = [32, 8], strides = [1, 1]} : vector<32x192xf32> to vector<32x8xf32>
    %73 = vector.extract_strided_slice %10 {offsets = [0, 88], sizes = [32, 8], strides = [1, 1]} : vector<32x192xf32> to vector<32x8xf32>
    %74 = vector.extract_strided_slice %10 {offsets = [0, 152], sizes = [32, 8], strides = [1, 1]} : vector<32x192xf32> to vector<32x8xf32>
    %75 = tpu.transpose %73, [1, 0] : vector<32x8xf32> -> vector<8x32xf32>
    %cst_29 = arith.constant dense<0.000000e+00> : vector<32x32xf32>
    %76 = tpu.matmul %72, %75, %cst_29 {dimension_numbers = #tpu.dot_dimension_numbers<[1], [0], [0], [1], [0, 0, 1, 1], [], []>} : vector<32x8xf32>, vector<8x32xf32>, vector<32x32xf32> -> vector<32x32xf32>
    %cst_30 = arith.constant 0.353553385 : f32
    %77 = vector.broadcast %cst_30 : f32 to vector<32x32xf32>
    %78 = arith.mulf %76, %77 : vector<32x32xf32>
    %79 = arith.addf %78, %11 : vector<32x32xf32>
    %cst_31 = arith.constant dense<0xFF800000> : vector<32xf32>
    %80 = vector.multi_reduction <maximumf>, %79, %cst_31 [1] : vector<32x32xf32> to vector<32xf32>
    %81 = vector.shape_cast %80 : vector<32xf32> to vector<32x1xf32>
    %82 = vector.broadcast %81 : vector<32x1xf32> to vector<32x32xf32>
    %83 = arith.subf %79, %82 : vector<32x32xf32>
    %84 = math.exp %83 : vector<32x32xf32>
    %cst_32 = arith.constant dense<0.000000e+00> : vector<32xf32>
    %85 = vector.multi_reduction <add>, %84, %cst_32 [1] : vector<32x32xf32> to vector<32xf32>
    %86 = vector.shape_cast %85 : vector<32xf32> to vector<32x1xf32>
    %87 = tpu.reciprocal %86 {approx = true} : vector<32x1xf32> -> vector<32x1xf32>
    %88 = vector.broadcast %87 : vector<32x1xf32> to vector<32x32xf32>
    %89 = arith.mulf %84, %88 : vector<32x32xf32>
    %cst_33 = arith.constant dense<0.000000e+00> : vector<32x8xf32>
    %90 = tpu.matmul %89, %74, %cst_33 {dimension_numbers = #tpu.dot_dimension_numbers<[1], [0], [0], [1], [0, 0, 1, 1], [], []>} : vector<32x32xf32>, vector<32x8xf32>, vector<32x8xf32> -> vector<32x8xf32>
    %c0_34 = arith.constant 0 : index
    %c24 = arith.constant 24 : index
    %91 = vector.load %arg17[%c0_34, %c24] : memref<32x64xf32, #tpu.memory_space<vmem>>, vector<32x8xf32>
    tpu.vector_store %arg17[%c0_34, %c24], %90 {strides = array<i32>} : memref<32x64xf32, #tpu.memory_space<vmem>>, vector<32x8xf32>,
    %92 = vector.extract_strided_slice %10 {offsets = [0, 32], sizes = [32, 8], strides = [1, 1]} : vector<32x192xf32> to vector<32x8xf32>
    %93 = vector.extract_strided_slice %10 {offsets = [0, 96], sizes = [32, 8], strides = [1, 1]} : vector<32x192xf32> to vector<32x8xf32>
    %94 = vector.extract_strided_slice %10 {offsets = [0, 160], sizes = [32, 8], strides = [1, 1]} : vector<32x192xf32> to vector<32x8xf32>
    %95 = tpu.transpose %93, [1, 0] : vector<32x8xf32> -> vector<8x32xf32>
    %cst_35 = arith.constant dense<0.000000e+00> : vector<32x32xf32>
    %96 = tpu.matmul %92, %95, %cst_35 {dimension_numbers = #tpu.dot_dimension_numbers<[1], [0], [0], [1], [0, 0, 1, 1], [], []>} : vector<32x8xf32>, vector<8x32xf32>, vector<32x32xf32> -> vector<32x32xf32>
    %cst_36 = arith.constant 0.353553385 : f32
    %97 = vector.broadcast %cst_36 : f32 to vector<32x32xf32>
    %98 = arith.mulf %96, %97 : vector<32x32xf32>
    %99 = arith.addf %98, %11 : vector<32x32xf32>
    %cst_37 = arith.constant dense<0xFF800000> : vector<32xf32>
    %100 = vector.multi_reduction <maximumf>, %99, %cst_37 [1] : vector<32x32xf32> to vector<32xf32>
    %101 = vector.shape_cast %100 : vector<32xf32> to vector<32x1xf32>
    %102 = vector.broadcast %101 : vector<32x1xf32> to vector<32x32xf32>
    %103 = arith.subf %99, %102 : vector<32x32xf32>
    %104 = math.exp %103 : vector<32x32xf32>
    %cst_38 = arith.constant dense<0.000000e+00> : vector<32xf32>
    %105 = vector.multi_reduction <add>, %104, %cst_38 [1] : vector<32x32xf32> to vector<32xf32>
    %106 = vector.shape_cast %105 : vector<32xf32> to vector<32x1xf32>
    %107 = tpu.reciprocal %106 {approx = true} : vector<32x1xf32> -> vector<32x1xf32>
    %108 = vector.broadcast %107 : vector<32x1xf32> to vector<32x32xf32>
    %109 = arith.mulf %104, %108 : vector<32x32xf32>
    %cst_39 = arith.constant dense<0.000000e+00> : vector<32x8xf32>
    %110 = tpu.matmul %109, %94, %cst_39 {dimension_numbers = #tpu.dot_dimension_numbers<[1], [0], [0], [1], [0, 0, 1, 1], [], []>} : vector<32x32xf32>, vector<32x8xf32>, vector<32x8xf32> -> vector<32x8xf32>
    %c0_40 = arith.constant 0 : index
    %c32 = arith.constant 32 : index
    %111 = vector.load %arg17[%c0_40, %c32] : memref<32x64xf32, #tpu.memory_space<vmem>>, vector<32x8xf32>
    tpu.vector_store %arg17[%c0_40, %c32], %110 {strides = array<i32>} : memref<32x64xf32, #tpu.memory_space<vmem>>, vector<32x8xf32>,
    %112 = vector.extract_strided_slice %10 {offsets = [0, 40], sizes = [32, 8], strides = [1, 1]} : vector<32x192xf32> to vector<32x8xf32>
    %113 = vector.extract_strided_slice %10 {offsets = [0, 104], sizes = [32, 8], strides = [1, 1]} : vector<32x192xf32> to vector<32x8xf32>
    %114 = vector.extract_strided_slice %10 {offsets = [0, 168], sizes = [32, 8], strides = [1, 1]} : vector<32x192xf32> to vector<32x8xf32>
    %115 = tpu.transpose %113, [1, 0] : vector<32x8xf32> -> vector<8x32xf32>
    %cst_41 = arith.constant dense<0.000000e+00> : vector<32x32xf32>
    %116 = tpu.matmul %112, %115, %cst_41 {dimension_numbers = #tpu.dot_dimension_numbers<[1], [0], [0], [1], [0, 0, 1, 1], [], []>} : vector<32x8xf32>, vector<8x32xf32>, vector<32x32xf32> -> vector<32x32xf32>
    %cst_42 = arith.constant 0.353553385 : f32
    %117 = vector.broadcast %cst_42 : f32 to vector<32x32xf32>
    %118 = arith.mulf %116, %117 : vector<32x32xf32>
    %119 = arith.addf %118, %11 : vector<32x32xf32>
    %cst_43 = arith.constant dense<0xFF800000> : vector<32xf32>
    %120 = vector.multi_reduction <maximumf>, %119, %cst_43 [1] : vector<32x32xf32> to vector<32xf32>
    %121 = vector.shape_cast %120 : vector<32xf32> to vector<32x1xf32>
    %122 = vector.broadcast %121 : vector<32x1xf32> to vector<32x32xf32>
    %123 = arith.subf %119, %122 : vector<32x32xf32>
    %124 = math.exp %123 : vector<32x32xf32>
    %cst_44 = arith.constant dense<0.000000e+00> : vector<32xf32>
    %125 = vector.multi_reduction <add>, %124, %cst_44 [1] : vector<32x32xf32> to vector<32xf32>
    %126 = vector.shape_cast %125 : vector<32xf32> to vector<32x1xf32>
    %127 = tpu.reciprocal %126 {approx = true} : vector<32x1xf32> -> vector<32x1xf32>
    %128 = vector.broadcast %127 : vector<32x1xf32> to vector<32x32xf32>
    %129 = arith.mulf %124, %128 : vector<32x32xf32>
    %cst_45 = arith.constant dense<0.000000e+00> : vector<32x8xf32>
    %130 = tpu.matmul %129, %114, %cst_45 {dimension_numbers = #tpu.dot_dimension_numbers<[1], [0], [0], [1], [0, 0, 1, 1], [], []>} : vector<32x32xf32>, vector<32x8xf32>, vector<32x8xf32> -> vector<32x8xf32>
    %c0_46 = arith.constant 0 : index
    %c40 = arith.constant 40 : index
    %131 = vector.load %arg17[%c0_46, %c40] : memref<32x64xf32, #tpu.memory_space<vmem>>, vector<32x8xf32>
    tpu.vector_store %arg17[%c0_46, %c40], %130 {strides = array<i32>} : memref<32x64xf32, #tpu.memory_space<vmem>>, vector<32x8xf32>,
    %132 = vector.extract_strided_slice %10 {offsets = [0, 48], sizes = [32, 8], strides = [1, 1]} : vector<32x192xf32> to vector<32x8xf32>
    %133 = vector.extract_strided_slice %10 {offsets = [0, 112], sizes = [32, 8], strides = [1, 1]} : vector<32x192xf32> to vector<32x8xf32>
    %134 = vector.extract_strided_slice %10 {offsets = [0, 176], sizes = [32, 8], strides = [1, 1]} : vector<32x192xf32> to vector<32x8xf32>
    %135 = tpu.transpose %133, [1, 0] : vector<32x8xf32> -> vector<8x32xf32>
    %cst_47 = arith.constant dense<0.000000e+00> : vector<32x32xf32>
    %136 = tpu.matmul %132, %135, %cst_47 {dimension_numbers = #tpu.dot_dimension_numbers<[1], [0], [0], [1], [0, 0, 1, 1], [], []>} : vector<32x8xf32>, vector<8x32xf32>, vector<32x32xf32> -> vector<32x32xf32>
    %cst_48 = arith.constant 0.353553385 : f32
    %137 = vector.broadcast %cst_48 : f32 to vector<32x32xf32>
    %138 = arith.mulf %136, %137 : vector<32x32xf32>
    %139 = arith.addf %138, %11 : vector<32x32xf32>
    %cst_49 = arith.constant dense<0xFF800000> : vector<32xf32>
    %140 = vector.multi_reduction <maximumf>, %139, %cst_49 [1] : vector<32x32xf32> to vector<32xf32>
    %141 = vector.shape_cast %140 : vector<32xf32> to vector<32x1xf32>
    %142 = vector.broadcast %141 : vector<32x1xf32> to vector<32x32xf32>
    %143 = arith.subf %139, %142 : vector<32x32xf32>
    %144 = math.exp %143 : vector<32x32xf32>
    %cst_50 = arith.constant dense<0.000000e+00> : vector<32xf32>
    %145 = vector.multi_reduction <add>, %144, %cst_50 [1] : vector<32x32xf32> to vector<32xf32>
    %146 = vector.shape_cast %145 : vector<32xf32> to vector<32x1xf32>
    %147 = tpu.reciprocal %146 {approx = true} : vector<32x1xf32> -> vector<32x1xf32>
    %148 = vector.broadcast %147 : vector<32x1xf32> to vector<32x32xf32>
    %149 = arith.mulf %144, %148 : vector<32x32xf32>
    %cst_51 = arith.constant dense<0.000000e+00> : vector<32x8xf32>
    %150 = tpu.matmul %149, %134, %cst_51 {dimension_numbers = #tpu.dot_dimension_numbers<[1], [0], [0], [1], [0, 0, 1, 1], [], []>} : vector<32x32xf32>, vector<32x8xf32>, vector<32x8xf32> -> vector<32x8xf32>
    %c0_52 = arith.constant 0 : index
    %c48 = arith.constant 48 : index
    %151 = vector.load %arg17[%c0_52, %c48] : memref<32x64xf32, #tpu.memory_space<vmem>>, vector<32x8xf32>
    tpu.vector_store %arg17[%c0_52, %c48], %150 {strides = array<i32>} : memref<32x64xf32, #tpu.memory_space<vmem>>, vector<32x8xf32>,
    %152 = vector.extract_strided_slice %10 {offsets = [0, 56], sizes = [32, 8], strides = [1, 1]} : vector<32x192xf32> to vector<32x8xf32>
    %153 = vector.extract_strided_slice %10 {offsets = [0, 120], sizes = [32, 8], strides = [1, 1]} : vector<32x192xf32> to vector<32x8xf32>
    %154 = vector.extract_strided_slice %10 {offsets = [0, 184], sizes = [32, 8], strides = [1, 1]} : vector<32x192xf32> to vector<32x8xf32>
    %155 = tpu.transpose %153, [1, 0] : vector<32x8xf32> -> vector<8x32xf32>
    %cst_53 = arith.constant dense<0.000000e+00> : vector<32x32xf32>
    %156 = tpu.matmul %152, %155, %cst_53 {dimension_numbers = #tpu.dot_dimension_numbers<[1], [0], [0], [1], [0, 0, 1, 1], [], []>} : vector<32x8xf32>, vector<8x32xf32>, vector<32x32xf32> -> vector<32x32xf32>
    %cst_54 = arith.constant 0.353553385 : f32
    %157 = vector.broadcast %cst_54 : f32 to vector<32x32xf32>
    %158 = arith.mulf %156, %157 : vector<32x32xf32>
    %159 = arith.addf %158, %11 : vector<32x32xf32>
    %cst_55 = arith.constant dense<0xFF800000> : vector<32xf32>
    %160 = vector.multi_reduction <maximumf>, %159, %cst_55 [1] : vector<32x32xf32> to vector<32xf32>
    %161 = vector.shape_cast %160 : vector<32xf32> to vector<32x1xf32>
    %162 = vector.broadcast %161 : vector<32x1xf32> to vector<32x32xf32>
    %163 = arith.subf %159, %162 : vector<32x32xf32>
    %164 = math.exp %163 : vector<32x32xf32>
    %cst_56 = arith.constant dense<0.000000e+00> : vector<32xf32>
    %165 = vector.multi_reduction <add>, %164, %cst_56 [1] : vector<32x32xf32> to vector<32xf32>
    %166 = vector.shape_cast %165 : vector<32xf32> to vector<32x1xf32>
    %167 = tpu.reciprocal %166 {approx = true} : vector<32x1xf32> -> vector<32x1xf32>
    %168 = vector.broadcast %167 : vector<32x1xf32> to vector<32x32xf32>
    %169 = arith.mulf %164, %168 : vector<32x32xf32>
    %cst_57 = arith.constant dense<0.000000e+00> : vector<32x8xf32>
    %170 = tpu.matmul %169, %154, %cst_57 {dimension_numbers = #tpu.dot_dimension_numbers<[1], [0], [0], [1], [0, 0, 1, 1], [], []>} : vector<32x32xf32>, vector<32x8xf32>, vector<32x8xf32> -> vector<32x8xf32>
    %c0_58 = arith.constant 0 : index
    %c56 = arith.constant 56 : index
    %171 = vector.load %arg17[%c0_58, %c56] : memref<32x64xf32, #tpu.memory_space<vmem>>, vector<32x8xf32>
    tpu.vector_store %arg17[%c0_58, %c56], %170 {strides = array<i32>} : memref<32x64xf32, #tpu.memory_space<vmem>>, vector<32x8xf32>,
    %c0_59 = arith.constant 0 : index
    %c0_60 = arith.constant 0 : index
    %172 = vector.load %arg17[%c0_59, %c0_60] : memref<32x64xf32, #tpu.memory_space<vmem>>, vector<32x64xf32>
    %c0_61 = arith.constant 0 : index
    %c0_62 = arith.constant 0 : index
    %c0_63 = arith.constant 0 : index
    %173 = vector.load %arg6[%c0_61, %c0_62, %c0_63] : memref<1x64x64xf32, #tpu.memory_space<vmem>>, vector<1x64x64xf32>
    %174 = vector.shape_cast %173 : vector<1x64x64xf32> to vector<64x64xf32>
    %cst_64 = arith.constant dense<0.000000e+00> : vector<32x64xf32>
    %175 = tpu.matmul %172, %174, %cst_64 {dimension_numbers = #tpu.dot_dimension_numbers<[1], [0], [0], [1], [0, 0, 1, 1], [], []>} : vector<32x64xf32>, vector<64x64xf32>, vector<32x64xf32> -> vector<32x64xf32>
    %c0_65 = arith.constant 0 : index
    %c0_66 = arith.constant 0 : index
    %c0_67 = arith.constant 0 : index
    %176 = vector.load %arg7[%c0_65, %c0_66, %c0_67] : memref<1x1x64xf32, #tpu.memory_space<vmem>>, vector<1x1x64xf32>
    %177 = vector.shape_cast %176 : vector<1x1x64xf32> to vector<1x64xf32>
    %178 = vector.broadcast %177 : vector<1x64xf32> to vector<32x64xf32>
    %179 = arith.addf %175, %178 : vector<32x64xf32>
    %180 = arith.addf %179, %3 : vector<32x64xf32>
    %c0_68 = arith.constant 0 : index
    %c0_69 = arith.constant 0 : index
    %c0_70 = arith.constant 0 : index
    %181 = vector.load %arg8[%c0_68, %c0_69, %c0_70] : memref<1x1x64xf32, #tpu.memory_space<vmem>>, vector<1x1x64xf32>
    %182 = vector.shape_cast %181 : vector<1x1x64xf32> to vector<1x64xf32>
    %c0_71 = arith.constant 0 : index
    %c0_72 = arith.constant 0 : index
    %c0_73 = arith.constant 0 : index
    %183 = vector.load %arg9[%c0_71, %c0_72, %c0_73] : memref<1x1x64xf32, #tpu.memory_space<vmem>>, vector<1x1x64xf32>
    %184 = vector.shape_cast %183 : vector<1x1x64xf32> to vector<1x64xf32>
    %cst_74 = arith.constant dense<0.000000e+00> : vector<32xf32>
    %185 = vector.multi_reduction <add>, %180, %cst_74 [1] : vector<32x64xf32> to vector<32xf32>
    %186 = vector.shape_cast %185 : vector<32xf32> to vector<32x1xf32>
    %cst_75 = arith.constant 6.400000e+01 : f32
    %187 = vector.broadcast %cst_75 : f32 to vector<32x1xf32>
    %188 = arith.divf %186, %187 : vector<32x1xf32>
    %189 = vector.broadcast %188 : vector<32x1xf32> to vector<32x64xf32>
    %190 = arith.subf %180, %189 : vector<32x64xf32>
    %191 = arith.mulf %190, %190 : vector<32x64xf32>
    %cst_76 = arith.constant dense<0.000000e+00> : vector<32xf32>
    %192 = vector.multi_reduction <add>, %191, %cst_76 [1] : vector<32x64xf32> to vector<32xf32>
    %193 = vector.shape_cast %192 : vector<32xf32> to vector<32x1xf32>
    %cst_77 = arith.constant 6.400000e+01 : f32
    %194 = vector.broadcast %cst_77 : f32 to vector<32x1xf32>
    %195 = arith.divf %193, %194 : vector<32x1xf32>
    %cst_78 = arith.constant 9.99999974E-6 : f32
    %196 = vector.broadcast %cst_78 : f32 to vector<32x1xf32>
    %197 = arith.addf %195, %196 : vector<32x1xf32>
    %198 = math.rsqrt %197 : vector<32x1xf32>
    %199 = vector.broadcast %198 : vector<32x1xf32> to vector<32x64xf32>
    %200 = arith.mulf %190, %199 : vector<32x64xf32>
    %201 = vector.broadcast %182 : vector<1x64xf32> to vector<32x64xf32>
    %202 = arith.mulf %200, %201 : vector<32x64xf32>
    %203 = vector.broadcast %184 : vector<1x64xf32> to vector<32x64xf32>
    %204 = arith.addf %202, %203 : vector<32x64xf32>
    %c0_79 = arith.constant 0 : index
    %c0_80 = arith.constant 0 : index
    %c0_81 = arith.constant 0 : index
    %205 = vector.load %arg10[%c0_79, %c0_80, %c0_81] : memref<1x64x64xf32, #tpu.memory_space<vmem>>, vector<1x64x64xf32>
    %206 = vector.shape_cast %205 : vector<1x64x64xf32> to vector<64x64xf32>
    %cst_82 = arith.constant dense<0.000000e+00> : vector<32x64xf32>
    %207 = tpu.matmul %204, %206, %cst_82 {dimension_numbers = #tpu.dot_dimension_numbers<[1], [0], [0], [1], [0, 0, 1, 1], [], []>} : vector<32x64xf32>, vector<64x64xf32>, vector<32x64xf32> -> vector<32x64xf32>
    %c0_83 = arith.constant 0 : index
    %c0_84 = arith.constant 0 : index
    %c0_85 = arith.constant 0 : index
    %208 = vector.load %arg11[%c0_83, %c0_84, %c0_85] : memref<1x1x64xf32, #tpu.memory_space<vmem>>, vector<1x1x64xf32>
    %209 = vector.shape_cast %208 : vector<1x1x64xf32> to vector<1x64xf32>
    %210 = vector.broadcast %209 : vector<1x64xf32> to vector<32x64xf32>
    %211 = arith.addf %207, %210 : vector<32x64xf32>
    %cst_86 = arith.constant 0.000000e+00 : f32
    %212 = vector.broadcast %cst_86 : f32 to vector<32x64xf32>
    %213 = arith.maximumf %211, %212 : vector<32x64xf32>
    %c0_87 = arith.constant 0 : index
    %c0_88 = arith.constant 0 : index
    %c0_89 = arith.constant 0 : index
    %214 = vector.load %arg12[%c0_87, %c0_88, %c0_89] : memref<1x64x64xf32, #tpu.memory_space<vmem>>, vector<1x64x64xf32>
    %215 = vector.shape_cast %214 : vector<1x64x64xf32> to vector<64x64xf32>
    %cst_90 = arith.constant dense<0.000000e+00> : vector<32x64xf32>
    %216 = tpu.matmul %213, %215, %cst_90 {dimension_numbers = #tpu.dot_dimension_numbers<[1], [0], [0], [1], [0, 0, 1, 1], [], []>} : vector<32x64xf32>, vector<64x64xf32>, vector<32x64xf32> -> vector<32x64xf32>
    %c0_91 = arith.constant 0 : index
    %c0_92 = arith.constant 0 : index
    %c0_93 = arith.constant 0 : index
    %217 = vector.load %arg13[%c0_91, %c0_92, %c0_93] : memref<1x1x64xf32, #tpu.memory_space<vmem>>, vector<1x1x64xf32>
    %218 = vector.shape_cast %217 : vector<1x1x64xf32> to vector<1x64xf32>
    %219 = vector.broadcast %218 : vector<1x64xf32> to vector<32x64xf32>
    %220 = arith.addf %216, %219 : vector<32x64xf32>
    %221 = arith.addf %220, %204 : vector<32x64xf32>
    %c0_94 = arith.constant 0 : index
    %c0_95 = arith.constant 0 : index
    %c0_96 = arith.constant 0 : index
    %222 = vector.load %arg14[%c0_94, %c0_95, %c0_96] : memref<1x1x64xf32, #tpu.memory_space<vmem>>, vector<1x1x64xf32>
    %223 = vector.shape_cast %222 : vector<1x1x64xf32> to vector<1x64xf32>
    %c0_97 = arith.constant 0 : index
    %c0_98 = arith.constant 0 : index
    %c0_99 = arith.constant 0 : index
    %224 = vector.load %arg15[%c0_97, %c0_98, %c0_99] : memref<1x1x64xf32, #tpu.memory_space<vmem>>, vector<1x1x64xf32>
    %225 = vector.shape_cast %224 : vector<1x1x64xf32> to vector<1x64xf32>
    %cst_100 = arith.constant dense<0.000000e+00> : vector<32xf32>
    %226 = vector.multi_reduction <add>, %221, %cst_100 [1] : vector<32x64xf32> to vector<32xf32>
    %227 = vector.shape_cast %226 : vector<32xf32> to vector<32x1xf32>
    %cst_101 = arith.constant 6.400000e+01 : f32
    %228 = vector.broadcast %cst_101 : f32 to vector<32x1xf32>
    %229 = arith.divf %227, %228 : vector<32x1xf32>
    %230 = vector.broadcast %229 : vector<32x1xf32> to vector<32x64xf32>
    %231 = arith.subf %221, %230 : vector<32x64xf32>
    %232 = arith.mulf %231, %231 : vector<32x64xf32>
    %cst_102 = arith.constant dense<0.000000e+00> : vector<32xf32>
    %233 = vector.multi_reduction <add>, %232, %cst_102 [1] : vector<32x64xf32> to vector<32xf32>
    %234 = vector.shape_cast %233 : vector<32xf32> to vector<32x1xf32>
    %cst_103 = arith.constant 6.400000e+01 : f32
    %235 = vector.broadcast %cst_103 : f32 to vector<32x1xf32>
    %236 = arith.divf %234, %235 : vector<32x1xf32>
    %cst_104 = arith.constant 9.99999974E-6 : f32
    %237 = vector.broadcast %cst_104 : f32 to vector<32x1xf32>
    %238 = arith.addf %236, %237 : vector<32x1xf32>
    %239 = math.rsqrt %238 : vector<32x1xf32>
    %240 = vector.broadcast %239 : vector<32x1xf32> to vector<32x64xf32>
    %241 = arith.mulf %231, %240 : vector<32x64xf32>
    %242 = vector.broadcast %223 : vector<1x64xf32> to vector<32x64xf32>
    %243 = arith.mulf %241, %242 : vector<32x64xf32>
    %244 = vector.broadcast %225 : vector<1x64xf32> to vector<32x64xf32>
    %245 = arith.addf %243, %244 : vector<32x64xf32>
    %c0_105 = arith.constant 0 : index
    %c0_106 = arith.constant 0 : index
    %246 = vector.load %arg16[%c0_105, %c0_106] : memref<32x64xf32, #tpu.memory_space<vmem>>, vector<32x64xf32>
    tpu.vector_store %arg16[%c0_105, %c0_106], %245 {strides = array<i32>} : memref<32x64xf32, #tpu.memory_space<vmem>>, vector<32x64xf32>,
    return
  }
  func.func @transform_0(%arg0: i32, %arg1: i32) -> (i32, i32) {
    %c0_i32 = arith.constant 0 : i32
    %c0_i32_0 = arith.constant 0 : i32
    return %arg0, %c0_i32 : i32, i32
  }
  func.func @transform_1(%arg0: i32, %arg1: i32) -> (i32, i32) {
    %c0_i32 = arith.constant 0 : i32
    %c0_i32_0 = arith.constant 0 : i32
    %c0_i32_1 = arith.constant 0 : i32
    return %c0_i32, %c0_i32_0 : i32, i32
  }
  func.func @transform_2(%arg0: i32, %arg1: i32) -> (i32, i32, i32) {
    %c0_i32 = arith.constant 0 : i32
    %c0_i32_0 = arith.constant 0 : i32
    %c0_i32_1 = arith.constant 0 : i32
    return %arg1, %c0_i32, %c0_i32_0 : i32, i32, i32
  }
  func.func @transform_3(%arg0: i32, %arg1: i32) -> (i32, i32, i32) {
    %c0_i32 = arith.constant 0 : i32
    %c0_i32_0 = arith.constant 0 : i32
    %c0_i32_1 = arith.constant 0 : i32
    return %arg1, %c0_i32, %c0_i32_0 : i32, i32, i32
  }
  func.func @transform_4(%arg0: i32, %arg1: i32) -> (i32, i32, i32) {
    %c0_i32 = arith.constant 0 : i32
    %c0_i32_0 = arith.constant 0 : i32
    %c0_i32_1 = arith.constant 0 : i32
    return %arg1, %c0_i32, %c0_i32_0 : i32, i32, i32
  }
  func.func @transform_5(%arg0: i32, %arg1: i32) -> (i32, i32, i32) {
    %c0_i32 = arith.constant 0 : i32
    %c0_i32_0 = arith.constant 0 : i32
    %c0_i32_1 = arith.constant 0 : i32
    return %arg1, %c0_i32, %c0_i32_0 : i32, i32, i32
  }
  func.func @transform_6(%arg0: i32, %arg1: i32) -> (i32, i32, i32) {
    %c0_i32 = arith.constant 0 : i32
    %c0_i32_0 = arith.constant 0 : i32
    %c0_i32_1 = arith.constant 0 : i32
    return %arg1, %c0_i32, %c0_i32_0 : i32, i32, i32
  }
  func.func @transform_7(%arg0: i32, %arg1: i32) -> (i32, i32, i32) {
    %c0_i32 = arith.constant 0 : i32
    %c0_i32_0 = arith.constant 0 : i32
    %c0_i32_1 = arith.constant 0 : i32
    return %arg1, %c0_i32, %c0_i32_0 : i32, i32, i32
  }
  func.func @transform_8(%arg0: i32, %arg1: i32) -> (i32, i32, i32) {
    %c0_i32 = arith.constant 0 : i32
    %c0_i32_0 = arith.constant 0 : i32
    %c0_i32_1 = arith.constant 0 : i32
    return %arg1, %c0_i32, %c0_i32_0 : i32, i32, i32
  }
  func.func @transform_9(%arg0: i32, %arg1: i32) -> (i32, i32, i32) {
    %c0_i32 = arith.constant 0 : i32
    %c0_i32_0 = arith.constant 0 : i32
    %c0_i32_1 = arith.constant 0 : i32
    return %arg1, %c0_i32, %c0_i32_0 : i32, i32, i32
  }
  func.func @transform_10(%arg0: i32, %arg1: i32) -> (i32, i32, i32) {
    %c0_i32 = arith.constant 0 : i32
    %c0_i32_0 = arith.constant 0 : i32
    %c0_i32_1 = arith.constant 0 : i32
    return %arg1, %c0_i32, %c0_i32_0 : i32, i32, i32
  }
  func.func @transform_11(%arg0: i32, %arg1: i32) -> (i32, i32, i32) {
    %c0_i32 = arith.constant 0 : i32
    %c0_i32_0 = arith.constant 0 : i32
    %c0_i32_1 = arith.constant 0 : i32
    return %arg1, %c0_i32, %c0_i32_0 : i32, i32, i32
  }
  func.func @transform_12(%arg0: i32, %arg1: i32) -> (i32, i32, i32) {
    %c0_i32 = arith.constant 0 : i32
    %c0_i32_0 = arith.constant 0 : i32
    %c0_i32_1 = arith.constant 0 : i32
    return %arg1, %c0_i32, %c0_i32_0 : i32, i32, i32
  }
  func.func @transform_13(%arg0: i32, %arg1: i32) -> (i32, i32, i32) {
    %c0_i32 = arith.constant 0 : i32
    %c0_i32_0 = arith.constant 0 : i32
    %c0_i32_1 = arith.constant 0 : i32
    return %arg1, %c0_i32, %c0_i32_0 : i32, i32, i32
  }
  func.func @transform_14(%arg0: i32, %arg1: i32) -> (i32, i32) {
    %c0_i32 = arith.constant 0 : i32
    %c0_i32_0 = arith.constant 0 : i32
    return %arg0, %c0_i32 : i32, i32
  }
}

module attributes {stable_mosaic.version = 11 : i64} {
  func.func @_encoder_stack_kernel(%arg0: i32, %arg1: i32, %arg2: memref<8x64xf32, #tpu.memory_space<vmem>>, %arg3: memref<8x8xf32, #tpu.memory_space<vmem>>, %arg4: memref<1x64x192xf32, #tpu.memory_space<vmem>>, %arg5: memref<1x1x192xf32, #tpu.memory_space<vmem>>, %arg6: memref<1x64x64xf32, #tpu.memory_space<vmem>>, %arg7: memref<1x1x64xf32, #tpu.memory_space<vmem>>, %arg8: memref<1x1x64xf32, #tpu.memory_space<vmem>>, %arg9: memref<1x1x64xf32, #tpu.memory_space<vmem>>, %arg10: memref<1x64x64xf32, #tpu.memory_space<vmem>>, %arg11: memref<1x1x64xf32, #tpu.memory_space<vmem>>, %arg12: memref<1x64x64xf32, #tpu.memory_space<vmem>>, %arg13: memref<1x1x64xf32, #tpu.memory_space<vmem>>, %arg14: memref<1x1x64xf32, #tpu.memory_space<vmem>>, %arg15: memref<1x1x64xf32, #tpu.memory_space<vmem>>, %arg16: memref<8x64xf32, #tpu.memory_space<vmem>>, %arg17: memref<8x64xf32, #tpu.memory_space<vmem>>) attributes {dimension_semantics = [#tpu.dimension_semantics<parallel>, #tpu.dimension_semantics<arbitrary>], iteration_bounds = array<i64: 2, 6>, scalar_prefetch = 0 : i64, scratch_operands = 1 : i64, tpu.core_type = #tpu.core_type<tc>, window_params = [{transform_indices = @transform_0, window_bounds = array<i64: 8, 64>}, {pipeline_mode = #tpu.pipeline_mode<synchronous>, transform_indices = @transform_1, window_bounds = array<i64: 8, 8>}, {transform_indices = @transform_2, window_bounds = array<i64: 1, 64, 192>}, {transform_indices = @transform_3, window_bounds = array<i64: 1, 1, 192>}, {transform_indices = @transform_4, window_bounds = array<i64: 1, 64, 64>}, {transform_indices = @transform_5, window_bounds = array<i64: 1, 1, 64>}, {transform_indices = @transform_6, window_bounds = array<i64: 1, 1, 64>}, {transform_indices = @transform_7, window_bounds = array<i64: 1, 1, 64>}, {transform_indices = @transform_8, window_bounds = array<i64: 1, 64, 64>}, {transform_indices = @transform_9, window_bounds = array<i64: 1, 1, 64>}, {transform_indices = @transform_10, window_bounds = array<i64: 1, 64, 64>}, {transform_indices = @transform_11, window_bounds = array<i64: 1, 1, 64>}, {transform_indices = @transform_12, window_bounds = array<i64: 1, 1, 64>}, {transform_indices = @transform_13, window_bounds = array<i64: 1, 1, 64>}, {transform_indices = @transform_14, window_bounds = array<i64: 8, 64>}]} {
    %c0_i32 = arith.constant 0 : i32
    %0 = arith.cmpi eq, %arg1, %c0_i32 : i32
    %1 = arith.extui %0 : i1 to i32
    %c0_i32_0 = arith.constant 0 : i32
    %2 = arith.cmpi ne, %1, %c0_i32_0 : i32
    scf.if %2 {
      %c0_107 = arith.constant 0 : index
      %c0_108 = arith.constant 0 : index
      %247 = vector.load %arg2[%c0_107, %c0_108] : memref<8x64xf32, #tpu.memory_space<vmem>>, vector<8x64xf32>
      %c0_109 = arith.constant 0 : index
      %c0_110 = arith.constant 0 : index
      %248 = vector.load %arg16[%c0_109, %c0_110] : memref<8x64xf32, #tpu.memory_space<vmem>>, vector<8x64xf32>
      tpu.vector_store %arg16[%c0_109, %c0_110], %247 {strides = array<i32>} : memref<8x64xf32, #tpu.memory_space<vmem>>, vector<8x64xf32>,
    } else {
    }
    %c0 = arith.constant 0 : index
    %c0_1 = arith.constant 0 : index
    %3 = vector.load %arg16[%c0, %c0_1] : memref<8x64xf32, #tpu.memory_space<vmem>>, vector<8x64xf32>
    %c0_2 = arith.constant 0 : index
    %c0_3 = arith.constant 0 : index
    %c0_4 = arith.constant 0 : index
    %4 = vector.load %arg4[%c0_2, %c0_3, %c0_4] : memref<1x64x192xf32, #tpu.memory_space<vmem>>, vector<1x64x192xf32>
    %5 = vector.shape_cast %4 : vector<1x64x192xf32> to vector<64x192xf32>
    %cst = arith.constant dense<0.000000e+00> : vector<8x192xf32>
    %6 = tpu.matmul %3, %5, %cst {dimension_numbers = #tpu.dot_dimension_numbers<[1], [0], [0], [1], [0, 0, 1, 1], [], []>} : vector<8x64xf32>, vector<64x192xf32>, vector<8x192xf32> -> vector<8x192xf32>
    %c0_5 = arith.constant 0 : index
    %c0_6 = arith.constant 0 : index
    %c0_7 = arith.constant 0 : index
    %7 = vector.load %arg5[%c0_5, %c0_6, %c0_7] : memref<1x1x192xf32, #tpu.memory_space<vmem>>, vector<1x1x192xf32>
    %8 = vector.shape_cast %7 : vector<1x1x192xf32> to vector<1x192xf32>
    %9 = vector.broadcast %8 : vector<1x192xf32> to vector<8x192xf32>
    %10 = arith.addf %6, %9 : vector<8x192xf32>
    %c0_8 = arith.constant 0 : index
    %c0_9 = arith.constant 0 : index
    %11 = vector.load %arg3[%c0_8, %c0_9] : memref<8x8xf32, #tpu.memory_space<vmem>>, vector<8x8xf32>
    %12 = vector.extract_strided_slice %10 {offsets = [0, 0], sizes = [8, 8], strides = [1, 1]} : vector<8x192xf32> to vector<8x8xf32>
    %13 = vector.extract_strided_slice %10 {offsets = [0, 64], sizes = [8, 8], strides = [1, 1]} : vector<8x192xf32> to vector<8x8xf32>
    %14 = vector.extract_strided_slice %10 {offsets = [0, 128], sizes = [8, 8], strides = [1, 1]} : vector<8x192xf32> to vector<8x8xf32>
    %15 = tpu.transpose %13, [1, 0] : vector<8x8xf32> -> vector<8x8xf32>
    %cst_10 = arith.constant dense<0.000000e+00> : vector<8x8xf32>
    %16 = tpu.matmul %12, %15, %cst_10 {dimension_numbers = #tpu.dot_dimension_numbers<[1], [0], [0], [1], [0, 0, 1, 1], [], []>} : vector<8x8xf32>, vector<8x8xf32>, vector<8x8xf32> -> vector<8x8xf32>
    %cst_11 = arith.constant 0.353553385 : f32
    %17 = vector.broadcast %cst_11 : f32 to vector<8x8xf32>
    %18 = arith.mulf %16, %17 : vector<8x8xf32>
    %19 = arith.addf %18, %11 : vector<8x8xf32>
    %cst_12 = arith.constant dense<0xFF800000> : vector<8xf32>
    %20 = vector.multi_reduction <maximumf>, %19, %cst_12 [1] : vector<8x8xf32> to vector<8xf32>
    %21 = vector.shape_cast %20 : vector<8xf32> to vector<8x1xf32>
    %22 = vector.broadcast %21 : vector<8x1xf32> to vector<8x8xf32>
    %23 = arith.subf %19, %22 : vector<8x8xf32>
    %24 = math.exp %23 : vector<8x8xf32>
    %cst_13 = arith.constant dense<0.000000e+00> : vector<8xf32>
    %25 = vector.multi_reduction <add>, %24, %cst_13 [1] : vector<8x8xf32> to vector<8xf32>
    %26 = vector.shape_cast %25 : vector<8xf32> to vector<8x1xf32>
    %27 = tpu.reciprocal %26 {approx = true} : vector<8x1xf32> -> vector<8x1xf32>
    %28 = vector.broadcast %27 : vector<8x1xf32> to vector<8x8xf32>
    %29 = arith.mulf %24, %28 : vector<8x8xf32>
    %cst_14 = arith.constant dense<0.000000e+00> : vector<8x8xf32>
    %30 = tpu.matmul %29, %14, %cst_14 {dimension_numbers = #tpu.dot_dimension_numbers<[1], [0], [0], [1], [0, 0, 1, 1], [], []>} : vector<8x8xf32>, vector<8x8xf32>, vector<8x8xf32> -> vector<8x8xf32>
    %c0_15 = arith.constant 0 : index
    %c0_16 = arith.constant 0 : index
    %31 = vector.load %arg17[%c0_15, %c0_16] : memref<8x64xf32, #tpu.memory_space<vmem>>, vector<8x8xf32>
    tpu.vector_store %arg17[%c0_15, %c0_16], %30 {strides = array<i32>} : memref<8x64xf32, #tpu.memory_space<vmem>>, vector<8x8xf32>,
    %32 = vector.extract_strided_slice %10 {offsets = [0, 8], sizes = [8, 8], strides = [1, 1]} : vector<8x192xf32> to vector<8x8xf32>
    %33 = vector.extract_strided_slice %10 {offsets = [0, 72], sizes = [8, 8], strides = [1, 1]} : vector<8x192xf32> to vector<8x8xf32>
    %34 = vector.extract_strided_slice %10 {offsets = [0, 136], sizes = [8, 8], strides = [1, 1]} : vector<8x192xf32> to vector<8x8xf32>
    %35 = tpu.transpose %33, [1, 0] : vector<8x8xf32> -> vector<8x8xf32>
    %cst_17 = arith.constant dense<0.000000e+00> : vector<8x8xf32>
    %36 = tpu.matmul %32, %35, %cst_17 {dimension_numbers = #tpu.dot_dimension_numbers<[1], [0], [0], [1], [0, 0, 1, 1], [], []>} : vector<8x8xf32>, vector<8x8xf32>, vector<8x8xf32> -> vector<8x8xf32>
    %cst_18 = arith.constant 0.353553385 : f32
    %37 = vector.broadcast %cst_18 : f32 to vector<8x8xf32>
    %38 = arith.mulf %36, %37 : vector<8x8xf32>
    %39 = arith.addf %38, %11 : vector<8x8xf32>
    %cst_19 = arith.constant dense<0xFF800000> : vector<8xf32>
    %40 = vector.multi_reduction <maximumf>, %39, %cst_19 [1] : vector<8x8xf32> to vector<8xf32>
    %41 = vector.shape_cast %40 : vector<8xf32> to vector<8x1xf32>
    %42 = vector.broadcast %41 : vector<8x1xf32> to vector<8x8xf32>
    %43 = arith.subf %39, %42 : vector<8x8xf32>
    %44 = math.exp %43 : vector<8x8xf32>
    %cst_20 = arith.constant dense<0.000000e+00> : vector<8xf32>
    %45 = vector.multi_reduction <add>, %44, %cst_20 [1] : vector<8x8xf32> to vector<8xf32>
    %46 = vector.shape_cast %45 : vector<8xf32> to vector<8x1xf32>
    %47 = tpu.reciprocal %46 {approx = true} : vector<8x1xf32> -> vector<8x1xf32>
    %48 = vector.broadcast %47 : vector<8x1xf32> to vector<8x8xf32>
    %49 = arith.mulf %44, %48 : vector<8x8xf32>
    %cst_21 = arith.constant dense<0.000000e+00> : vector<8x8xf32>
    %50 = tpu.matmul %49, %34, %cst_21 {dimension_numbers = #tpu.dot_dimension_numbers<[1], [0], [0], [1], [0, 0, 1, 1], [], []>} : vector<8x8xf32>, vector<8x8xf32>, vector<8x8xf32> -> vector<8x8xf32>
    %c0_22 = arith.constant 0 : index
    %c8 = arith.constant 8 : index
    %51 = vector.load %arg17[%c0_22, %c8] : memref<8x64xf32, #tpu.memory_space<vmem>>, vector<8x8xf32>
    tpu.vector_store %arg17[%c0_22, %c8], %50 {strides = array<i32>} : memref<8x64xf32, #tpu.memory_space<vmem>>, vector<8x8xf32>,
    %52 = vector.extract_strided_slice %10 {offsets = [0, 16], sizes = [8, 8], strides = [1, 1]} : vector<8x192xf32> to vector<8x8xf32>
    %53 = vector.extract_strided_slice %10 {offsets = [0, 80], sizes = [8, 8], strides = [1, 1]} : vector<8x192xf32> to vector<8x8xf32>
    %54 = vector.extract_strided_slice %10 {offsets = [0, 144], sizes = [8, 8], strides = [1, 1]} : vector<8x192xf32> to vector<8x8xf32>
    %55 = tpu.transpose %53, [1, 0] : vector<8x8xf32> -> vector<8x8xf32>
    %cst_23 = arith.constant dense<0.000000e+00> : vector<8x8xf32>
    %56 = tpu.matmul %52, %55, %cst_23 {dimension_numbers = #tpu.dot_dimension_numbers<[1], [0], [0], [1], [0, 0, 1, 1], [], []>} : vector<8x8xf32>, vector<8x8xf32>, vector<8x8xf32> -> vector<8x8xf32>
    %cst_24 = arith.constant 0.353553385 : f32
    %57 = vector.broadcast %cst_24 : f32 to vector<8x8xf32>
    %58 = arith.mulf %56, %57 : vector<8x8xf32>
    %59 = arith.addf %58, %11 : vector<8x8xf32>
    %cst_25 = arith.constant dense<0xFF800000> : vector<8xf32>
    %60 = vector.multi_reduction <maximumf>, %59, %cst_25 [1] : vector<8x8xf32> to vector<8xf32>
    %61 = vector.shape_cast %60 : vector<8xf32> to vector<8x1xf32>
    %62 = vector.broadcast %61 : vector<8x1xf32> to vector<8x8xf32>
    %63 = arith.subf %59, %62 : vector<8x8xf32>
    %64 = math.exp %63 : vector<8x8xf32>
    %cst_26 = arith.constant dense<0.000000e+00> : vector<8xf32>
    %65 = vector.multi_reduction <add>, %64, %cst_26 [1] : vector<8x8xf32> to vector<8xf32>
    %66 = vector.shape_cast %65 : vector<8xf32> to vector<8x1xf32>
    %67 = tpu.reciprocal %66 {approx = true} : vector<8x1xf32> -> vector<8x1xf32>
    %68 = vector.broadcast %67 : vector<8x1xf32> to vector<8x8xf32>
    %69 = arith.mulf %64, %68 : vector<8x8xf32>
    %cst_27 = arith.constant dense<0.000000e+00> : vector<8x8xf32>
    %70 = tpu.matmul %69, %54, %cst_27 {dimension_numbers = #tpu.dot_dimension_numbers<[1], [0], [0], [1], [0, 0, 1, 1], [], []>} : vector<8x8xf32>, vector<8x8xf32>, vector<8x8xf32> -> vector<8x8xf32>
    %c0_28 = arith.constant 0 : index
    %c16 = arith.constant 16 : index
    %71 = vector.load %arg17[%c0_28, %c16] : memref<8x64xf32, #tpu.memory_space<vmem>>, vector<8x8xf32>
    tpu.vector_store %arg17[%c0_28, %c16], %70 {strides = array<i32>} : memref<8x64xf32, #tpu.memory_space<vmem>>, vector<8x8xf32>,
    %72 = vector.extract_strided_slice %10 {offsets = [0, 24], sizes = [8, 8], strides = [1, 1]} : vector<8x192xf32> to vector<8x8xf32>
    %73 = vector.extract_strided_slice %10 {offsets = [0, 88], sizes = [8, 8], strides = [1, 1]} : vector<8x192xf32> to vector<8x8xf32>
    %74 = vector.extract_strided_slice %10 {offsets = [0, 152], sizes = [8, 8], strides = [1, 1]} : vector<8x192xf32> to vector<8x8xf32>
    %75 = tpu.transpose %73, [1, 0] : vector<8x8xf32> -> vector<8x8xf32>
    %cst_29 = arith.constant dense<0.000000e+00> : vector<8x8xf32>
    %76 = tpu.matmul %72, %75, %cst_29 {dimension_numbers = #tpu.dot_dimension_numbers<[1], [0], [0], [1], [0, 0, 1, 1], [], []>} : vector<8x8xf32>, vector<8x8xf32>, vector<8x8xf32> -> vector<8x8xf32>
    %cst_30 = arith.constant 0.353553385 : f32
    %77 = vector.broadcast %cst_30 : f32 to vector<8x8xf32>
    %78 = arith.mulf %76, %77 : vector<8x8xf32>
    %79 = arith.addf %78, %11 : vector<8x8xf32>
    %cst_31 = arith.constant dense<0xFF800000> : vector<8xf32>
    %80 = vector.multi_reduction <maximumf>, %79, %cst_31 [1] : vector<8x8xf32> to vector<8xf32>
    %81 = vector.shape_cast %80 : vector<8xf32> to vector<8x1xf32>
    %82 = vector.broadcast %81 : vector<8x1xf32> to vector<8x8xf32>
    %83 = arith.subf %79, %82 : vector<8x8xf32>
    %84 = math.exp %83 : vector<8x8xf32>
    %cst_32 = arith.constant dense<0.000000e+00> : vector<8xf32>
    %85 = vector.multi_reduction <add>, %84, %cst_32 [1] : vector<8x8xf32> to vector<8xf32>
    %86 = vector.shape_cast %85 : vector<8xf32> to vector<8x1xf32>
    %87 = tpu.reciprocal %86 {approx = true} : vector<8x1xf32> -> vector<8x1xf32>
    %88 = vector.broadcast %87 : vector<8x1xf32> to vector<8x8xf32>
    %89 = arith.mulf %84, %88 : vector<8x8xf32>
    %cst_33 = arith.constant dense<0.000000e+00> : vector<8x8xf32>
    %90 = tpu.matmul %89, %74, %cst_33 {dimension_numbers = #tpu.dot_dimension_numbers<[1], [0], [0], [1], [0, 0, 1, 1], [], []>} : vector<8x8xf32>, vector<8x8xf32>, vector<8x8xf32> -> vector<8x8xf32>
    %c0_34 = arith.constant 0 : index
    %c24 = arith.constant 24 : index
    %91 = vector.load %arg17[%c0_34, %c24] : memref<8x64xf32, #tpu.memory_space<vmem>>, vector<8x8xf32>
    tpu.vector_store %arg17[%c0_34, %c24], %90 {strides = array<i32>} : memref<8x64xf32, #tpu.memory_space<vmem>>, vector<8x8xf32>,
    %92 = vector.extract_strided_slice %10 {offsets = [0, 32], sizes = [8, 8], strides = [1, 1]} : vector<8x192xf32> to vector<8x8xf32>
    %93 = vector.extract_strided_slice %10 {offsets = [0, 96], sizes = [8, 8], strides = [1, 1]} : vector<8x192xf32> to vector<8x8xf32>
    %94 = vector.extract_strided_slice %10 {offsets = [0, 160], sizes = [8, 8], strides = [1, 1]} : vector<8x192xf32> to vector<8x8xf32>
    %95 = tpu.transpose %93, [1, 0] : vector<8x8xf32> -> vector<8x8xf32>
    %cst_35 = arith.constant dense<0.000000e+00> : vector<8x8xf32>
    %96 = tpu.matmul %92, %95, %cst_35 {dimension_numbers = #tpu.dot_dimension_numbers<[1], [0], [0], [1], [0, 0, 1, 1], [], []>} : vector<8x8xf32>, vector<8x8xf32>, vector<8x8xf32> -> vector<8x8xf32>
    %cst_36 = arith.constant 0.353553385 : f32
    %97 = vector.broadcast %cst_36 : f32 to vector<8x8xf32>
    %98 = arith.mulf %96, %97 : vector<8x8xf32>
    %99 = arith.addf %98, %11 : vector<8x8xf32>
    %cst_37 = arith.constant dense<0xFF800000> : vector<8xf32>
    %100 = vector.multi_reduction <maximumf>, %99, %cst_37 [1] : vector<8x8xf32> to vector<8xf32>
    %101 = vector.shape_cast %100 : vector<8xf32> to vector<8x1xf32>
    %102 = vector.broadcast %101 : vector<8x1xf32> to vector<8x8xf32>
    %103 = arith.subf %99, %102 : vector<8x8xf32>
    %104 = math.exp %103 : vector<8x8xf32>
    %cst_38 = arith.constant dense<0.000000e+00> : vector<8xf32>
    %105 = vector.multi_reduction <add>, %104, %cst_38 [1] : vector<8x8xf32> to vector<8xf32>
    %106 = vector.shape_cast %105 : vector<8xf32> to vector<8x1xf32>
    %107 = tpu.reciprocal %106 {approx = true} : vector<8x1xf32> -> vector<8x1xf32>
    %108 = vector.broadcast %107 : vector<8x1xf32> to vector<8x8xf32>
    %109 = arith.mulf %104, %108 : vector<8x8xf32>
    %cst_39 = arith.constant dense<0.000000e+00> : vector<8x8xf32>
    %110 = tpu.matmul %109, %94, %cst_39 {dimension_numbers = #tpu.dot_dimension_numbers<[1], [0], [0], [1], [0, 0, 1, 1], [], []>} : vector<8x8xf32>, vector<8x8xf32>, vector<8x8xf32> -> vector<8x8xf32>
    %c0_40 = arith.constant 0 : index
    %c32 = arith.constant 32 : index
    %111 = vector.load %arg17[%c0_40, %c32] : memref<8x64xf32, #tpu.memory_space<vmem>>, vector<8x8xf32>
    tpu.vector_store %arg17[%c0_40, %c32], %110 {strides = array<i32>} : memref<8x64xf32, #tpu.memory_space<vmem>>, vector<8x8xf32>,
    %112 = vector.extract_strided_slice %10 {offsets = [0, 40], sizes = [8, 8], strides = [1, 1]} : vector<8x192xf32> to vector<8x8xf32>
    %113 = vector.extract_strided_slice %10 {offsets = [0, 104], sizes = [8, 8], strides = [1, 1]} : vector<8x192xf32> to vector<8x8xf32>
    %114 = vector.extract_strided_slice %10 {offsets = [0, 168], sizes = [8, 8], strides = [1, 1]} : vector<8x192xf32> to vector<8x8xf32>
    %115 = tpu.transpose %113, [1, 0] : vector<8x8xf32> -> vector<8x8xf32>
    %cst_41 = arith.constant dense<0.000000e+00> : vector<8x8xf32>
    %116 = tpu.matmul %112, %115, %cst_41 {dimension_numbers = #tpu.dot_dimension_numbers<[1], [0], [0], [1], [0, 0, 1, 1], [], []>} : vector<8x8xf32>, vector<8x8xf32>, vector<8x8xf32> -> vector<8x8xf32>
    %cst_42 = arith.constant 0.353553385 : f32
    %117 = vector.broadcast %cst_42 : f32 to vector<8x8xf32>
    %118 = arith.mulf %116, %117 : vector<8x8xf32>
    %119 = arith.addf %118, %11 : vector<8x8xf32>
    %cst_43 = arith.constant dense<0xFF800000> : vector<8xf32>
    %120 = vector.multi_reduction <maximumf>, %119, %cst_43 [1] : vector<8x8xf32> to vector<8xf32>
    %121 = vector.shape_cast %120 : vector<8xf32> to vector<8x1xf32>
    %122 = vector.broadcast %121 : vector<8x1xf32> to vector<8x8xf32>
    %123 = arith.subf %119, %122 : vector<8x8xf32>
    %124 = math.exp %123 : vector<8x8xf32>
    %cst_44 = arith.constant dense<0.000000e+00> : vector<8xf32>
    %125 = vector.multi_reduction <add>, %124, %cst_44 [1] : vector<8x8xf32> to vector<8xf32>
    %126 = vector.shape_cast %125 : vector<8xf32> to vector<8x1xf32>
    %127 = tpu.reciprocal %126 {approx = true} : vector<8x1xf32> -> vector<8x1xf32>
    %128 = vector.broadcast %127 : vector<8x1xf32> to vector<8x8xf32>
    %129 = arith.mulf %124, %128 : vector<8x8xf32>
    %cst_45 = arith.constant dense<0.000000e+00> : vector<8x8xf32>
    %130 = tpu.matmul %129, %114, %cst_45 {dimension_numbers = #tpu.dot_dimension_numbers<[1], [0], [0], [1], [0, 0, 1, 1], [], []>} : vector<8x8xf32>, vector<8x8xf32>, vector<8x8xf32> -> vector<8x8xf32>
    %c0_46 = arith.constant 0 : index
    %c40 = arith.constant 40 : index
    %131 = vector.load %arg17[%c0_46, %c40] : memref<8x64xf32, #tpu.memory_space<vmem>>, vector<8x8xf32>
    tpu.vector_store %arg17[%c0_46, %c40], %130 {strides = array<i32>} : memref<8x64xf32, #tpu.memory_space<vmem>>, vector<8x8xf32>,
    %132 = vector.extract_strided_slice %10 {offsets = [0, 48], sizes = [8, 8], strides = [1, 1]} : vector<8x192xf32> to vector<8x8xf32>
    %133 = vector.extract_strided_slice %10 {offsets = [0, 112], sizes = [8, 8], strides = [1, 1]} : vector<8x192xf32> to vector<8x8xf32>
    %134 = vector.extract_strided_slice %10 {offsets = [0, 176], sizes = [8, 8], strides = [1, 1]} : vector<8x192xf32> to vector<8x8xf32>
    %135 = tpu.transpose %133, [1, 0] : vector<8x8xf32> -> vector<8x8xf32>
    %cst_47 = arith.constant dense<0.000000e+00> : vector<8x8xf32>
    %136 = tpu.matmul %132, %135, %cst_47 {dimension_numbers = #tpu.dot_dimension_numbers<[1], [0], [0], [1], [0, 0, 1, 1], [], []>} : vector<8x8xf32>, vector<8x8xf32>, vector<8x8xf32> -> vector<8x8xf32>
    %cst_48 = arith.constant 0.353553385 : f32
    %137 = vector.broadcast %cst_48 : f32 to vector<8x8xf32>
    %138 = arith.mulf %136, %137 : vector<8x8xf32>
    %139 = arith.addf %138, %11 : vector<8x8xf32>
    %cst_49 = arith.constant dense<0xFF800000> : vector<8xf32>
    %140 = vector.multi_reduction <maximumf>, %139, %cst_49 [1] : vector<8x8xf32> to vector<8xf32>
    %141 = vector.shape_cast %140 : vector<8xf32> to vector<8x1xf32>
    %142 = vector.broadcast %141 : vector<8x1xf32> to vector<8x8xf32>
    %143 = arith.subf %139, %142 : vector<8x8xf32>
    %144 = math.exp %143 : vector<8x8xf32>
    %cst_50 = arith.constant dense<0.000000e+00> : vector<8xf32>
    %145 = vector.multi_reduction <add>, %144, %cst_50 [1] : vector<8x8xf32> to vector<8xf32>
    %146 = vector.shape_cast %145 : vector<8xf32> to vector<8x1xf32>
    %147 = tpu.reciprocal %146 {approx = true} : vector<8x1xf32> -> vector<8x1xf32>
    %148 = vector.broadcast %147 : vector<8x1xf32> to vector<8x8xf32>
    %149 = arith.mulf %144, %148 : vector<8x8xf32>
    %cst_51 = arith.constant dense<0.000000e+00> : vector<8x8xf32>
    %150 = tpu.matmul %149, %134, %cst_51 {dimension_numbers = #tpu.dot_dimension_numbers<[1], [0], [0], [1], [0, 0, 1, 1], [], []>} : vector<8x8xf32>, vector<8x8xf32>, vector<8x8xf32> -> vector<8x8xf32>
    %c0_52 = arith.constant 0 : index
    %c48 = arith.constant 48 : index
    %151 = vector.load %arg17[%c0_52, %c48] : memref<8x64xf32, #tpu.memory_space<vmem>>, vector<8x8xf32>
    tpu.vector_store %arg17[%c0_52, %c48], %150 {strides = array<i32>} : memref<8x64xf32, #tpu.memory_space<vmem>>, vector<8x8xf32>,
    %152 = vector.extract_strided_slice %10 {offsets = [0, 56], sizes = [8, 8], strides = [1, 1]} : vector<8x192xf32> to vector<8x8xf32>
    %153 = vector.extract_strided_slice %10 {offsets = [0, 120], sizes = [8, 8], strides = [1, 1]} : vector<8x192xf32> to vector<8x8xf32>
    %154 = vector.extract_strided_slice %10 {offsets = [0, 184], sizes = [8, 8], strides = [1, 1]} : vector<8x192xf32> to vector<8x8xf32>
    %155 = tpu.transpose %153, [1, 0] : vector<8x8xf32> -> vector<8x8xf32>
    %cst_53 = arith.constant dense<0.000000e+00> : vector<8x8xf32>
    %156 = tpu.matmul %152, %155, %cst_53 {dimension_numbers = #tpu.dot_dimension_numbers<[1], [0], [0], [1], [0, 0, 1, 1], [], []>} : vector<8x8xf32>, vector<8x8xf32>, vector<8x8xf32> -> vector<8x8xf32>
    %cst_54 = arith.constant 0.353553385 : f32
    %157 = vector.broadcast %cst_54 : f32 to vector<8x8xf32>
    %158 = arith.mulf %156, %157 : vector<8x8xf32>
    %159 = arith.addf %158, %11 : vector<8x8xf32>
    %cst_55 = arith.constant dense<0xFF800000> : vector<8xf32>
    %160 = vector.multi_reduction <maximumf>, %159, %cst_55 [1] : vector<8x8xf32> to vector<8xf32>
    %161 = vector.shape_cast %160 : vector<8xf32> to vector<8x1xf32>
    %162 = vector.broadcast %161 : vector<8x1xf32> to vector<8x8xf32>
    %163 = arith.subf %159, %162 : vector<8x8xf32>
    %164 = math.exp %163 : vector<8x8xf32>
    %cst_56 = arith.constant dense<0.000000e+00> : vector<8xf32>
    %165 = vector.multi_reduction <add>, %164, %cst_56 [1] : vector<8x8xf32> to vector<8xf32>
    %166 = vector.shape_cast %165 : vector<8xf32> to vector<8x1xf32>
    %167 = tpu.reciprocal %166 {approx = true} : vector<8x1xf32> -> vector<8x1xf32>
    %168 = vector.broadcast %167 : vector<8x1xf32> to vector<8x8xf32>
    %169 = arith.mulf %164, %168 : vector<8x8xf32>
    %cst_57 = arith.constant dense<0.000000e+00> : vector<8x8xf32>
    %170 = tpu.matmul %169, %154, %cst_57 {dimension_numbers = #tpu.dot_dimension_numbers<[1], [0], [0], [1], [0, 0, 1, 1], [], []>} : vector<8x8xf32>, vector<8x8xf32>, vector<8x8xf32> -> vector<8x8xf32>
    %c0_58 = arith.constant 0 : index
    %c56 = arith.constant 56 : index
    %171 = vector.load %arg17[%c0_58, %c56] : memref<8x64xf32, #tpu.memory_space<vmem>>, vector<8x8xf32>
    tpu.vector_store %arg17[%c0_58, %c56], %170 {strides = array<i32>} : memref<8x64xf32, #tpu.memory_space<vmem>>, vector<8x8xf32>,
    %c0_59 = arith.constant 0 : index
    %c0_60 = arith.constant 0 : index
    %172 = vector.load %arg17[%c0_59, %c0_60] : memref<8x64xf32, #tpu.memory_space<vmem>>, vector<8x64xf32>
    %c0_61 = arith.constant 0 : index
    %c0_62 = arith.constant 0 : index
    %c0_63 = arith.constant 0 : index
    %173 = vector.load %arg6[%c0_61, %c0_62, %c0_63] : memref<1x64x64xf32, #tpu.memory_space<vmem>>, vector<1x64x64xf32>
    %174 = vector.shape_cast %173 : vector<1x64x64xf32> to vector<64x64xf32>
    %cst_64 = arith.constant dense<0.000000e+00> : vector<8x64xf32>
    %175 = tpu.matmul %172, %174, %cst_64 {dimension_numbers = #tpu.dot_dimension_numbers<[1], [0], [0], [1], [0, 0, 1, 1], [], []>} : vector<8x64xf32>, vector<64x64xf32>, vector<8x64xf32> -> vector<8x64xf32>
    %c0_65 = arith.constant 0 : index
    %c0_66 = arith.constant 0 : index
    %c0_67 = arith.constant 0 : index
    %176 = vector.load %arg7[%c0_65, %c0_66, %c0_67] : memref<1x1x64xf32, #tpu.memory_space<vmem>>, vector<1x1x64xf32>
    %177 = vector.shape_cast %176 : vector<1x1x64xf32> to vector<1x64xf32>
    %178 = vector.broadcast %177 : vector<1x64xf32> to vector<8x64xf32>
    %179 = arith.addf %175, %178 : vector<8x64xf32>
    %180 = arith.addf %179, %3 : vector<8x64xf32>
    %c0_68 = arith.constant 0 : index
    %c0_69 = arith.constant 0 : index
    %c0_70 = arith.constant 0 : index
    %181 = vector.load %arg8[%c0_68, %c0_69, %c0_70] : memref<1x1x64xf32, #tpu.memory_space<vmem>>, vector<1x1x64xf32>
    %182 = vector.shape_cast %181 : vector<1x1x64xf32> to vector<1x64xf32>
    %c0_71 = arith.constant 0 : index
    %c0_72 = arith.constant 0 : index
    %c0_73 = arith.constant 0 : index
    %183 = vector.load %arg9[%c0_71, %c0_72, %c0_73] : memref<1x1x64xf32, #tpu.memory_space<vmem>>, vector<1x1x64xf32>
    %184 = vector.shape_cast %183 : vector<1x1x64xf32> to vector<1x64xf32>
    %cst_74 = arith.constant dense<0.000000e+00> : vector<8xf32>
    %185 = vector.multi_reduction <add>, %180, %cst_74 [1] : vector<8x64xf32> to vector<8xf32>
    %186 = vector.shape_cast %185 : vector<8xf32> to vector<8x1xf32>
    %cst_75 = arith.constant 6.400000e+01 : f32
    %187 = vector.broadcast %cst_75 : f32 to vector<8x1xf32>
    %188 = arith.divf %186, %187 : vector<8x1xf32>
    %189 = vector.broadcast %188 : vector<8x1xf32> to vector<8x64xf32>
    %190 = arith.subf %180, %189 : vector<8x64xf32>
    %191 = arith.mulf %190, %190 : vector<8x64xf32>
    %cst_76 = arith.constant dense<0.000000e+00> : vector<8xf32>
    %192 = vector.multi_reduction <add>, %191, %cst_76 [1] : vector<8x64xf32> to vector<8xf32>
    %193 = vector.shape_cast %192 : vector<8xf32> to vector<8x1xf32>
    %cst_77 = arith.constant 6.400000e+01 : f32
    %194 = vector.broadcast %cst_77 : f32 to vector<8x1xf32>
    %195 = arith.divf %193, %194 : vector<8x1xf32>
    %cst_78 = arith.constant 9.99999974E-6 : f32
    %196 = vector.broadcast %cst_78 : f32 to vector<8x1xf32>
    %197 = arith.addf %195, %196 : vector<8x1xf32>
    %198 = math.rsqrt %197 : vector<8x1xf32>
    %199 = vector.broadcast %198 : vector<8x1xf32> to vector<8x64xf32>
    %200 = arith.mulf %190, %199 : vector<8x64xf32>
    %201 = vector.broadcast %182 : vector<1x64xf32> to vector<8x64xf32>
    %202 = arith.mulf %200, %201 : vector<8x64xf32>
    %203 = vector.broadcast %184 : vector<1x64xf32> to vector<8x64xf32>
    %204 = arith.addf %202, %203 : vector<8x64xf32>
    %c0_79 = arith.constant 0 : index
    %c0_80 = arith.constant 0 : index
    %c0_81 = arith.constant 0 : index
    %205 = vector.load %arg10[%c0_79, %c0_80, %c0_81] : memref<1x64x64xf32, #tpu.memory_space<vmem>>, vector<1x64x64xf32>
    %206 = vector.shape_cast %205 : vector<1x64x64xf32> to vector<64x64xf32>
    %cst_82 = arith.constant dense<0.000000e+00> : vector<8x64xf32>
    %207 = tpu.matmul %204, %206, %cst_82 {dimension_numbers = #tpu.dot_dimension_numbers<[1], [0], [0], [1], [0, 0, 1, 1], [], []>} : vector<8x64xf32>, vector<64x64xf32>, vector<8x64xf32> -> vector<8x64xf32>
    %c0_83 = arith.constant 0 : index
    %c0_84 = arith.constant 0 : index
    %c0_85 = arith.constant 0 : index
    %208 = vector.load %arg11[%c0_83, %c0_84, %c0_85] : memref<1x1x64xf32, #tpu.memory_space<vmem>>, vector<1x1x64xf32>
    %209 = vector.shape_cast %208 : vector<1x1x64xf32> to vector<1x64xf32>
    %210 = vector.broadcast %209 : vector<1x64xf32> to vector<8x64xf32>
    %211 = arith.addf %207, %210 : vector<8x64xf32>
    %cst_86 = arith.constant 0.000000e+00 : f32
    %212 = vector.broadcast %cst_86 : f32 to vector<8x64xf32>
    %213 = arith.maximumf %211, %212 : vector<8x64xf32>
    %c0_87 = arith.constant 0 : index
    %c0_88 = arith.constant 0 : index
    %c0_89 = arith.constant 0 : index
    %214 = vector.load %arg12[%c0_87, %c0_88, %c0_89] : memref<1x64x64xf32, #tpu.memory_space<vmem>>, vector<1x64x64xf32>
    %215 = vector.shape_cast %214 : vector<1x64x64xf32> to vector<64x64xf32>
    %cst_90 = arith.constant dense<0.000000e+00> : vector<8x64xf32>
    %216 = tpu.matmul %213, %215, %cst_90 {dimension_numbers = #tpu.dot_dimension_numbers<[1], [0], [0], [1], [0, 0, 1, 1], [], []>} : vector<8x64xf32>, vector<64x64xf32>, vector<8x64xf32> -> vector<8x64xf32>
    %c0_91 = arith.constant 0 : index
    %c0_92 = arith.constant 0 : index
    %c0_93 = arith.constant 0 : index
    %217 = vector.load %arg13[%c0_91, %c0_92, %c0_93] : memref<1x1x64xf32, #tpu.memory_space<vmem>>, vector<1x1x64xf32>
    %218 = vector.shape_cast %217 : vector<1x1x64xf32> to vector<1x64xf32>
    %219 = vector.broadcast %218 : vector<1x64xf32> to vector<8x64xf32>
    %220 = arith.addf %216, %219 : vector<8x64xf32>
    %221 = arith.addf %220, %204 : vector<8x64xf32>
    %c0_94 = arith.constant 0 : index
    %c0_95 = arith.constant 0 : index
    %c0_96 = arith.constant 0 : index
    %222 = vector.load %arg14[%c0_94, %c0_95, %c0_96] : memref<1x1x64xf32, #tpu.memory_space<vmem>>, vector<1x1x64xf32>
    %223 = vector.shape_cast %222 : vector<1x1x64xf32> to vector<1x64xf32>
    %c0_97 = arith.constant 0 : index
    %c0_98 = arith.constant 0 : index
    %c0_99 = arith.constant 0 : index
    %224 = vector.load %arg15[%c0_97, %c0_98, %c0_99] : memref<1x1x64xf32, #tpu.memory_space<vmem>>, vector<1x1x64xf32>
    %225 = vector.shape_cast %224 : vector<1x1x64xf32> to vector<1x64xf32>
    %cst_100 = arith.constant dense<0.000000e+00> : vector<8xf32>
    %226 = vector.multi_reduction <add>, %221, %cst_100 [1] : vector<8x64xf32> to vector<8xf32>
    %227 = vector.shape_cast %226 : vector<8xf32> to vector<8x1xf32>
    %cst_101 = arith.constant 6.400000e+01 : f32
    %228 = vector.broadcast %cst_101 : f32 to vector<8x1xf32>
    %229 = arith.divf %227, %228 : vector<8x1xf32>
    %230 = vector.broadcast %229 : vector<8x1xf32> to vector<8x64xf32>
    %231 = arith.subf %221, %230 : vector<8x64xf32>
    %232 = arith.mulf %231, %231 : vector<8x64xf32>
    %cst_102 = arith.constant dense<0.000000e+00> : vector<8xf32>
    %233 = vector.multi_reduction <add>, %232, %cst_102 [1] : vector<8x64xf32> to vector<8xf32>
    %234 = vector.shape_cast %233 : vector<8xf32> to vector<8x1xf32>
    %cst_103 = arith.constant 6.400000e+01 : f32
    %235 = vector.broadcast %cst_103 : f32 to vector<8x1xf32>
    %236 = arith.divf %234, %235 : vector<8x1xf32>
    %cst_104 = arith.constant 9.99999974E-6 : f32
    %237 = vector.broadcast %cst_104 : f32 to vector<8x1xf32>
    %238 = arith.addf %236, %237 : vector<8x1xf32>
    %239 = math.rsqrt %238 : vector<8x1xf32>
    %240 = vector.broadcast %239 : vector<8x1xf32> to vector<8x64xf32>
    %241 = arith.mulf %231, %240 : vector<8x64xf32>
    %242 = vector.broadcast %223 : vector<1x64xf32> to vector<8x64xf32>
    %243 = arith.mulf %241, %242 : vector<8x64xf32>
    %244 = vector.broadcast %225 : vector<1x64xf32> to vector<8x64xf32>
    %245 = arith.addf %243, %244 : vector<8x64xf32>
    %c0_105 = arith.constant 0 : index
    %c0_106 = arith.constant 0 : index
    %246 = vector.load %arg16[%c0_105, %c0_106] : memref<8x64xf32, #tpu.memory_space<vmem>>, vector<8x64xf32>
    tpu.vector_store %arg16[%c0_105, %c0_106], %245 {strides = array<i32>} : memref<8x64xf32, #tpu.memory_space<vmem>>, vector<8x64xf32>,
    return
  }
  func.func @transform_0(%arg0: i32, %arg1: i32) -> (i32, i32) {
    %c0_i32 = arith.constant 0 : i32
    %c0_i32_0 = arith.constant 0 : i32
    return %arg0, %c0_i32 : i32, i32
  }
  func.func @transform_1(%arg0: i32, %arg1: i32) -> (i32, i32) {
    %c0_i32 = arith.constant 0 : i32
    %c0_i32_0 = arith.constant 0 : i32
    %c0_i32_1 = arith.constant 0 : i32
    return %c0_i32, %c0_i32_0 : i32, i32
  }
  func.func @transform_2(%arg0: i32, %arg1: i32) -> (i32, i32, i32) {
    %c0_i32 = arith.constant 0 : i32
    %c0_i32_0 = arith.constant 0 : i32
    %c0_i32_1 = arith.constant 0 : i32
    return %arg1, %c0_i32, %c0_i32_0 : i32, i32, i32
  }
  func.func @transform_3(%arg0: i32, %arg1: i32) -> (i32, i32, i32) {
    %c0_i32 = arith.constant 0 : i32
    %c0_i32_0 = arith.constant 0 : i32
    %c0_i32_1 = arith.constant 0 : i32
    return %arg1, %c0_i32, %c0_i32_0 : i32, i32, i32
  }
  func.func @transform_4(%arg0: i32, %arg1: i32) -> (i32, i32, i32) {
    %c0_i32 = arith.constant 0 : i32
    %c0_i32_0 = arith.constant 0 : i32
    %c0_i32_1 = arith.constant 0 : i32
    return %arg1, %c0_i32, %c0_i32_0 : i32, i32, i32
  }
  func.func @transform_5(%arg0: i32, %arg1: i32) -> (i32, i32, i32) {
    %c0_i32 = arith.constant 0 : i32
    %c0_i32_0 = arith.constant 0 : i32
    %c0_i32_1 = arith.constant 0 : i32
    return %arg1, %c0_i32, %c0_i32_0 : i32, i32, i32
  }
  func.func @transform_6(%arg0: i32, %arg1: i32) -> (i32, i32, i32) {
    %c0_i32 = arith.constant 0 : i32
    %c0_i32_0 = arith.constant 0 : i32
    %c0_i32_1 = arith.constant 0 : i32
    return %arg1, %c0_i32, %c0_i32_0 : i32, i32, i32
  }
  func.func @transform_7(%arg0: i32, %arg1: i32) -> (i32, i32, i32) {
    %c0_i32 = arith.constant 0 : i32
    %c0_i32_0 = arith.constant 0 : i32
    %c0_i32_1 = arith.constant 0 : i32
    return %arg1, %c0_i32, %c0_i32_0 : i32, i32, i32
  }
  func.func @transform_8(%arg0: i32, %arg1: i32) -> (i32, i32, i32) {
    %c0_i32 = arith.constant 0 : i32
    %c0_i32_0 = arith.constant 0 : i32
    %c0_i32_1 = arith.constant 0 : i32
    return %arg1, %c0_i32, %c0_i32_0 : i32, i32, i32
  }
  func.func @transform_9(%arg0: i32, %arg1: i32) -> (i32, i32, i32) {
    %c0_i32 = arith.constant 0 : i32
    %c0_i32_0 = arith.constant 0 : i32
    %c0_i32_1 = arith.constant 0 : i32
    return %arg1, %c0_i32, %c0_i32_0 : i32, i32, i32
  }
  func.func @transform_10(%arg0: i32, %arg1: i32) -> (i32, i32, i32) {
    %c0_i32 = arith.constant 0 : i32
    %c0_i32_0 = arith.constant 0 : i32
    %c0_i32_1 = arith.constant 0 : i32
    return %arg1, %c0_i32, %c0_i32_0 : i32, i32, i32
  }
  func.func @transform_11(%arg0: i32, %arg1: i32) -> (i32, i32, i32) {
    %c0_i32 = arith.constant 0 : i32
    %c0_i32_0 = arith.constant 0 : i32
    %c0_i32_1 = arith.constant 0 : i32
    return %arg1, %c0_i32, %c0_i32_0 : i32, i32, i32
  }
  func.func @transform_12(%arg0: i32, %arg1: i32) -> (i32, i32, i32) {
    %c0_i32 = arith.constant 0 : i32
    %c0_i32_0 = arith.constant 0 : i32
    %c0_i32_1 = arith.constant 0 : i32
    return %arg1, %c0_i32, %c0_i32_0 : i32, i32, i32
  }
  func.func @transform_13(%arg0: i32, %arg1: i32) -> (i32, i32, i32) {
    %c0_i32 = arith.constant 0 : i32
    %c0_i32_0 = arith.constant 0 : i32
    %c0_i32_1 = arith.constant 0 : i32
    return %arg1, %c0_i32, %c0_i32_0 : i32, i32, i32
  }
  func.func @transform_14(%arg0: i32, %arg1: i32) -> (i32, i32) {
    %c0_i32 = arith.constant 0 : i32
    %c0_i32_0 = arith.constant 0 : i32
    return %arg0, %c0_i32 : i32, i32
  }
}

module attributes {stable_mosaic.version = 11 : i64} {
  func.func @_tail_kernel(%arg0: i32, %arg1: memref<2x512xf32, #tpu.memory_space<vmem>>, %arg2: memref<512x256xf32, #tpu.memory_space<vmem>>, %arg3: memref<1x256xf32, #tpu.memory_space<vmem>>, %arg4: memref<256x64xf32, #tpu.memory_space<vmem>>, %arg5: memref<1x64xf32, #tpu.memory_space<vmem>>, %arg6: memref<1x64xf32, #tpu.memory_space<vmem>>, %arg7: memref<64x64xf32, #tpu.memory_space<vmem>>, %arg8: memref<1x64xf32, #tpu.memory_space<vmem>>, %arg9: memref<64x512xf32, #tpu.memory_space<vmem>>, %arg10: memref<1x512xf32, #tpu.memory_space<vmem>>, %arg11: memref<512x16xf32, #tpu.memory_space<vmem>>, %arg12: memref<1x16xf32, #tpu.memory_space<vmem>>, %arg13: memref<2x16xf32, #tpu.memory_space<vmem>>) attributes {dimension_semantics = [#tpu.dimension_semantics<arbitrary>], iteration_bounds = array<i64: 1>, scalar_prefetch = 0 : i64, scratch_operands = 0 : i64, tpu.core_type = #tpu.core_type<tc>, window_params = [{pipeline_mode = #tpu.pipeline_mode<synchronous>, transform_indices = @transform_0, window_bounds = array<i64: 2, 512>}, {pipeline_mode = #tpu.pipeline_mode<synchronous>, transform_indices = @transform_1, window_bounds = array<i64: 512, 256>}, {pipeline_mode = #tpu.pipeline_mode<synchronous>, transform_indices = @transform_2, window_bounds = array<i64: 1, 256>}, {pipeline_mode = #tpu.pipeline_mode<synchronous>, transform_indices = @transform_3, window_bounds = array<i64: 256, 64>}, {pipeline_mode = #tpu.pipeline_mode<synchronous>, transform_indices = @transform_4, window_bounds = array<i64: 1, 64>}, {pipeline_mode = #tpu.pipeline_mode<synchronous>, transform_indices = @transform_5, window_bounds = array<i64: 1, 64>}, {pipeline_mode = #tpu.pipeline_mode<synchronous>, transform_indices = @transform_6, window_bounds = array<i64: 64, 64>}, {pipeline_mode = #tpu.pipeline_mode<synchronous>, transform_indices = @transform_7, window_bounds = array<i64: 1, 64>}, {pipeline_mode = #tpu.pipeline_mode<synchronous>, transform_indices = @transform_8, window_bounds = array<i64: 64, 512>}, {pipeline_mode = #tpu.pipeline_mode<synchronous>, transform_indices = @transform_9, window_bounds = array<i64: 1, 512>}, {pipeline_mode = #tpu.pipeline_mode<synchronous>, transform_indices = @transform_10, window_bounds = array<i64: 512, 16>}, {pipeline_mode = #tpu.pipeline_mode<synchronous>, transform_indices = @transform_11, window_bounds = array<i64: 1, 16>}, {pipeline_mode = #tpu.pipeline_mode<synchronous>, transform_indices = @transform_12, window_bounds = array<i64: 2, 16>}]} {
    %c0 = arith.constant 0 : index
    %c0_0 = arith.constant 0 : index
    %0 = vector.load %arg1[%c0, %c0_0] : memref<2x512xf32, #tpu.memory_space<vmem>>, vector<2x512xf32>
    %c0_1 = arith.constant 0 : index
    %c0_2 = arith.constant 0 : index
    %1 = vector.load %arg2[%c0_1, %c0_2] : memref<512x256xf32, #tpu.memory_space<vmem>>, vector<512x256xf32>
    %cst = arith.constant dense<0.000000e+00> : vector<2x256xf32>
    %2 = tpu.matmul %0, %1, %cst {dimension_numbers = #tpu.dot_dimension_numbers<[1], [0], [0], [1], [0, 0, 1, 1], [], []>} : vector<2x512xf32>, vector<512x256xf32>, vector<2x256xf32> -> vector<2x256xf32>
    %c0_3 = arith.constant 0 : index
    %c0_4 = arith.constant 0 : index
    %3 = vector.load %arg3[%c0_3, %c0_4] : memref<1x256xf32, #tpu.memory_space<vmem>>, vector<1x256xf32>
    %4 = vector.broadcast %3 : vector<1x256xf32> to vector<2x256xf32>
    %5 = arith.addf %2, %4 : vector<2x256xf32>
    %cst_5 = arith.constant 0.000000e+00 : f32
    %6 = vector.broadcast %cst_5 : f32 to vector<2x256xf32>
    %7 = arith.maximumf %5, %6 : vector<2x256xf32>
    %c0_6 = arith.constant 0 : index
    %c0_7 = arith.constant 0 : index
    %8 = vector.load %arg4[%c0_6, %c0_7] : memref<256x64xf32, #tpu.memory_space<vmem>>, vector<256x64xf32>
    %cst_8 = arith.constant dense<0.000000e+00> : vector<2x64xf32>
    %9 = tpu.matmul %7, %8, %cst_8 {dimension_numbers = #tpu.dot_dimension_numbers<[1], [0], [0], [1], [0, 0, 1, 1], [], []>} : vector<2x256xf32>, vector<256x64xf32>, vector<2x64xf32> -> vector<2x64xf32>
    %c0_9 = arith.constant 0 : index
    %c0_10 = arith.constant 0 : index
    %10 = vector.load %arg5[%c0_9, %c0_10] : memref<1x64xf32, #tpu.memory_space<vmem>>, vector<1x64xf32>
    %11 = vector.broadcast %10 : vector<1x64xf32> to vector<2x64xf32>
    %12 = arith.mulf %9, %11 : vector<2x64xf32>
    %c0_11 = arith.constant 0 : index
    %c0_12 = arith.constant 0 : index
    %13 = vector.load %arg6[%c0_11, %c0_12] : memref<1x64xf32, #tpu.memory_space<vmem>>, vector<1x64xf32>
    %14 = vector.broadcast %13 : vector<1x64xf32> to vector<2x64xf32>
    %15 = arith.addf %12, %14 : vector<2x64xf32>
    %cst_13 = arith.constant 0.000000e+00 : f32
    %16 = vector.broadcast %cst_13 : f32 to vector<2x64xf32>
    %17 = arith.maximumf %15, %16 : vector<2x64xf32>
    %c0_14 = arith.constant 0 : index
    %c0_15 = arith.constant 0 : index
    %18 = vector.load %arg7[%c0_14, %c0_15] : memref<64x64xf32, #tpu.memory_space<vmem>>, vector<64x64xf32>
    %cst_16 = arith.constant dense<0.000000e+00> : vector<2x64xf32>
    %19 = tpu.matmul %17, %18, %cst_16 {dimension_numbers = #tpu.dot_dimension_numbers<[1], [0], [0], [1], [0, 0, 1, 1], [], []>} : vector<2x64xf32>, vector<64x64xf32>, vector<2x64xf32> -> vector<2x64xf32>
    %c0_17 = arith.constant 0 : index
    %c0_18 = arith.constant 0 : index
    %20 = vector.load %arg8[%c0_17, %c0_18] : memref<1x64xf32, #tpu.memory_space<vmem>>, vector<1x64xf32>
    %21 = vector.broadcast %20 : vector<1x64xf32> to vector<2x64xf32>
    %22 = arith.addf %19, %21 : vector<2x64xf32>
    %cst_19 = arith.constant 0.000000e+00 : f32
    %23 = vector.broadcast %cst_19 : f32 to vector<2x64xf32>
    %24 = arith.maximumf %22, %23 : vector<2x64xf32>
    %c0_20 = arith.constant 0 : index
    %c0_21 = arith.constant 0 : index
    %25 = vector.load %arg9[%c0_20, %c0_21] : memref<64x512xf32, #tpu.memory_space<vmem>>, vector<64x512xf32>
    %cst_22 = arith.constant dense<0.000000e+00> : vector<2x512xf32>
    %26 = tpu.matmul %24, %25, %cst_22 {dimension_numbers = #tpu.dot_dimension_numbers<[1], [0], [0], [1], [0, 0, 1, 1], [], []>} : vector<2x64xf32>, vector<64x512xf32>, vector<2x512xf32> -> vector<2x512xf32>
    %c0_23 = arith.constant 0 : index
    %c0_24 = arith.constant 0 : index
    %27 = vector.load %arg10[%c0_23, %c0_24] : memref<1x512xf32, #tpu.memory_space<vmem>>, vector<1x512xf32>
    %28 = vector.broadcast %27 : vector<1x512xf32> to vector<2x512xf32>
    %29 = arith.addf %26, %28 : vector<2x512xf32>
    %cst_25 = arith.constant 0.000000e+00 : f32
    %30 = vector.broadcast %cst_25 : f32 to vector<2x512xf32>
    %31 = arith.maximumf %29, %30 : vector<2x512xf32>
    %c0_26 = arith.constant 0 : index
    %c0_27 = arith.constant 0 : index
    %32 = vector.load %arg11[%c0_26, %c0_27] : memref<512x16xf32, #tpu.memory_space<vmem>>, vector<512x16xf32>
    %cst_28 = arith.constant dense<0.000000e+00> : vector<2x16xf32>
    %33 = tpu.matmul %31, %32, %cst_28 {dimension_numbers = #tpu.dot_dimension_numbers<[1], [0], [0], [1], [0, 0, 1, 1], [], []>} : vector<2x512xf32>, vector<512x16xf32>, vector<2x16xf32> -> vector<2x16xf32>
    %c0_29 = arith.constant 0 : index
    %c0_30 = arith.constant 0 : index
    %34 = vector.load %arg12[%c0_29, %c0_30] : memref<1x16xf32, #tpu.memory_space<vmem>>, vector<1x16xf32>
    %35 = vector.broadcast %34 : vector<1x16xf32> to vector<2x16xf32>
    %36 = arith.addf %33, %35 : vector<2x16xf32>
    %c0_31 = arith.constant 0 : index
    %c0_32 = arith.constant 0 : index
    %37 = vector.load %arg13[%c0_31, %c0_32] : memref<2x16xf32, #tpu.memory_space<vmem>>, vector<2x16xf32>
    tpu.vector_store %arg13[%c0_31, %c0_32], %36 {strides = array<i32>} : memref<2x16xf32, #tpu.memory_space<vmem>>, vector<2x16xf32>,
    return
  }
  func.func @transform_0(%arg0: i32) -> (i32, i32) {
    %c0_i32 = arith.constant 0 : i32
    %c0_i32_0 = arith.constant 0 : i32
    %c0_i32_1 = arith.constant 0 : i32
    return %c0_i32, %c0_i32_0 : i32, i32
  }
  func.func @transform_1(%arg0: i32) -> (i32, i32) {
    %c0_i32 = arith.constant 0 : i32
    %c0_i32_0 = arith.constant 0 : i32
    %c0_i32_1 = arith.constant 0 : i32
    return %c0_i32, %c0_i32_0 : i32, i32
  }
  func.func @transform_2(%arg0: i32) -> (i32, i32) {
    %c0_i32 = arith.constant 0 : i32
    %c0_i32_0 = arith.constant 0 : i32
    %c0_i32_1 = arith.constant 0 : i32
    return %c0_i32, %c0_i32_0 : i32, i32
  }
  func.func @transform_3(%arg0: i32) -> (i32, i32) {
    %c0_i32 = arith.constant 0 : i32
    %c0_i32_0 = arith.constant 0 : i32
    %c0_i32_1 = arith.constant 0 : i32
    return %c0_i32, %c0_i32_0 : i32, i32
  }
  func.func @transform_4(%arg0: i32) -> (i32, i32) {
    %c0_i32 = arith.constant 0 : i32
    %c0_i32_0 = arith.constant 0 : i32
    %c0_i32_1 = arith.constant 0 : i32
    return %c0_i32, %c0_i32_0 : i32, i32
  }
  func.func @transform_5(%arg0: i32) -> (i32, i32) {
    %c0_i32 = arith.constant 0 : i32
    %c0_i32_0 = arith.constant 0 : i32
    %c0_i32_1 = arith.constant 0 : i32
    return %c0_i32, %c0_i32_0 : i32, i32
  }
  func.func @transform_6(%arg0: i32) -> (i32, i32) {
    %c0_i32 = arith.constant 0 : i32
    %c0_i32_0 = arith.constant 0 : i32
    %c0_i32_1 = arith.constant 0 : i32
    return %c0_i32, %c0_i32_0 : i32, i32
  }
  func.func @transform_7(%arg0: i32) -> (i32, i32) {
    %c0_i32 = arith.constant 0 : i32
    %c0_i32_0 = arith.constant 0 : i32
    %c0_i32_1 = arith.constant 0 : i32
    return %c0_i32, %c0_i32_0 : i32, i32
  }
  func.func @transform_8(%arg0: i32) -> (i32, i32) {
    %c0_i32 = arith.constant 0 : i32
    %c0_i32_0 = arith.constant 0 : i32
    %c0_i32_1 = arith.constant 0 : i32
    return %c0_i32, %c0_i32_0 : i32, i32
  }
  func.func @transform_9(%arg0: i32) -> (i32, i32) {
    %c0_i32 = arith.constant 0 : i32
    %c0_i32_0 = arith.constant 0 : i32
    %c0_i32_1 = arith.constant 0 : i32
    return %c0_i32, %c0_i32_0 : i32, i32
  }
  func.func @transform_10(%arg0: i32) -> (i32, i32) {
    %c0_i32 = arith.constant 0 : i32
    %c0_i32_0 = arith.constant 0 : i32
    %c0_i32_1 = arith.constant 0 : i32
    return %c0_i32, %c0_i32_0 : i32, i32
  }
  func.func @transform_11(%arg0: i32) -> (i32, i32) {
    %c0_i32 = arith.constant 0 : i32
    %c0_i32_0 = arith.constant 0 : i32
    %c0_i32_1 = arith.constant 0 : i32
    return %c0_i32, %c0_i32_0 : i32, i32
  }
  func.func @transform_12(%arg0: i32) -> (i32, i32) {
    %c0_i32 = arith.constant 0 : i32
    %c0_i32_0 = arith.constant 0 : i32
    %c0_i32_1 = arith.constant 0 : i32
    return %c0_i32, %c0_i32_0 : i32, i32
  }
}

</mosaic_0001>

<llo_original>
// kernel: forward.5
$region0: #{forward.5}
  #allocation0 [shape = 'u32[]', space=smem, size = 0x4, offset = 0x4, fixed_abs, tag = 'smem constant byte address 0x4 - core index']
  #allocation1 [shape = 'u32[144,128]{1,0:T(1,128)}', space=vmem, size = 0x12000, scoped, tag = 'internal scratch']
  %s0 = inlined_call_operand.vmem [shape: f32[64,4], index: 0, kind: input, shape index: {}]
  %s1 = inlined_call_operand.vmem [shape: s32[64,1], index: 1, kind: input, shape index: {}]
  %s2 = inlined_call_operand.vmem [shape: f32[3,32], index: 2, kind: input, shape index: {}]
  %s3 = inlined_call_operand.vmem [shape: f32[4,32], index: 3, kind: input, shape index: {}]
  %s4 = inlined_call_operand.vmem [shape: f32[1,32], index: 4, kind: input, shape index: {}]
  %s5 = inlined_call_operand.vmem [shape: f32[1,32], index: 5, kind: input, shape index: {}]
  %s6 = inlined_call_operand.vmem [shape: f32[32,64], index: 6, kind: input, shape index: {}]
  %s7 = inlined_call_operand.vmem [shape: f32[1,64], index: 7, kind: input, shape index: {}]
  %s8 = inlined_call_operand.vmem [shape: f32[1,64], index: 8, kind: input, shape index: {}]
  %s9 = inlined_call_operand.vmem [shape: f32[64,64], index: 9, kind: input, shape index: {}]
  %s10 = inlined_call_operand.vmem [shape: f32[32,64], index: 10, kind: input, shape index: {}]
  %s11 = inlined_call_operand.vmem [shape: f32[1,64], index: 11, kind: input, shape index: {}]
  %s12 = inlined_call_operand.vmem [shape: f32[1,64], index: 12, kind: input, shape index: {}]
  %s13 = inlined_call_operand.vmem [shape: f32[64,64], index: 13, kind: output, shape index: {}]
  %s14 = sld [smem:[#allocation0]]
  $region62: #{forward.5} parent=0
    _
  %s16 = ssub.s32 1, %s14
  %s17 = scalar_select 0, %s16, %s14
  // Predicated region
  $region2: #{forward.5} parent=0 // pred_check
    _
  $region3: #{forward.5} parent=0 // pred_check_branch
    %19 = sbr.rel (0) target = $region5
  $region4: #{forward.5} parent=0 // pred_region
    _
  $region5: #{forward.5} parent=0 // pred_fallthru
    _
  // Predicated region
  $region6: #{forward.5} parent=0 // pred_check
    _
  $region7: #{forward.5} parent=0 // pred_check_branch
    %21 = sbr.rel (0) target = $region9
  $region8: #{forward.5} parent=0 // pred_region
    _
  $region9: #{forward.5} parent=0 // pred_fallthru
    _
  // Predicated region
  $region10: #{forward.5} parent=0 // pred_check
    _
  $region11: #{forward.5} parent=0 // pred_check_branch
    %23 = sbr.rel (0) target = $region13
  $region12: #{forward.5} parent=0 // pred_region
    _
  $region13: #{forward.5} parent=0 // pred_fallthru
    _
  // Predicated region
  $region14: #{forward.5} parent=0 // pred_check
    _
  $region15: #{forward.5} parent=0 // pred_check_branch
    %25 = sbr.rel (0) target = $region17
  $region16: #{forward.5} parent=0 // pred_region
    _
  $region17: #{forward.5} parent=0 // pred_fallthru
    _
  // Predicated region
  $region18: #{forward.5} parent=0 // pred_check
    _
  $region19: #{forward.5} parent=0 // pred_check_branch
    %27 = sbr.rel (0) target = $region21
  $region20: #{forward.5} parent=0 // pred_region
    _
  $region21: #{forward.5} parent=0 // pred_fallthru
    _
  // Predicated region
  $region22: #{forward.5} parent=0 // pred_check
    _
  $region23: #{forward.5} parent=0 // pred_check_branch
    %29 = sbr.rel (0) target = $region25
  $region24: #{forward.5} parent=0 // pred_region
    _
  $region25: #{forward.5} parent=0 // pred_fallthru
    _
  // Predicated region
  $region26: #{forward.5} parent=0 // pred_check
    _
  $region27: #{forward.5} parent=0 // pred_check_branch
    %31 = sbr.rel (0) target = $region29
  $region28: #{forward.5} parent=0 // pred_region
    _
  $region29: #{forward.5} parent=0 // pred_fallthru
    _
  // Predicated region
  $region30: #{forward.5} parent=0 // pred_check
    _
  $region31: #{forward.5} parent=0 // pred_check_branch
    %33 = sbr.rel (0) target = $region33
  $region32: #{forward.5} parent=0 // pred_region
    _
  $region33: #{forward.5} parent=0 // pred_fallthru
    _
  // Predicated region
  $region34: #{forward.5} parent=0 // pred_check
    _
  $region35: #{forward.5} parent=0 // pred_check_branch
    %35 = sbr.rel (0) target = $region37
  $region36: #{forward.5} parent=0 // pred_region
    _
  $region37: #{forward.5} parent=0 // pred_fallthru
    _
  // Predicated region
  $region38: #{forward.5} parent=0 // pred_check
    _
  $region39: #{forward.5} parent=0 // pred_check_branch
    %37 = sbr.rel (0) target = $region41
  $region40: #{forward.5} parent=0 // pred_region
    _
  $region41: #{forward.5} parent=0 // pred_fallthru
    _
  // Predicated region
  $region42: #{forward.5} parent=0 // pred_check
    _
  $region43: #{forward.5} parent=0 // pred_check_branch
    %39 = sbr.rel (0) target = $region45
  $region44: #{forward.5} parent=0 // pred_region
    _
  $region45: #{forward.5} parent=0 // pred_fallthru
    _
  // Predicated region
  $region46: #{forward.5} parent=0 // pred_check
    _
  $region47: #{forward.5} parent=0 // pred_check_branch
    %41 = sbr.rel (0) target = $region49
  $region48: #{forward.5} parent=0 // pred_region
    _
  $region49: #{forward.5} parent=0 // pred_fallthru
    _
  // Predicated region
  $region50: #{forward.5} parent=0 // pred_check
    _
  $region51: #{forward.5} parent=0 // pred_check_branch
    %43 = sbr.rel (0) target = $region53
  $region52: #{forward.5} parent=0 // pred_region
    _
  $region53: #{forward.5} parent=0 // pred_fallthru
    _
  %v44 = vld [vmem:[%s0] sm:$0xff]
  %v45 = vld [vmem:[%s0 + $0x8] sm:$0xff]
  %v46 = vld [vmem:[%s0 + $0x10] sm:$0xff]
  %v47 = vld [vmem:[%s0 + $0x18] sm:$0xff]
  %v48 = vld [vmem:[%s0 + $0x20] sm:$0xff]
  %v49 = vld [vmem:[%s0 + $0x28] sm:$0xff]
  %v50 = vld [vmem:[%s0 + $0x30] sm:$0xff]
  %v51 = vld [vmem:[%s0 + $0x38] sm:$0xff]
  %v52 = vld [vmem:[%s3] sm:$0xf]
  %vm53 = vcmask 31744
  %v55 = vsel %vm53, %v44, 0
  %v58 = vsel %vm53, %v45, 0
  %v61 = vsel %vm53, %v46, 0
  %v64 = vsel %vm53, %v47, 0
  %v67 = vsel %vm53, %v48, 0
  %v70 = vsel %vm53, %v49, 0
  %v73 = vsel %vm53, %v50, 0
  %v76 = vsel %vm53, %v51, 0
  %vm78 = vcmask 1043456
  %v80 = vsel %vm78, %v52, 0
  %82 = vmatprep.subr.mxu0 0.0
  %83 = vmatpush1.msra.mxu0 %v80
  %84 = vmatprep.subr.mxu0 0.0
  %85 = vmatpush1.msra.mxu0 0.0
  %86 = vmatprep.subr.mxu0 0.0
  %87 = vmatpush1.msra.mxu0 0.0
  %88 = vmatprep.subr.mxu0 0.0
  %89 = vmatpush1.msra.mxu0 0.0
  %90 = vmatprep.subr.mxu0 0.0
  %91 = vmatpush1.msra.mxu0 0.0
  %92 = vmatprep.subr.mxu0 0.0
  %93 = vmatpush1.msra.mxu0 0.0
  %94 = vmatprep.subr.mxu0 0.0
  %95 = vmatpush1.msra.mxu0 0.0
  %96 = vmatprep.subr.mxu0 0.0
  %97 = vmatpush1.msra.mxu0 0.0
  %98 = vmatprep.subr.mxu0 0.0
  %99 = vmatpush1.msra.mxu0 0.0
  %100 = vmatprep.subr.mxu0 0.0
  %101 = vmatpush1.msra.mxu0 0.0
  %102 = vmatprep.subr.mxu0 0.0
  %103 = vmatpush1.msra.mxu0 0.0
  %104 = vmatprep.subr.mxu0 0.0
  %105 = vmatpush1.msra.mxu0 0.0
  %106 = vmatprep.subr.mxu0 0.0
  %107 = vmatpush1.msra.mxu0 0.0
  %108 = vmatprep.subr.mxu0 0.0
  %109 = vmatpush1.msra.mxu0 0.0
  %110 = vmatprep.subr.mxu0 0.0
  %111 = vmatpush1.msra.mxu0 0.0
  %112 = vmatprep.subr.mxu0 0.0
  %113 = vmatpush1.msra.mxu0 0.0
  %114 = vmatprep.subr.mxu0 0.0
  %115 = vmatpush1.msra.mxu0 0.0
  %116 = vmatprep.subr.mxu0 0.0
  %117 = vmatpush1.msra.mxu0 0.0
  %118 = vmatprep.subr.mxu0 0.0
  %119 = vmatpush1.msra.mxu0 0.0
  %120 = vmatprep.subr.mxu0 0.0
  %121 = vmatpush1.msra.mxu0 0.0
  %122 = vmatprep.subr.mxu0 0.0
  %123 = vmatpush1.msra.mxu0 0.0
  %124 = vmatprep.subr.mxu0 0.0
  %125 = vmatpush1.msra.mxu0 0.0
  %126 = vmatprep.subr.mxu0 0.0
  %127 = vmatpush1.msra.mxu0 0.0
  %128 = vmatprep.subr.mxu0 0.0
  %129 = vmatpush1.msra.mxu0 0.0
  %130 = vmatprep.subr.mxu0 0.0
  %131 = vmatpush1.msra.mxu0 0.0
  %132 = vmatprep.subr.mxu0 0.0
  %133 = vmatpush1.msra.mxu0 0.0
  %134 = vmatprep.subr.mxu0 0.0
  %135 = vmatpush1.msra.mxu0 0.0
  %136 = vmatprep.subr.mxu0 0.0
  %137 = vmatpush1.msra.mxu0 0.0
  %138 = vmatprep.subr.mxu0 0.0
  %139 = vmatpush1.msra.mxu0 0.0
  %140 = vmatprep.subr.mxu0 0.0
  %141 = vmatpush1.msra.mxu0 0.0
  %142 = vmatprep.subr.mxu0 0.0
  %143 = vmatpush1.msra.mxu0 0.0
  %144 = vmatprep.subr.mxu0 0.0
  %145 = vmatpush1.msra.mxu0 0.0
  %146 = vmatprep.mubr.f32.mxu0 0.0
  %147 = vmatmul.mubr.f32.gmra.mrb[0].mxu0 %v55
  %v148 = vpop.f32.mrb[0].mxu0
  %v149 = vadd.f32 0.0, %v148
  %v150 = vpop.f32.mrb[0].mxu0
  %151 = vmatprep.mubr.f32.mxu0 0.0
  %152 = vmatmul.mubr.f32.gmra.mrb[0].mxu0 %v58
  %v153 = vpop.f32.mrb[0].mxu0
  %v154 = vadd.f32 0.0, %v153
  %v155 = vpop.f32.mrb[0].mxu0
  %156 = vmatprep.mubr.f32.mxu0 0.0
  %157 = vmatmul.mubr.f32.gmra.mrb[0].mxu0 %v61
  %v158 = vpop.f32.mrb[0].mxu0
  %v159 = vadd.f32 0.0, %v158
  %v160 = vpop.f32.mrb[0].mxu0
  %161 = vmatprep.mubr.f32.mxu0 0.0
  %162 = vmatmul.mubr.f32.gmra.mrb[0].mxu0 %v64
  %v163 = vpop.f32.mrb[0].mxu0
  %v164 = vadd.f32 0.0, %v163
  %v165 = vpop.f32.mrb[0].mxu0
  %166 = vmatprep.mubr.f32.mxu0 0.0
  %167 = vmatmul.mubr.f32.gmra.mrb[0].mxu0 %v67
  %v168 = vpop.f32.mrb[0].mxu0
  %v169 = vadd.f32 0.0, %v168
  %v170 = vpop.f32.mrb[0].mxu0
  %171 = vmatprep.mubr.f32.mxu0 0.0
  %172 = vmatmul.mubr.f32.gmra.mrb[0].mxu0 %v70
  %v173 = vpop.f32.mrb[0].mxu0
  %v174 = vadd.f32 0.0, %v173
  %v175 = vpop.f32.mrb[0].mxu0
  %176 = vmatprep.mubr.f32.mxu0 0.0
  %177 = vmatmul.mubr.f32.gmra.mrb[0].mxu0 %v73
  %v178 = vpop.f32.mrb[0].mxu0
  %v179 = vadd.f32 0.0, %v178
  %v180 = vpop.f32.mrb[0].mxu0
  %181 = vmatprep.mubr.f32.mxu0 0.0
  %182 = vmatmul.mubr.f32.gmra.mrb[0].mxu0 %v76
  %v183 = vpop.f32.mrb[0].mxu0
  %v184 = vadd.f32 0.0, %v183
  %v185 = vpop.f32.mrb[0].mxu0
  %186 = vdwg.mxu0
  %v187 = vld [vmem:[%s4] sm:$0x1]
  %v189 = vlaneseq
  %v190 = vshrl.u32 %v189, 7
  %v191 = vsub.s32 0, %v190
  %v192 = vrot.slane %v187, %v191
  %v194 = vmul.f32 %v149, %v192
  %v195 = vmul.f32 %v154, %v192
  %v196 = vmul.f32 %v159, %v192
  %v197 = vmul.f32 %v164, %v192
  %v198 = vmul.f32 %v169, %v192
  %v199 = vmul.f32 %v174, %v192
  %v200 = vmul.f32 %v179, %v192
  %v201 = vmul.f32 %v184, %v192
  %v202 = vld [vmem:[%s5] sm:$0x1]
  %v204 = vlaneseq
  %v205 = vshrl.u32 %v204, 7
  %v206 = vsub.s32 0, %v205
  %v207 = vrot.slane %v202, %v206
  %v209 = vadd.f32 %v194, %v207
  %v210 = vadd.f32 %v195, %v207
  %v211 = vadd.f32 %v196, %v207
  %v212 = vadd.f32 %v197, %v207
  %v213 = vadd.f32 %v198, %v207
  %v214 = vadd.f32 %v199, %v207
  %v215 = vadd.f32 %v200, %v207
  %v216 = vadd.f32 %v201, %v207
  %v217 = vmax.f32 %v209, 0.0
  %v218 = vmax.f32 %v210, 0.0
  %v219 = vmax.f32 %v211, 0.0
  %v220 = vmax.f32 %v212, 0.0
  %v221 = vmax.f32 %v213, 0.0
  %v222 = vmax.f32 %v214, 0.0
  %v223 = vmax.f32 %v215, 0.0
  %v224 = vmax.f32 %v216, 0.0
  %v225 = vld [vmem:[%s6] sm:$0xff]
  %v226 = vld [vmem:[%s6 + $0x8] sm:$0xff]
  %v227 = vld [vmem:[%s6 + $0x10] sm:$0xff]
  %v228 = vld [vmem:[%s6 + $0x18] sm:$0xff]
  %vm229 = vcmask 261120
  %v231 = vsel %vm229, %v217, 0
  %v234 = vsel %vm229, %v218, 0
  %v237 = vsel %vm229, %v219, 0
  %v240 = vsel %vm229, %v220, 0
  %v243 = vsel %vm229, %v221, 0
  %v246 = vsel %vm229, %v222, 0
  %v249 = vsel %vm229, %v223, 0
  %v252 = vsel %vm229, %v224, 0
  %254 = vmatprep.subr.mxu0 0.0
  %255 = vmatpush1.msra.mxu0 %v225
  %256 = vmatprep.subr.mxu0 0.0
  %257 = vmatpush1.msra.mxu0 %v226
  %258 = vmatprep.subr.mxu0 0.0
  %259 = vmatpush1.msra.mxu0 %v227
  %260 = vmatprep.subr.mxu0 0.0
  %261 = vmatpush1.msra.mxu0 %v228
  %262 = vmatprep.subr.mxu0 0.0
  %263 = vmatpush1.msra.mxu0 0.0
  %264 = vmatprep.subr.mxu0 0.0
  %265 = vmatpush1.msra.mxu0 0.0
  %266 = vmatprep.subr.mxu0 0.0
  %267 = vmatpush1.msra.mxu0 0.0
  %268 = vmatprep.subr.mxu0 0.0
  %269 = vmatpush1.msra.mxu0 0.0
  %270 = vmatprep.subr.mxu0 0.0
  %271 = vmatpush1.msra.mxu0 0.0
  %272 = vmatprep.subr.mxu0 0.0
  %273 = vmatpush1.msra.mxu0 0.0
  %274 = vmatprep.subr.mxu0 0.0
  %275 = vmatpush1.msra.mxu0 0.0
  %276 = vmatprep.subr.mxu0 0.0
  %277 = vmatpush1.msra.mxu0 0.0
  %278 = vmatprep.subr.mxu0 0.0
  %279 = vmatpush1.msra.mxu0 0.0
  %280 = vmatprep.subr.mxu0 0.0
  %281 = vmatpush1.msra.mxu0 0.0
  %282 = vmatprep.subr.mxu0 0.0
  %283 = vmatpush1.msra.mxu0 0.0
  %284 = vmatprep.subr.mxu0 0.0
  %285 = vmatpush1.msra.mxu0 0.0
  %286 = vmatprep.subr.mxu0 0.0
  %287 = vmatpush1.msra.mxu0 0.0
  %288 = vmatprep.subr.mxu0 0.0
  %289 = vmatpush1.msra.mxu0 0.0
  %290 = vmatprep.subr.mxu0 0.0
  %291 = vmatpush1.msra.mxu0 0.0
  %292 = vmatprep.subr.mxu0 0.0
  %293 = vmatpush1.msra.mxu0 0.0
  %294 = vmatprep.subr.mxu0 0.0
  %295 = vmatpush1.msra.mxu0 0.0
  %296 = vmatprep.subr.mxu0 0.0
  %297 = vmatpush1.msra.mxu0 0.0
  %298 = vmatprep.subr.mxu0 0.0
  %299 = vmatpush1.msra.mxu0 0.0
  %300 = vmatprep.subr.mxu0 0.0
  %301 = vmatpush1.msra.mxu0 0.0
  %302 = vmatprep.subr.mxu0 0.0
  %303 = vmatpush1.msra.mxu0 0.0
  %304 = vmatprep.subr.mxu0 0.0
  %305 = vmatpush1.msra.mxu0 0.0
  %306 = vmatprep.subr.mxu0 0.0
  %307 = vmatpush1.msra.mxu0 0.0
  %308 = vmatprep.subr.mxu0 0.0
  %309 = vmatpush1.msra.mxu0 0.0
  %310 = vmatprep.subr.mxu0 0.0
  %311 = vmatpush1.msra.mxu0 0.0
  %312 = vmatprep.subr.mxu0 0.0
  %313 = vmatpush1.msra.mxu0 0.0
  %314 = vmatprep.subr.mxu0 0.0
  %315 = vmatpush1.msra.mxu0 0.0
  %316 = vmatprep.subr.mxu0 0.0
  %317 = vmatpush1.msra.mxu0 0.0
  %318 = vmatprep.mubr.f32.mxu0 0.0
  %319 = vmatmul.mubr.f32.gmra.mrb[0].mxu0 %v231
  %v320 = vpop.f32.mrb[0].mxu0
  %v321 = vadd.f32 0.0, %v320
  %v322 = vpop.f32.mrb[0].mxu0
  %323 = vmatprep.mubr.f32.mxu0 0.0
  %324 = vmatmul.mubr.f32.gmra.mrb[0].mxu0 %v234
  %v325 = vpop.f32.mrb[0].mxu0
  %v326 = vadd.f32 0.0, %v325
  %v327 = vpop.f32.mrb[0].mxu0
  %328 = vmatprep.mubr.f32.mxu0 0.0
  %329 = vmatmul.mubr.f32.gmra.mrb[0].mxu0 %v237
  %v330 = vpop.f32.mrb[0].mxu0
  %v331 = vadd.f32 0.0, %v330
  %v332 = vpop.f32.mrb[0].mxu0
  %333 = vmatprep.mubr.f32.mxu0 0.0
  %334 = vmatmul.mubr.f32.gmra.mrb[0].mxu0 %v240
  %v335 = vpop.f32.mrb[0].mxu0
  %v336 = vadd.f32 0.0, %v335
  %v337 = vpop.f32.mrb[0].mxu0
  %338 = vmatprep.mubr.f32.mxu0 0.0
  %339 = vmatmul.mubr.f32.gmra.mrb[0].mxu0 %v243
  %v340 = vpop.f32.mrb[0].mxu0
  %v341 = vadd.f32 0.0, %v340
  %v342 = vpop.f32.mrb[0].mxu0
  %343 = vmatprep.mubr.f32.mxu0 0.0
  %344 = vmatmul.mubr.f32.gmra.mrb[0].mxu0 %v246
  %v345 = vpop.f32.mrb[0].mxu0
  %v346 = vadd.f32 0.0, %v345
  %v347 = vpop.f32.mrb[0].mxu0
  %348 = vmatprep.mubr.f32.mxu0 0.0
  %349 = vmatmul.mubr.f32.gmra.mrb[0].mxu0 %v249
  %v350 = vpop.f32.mrb[0].mxu0
  %v351 = vadd.f32 0.0, %v350
  %v352 = vpop.f32.mrb[0].mxu0
  %353 = vmatprep.mubr.f32.mxu0 0.0
  %354 = vmatmul.mubr.f32.gmra.mrb[0].mxu0 %v252
  %v355 = vpop.f32.mrb[0].mxu0
  %v356 = vadd.f32 0.0, %v355
  %v357 = vpop.f32.mrb[0].mxu0
  %358 = vdwg.mxu0
  %v359 = vld [vmem:[%s7] sm:$0x1]
  %v361 = vlaneseq
  %v362 = vshrl.u32 %v361, 7
  %v363 = vsub.s32 0, %v362
  %v364 = vrot.slane %v359, %v363
  %v366 = vmul.f32 %v321, %v364
  %v367 = vmul.f32 %v326, %v364
  %v368 = vmul.f32 %v331, %v364
  %v369 = vmul.f32 %v336, %v364
  %v370 = vmul.f32 %v341, %v364
  %v371 = vmul.f32 %v346, %v364
  %v372 = vmul.f32 %v351, %v364
  %v373 = vmul.f32 %v356, %v364
  %v374 = vld [vmem:[%s8] sm:$0x1]
  %v376 = vlaneseq
  %v377 = vshrl.u32 %v376, 7
  %v378 = vsub.s32 0, %v377
  %v379 = vrot.slane %v374, %v378
  %v381 = vadd.f32 %v366, %v379
  %v382 = vadd.f32 %v367, %v379
  %v383 = vadd.f32 %v368, %v379
  %v384 = vadd.f32 %v369, %v379
  %v385 = vadd.f32 %v370, %v379
  %v386 = vadd.f32 %v371, %v379
  %v387 = vadd.f32 %v372, %v379
  %v388 = vadd.f32 %v373, %v379
  %v389 = vmax.f32 %v381, 0.0
  %v390 = vmax.f32 %v382, 0.0
  %v391 = vmax.f32 %v383, 0.0
  %v392 = vmax.f32 %v384, 0.0
  %v393 = vmax.f32 %v385, 0.0
  %v394 = vmax.f32 %v386, 0.0
  %v395 = vmax.f32 %v387, 0.0
  %v396 = vmax.f32 %v388, 0.0
  %v397 = vld [vmem:[%s1] sm:$0xff]
  %v398 = vld [vmem:[%s1 + $0x8] sm:$0xff]
  %v399 = vld [vmem:[%s1 + $0x10] sm:$0xff]
  %v400 = vld [vmem:[%s1 + $0x18] sm:$0xff]
  %v401 = vld [vmem:[%s1 + $0x20] sm:$0xff]
  %v402 = vld [vmem:[%s1 + $0x28] sm:$0xff]
  %v403 = vld [vmem:[%s1 + $0x30] sm:$0xff]
  %v404 = vld [vmem:[%s1 + $0x38] sm:$0xff]
  %v405 = vld [vmem:[%s2] sm:$0x7]
  %vm406 = vcmp.eq.s32.totalorder %v397, 0
  %vm407 = vcmp.eq.s32.totalorder %v398, 0
  %vm408 = vcmp.eq.s32.totalorder %v399, 0
  %vm409 = vcmp.eq.s32.totalorder %v400, 0
  %vm410 = vcmp.eq.s32.totalorder %v401, 0
  %vm411 = vcmp.eq.s32.totalorder %v402, 0
  %vm412 = vcmp.eq.s32.totalorder %v403, 0
  %vm413 = vcmp.eq.s32.totalorder %v404, 0
  %v414 = vsel %vm406, 1, 0
  %v415 = vsel %vm407, 1, 0
  %v416 = vsel %vm408, 1, 0
  %v417 = vsel %vm409, 1, 0
  %v418 = vsel %vm410, 1, 0
  %v419 = vsel %vm411, 1, 0
  %v420 = vsel %vm412, 1, 0
  %v421 = vsel %vm413, 1, 0
  %v422 = vcvt.s32.f32 %v414
  %v423 = vcvt.s32.f32 %v415
  %v424 = vcvt.s32.f32 %v416
  %v425 = vcvt.s32.f32 %v417
  %v426 = vcvt.s32.f32 %v418
  %v427 = vcvt.s32.f32 %v419
  %v428 = vcvt.s32.f32 %v420
  %v429 = vcvt.s32.f32 %v421
  %431 = vset.pattern.permute.xlu0 0
  %432 = vperm.xlu0 %431, %v422
  %v433 = vpop.permute.xlu0 %432
  %436 = vset.pattern.permute.xlu0 0
  %437 = vperm.xlu0 %436, %v423
  %v438 = vpop.permute.xlu0 %437
  %441 = vset.pattern.permute.xlu0 0
  %442 = vperm.xlu0 %441, %v424
  %v443 = vpop.permute.xlu0 %442
  %446 = vset.pattern.permute.xlu0 0
  %447 = vperm.xlu0 %446, %v425
  %v448 = vpop.permute.xlu0 %447
  %451 = vset.pattern.permute.xlu0 0
  %452 = vperm.xlu0 %451, %v426
  %v453 = vpop.permute.xlu0 %452
  %456 = vset.pattern.permute.xlu0 0
  %457 = vperm.xlu0 %456, %v427
  %v458 = vpop.permute.xlu0 %457
  %461 = vset.pattern.permute.xlu0 0
  %462 = vperm.xlu0 %461, %v428
  %v463 = vpop.permute.xlu0 %462
  %466 = vset.pattern.permute.xlu0 0
  %467 = vperm.xlu0 %466, %v429
  %v468 = vpop.permute.xlu0 %467
  %v470 = vlaneseq
  %v471 = vshrl.u32 %v470, 7
  %v472 = vsub.s32 0, %v471
  %v473 = vrot.slane %v405, %v472
  %v474 = vmul.f32 %v433, %v473
  %v475 = vmul.f32 %v438, %v473
  %v476 = vmul.f32 %v443, %v473
  %v477 = vmul.f32 %v448, %v473
  %v478 = vmul.f32 %v453, %v473
  %v479 = vmul.f32 %v458, %v473
  %v480 = vmul.f32 %v463, %v473
  %v481 = vmul.f32 %v468, %v473
  %vm482 = vcmp.eq.s32.totalorder %v397, 1
  %vm483 = vcmp.eq.s32.totalorder %v398, 1
  %vm484 = vcmp.eq.s32.totalorder %v399, 1
  %vm485 = vcmp.eq.s32.totalorder %v400, 1
  %vm486 = vcmp.eq.s32.totalorder %v401, 1
  %vm487 = vcmp.eq.s32.totalorder %v402, 1
  %vm488 = vcmp.eq.s32.totalorder %v403, 1
  %vm489 = vcmp.eq.s32.totalorder %v404, 1
  %v490 = vsel %vm482, 1, 0
  %v491 = vsel %vm483, 1, 0
  %v492 = vsel %vm484, 1, 0
  %v493 = vsel %vm485, 1, 0
  %v494 = vsel %vm486, 1, 0
  %v495 = vsel %vm487, 1, 0
  %v496 = vsel %vm488, 1, 0
  %v497 = vsel %vm489, 1, 0
  %v498 = vcvt.s32.f32 %v490
  %v499 = vcvt.s32.f32 %v491
  %v500 = vcvt.s32.f32 %v492
  %v501 = vcvt.s32.f32 %v493
  %v502 = vcvt.s32.f32 %v494
  %v503 = vcvt.s32.f32 %v495
  %v504 = vcvt.s32.f32 %v496
  %v505 = vcvt.s32.f32 %v497
  %507 = vset.pattern.permute.xlu0 0
  %508 = vperm.xlu0 %507, %v498
  %v509 = vpop.permute.xlu0 %508
  %512 = vset.pattern.permute.xlu0 0
  %513 = vperm.xlu0 %512, %v499
  %v514 = vpop.permute.xlu0 %513
  %517 = vset.pattern.permute.xlu0 0
  %518 = vperm.xlu0 %517, %v500
  %v519 = vpop.permute.xlu0 %518
  %522 = vset.pattern.permute.xlu0 0
  %523 = vperm.xlu0 %522, %v501
  %v524 = vpop.permute.xlu0 %523
  %527 = vset.pattern.permute.xlu0 0
  %528 = vperm.xlu0 %527, %v502
  %v529 = vpop.permute.xlu0 %528
  %532 = vset.pattern.permute.xlu0 0
  %533 = vperm.xlu0 %532, %v503
  %v534 = vpop.permute.xlu0 %533
  %537 = vset.pattern.permute.xlu0 0
  %538 = vperm.xlu0 %537, %v504
  %v539 = vpop.permute.xlu0 %538
  %542 = vset.pattern.permute.xlu0 0
  %543 = vperm.xlu0 %542, %v505
  %v544 = vpop.permute.xlu0 %543
  %v546 = vlaneseq
  %v547 = vshrl.u32 %v546, 7
  %v548 = vsub.s32 1, %v547
  %v549 = vrot.slane %v405, %v548
  %v550 = vmul.f32 %v509, %v549
  %v551 = vmul.f32 %v514, %v549
  %v552 = vmul.f32 %v519, %v549
  %v553 = vmul.f32 %v524, %v549
  %v554 = vmul.f32 %v529, %v549
  %v555 = vmul.f32 %v534, %v549
  %v556 = vmul.f32 %v539, %v549
  %v557 = vmul.f32 %v544, %v549
  %v558 = vadd.f32 %v474, %v550
  %v559 = vadd.f32 %v475, %v551
  %v560 = vadd.f32 %v476, %v552
  %v561 = vadd.f32 %v477, %v553
  %v562 = vadd.f32 %v478, %v554
  %v563 = vadd.f32 %v479, %v555
  %v564 = vadd.f32 %v480, %v556
  %v565 = vadd.f32 %v481, %v557
  %vm566 = vcmp.eq.s32.totalorder %v397, 2
  %vm567 = vcmp.eq.s32.totalorder %v398, 2
  %vm568 = vcmp.eq.s32.totalorder %v399, 2
  %vm569 = vcmp.eq.s32.totalorder %v400, 2
  %vm570 = vcmp.eq.s32.totalorder %v401, 2
  %vm571 = vcmp.eq.s32.totalorder %v402, 2
  %vm572 = vcmp.eq.s32.totalorder %v403, 2
  %vm573 = vcmp.eq.s32.totalorder %v404, 2
  %v574 = vsel %vm566, 1, 0
  %v575 = vsel %vm567, 1, 0
  %v576 = vsel %vm568, 1, 0
  %v577 = vsel %vm569, 1, 0
  %v578 = vsel %vm570, 1, 0
  %v579 = vsel %vm571, 1, 0
  %v580 = vsel %vm572, 1, 0
  %v581 = vsel %vm573, 1, 0
  %v582 = vcvt.s32.f32 %v574
  %v583 = vcvt.s32.f32 %v575
  %v584 = vcvt.s32.f32 %v576
  %v585 = vcvt.s32.f32 %v577
  %v586 = vcvt.s32.f32 %v578
  %v587 = vcvt.s32.f32 %v579
  %v588 = vcvt.s32.f32 %v580
  %v589 = vcvt.s32.f32 %v581
  %591 = vset.pattern.permute.xlu0 0
  %592 = vperm.xlu0 %591, %v582
  %v593 = vpop.permute.xlu0 %592
  %596 = vset.pattern.permute.xlu0 0
  %597 = vperm.xlu0 %596, %v583
  %v598 = vpop.permute.xlu0 %597
  %601 = vset.pattern.permute.xlu0 0
  %602 = vperm.xlu0 %601, %v584
  %v603 = vpop.permute.xlu0 %602
  %606 = vset.pattern.permute.xlu0 0
  %607 = vperm.xlu0 %606, %v585
  %v608 = vpop.permute.xlu0 %607
  %611 = vset.pattern.permute.xlu0 0
  %612 = vperm.xlu0 %611, %v586
  %v613 = vpop.permute.xlu0 %612
  %616 = vset.pattern.permute.xlu0 0
  %617 = vperm.xlu0 %616, %v587
  %v618 = vpop.permute.xlu0 %617
  %621 = vset.pattern.permute.xlu0 0
  %622 = vperm.xlu0 %621, %v588
  %v623 = vpop.permute.xlu0 %622
  %626 = vset.pattern.permute.xlu0 0
  %627 = vperm.xlu0 %626, %v589
  %v628 = vpop.permute.xlu0 %627
  %v630 = vlaneseq
  %v631 = vshrl.u32 %v630, 7
  %v632 = vsub.s32 2, %v631
  %v633 = vrot.slane %v405, %v632
  %v634 = vmul.f32 %v593, %v633
  %v635 = vmul.f32 %v598, %v633
  %v636 = vmul.f32 %v603, %v633
  %v637 = vmul.f32 %v608, %v633
  %v638 = vmul.f32 %v613, %v633
  %v639 = vmul.f32 %v618, %v633
  %v640 = vmul.f32 %v623, %v633
  %v641 = vmul.f32 %v628, %v633
  %v642 = vadd.f32 %v558, %v634
  %v643 = vadd.f32 %v559, %v635
  %v644 = vadd.f32 %v560, %v636
  %v645 = vadd.f32 %v561, %v637
  %v646 = vadd.f32 %v562, %v638
  %v647 = vadd.f32 %v563, %v639
  %v648 = vadd.f32 %v564, %v640
  %v649 = vadd.f32 %v565, %v641
  %v650 = vld [vmem:[%s9] sm:$0xff]
  %v651 = vld [vmem:[%s9 + $0x8] sm:$0xff]
  %v652 = vld [vmem:[%s9 + $0x10] sm:$0xff]
  %v653 = vld [vmem:[%s9 + $0x18] sm:$0xff]
  %v654 = vld [vmem:[%s9 + $0x20] sm:$0xff]
  %v655 = vld [vmem:[%s9 + $0x28] sm:$0xff]
  %v656 = vld [vmem:[%s9 + $0x30] sm:$0xff]
  %v657 = vld [vmem:[%s9 + $0x38] sm:$0xff]
  %v658 = vld [vmem:[%s10] sm:$0xff]
  %v659 = vld [vmem:[%s10 + $0x8] sm:$0xff]
  %v660 = vld [vmem:[%s10 + $0x10] sm:$0xff]
  %v661 = vld [vmem:[%s10 + $0x18] sm:$0xff]
  %v663 = vsel %vm229, %v642, 0
  %v666 = vsel %vm229, %v643, 0
  %v669 = vsel %vm229, %v644, 0
  %v672 = vsel %vm229, %v645, 0
  %v675 = vsel %vm229, %v646, 0
  %v678 = vsel %vm229, %v647, 0
  %v681 = vsel %vm229, %v648, 0
  %v684 = vsel %vm229, %v649, 0
  %686 = vmatprep.subr.mxu0 0.0
  %687 = vmatpush1.msra.mxu0 %v658
  %688 = vmatprep.subr.mxu0 0.0
  %689 = vmatpush1.msra.mxu0 %v659
  %690 = vmatprep.subr.mxu0 0.0
  %691 = vmatpush1.msra.mxu0 %v660
  %692 = vmatprep.subr.mxu0 0.0
  %693 = vmatpush1.msra.mxu0 %v661
  %694 = vmatprep.subr.mxu0 0.0
  %695 = vmatpush1.msra.mxu0 0.0
  %696 = vmatprep.subr.mxu0 0.0
  %697 = vmatpush1.msra.mxu0 0.0
  %698 = vmatprep.subr.mxu0 0.0
  %699 = vmatpush1.msra.mxu0 0.0
  %700 = vmatprep.subr.mxu0 0.0
  %701 = vmatpush1.msra.mxu0 0.0
  %702 = vmatprep.subr.mxu0 0.0
  %703 = vmatpush1.msra.mxu0 0.0
  %704 = vmatprep.subr.mxu0 0.0
  %705 = vmatpush1.msra.mxu0 0.0
  %706 = vmatprep.subr.mxu0 0.0
  %707 = vmatpush1.msra.mxu0 0.0
  %708 = vmatprep.subr.mxu0 0.0
  %709 = vmatpush1.msra.mxu0 0.0
  %710 = vmatprep.subr.mxu0 0.0
  %711 = vmatpush1.msra.mxu0 0.0
  %712 = vmatprep.subr.mxu0 0.0
  %713 = vmatpush1.msra.mxu0 0.0
  %714 = vmatprep.subr.mxu0 0.0
  %715 = vmatpush1.msra.mxu0 0.0
  %716 = vmatprep.subr.mxu0 0.0
  %717 = vmatpush1.msra.mxu0 0.0
  %718 = vmatprep.subr.mxu0 0.0
  %719 = vmatpush1.msra.mxu0 0.0
  %720 = vmatprep.subr.mxu0 0.0
  %721 = vmatpush1.msra.mxu0 0.0
  %722 = vmatprep.subr.mxu0 0.0
  %723 = vmatpush1.msra.mxu0 0.0
  %724 = vmatprep.subr.mxu0 0.0
  %725 = vmatpush1.msra.mxu0 0.0
  %726 = vmatprep.subr.mxu0 0.0
  %727 = vmatpush1.msra.mxu0 0.0
  %728 = vmatprep.subr.mxu0 0.0
  %729 = vmatpush1.msra.mxu0 0.0
  %730 = vmatprep.subr.mxu0 0.0
  %731 = vmatpush1.msra.mxu0 0.0
  %732 = vmatprep.subr.mxu0 0.0
  %733 = vmatpush1.msra.mxu0 0.0
  %734 = vmatprep.subr.mxu0 0.0
  %735 = vmatpush1.msra.mxu0 0.0
  %736 = vmatprep.subr.mxu0 0.0
  %737 = vmatpush1.msra.mxu0 0.0
  %738 = vmatprep.subr.mxu0 0.0
  %739 = vmatpush1.msra.mxu0 0.0
  %740 = vmatprep.subr.mxu0 0.0
  %741 = vmatpush1.msra.mxu0 0.0
  %742 = vmatprep.subr.mxu0 0.0
  %743 = vmatpush1.msra.mxu0 0.0
  %744 = vmatprep.subr.mxu0 0.0
  %745 = vmatpush1.msra.mxu0 0.0
  %746 = vmatprep.subr.mxu0 0.0
  %747 = vmatpush1.msra.mxu0 0.0
  %748 = vmatprep.subr.mxu0 0.0
  %749 = vmatpush1.msra.mxu0 0.0
  %750 = vmatprep.mubr.f32.mxu0 0.0
  %751 = vmatmul.mubr.f32.gmra.mrb[0].mxu0 %v663
  %v752 = vpop.f32.mrb[0].mxu0
  %v753 = vadd.f32 0.0, %v752
  %v754 = vpop.f32.mrb[0].mxu0
  %755 = vmatprep.mubr.f32.mxu0 0.0
  %756 = vmatmul.mubr.f32.gmra.mrb[0].mxu0 %v666
  %v757 = vpop.f32.mrb[0].mxu0
  %v758 = vadd.f32 0.0, %v757
  %v759 = vpop.f32.mrb[0].mxu0
  %760 = vmatprep.mubr.f32.mxu0 0.0
  %761 = vmatmul.mubr.f32.gmra.mrb[0].mxu0 %v669
  %v762 = vpop.f32.mrb[0].mxu0
  %v763 = vadd.f32 0.0, %v762
  %v764 = vpop.f32.mrb[0].mxu0
  %765 = vmatprep.mubr.f32.mxu0 0.0
  %766 = vmatmul.mubr.f32.gmra.mrb[0].mxu0 %v672
  %v767 = vpop.f32.mrb[0].mxu0
  %v768 = vadd.f32 0.0, %v767
  %v769 = vpop.f32.mrb[0].mxu0
  %770 = vmatprep.mubr.f32.mxu0 0.0
  %771 = vmatmul.mubr.f32.gmra.mrb[0].mxu0 %v675
  %v772 = vpop.f32.mrb[0].mxu0
  %v773 = vadd.f32 0.0, %v772
  %v774 = vpop.f32.mrb[0].mxu0
  %775 = vmatprep.mubr.f32.mxu0 0.0
  %776 = vmatmul.mubr.f32.gmra.mrb[0].mxu0 %v678
  %v777 = vpop.f32.mrb[0].mxu0
  %v778 = vadd.f32 0.0, %v777
  %v779 = vpop.f32.mrb[0].mxu0
  %780 = vmatprep.mubr.f32.mxu0 0.0
  %781 = vmatmul.mubr.f32.gmra.mrb[0].mxu0 %v681
  %v782 = vpop.f32.mrb[0].mxu0
  %v783 = vadd.f32 0.0, %v782
  %v784 = vpop.f32.mrb[0].mxu0
  %785 = vmatprep.mubr.f32.mxu0 0.0
  %786 = vmatmul.mubr.f32.gmra.mrb[0].mxu0 %v684
  %v787 = vpop.f32.mrb[0].mxu0
  %v788 = vadd.f32 0.0, %v787
  %v789 = vpop.f32.mrb[0].mxu0
  %790 = vdwg.mxu0
  %vm791 = vcmask 523264
  %v793 = vsel %vm791, %v389, 0
  %v796 = vsel %vm791, %v390, 0
  %v799 = vsel %vm791, %v391, 0
  %v802 = vsel %vm791, %v392, 0
  %v805 = vsel %vm791, %v393, 0
  %v808 = vsel %vm791, %v394, 0
  %v811 = vsel %vm791, %v395, 0
  %v814 = vsel %vm791, %v396, 0
  %816 = vmatprep.subr.mxu0 0.0
  %817 = vmatpush1.msra.mxu0 %v650
  %818 = vmatprep.subr.mxu0 0.0
  %819 = vmatpush1.msra.mxu0 %v651
  %820 = vmatprep.subr.mxu0 0.0
  %821 = vmatpush1.msra.mxu0 %v652
  %822 = vmatprep.subr.mxu0 0.0
  %823 = vmatpush1.msra.mxu0 %v653
  %824 = vmatprep.subr.mxu0 0.0
  %825 = vmatpush1.msra.mxu0 %v654
  %826 = vmatprep.subr.mxu0 0.0
  %827 = vmatpush1.msra.mxu0 %v655
  %828 = vmatprep.subr.mxu0 0.0
  %829 = vmatpush1.msra.mxu0 %v656
  %830 = vmatprep.subr.mxu0 0.0
  %831 = vmatpush1.msra.mxu0 %v657
  %832 = vmatprep.subr.mxu0 0.0
  %833 = vmatpush1.msra.mxu0 0.0
  %834 = vmatprep.subr.mxu0 0.0
  %835 = vmatpush1.msra.mxu0 0.0
  %836 = vmatprep.subr.mxu0 0.0
  %837 = vmatpush1.msra.mxu0 0.0
  %838 = vmatprep.subr.mxu0 0.0
  %839 = vmatpush1.msra.mxu0 0.0
  %840 = vmatprep.subr.mxu0 0.0
  %841 = vmatpush1.msra.mxu0 0.0
  %842 = vmatprep.subr.mxu0 0.0
  %843 = vmatpush1.msra.mxu0 0.0
  %844 = vmatprep.subr.mxu0 0.0
  %845 = vmatpush1.msra.mxu0 0.0
  %846 = vmatprep.subr.mxu0 0.0
  %847 = vmatpush1.msra.mxu0 0.0
  %848 = vmatprep.subr.mxu0 0.0
  %849 = vmatpush1.msra.mxu0 0.0
  %850 = vmatprep.subr.mxu0 0.0
  %851 = vmatpush1.msra.mxu0 0.0
  %852 = vmatprep.subr.mxu0 0.0
  %853 = vmatpush1.msra.mxu0 0.0
  %854 = vmatprep.subr.mxu0 0.0
  %855 = vmatpush1.msra.mxu0 0.0
  %856 = vmatprep.subr.mxu0 0.0
  %857 = vmatpush1.msra.mxu0 0.0
  %858 = vmatprep.subr.mxu0 0.0
  %859 = vmatpush1.msra.mxu0 0.0
  %860 = vmatprep.subr.mxu0 0.0
  %861 = vmatpush1.msra.mxu0 0.0
  %862 = vmatprep.subr.mxu0 0.0
  %863 = vmatpush1.msra.mxu0 0.0
  %864 = vmatprep.subr.mxu0 0.0
  %865 = vmatpush1.msra.mxu0 0.0
  %866 = vmatprep.subr.mxu0 0.0
  %867 = vmatpush1.msra.mxu0 0.0
  %868 = vmatprep.subr.mxu0 0.0
  %869 = vmatpush1.msra.mxu0 0.0
  %870 = vmatprep.subr.mxu0 0.0
  %871 = vmatpush1.msra.mxu0 0.0
  %872 = vmatprep.subr.mxu0 0.0
  %873 = vmatpush1.msra.mxu0 0.0
  %874 = vmatprep.subr.mxu0 0.0
  %875 = vmatpush1.msra.mxu0 0.0
  %876 = vmatprep.subr.mxu0 0.0
  %877 = vmatpush1.msra.mxu0 0.0
  %878 = vmatprep.subr.mxu0 0.0
  %879 = vmatpush1.msra.mxu0 0.0
  %880 = vmatprep.mubr.f32.mxu0 0.0
  %881 = vmatmul.mubr.f32.gmra.mrb[0].mxu0 %v793
  %v882 = vpop.f32.mrb[0].mxu0
  %v883 = vadd.f32 %v753, %v882
  %v884 = vpop.f32.mrb[0].mxu0
  %885 = vmatprep.mubr.f32.mxu0 0.0
  %886 = vmatmul.mubr.f32.gmra.mrb[0].mxu0 %v796
  %v887 = vpop.f32.mrb[0].mxu0
  %v888 = vadd.f32 %v758, %v887
  %v889 = vpop.f32.mrb[0].mxu0
  %890 = vmatprep.mubr.f32.mxu0 0.0
  %891 = vmatmul.mubr.f32.gmra.mrb[0].mxu0 %v799
  %v892 = vpop.f32.mrb[0].mxu0
  %v893 = vadd.f32 %v763, %v892
  %v894 = vpop.f32.mrb[0].mxu0
  %895 = vmatprep.mubr.f32.mxu0 0.0
  %896 = vmatmul.mubr.f32.gmra.mrb[0].mxu0 %v802
  %v897 = vpop.f32.mrb[0].mxu0
  %v898 = vadd.f32 %v768, %v897
  %v899 = vpop.f32.mrb[0].mxu0
  %900 = vmatprep.mubr.f32.mxu0 0.0
  %901 = vmatmul.mubr.f32.gmra.mrb[0].mxu0 %v805
  %v902 = vpop.f32.mrb[0].mxu0
  %v903 = vadd.f32 %v773, %v902
  %v904 = vpop.f32.mrb[0].mxu0
  %905 = vmatprep.mubr.f32.mxu0 0.0
  %906 = vmatmul.mubr.f32.gmra.mrb[0].mxu0 %v808
  %v907 = vpop.f32.mrb[0].mxu0
  %v908 = vadd.f32 %v778, %v907
  %v909 = vpop.f32.mrb[0].mxu0
  %910 = vmatprep.mubr.f32.mxu0 0.0
  %911 = vmatmul.mubr.f32.gmra.mrb[0].mxu0 %v811
  %v912 = vpop.f32.mrb[0].mxu0
  %v913 = vadd.f32 %v783, %v912
  %v914 = vpop.f32.mrb[0].mxu0
  %915 = vmatprep.mubr.f32.mxu0 0.0
  %916 = vmatmul.mubr.f32.gmra.mrb[0].mxu0 %v814
  %v917 = vpop.f32.mrb[0].mxu0
  %v918 = vadd.f32 %v788, %v917
  %v919 = vpop.f32.mrb[0].mxu0
  %920 = vdwg.mxu0
  %v921 = vld [vmem:[%s11] sm:$0x1]
  %v923 = vlaneseq
  %v924 = vshrl.u32 %v923, 7
  %v925 = vsub.s32 0, %v924
  %v926 = vrot.slane %v921, %v925
  %v928 = vmul.f32 %v883, %v926
  %v929 = vmul.f32 %v888, %v926
  %v930 = vmul.f32 %v893, %v926
  %v931 = vmul.f32 %v898, %v926
  %v932 = vmul.f32 %v903, %v926
  %v933 = vmul.f32 %v908, %v926
  %v934 = vmul.f32 %v913, %v926
  %v935 = vmul.f32 %v918, %v926
  %v936 = vld [vmem:[%s12] sm:$0x1]
  %v938 = vlaneseq
  %v939 = vshrl.u32 %v938, 7
  %v940 = vsub.s32 0, %v939
  %v941 = vrot.slane %v936, %v940
  %v943 = vadd.f32 %v928, %v941
  %v944 = vadd.f32 %v929, %v941
  %v945 = vadd.f32 %v930, %v941
  %v946 = vadd.f32 %v931, %v941
  %v947 = vadd.f32 %v932, %v941
  %v948 = vadd.f32 %v933, %v941
  %v949 = vadd.f32 %v934, %v941
  %v950 = vadd.f32 %v935, %v941
  %v951 = vmax.f32 %v943, 0.0
  %v952 = vmax.f32 %v944, 0.0
  %v953 = vmax.f32 %v945, 0.0
  %v954 = vmax.f32 %v946, 0.0
  %v955 = vmax.f32 %v947, 0.0
  %v956 = vmax.f32 %v948, 0.0
  %v957 = vmax.f32 %v949, 0.0
  %v958 = vmax.f32 %v950, 0.0
  %959 = vst.msk [vmem:[%s13] sm:$0xff] %vm791, %v951
  %960 = vst.msk [vmem:[%s13 + $0x8] sm:$0xff] %vm791, %v952
  %961 = vst.msk [vmem:[%s13 + $0x10] sm:$0xff] %vm791, %v953
  %962 = vst.msk [vmem:[%s13 + $0x18] sm:$0xff] %vm791, %v954
  %963 = vst.msk [vmem:[%s13 + $0x20] sm:$0xff] %vm791, %v955
  %964 = vst.msk [vmem:[%s13 + $0x28] sm:$0xff] %vm791, %v956
  %965 = vst.msk [vmem:[%s13 + $0x30] sm:$0xff] %vm791, %v957
  %966 = vst.msk [vmem:[%s13 + $0x38] sm:$0xff] %vm791, %v958
  // Predicated region
  $region54: #{forward.5} parent=0 // pred_check
    _
  $region55: #{forward.5} parent=0 // pred_check_branch
    %968 = sbr.rel (0) target = $region57
  $region56: #{forward.5} parent=0 // pred_region
    _
  $region57: #{forward.5} parent=0 // pred_fallthru
    _
  // Predicated region
  $region58: #{forward.5} parent=0 // pred_check
    _
  $region59: #{forward.5} parent=0 // pred_check_branch
    %970 = sbr.rel (0) target = $region61
  $region60: #{forward.5} parent=0 // pred_region
    _
  $region61: #{forward.5} parent=0 // pred_fallthru
    _

// kernel: forward.7
$region0: #{forward.7}
  #allocation0 [shape = 'u32[]', space=smem, size = 0x4, offset = 0x4, fixed_abs, tag = 'smem constant byte address 0x4 - core index']
  #allocation1 [shape = 'u32[144,128]{1,0:T(1,128)}', space=vmem, size = 0x12000, scoped, tag = 'internal scratch']
  %s0 = inlined_call_operand.vmem [shape: f32[16,256], index: 0, kind: input, shape index: {}]
  %s1 = inlined_call_operand.vmem [shape: f32[256,128], index: 1, kind: input, shape index: {}]
  %s2 = inlined_call_operand.vmem [shape: f32[1,128], index: 2, kind: input, shape index: {}]
  %s3 = inlined_call_operand.vmem [shape: f32[128,64], index: 3, kind: input, shape index: {}]
  %s4 = inlined_call_operand.vmem [shape: f32[1,64], index: 4, kind: input, shape index: {}]
  %s5 = inlined_call_operand.vmem [shape: f32[16,64], index: 5, kind: output, shape index: {}]
  %s6 = sld [smem:[#allocation0]]
  $region30: #{forward.7} parent=0
    _
  %s8 = ssub.s32 1, %s6
  %s9 = scalar_select 0, %s8, %s6
  // Predicated region
  $region2: #{forward.7} parent=0 // pred_check
    _
  $region3: #{forward.7} parent=0 // pred_check_branch
    %11 = sbr.rel (0) target = $region5
  $region4: #{forward.7} parent=0 // pred_region
    _
  $region5: #{forward.7} parent=0 // pred_fallthru
    _
  // Predicated region
  $region6: #{forward.7} parent=0 // pred_check
    _
  $region7: #{forward.7} parent=0 // pred_check_branch
    %13 = sbr.rel (0) target = $region9
  $region8: #{forward.7} parent=0 // pred_region
    _
  $region9: #{forward.7} parent=0 // pred_fallthru
    _
  // Predicated region
  $region10: #{forward.7} parent=0 // pred_check
    _
  $region11: #{forward.7} parent=0 // pred_check_branch
    %15 = sbr.rel (0) target = $region13
  $region12: #{forward.7} parent=0 // pred_region
    _
  $region13: #{forward.7} parent=0 // pred_fallthru
    _
  // Predicated region
  $region14: #{forward.7} parent=0 // pred_check
    _
  $region15: #{forward.7} parent=0 // pred_check_branch
    %17 = sbr.rel (0) target = $region17
  $region16: #{forward.7} parent=0 // pred_region
    _
  $region17: #{forward.7} parent=0 // pred_fallthru
    _
  // Predicated region
  $region18: #{forward.7} parent=0 // pred_check
    _
  $region19: #{forward.7} parent=0 // pred_check_branch
    %19 = sbr.rel (0) target = $region21
  $region20: #{forward.7} parent=0 // pred_region
    _
  $region21: #{forward.7} parent=0 // pred_fallthru
    _
  %v20 = vld [vmem:[%s0] sm:$0xff]
  %v21 = vld [vmem:[%s0 + $0x8] sm:$0xff]
  %v22 = vld [vmem:[%s0 + $0x10] sm:$0xff]
  %v23 = vld [vmem:[%s0 + $0x18] sm:$0xff]
  %v24 = vld [vmem:[%s1] sm:$0xff]
  %v25 = vld [vmem:[%s1 + $0x8] sm:$0xff]
  %v26 = vld [vmem:[%s1 + $0x10] sm:$0xff]
  %v27 = vld [vmem:[%s1 + $0x18] sm:$0xff]
  %v28 = vld [vmem:[%s1 + $0x20] sm:$0xff]
  %v29 = vld [vmem:[%s1 + $0x28] sm:$0xff]
  %v30 = vld [vmem:[%s1 + $0x30] sm:$0xff]
  %v31 = vld [vmem:[%s1 + $0x38] sm:$0xff]
  %v32 = vld [vmem:[%s1 + $0x40] sm:$0xff]
  %v33 = vld [vmem:[%s1 + $0x48] sm:$0xff]
  %v34 = vld [vmem:[%s1 + $0x50] sm:$0xff]
  %v35 = vld [vmem:[%s1 + $0x58] sm:$0xff]
  %v36 = vld [vmem:[%s1 + $0x60] sm:$0xff]
  %v37 = vld [vmem:[%s1 + $0x68] sm:$0xff]
  %v38 = vld [vmem:[%s1 + $0x70] sm:$0xff]
  %v39 = vld [vmem:[%s1 + $0x78] sm:$0xff]
  %v40 = vld [vmem:[%s1 + $0x80] sm:$0xff]
  %v41 = vld [vmem:[%s1 + $0x88] sm:$0xff]
  %v42 = vld [vmem:[%s1 + $0x90] sm:$0xff]
  %v43 = vld [vmem:[%s1 + $0x98] sm:$0xff]
  %v44 = vld [vmem:[%s1 + $0xa0] sm:$0xff]
  %v45 = vld [vmem:[%s1 + $0xa8] sm:$0xff]
  %v46 = vld [vmem:[%s1 + $0xb0] sm:$0xff]
  %v47 = vld [vmem:[%s1 + $0xb8] sm:$0xff]
  %v48 = vld [vmem:[%s1 + $0xc0] sm:$0xff]
  %v49 = vld [vmem:[%s1 + $0xc8] sm:$0xff]
  %v50 = vld [vmem:[%s1 + $0xd0] sm:$0xff]
  %v51 = vld [vmem:[%s1 + $0xd8] sm:$0xff]
  %v52 = vld [vmem:[%s1 + $0xe0] sm:$0xff]
  %v53 = vld [vmem:[%s1 + $0xe8] sm:$0xff]
  %v54 = vld [vmem:[%s1 + $0xf0] sm:$0xff]
  %v55 = vld [vmem:[%s1 + $0xf8] sm:$0xff]
  %v56 = vld [vmem:[%s2] sm:$0x1]
  %v58 = vlaneseq
  %v59 = vshrl.u32 %v58, 7
  %v60 = vsub.s32 0, %v59
  %v61 = vrot.slane %v56, %v60
  %63 = vmatprep.subr.mxu0 0.0
  %64 = vmatpush1.msra.mxu0 %v24
  %65 = vmatprep.subr.mxu0 0.0
  %66 = vmatpush1.msra.mxu0 %v25
  %67 = vmatprep.subr.mxu0 0.0
  %68 = vmatpush1.msra.mxu0 %v26
  %69 = vmatprep.subr.mxu0 0.0
  %70 = vmatpush1.msra.mxu0 %v27
  %71 = vmatprep.subr.mxu0 0.0
  %72 = vmatpush1.msra.mxu0 %v28
  %73 = vmatprep.subr.mxu0 0.0
  %74 = vmatpush1.msra.mxu0 %v29
  %75 = vmatprep.subr.mxu0 0.0
  %76 = vmatpush1.msra.mxu0 %v30
  %77 = vmatprep.subr.mxu0 0.0
  %78 = vmatpush1.msra.mxu0 %v31
  %79 = vmatprep.subr.mxu0 0.0
  %80 = vmatpush1.msra.mxu0 %v32
  %81 = vmatprep.subr.mxu0 0.0
  %82 = vmatpush1.msra.mxu0 %v33
  %83 = vmatprep.subr.mxu0 0.0
  %84 = vmatpush1.msra.mxu0 %v34
  %85 = vmatprep.subr.mxu0 0.0
  %86 = vmatpush1.msra.mxu0 %v35
  %87 = vmatprep.subr.mxu0 0.0
  %88 = vmatpush1.msra.mxu0 %v36
  %89 = vmatprep.subr.mxu0 0.0
  %90 = vmatpush1.msra.mxu0 %v37
  %91 = vmatprep.subr.mxu0 0.0
  %92 = vmatpush1.msra.mxu0 %v38
  %93 = vmatprep.subr.mxu0 0.0
  %94 = vmatpush1.msra.mxu0 %v39
  %95 = vmatprep.subr.mxu0 0.0
  %96 = vmatpush1.msra.mxu0 %v40
  %97 = vmatprep.subr.mxu0 0.0
  %98 = vmatpush1.msra.mxu0 %v41
  %99 = vmatprep.subr.mxu0 0.0
  %100 = vmatpush1.msra.mxu0 %v42
  %101 = vmatprep.subr.mxu0 0.0
  %102 = vmatpush1.msra.mxu0 %v43
  %103 = vmatprep.subr.mxu0 0.0
  %104 = vmatpush1.msra.mxu0 %v44
  %105 = vmatprep.subr.mxu0 0.0
  %106 = vmatpush1.msra.mxu0 %v45
  %107 = vmatprep.subr.mxu0 0.0
  %108 = vmatpush1.msra.mxu0 %v46
  %109 = vmatprep.subr.mxu0 0.0
  %110 = vmatpush1.msra.mxu0 %v47
  %111 = vmatprep.subr.mxu0 0.0
  %112 = vmatpush1.msra.mxu0 %v48
  %113 = vmatprep.subr.mxu0 0.0
  %114 = vmatpush1.msra.mxu0 %v49
  %115 = vmatprep.subr.mxu0 0.0
  %116 = vmatpush1.msra.mxu0 %v50
  %117 = vmatprep.subr.mxu0 0.0
  %118 = vmatpush1.msra.mxu0 %v51
  %119 = vmatprep.subr.mxu0 0.0
  %120 = vmatpush1.msra.mxu0 %v52
  %121 = vmatprep.subr.mxu0 0.0
  %122 = vmatpush1.msra.mxu0 %v53
  %123 = vmatprep.subr.mxu0 0.0
  %124 = vmatpush1.msra.mxu0 %v54
  %125 = vmatprep.subr.mxu0 0.0
  %126 = vmatpush1.msra.mxu0 %v55
  %127 = vmatprep.mubr.f32.mxu0 %v21
  %128 = vmatmul.mubr.f32.gmra.mrb[0].mxu0 %v20
  %v129 = vpop.f32.mrb[0].mxu0
  %v130 = vadd.f32 %v61, %v129
  %v131 = vpop.f32.mrb[0].mxu0
  %132 = vmatprep.mubr.f32.mxu0 %v23
  %133 = vmatmul.mubr.f32.gmra.mrb[0].mxu0 %v22
  %v134 = vpop.f32.mrb[0].mxu0
  %v135 = vadd.f32 %v61, %v134
  %v136 = vpop.f32.mrb[0].mxu0
  %137 = vdwg.mxu0
  %v138 = vmax.f32 %v130, 0.0
  %v139 = vmax.f32 %v135, 0.0
  %v140 = vld [vmem:[%s3] sm:$0xff]
  %v141 = vld [vmem:[%s3 + $0x8] sm:$0xff]
  %v142 = vld [vmem:[%s3 + $0x10] sm:$0xff]
  %v143 = vld [vmem:[%s3 + $0x18] sm:$0xff]
  %v144 = vld [vmem:[%s3 + $0x20] sm:$0xff]
  %v145 = vld [vmem:[%s3 + $0x28] sm:$0xff]
  %v146 = vld [vmem:[%s3 + $0x30] sm:$0xff]
  %v147 = vld [vmem:[%s3 + $0x38] sm:$0xff]
  %v148 = vld [vmem:[%s3 + $0x40] sm:$0xff]
  %v149 = vld [vmem:[%s3 + $0x48] sm:$0xff]
  %v150 = vld [vmem:[%s3 + $0x50] sm:$0xff]
  %v151 = vld [vmem:[%s3 + $0x58] sm:$0xff]
  %v152 = vld [vmem:[%s3 + $0x60] sm:$0xff]
  %v153 = vld [vmem:[%s3 + $0x68] sm:$0xff]
  %v154 = vld [vmem:[%s3 + $0x70] sm:$0xff]
  %v155 = vld [vmem:[%s3 + $0x78] sm:$0xff]
  %v156 = vld [vmem:[%s4] sm:$0x1]
  %v158 = vlaneseq
  %v159 = vshrl.u32 %v158, 7
  %v160 = vsub.s32 0, %v159
  %v161 = vrot.slane %v156, %v160
  %163 = vmatprep.subr.mxu0 0.0
  %164 = vmatpush1.msra.mxu0 %v140
  %165 = vmatprep.subr.mxu0 0.0
  %166 = vmatpush1.msra.mxu0 %v141
  %167 = vmatprep.subr.mxu0 0.0
  %168 = vmatpush1.msra.mxu0 %v142
  %169 = vmatprep.subr.mxu0 0.0
  %170 = vmatpush1.msra.mxu0 %v143
  %171 = vmatprep.subr.mxu0 0.0
  %172 = vmatpush1.msra.mxu0 %v144
  %173 = vmatprep.subr.mxu0 0.0
  %174 = vmatpush1.msra.mxu0 %v145
  %175 = vmatprep.subr.mxu0 0.0
  %176 = vmatpush1.msra.mxu0 %v146
  %177 = vmatprep.subr.mxu0 0.0
  %178 = vmatpush1.msra.mxu0 %v147
  %179 = vmatprep.subr.mxu0 0.0
  %180 = vmatpush1.msra.mxu0 %v148
  %181 = vmatprep.subr.mxu0 0.0
  %182 = vmatpush1.msra.mxu0 %v149
  %183 = vmatprep.subr.mxu0 0.0
  %184 = vmatpush1.msra.mxu0 %v150
  %185 = vmatprep.subr.mxu0 0.0
  %186 = vmatpush1.msra.mxu0 %v151
  %187 = vmatprep.subr.mxu0 0.0
  %188 = vmatpush1.msra.mxu0 %v152
  %189 = vmatprep.subr.mxu0 0.0
  %190 = vmatpush1.msra.mxu0 %v153
  %191 = vmatprep.subr.mxu0 0.0
  %192 = vmatpush1.msra.mxu0 %v154
  %193 = vmatprep.subr.mxu0 0.0
  %194 = vmatpush1.msra.mxu0 %v155
  %195 = vmatprep.subr.mxu0 0.0
  %196 = vmatpush1.msra.mxu0 0.0
  %197 = vmatprep.subr.mxu0 0.0
  %198 = vmatpush1.msra.mxu0 0.0
  %199 = vmatprep.subr.mxu0 0.0
  %200 = vmatpush1.msra.mxu0 0.0
  %201 = vmatprep.subr.mxu0 0.0
  %202 = vmatpush1.msra.mxu0 0.0
  %203 = vmatprep.subr.mxu0 0.0
  %204 = vmatpush1.msra.mxu0 0.0
  %205 = vmatprep.subr.mxu0 0.0
  %206 = vmatpush1.msra.mxu0 0.0
  %207 = vmatprep.subr.mxu0 0.0
  %208 = vmatpush1.msra.mxu0 0.0
  %209 = vmatprep.subr.mxu0 0.0
  %210 = vmatpush1.msra.mxu0 0.0
  %211 = vmatprep.subr.mxu0 0.0
  %212 = vmatpush1.msra.mxu0 0.0
  %213 = vmatprep.subr.mxu0 0.0
  %214 = vmatpush1.msra.mxu0 0.0
  %215 = vmatprep.subr.mxu0 0.0
  %216 = vmatpush1.msra.mxu0 0.0
  %217 = vmatprep.subr.mxu0 0.0
  %218 = vmatpush1.msra.mxu0 0.0
  %219 = vmatprep.subr.mxu0 0.0
  %220 = vmatpush1.msra.mxu0 0.0
  %221 = vmatprep.subr.mxu0 0.0
  %222 = vmatpush1.msra.mxu0 0.0
  %223 = vmatprep.subr.mxu0 0.0
  %224 = vmatpush1.msra.mxu0 0.0
  %225 = vmatprep.subr.mxu0 0.0
  %226 = vmatpush1.msra.mxu0 0.0
  %227 = vmatprep.mubr.f32.mxu0 0.0
  %228 = vmatmul.mubr.f32.gmra.mrb[0].mxu0 %v138
  %v229 = vpop.f32.mrb[0].mxu0
  %v230 = vadd.f32 %v161, %v229
  %v231 = vpop.f32.mrb[0].mxu0
  %232 = vmatprep.mubr.f32.mxu0 0.0
  %233 = vmatmul.mubr.f32.gmra.mrb[0].mxu0 %v139
  %v234 = vpop.f32.mrb[0].mxu0
  %v235 = vadd.f32 %v161, %v234
  %v236 = vpop.f32.mrb[0].mxu0
  %237 = vdwg.mxu0
  %vm238 = vcmask 523264
  %239 = vst.msk [vmem:[%s5] sm:$0xff] %vm238, %v230
  %240 = vst.msk [vmem:[%s5 + $0x8] sm:$0xff] %vm238, %v235
  // Predicated region
  $region22: #{forward.7} parent=0 // pred_check
    _
  $region23: #{forward.7} parent=0 // pred_check_branch
    %242 = sbr.rel (0) target = $region25
  $region24: #{forward.7} parent=0 // pred_region
    _
  $region25: #{forward.7} parent=0 // pred_fallthru
    _
  // Predicated region
  $region26: #{forward.7} parent=0 // pred_check
    _
  $region27: #{forward.7} parent=0 // pred_check_branch
    %244 = sbr.rel (0) target = $region29
  $region28: #{forward.7} parent=0 // pred_region
    _
  $region29: #{forward.7} parent=0 // pred_fallthru
    _

// kernel: forward.8
$region0: #{forward.8}
  #allocation0 [shape = 'u32[]', space=smem, size = 0x4, offset = 0x4, fixed_abs, tag = 'smem constant byte address 0x4 - core index']
  #allocation1 [shape = 'u32[144,128]{1,0:T(1,128)}', space=vmem, size = 0x12000, scoped, tag = 'internal scratch']
  #allocation2 [shape = 'f32[8,64]{1,0:T(8,128)}', space=vmem, size = 0x1000, scoped, tag = 'scratch operand']
  %s0 = inlined_call_operand.vmem [shape: f32[16,64], index: 0, kind: input, shape index: {}]
  %s1 = inlined_call_operand.vmem [shape: f32[8,8], index: 1, kind: input, shape index: {}]
  %s2 = inlined_call_operand.vmem [shape: f32[6,64,192], index: 2, kind: input, shape index: {}]
  %s3 = inlined_call_operand.vmem [shape: f32[6,1,192], index: 3, kind: input, shape index: {}]
  %s4 = inlined_call_operand.vmem [shape: f32[6,64,64], index: 4, kind: input, shape index: {}]
  %s5 = inlined_call_operand.vmem [shape: f32[6,1,64], index: 5, kind: input, shape index: {}]
  %s6 = inlined_call_operand.vmem [shape: f32[6,1,64], index: 6, kind: input, shape index: {}]
  %s7 = inlined_call_operand.vmem [shape: f32[6,1,64], index: 7, kind: input, shape index: {}]
  %s8 = inlined_call_operand.vmem [shape: f32[6,64,64], index: 8, kind: input, shape index: {}]
  %s9 = inlined_call_operand.vmem [shape: f32[6,1,64], index: 9, kind: input, shape index: {}]
  %s10 = inlined_call_operand.vmem [shape: f32[6,64,64], index: 10, kind: input, shape index: {}]
  %s11 = inlined_call_operand.vmem [shape: f32[6,1,64], index: 11, kind: input, shape index: {}]
  %s12 = inlined_call_operand.vmem [shape: f32[6,1,64], index: 12, kind: input, shape index: {}]
  %s13 = inlined_call_operand.vmem [shape: f32[6,1,64], index: 13, kind: input, shape index: {}]
  %s14 = inlined_call_operand.vmem [shape: f32[16,64], index: 14, kind: output, shape index: {}]
  %s15 = sld [smem:[#allocation0]]
  $region93: #{forward.8} parent=0
    _
  %s17 = ssub.s32 1, %s15
  %s18 = scalar_select 0, %s17, %s15
  loop: start=0, step=1, limit=14
  $region2: #{forward.8} parent=0 // loop_pre_header
    _
  $region3: #{forward.8} parent=0 // loop_header
    %s20 = sphi 0, %s24
    %p21 = scmp.ge.s32.totalorder %s20, 14
    %s27 = sphi 0, %s39
    %s28 = sphi 0, %s35
    %s29 = sphi 0, %s27
    %s30 = sphi 0, %s28
    %s31 = sphi 0, %s29
    %s32 = sphi 0, %s30
    %s42 = sphi 0, %s44
    %s45 = sphi 0, %s42
    %s46 = sphi 0, %s45
    %s62 = sphi 0, %s46
    %s66 = sphi 0, %s66
    %s68 = sphi 0, %s66
    %s69 = sphi 0, %s68
    %s83 = sphi 0, %s69
    %s89 = sphi 0, %s91
    %s92 = sphi 0, %s89
    %s93 = sphi 0, %s92
    %s109 = sphi 0, %s93
    %s115 = sphi 0, %s117
    %s118 = sphi 0, %s115
    %s119 = sphi 0, %s118
    %s135 = sphi 0, %s119
    %s141 = sphi 0, %s143
    %s144 = sphi 0, %s141
    %s145 = sphi 0, %s144
    %s161 = sphi 0, %s145
    %s167 = sphi 0, %s169
    %s170 = sphi 0, %s167
    %s171 = sphi 0, %s170
    %s187 = sphi 0, %s171
    %s193 = sphi 0, %s195
    %s196 = sphi 0, %s193
    %s197 = sphi 0, %s196
    %s213 = sphi 0, %s197
    %s219 = sphi 0, %s221
    %s222 = sphi 0, %s219
    %s223 = sphi 0, %s222
    %s239 = sphi 0, %s223
    %s245 = sphi 0, %s247
    %s248 = sphi 0, %s245
    %s249 = sphi 0, %s248
    %s265 = sphi 0, %s249
    %s271 = sphi 0, %s273
    %s274 = sphi 0, %s271
    %s275 = sphi 0, %s274
    %s291 = sphi 0, %s275
    %s297 = sphi 0, %s299
    %s300 = sphi 0, %s297
    %s301 = sphi 0, %s300
    %s317 = sphi 0, %s301
    %s323 = sphi 0, %s325
    %s326 = sphi 0, %s323
    %s327 = sphi 0, %s326
    %s343 = sphi 0, %s327
    %s349 = sphi 0, %s351
    %s352 = sphi 0, %s349
    %s353 = sphi 0, %s352
    %s369 = sphi 0, %s353
    %s375 = sphi 0, %s377
    %s378 = sphi 0, %s375
    %s379 = sphi 0, %s378
    %s395 = sphi 0, %s379
    %s401 = sphi 0, %s403
    %s404 = sphi 0, %s401
    %s405 = sphi 0, %s404
    %s421 = sphi 0, %s405
  $region4: #{forward.8} parent=0 // loop_header_branch
    %23 = sbr.rel (%p21) target = $region8
  $region5: #{forward.8} parent=0 // loop_body
    %s25 = ssub.s32 %s20, 1
    %s26 = ssub.s32 %s20, 2
    %s33 = sadd.s32 1, %s28
    %p34 = scmp.ge.s32.totalorder %s33, 6
    %s35 = scalar_select %p34, 0, %s33
    %s36 = sadd.s32 1, %s27
    %s37 = scalar_select %p34, %s36, %s27
    %p38 = scmp.ge.s32.totalorder %s37, 2
    %s39 = scalar_select %p38, 0, %s37
    %s40 = ssub.s32 %s27, %s39
    %p41 = scmp.eq.s32.totalorder %s40, 0
    %s43 = sadd.s32 %s42, 1
    %s44 = scalar_select %p41, %s42, %s43
    %p47 = pneg %p41
    %p48 = scmp.eq.s32.totalorder %s20, 11
    %p49 = por %p47, %p48
    %p50 = scmp.ne.s32.totalorder %s42, %s45
    %p51 = scmp.eq.s32.totalorder %s20, 0
    %p52 = por %p50, %p51
    %p53 = scmp.ne.s32.totalorder %s42, %s45
    %p54 = scmp.eq.s32.totalorder %s25, 11
    %p55 = por %p53, %p54
    %p56 = scmp.ne.s32.totalorder %s45, %s46
    %p57 = scmp.eq.s32.totalorder %s25, 0
    %p58 = por %p56, %p57
    %p59 = scmp.ne.s32.totalorder %s45, %s46
    %p60 = scmp.eq.s32.totalorder %s26, 11
    %p61 = por %p59, %p60
    %p63 = scmp.ne.s32.totalorder %s46, %s62
    %p64 = scmp.eq.s32.totalorder %s26, 0
    %p65 = por %p63, %p64
    %s67 = sadd.s32 %s66, 1
    %p70 = scmp.eq.s32.totalorder %s20, 11
    %p71 = scmp.ne.s32.totalorder %s66, %s68
    %p72 = scmp.eq.s32.totalorder %s20, 0
    %p73 = por %p71, %p72
    %p74 = scmp.ne.s32.totalorder %s66, %s68
    %p75 = scmp.eq.s32.totalorder %s25, 11
    %p76 = por %p74, %p75
    %p77 = scmp.ne.s32.totalorder %s68, %s69
    %p78 = scmp.eq.s32.totalorder %s25, 0
    %p79 = por %p77, %p78
    %p80 = scmp.ne.s32.totalorder %s68, %s69
    %p81 = scmp.eq.s32.totalorder %s26, 11
    %p82 = por %p80, %p81
    %p84 = scmp.ne.s32.totalorder %s69, %s83
    %p85 = scmp.eq.s32.totalorder %s26, 0
    %p86 = por %p84, %p85
    %s87 = ssub.s32 %s28, %s35
    %p88 = scmp.eq.s32.totalorder %s87, 0
    %s90 = sadd.s32 %s89, 1
    %s91 = scalar_select %p88, %s89, %s90
    %p94 = pneg %p88
    %p95 = scmp.eq.s32.totalorder %s20, 11
    %p96 = por %p94, %p95
    %p97 = scmp.ne.s32.totalorder %s89, %s92
    %p98 = scmp.eq.s32.totalorder %s20, 0
    %p99 = por %p97, %p98
    %p100 = scmp.ne.s32.totalorder %s89, %s92
    %p101 = scmp.eq.s32.totalorder %s25, 11
    %p102 = por %p100, %p101
    %p103 = scmp.ne.s32.totalorder %s92, %s93
    %p104 = scmp.eq.s32.totalorder %s25, 0
    %p105 = por %p103, %p104
    %p106 = scmp.ne.s32.totalorder %s92, %s93
    %p107 = scmp.eq.s32.totalorder %s26, 11
    %p108 = por %p106, %p107
    %p110 = scmp.ne.s32.totalorder %s93, %s109
    %p111 = scmp.eq.s32.totalorder %s26, 0
    %p112 = por %p110, %p111
    %s113 = ssub.s32 %s28, %s35
    %p114 = scmp.eq.s32.totalorder %s113, 0
    %s116 = sadd.s32 %s115, 1
    %s117 = scalar_select %p114, %s115, %s116
    %p120 = pneg %p114
    %p121 = scmp.eq.s32.totalorder %s20, 11
    %p122 = por %p120, %p121
    %p123 = scmp.ne.s32.totalorder %s115, %s118
    %p124 = scmp.eq.s32.totalorder %s20, 0
    %p125 = por %p123, %p124
    %p126 = scmp.ne.s32.totalorder %s115, %s118
    %p127 = scmp.eq.s32.totalorder %s25, 11
    %p128 = por %p126, %p127
    %p129 = scmp.ne.s32.totalorder %s118, %s119
    %p130 = scmp.eq.s32.totalorder %s25, 0
    %p131 = por %p129, %p130
    %p132 = scmp.ne.s32.totalorder %s118, %s119
    %p133 = scmp.eq.s32.totalorder %s26, 11
    %p134 = por %p132, %p133
    %p136 = scmp.ne.s32.totalorder %s119, %s135
    %p137 = scmp.eq.s32.totalorder %s26, 0
    %p138 = por %p136, %p137
    %s139 = ssub.s32 %s28, %s35
    %p140 = scmp.eq.s32.totalorder %s139, 0
    %s142 = sadd.s32 %s141, 1
    %s143 = scalar_select %p140, %s141, %s142
    %p146 = pneg %p140
    %p147 = scmp.eq.s32.totalorder %s20, 11
    %p148 = por %p146, %p147
    %p149 = scmp.ne.s32.totalorder %s141, %s144
    %p150 = scmp.eq.s32.totalorder %s20, 0
    %p151 = por %p149, %p150
    %p152 = scmp.ne.s32.totalorder %s141, %s144
    %p153 = scmp.eq.s32.totalorder %s25, 11
    %p154 = por %p152, %p153
    %p155 = scmp.ne.s32.totalorder %s144, %s145
    %p156 = scmp.eq.s32.totalorder %s25, 0
    %p157 = por %p155, %p156
    %p158 = scmp.ne.s32.totalorder %s144, %s145
    %p159 = scmp.eq.s32.totalorder %s26, 11
    %p160 = por %p158, %p159
    %p162 = scmp.ne.s32.totalorder %s145, %s161
    %p163 = scmp.eq.s32.totalorder %s26, 0
    %p164 = por %p162, %p163
    %s165 = ssub.s32 %s28, %s35
    %p166 = scmp.eq.s32.totalorder %s165, 0
    %s168 = sadd.s32 %s167, 1
    %s169 = scalar_select %p166, %s167, %s168
    %p172 = pneg %p166
    %p173 = scmp.eq.s32.totalorder %s20, 11
    %p174 = por %p172, %p173
    %p175 = scmp.ne.s32.totalorder %s167, %s170
    %p176 = scmp.eq.s32.totalorder %s20, 0
    %p177 = por %p175, %p176
    %p178 = scmp.ne.s32.totalorder %s167, %s170
    %p179 = scmp.eq.s32.totalorder %s25, 11
    %p180 = por %p178, %p179
    %p181 = scmp.ne.s32.totalorder %s170, %s171
    %p182 = scmp.eq.s32.totalorder %s25, 0
    %p183 = por %p181, %p182
    %p184 = scmp.ne.s32.totalorder %s170, %s171
    %p185 = scmp.eq.s32.totalorder %s26, 11
    %p186 = por %p184, %p185
    %p188 = scmp.ne.s32.totalorder %s171, %s187
    %p189 = scmp.eq.s32.totalorder %s26, 0
    %p190 = por %p188, %p189
    %s191 = ssub.s32 %s28, %s35
    %p192 = scmp.eq.s32.totalorder %s191, 0
    %s194 = sadd.s32 %s193, 1
    %s195 = scalar_select %p192, %s193, %s194
    %p198 = pneg %p192
    %p199 = scmp.eq.s32.totalorder %s20, 11
    %p200 = por %p198, %p199
    %p201 = scmp.ne.s32.totalorder %s193, %s196
    %p202 = scmp.eq.s32.totalorder %s20, 0
    %p203 = por %p201, %p202
    %p204 = scmp.ne.s32.totalorder %s193, %s196
    %p205 = scmp.eq.s32.totalorder %s25, 11
    %p206 = por %p204, %p205
    %p207 = scmp.ne.s32.totalorder %s196, %s197
    %p208 = scmp.eq.s32.totalorder %s25, 0
    %p209 = por %p207, %p208
    %p210 = scmp.ne.s32.totalorder %s196, %s197
    %p211 = scmp.eq.s32.totalorder %s26, 11
    %p212 = por %p210, %p211
    %p214 = scmp.ne.s32.totalorder %s197, %s213
    %p215 = scmp.eq.s32.totalorder %s26, 0
    %p216 = por %p214, %p215
    %s217 = ssub.s32 %s28, %s35
    %p218 = scmp.eq.s32.totalorder %s217, 0
    %s220 = sadd.s32 %s219, 1
    %s221 = scalar_select %p218, %s219, %s220
    %p224 = pneg %p218
    %p225 = scmp.eq.s32.totalorder %s20, 11
    %p226 = por %p224, %p225
    %p227 = scmp.ne.s32.totalorder %s219, %s222
    %p228 = scmp.eq.s32.totalorder %s20, 0
    %p229 = por %p227, %p228
    %p230 = scmp.ne.s32.totalorder %s219, %s222
    %p231 = scmp.eq.s32.totalorder %s25, 11
    %p232 = por %p230, %p231
    %p233 = scmp.ne.s32.totalorder %s222, %s223
    %p234 = scmp.eq.s32.totalorder %s25, 0
    %p235 = por %p233, %p234
    %p236 = scmp.ne.s32.totalorder %s222, %s223
    %p237 = scmp.eq.s32.totalorder %s26, 11
    %p238 = por %p236, %p237
    %p240 = scmp.ne.s32.totalorder %s223, %s239
    %p241 = scmp.eq.s32.totalorder %s26, 0
    %p242 = por %p240, %p241
    %s243 = ssub.s32 %s28, %s35
    %p244 = scmp.eq.s32.totalorder %s243, 0
    %s246 = sadd.s32 %s245, 1
    %s247 = scalar_select %p244, %s245, %s246
    %p250 = pneg %p244
    %p251 = scmp.eq.s32.totalorder %s20, 11
    %p252 = por %p250, %p251
    %p253 = scmp.ne.s32.totalorder %s245, %s248
    %p254 = scmp.eq.s32.totalorder %s20, 0
    %p255 = por %p253, %p254
    %p256 = scmp.ne.s32.totalorder %s245, %s248
    %p257 = scmp.eq.s32.totalorder %s25, 11
    %p258 = por %p256, %p257
    %p259 = scmp.ne.s32.totalorder %s248, %s249
    %p260 = scmp.eq.s32.totalorder %s25, 0
    %p261 = por %p259, %p260
    %p262 = scmp.ne.s32.totalorder %s248, %s249
    %p263 = scmp.eq.s32.totalorder %s26, 11
    %p264 = por %p262, %p263
    %p266 = scmp.ne.s32.totalorder %s249, %s265
    %p267 = scmp.eq.s32.totalorder %s26, 0
    %p268 = por %p266, %p267
    %s269 = ssub.s32 %s28, %s35
    %p270 = scmp.eq.s32.totalorder %s269, 0
    %s272 = sadd.s32 %s271, 1
    %s273 = scalar_select %p270, %s271, %s272
    %p276 = pneg %p270
    %p277 = scmp.eq.s32.totalorder %s20, 11
    %p278 = por %p276, %p277
    %p279 = scmp.ne.s32.totalorder %s271, %s274
    %p280 = scmp.eq.s32.totalorder %s20, 0
    %p281 = por %p279, %p280
    %p282 = scmp.ne.s32.totalorder %s271, %s274
    %p283 = scmp.eq.s32.totalorder %s25, 11
    %p284 = por %p282, %p283
    %p285 = scmp.ne.s32.totalorder %s274, %s275
    %p286 = scmp.eq.s32.totalorder %s25, 0
    %p287 = por %p285, %p286
    %p288 = scmp.ne.s32.totalorder %s274, %s275
    %p289 = scmp.eq.s32.totalorder %s26, 11
    %p290 = por %p288, %p289
    %p292 = scmp.ne.s32.totalorder %s275, %s291
    %p293 = scmp.eq.s32.totalorder %s26, 0
    %p294 = por %p292, %p293
    %s295 = ssub.s32 %s28, %s35
    %p296 = scmp.eq.s32.totalorder %s295, 0
    %s298 = sadd.s32 %s297, 1
    %s299 = scalar_select %p296, %s297, %s298
    %p302 = pneg %p296
    %p303 = scmp.eq.s32.totalorder %s20, 11
    %p304 = por %p302, %p303
    %p305 = scmp.ne.s32.totalorder %s297, %s300
    %p306 = scmp.eq.s32.totalorder %s20, 0
    %p307 = por %p305, %p306
    %p308 = scmp.ne.s32.totalorder %s297, %s300
    %p309 = scmp.eq.s32.totalorder %s25, 11
    %p310 = por %p308, %p309
    %p311 = scmp.ne.s32.totalorder %s300, %s301
    %p312 = scmp.eq.s32.totalorder %s25, 0
    %p313 = por %p311, %p312
    %p314 = scmp.ne.s32.totalorder %s300, %s301
    %p315 = scmp.eq.s32.totalorder %s26, 11
    %p316 = por %p314, %p315
    %p318 = scmp.ne.s32.totalorder %s301, %s317
    %p319 = scmp.eq.s32.totalorder %s26, 0
    %p320 = por %p318, %p319
    %s321 = ssub.s32 %s28, %s35
    %p322 = scmp.eq.s32.totalorder %s321, 0
    %s324 = sadd.s32 %s323, 1
    %s325 = scalar_select %p322, %s323, %s324
    %p328 = pneg %p322
    %p329 = scmp.eq.s32.totalorder %s20, 11
    %p330 = por %p328, %p329
    %p331 = scmp.ne.s32.totalorder %s323, %s326
    %p332 = scmp.eq.s32.totalorder %s20, 0
    %p333 = por %p331, %p332
    %p334 = scmp.ne.s32.totalorder %s323, %s326
    %p335 = scmp.eq.s32.totalorder %s25, 11
    %p336 = por %p334, %p335
    %p337 = scmp.ne.s32.totalorder %s326, %s327
    %p338 = scmp.eq.s32.totalorder %s25, 0
    %p339 = por %p337, %p338
    %p340 = scmp.ne.s32.totalorder %s326, %s327
    %p341 = scmp.eq.s32.totalorder %s26, 11
    %p342 = por %p340, %p341
    %p344 = scmp.ne.s32.totalorder %s327, %s343
    %p345 = scmp.eq.s32.totalorder %s26, 0
    %p346 = por %p344, %p345
    %s347 = ssub.s32 %s28, %s35
    %p348 = scmp.eq.s32.totalorder %s347, 0
    %s350 = sadd.s32 %s349, 1
    %s351 = scalar_select %p348, %s349, %s350
    %p354 = pneg %p348
    %p355 = scmp.eq.s32.totalorder %s20, 11
    %p356 = por %p354, %p355
    %p357 = scmp.ne.s32.totalorder %s349, %s352
    %p358 = scmp.eq.s32.totalorder %s20, 0
    %p359 = por %p357, %p358
    %p360 = scmp.ne.s32.totalorder %s349, %s352
    %p361 = scmp.eq.s32.totalorder %s25, 11
    %p362 = por %p360, %p361
    %p363 = scmp.ne.s32.totalorder %s352, %s353
    %p364 = scmp.eq.s32.totalorder %s25, 0
    %p365 = por %p363, %p364
    %p366 = scmp.ne.s32.totalorder %s352, %s353
    %p367 = scmp.eq.s32.totalorder %s26, 11
    %p368 = por %p366, %p367
    %p370 = scmp.ne.s32.totalorder %s353, %s369
    %p371 = scmp.eq.s32.totalorder %s26, 0
    %p372 = por %p370, %p371
    %s373 = ssub.s32 %s28, %s35
    %p374 = scmp.eq.s32.totalorder %s373, 0
    %s376 = sadd.s32 %s375, 1
    %s377 = scalar_select %p374, %s375, %s376
    %p380 = pneg %p374
    %p381 = scmp.eq.s32.totalorder %s20, 11
    %p382 = por %p380, %p381
    %p383 = scmp.ne.s32.totalorder %s375, %s378
    %p384 = scmp.eq.s32.totalorder %s20, 0
    %p385 = por %p383, %p384
    %p386 = scmp.ne.s32.totalorder %s375, %s378
    %p387 = scmp.eq.s32.totalorder %s25, 11
    %p388 = por %p386, %p387
    %p389 = scmp.ne.s32.totalorder %s378, %s379
    %p390 = scmp.eq.s32.totalorder %s25, 0
    %p391 = por %p389, %p390
    %p392 = scmp.ne.s32.totalorder %s378, %s379
    %p393 = scmp.eq.s32.totalorder %s26, 11
    %p394 = por %p392, %p393
    %p396 = scmp.ne.s32.totalorder %s379, %s395
    %p397 = scmp.eq.s32.totalorder %s26, 0
    %p398 = por %p396, %p397
    %s399 = ssub.s32 %s27, %s39
    %p400 = scmp.eq.s32.totalorder %s399, 0
    %s402 = sadd.s32 %s401, 1
    %s403 = scalar_select %p400, %s401, %s402
    %p406 = pneg %p400
    %p407 = scmp.eq.s32.totalorder %s20, 11
    %p408 = por %p406, %p407
    %p409 = scmp.ne.s32.totalorder %s401, %s404
    %p410 = scmp.eq.s32.totalorder %s20, 0
    %p411 = por %p409, %p410
    %p412 = scmp.ne.s32.totalorder %s401, %s404
    %p413 = scmp.eq.s32.totalorder %s25, 11
    %p414 = por %p412, %p413
    %p415 = scmp.ne.s32.totalorder %s404, %s405
    %p416 = scmp.eq.s32.totalorder %s25, 0
    %p417 = por %p415, %p416
    %p418 = scmp.ne.s32.totalorder %s404, %s405
    %p419 = scmp.eq.s32.totalorder %s26, 11
    %p420 = por %p418, %p419
    %p422 = scmp.ne.s32.totalorder %s405, %s421
    %p423 = scmp.eq.s32.totalorder %s26, 0
    %p424 = por %p422, %p423
    %p425 = scmp.le.s32.totalorder 1, %s20
    %p426 = scmp.lt.s32.totalorder %s20, 13
    %p427 = pnand %p425, %p426
    %p428 = pneg %p427
    // Predicated region
    $region9: #{forward.8} parent=5 // pred_check
      _
    $region10: #{forward.8} parent=5 // pred_check_branch
      %430 = sbr.rel (%p427) target = $region12
    $region11: #{forward.8} parent=5 // pred_region
      %s431 = ssub.s32 %s20, 1
      // Predicated region
      $region13: #{forward.8} parent=11 // pred_check
        %p432 = pneg %p79
      $region14: #{forward.8} parent=11 // pred_check_branch
        %434 = sbr.rel (%p432) target = $region16
      $region15: #{forward.8} parent=11 // pred_region
        _
      $region16: #{forward.8} parent=11 // pred_fallthru
        _
    $region12: #{forward.8} parent=5 // pred_fallthru
      _
    %p435 = scmp.lt.s32.totalorder %s20, 12
    // Predicated region
    $region17: #{forward.8} parent=5 // pred_check
      %p436 = pneg %p435
    $region18: #{forward.8} parent=5 // pred_check_branch
      %438 = sbr.rel (%p436) target = $region20
    $region19: #{forward.8} parent=5 // pred_region
      // Predicated region
      $region21: #{forward.8} parent=19 // pred_check
        %p439 = pneg %p52
      $region22: #{forward.8} parent=19 // pred_check_branch
        %441 = sbr.rel (%p439) target = $region24
      $region23: #{forward.8} parent=19 // pred_region
        %p442 = scmp.lt.s32.totalorder %s27, 1
        %s443 = scalar_select %p442, %s27, 1
        %s444 = smul.addr %s443, 8
        %s445 = scalar_lea.vmem %s0, %s444
      $region24: #{forward.8} parent=19 // pred_fallthru
        _
      // Predicated region
      $region25: #{forward.8} parent=19 // pred_check
        %p446 = pneg %p99
      $region26: #{forward.8} parent=19 // pred_check_branch
        %448 = sbr.rel (%p446) target = $region28
      $region27: #{forward.8} parent=19 // pred_region
        %p449 = scmp.lt.s32.totalorder %s28, 5
        %s450 = scalar_select %p449, %s28, 5
        %s451 = smul.addr %s450, 16
        %s452 = smul.addr %s451, 8
        %s453 = scalar_lea.vmem %s2, %s452
      $region28: #{forward.8} parent=19 // pred_fallthru
        _
      // Predicated region
      $region29: #{forward.8} parent=19 // pred_check
        %p454 = pneg %p125
      $region30: #{forward.8} parent=19 // pred_check_branch
        %456 = sbr.rel (%p454) target = $region32
      $region31: #{forward.8} parent=19 // pred_region
        %p457 = scmp.lt.s32.totalorder %s28, 5
        %s458 = scalar_select %p457, %s28, 5
        %s459 = smul.addr %s458, 2
        %s460 = scalar_lea.vmem %s3, %s459
      $region32: #{forward.8} parent=19 // pred_fallthru
        _
      // Predicated region
      $region33: #{forward.8} parent=19 // pred_check
        %p461 = pneg %p151
      $region34: #{forward.8} parent=19 // pred_check_branch
        %463 = sbr.rel (%p461) target = $region36
      $region35: #{forward.8} parent=19 // pred_region
        %p464 = scmp.lt.s32.totalorder %s28, 5
        %s465 = scalar_select %p464, %s28, 5
        %s466 = smul.addr %s465, 8
        %s467 = smul.addr %s466, 8
        %s468 = scalar_lea.vmem %s4, %s467
      $region36: #{forward.8} parent=19 // pred_fallthru
        _
      // Predicated region
      $region37: #{forward.8} parent=19 // pred_check
        %p469 = pneg %p177
      $region38: #{forward.8} parent=19 // pred_check_branch
        %471 = sbr.rel (%p469) target = $region40
      $region39: #{forward.8} parent=19 // pred_region
        %p472 = scmp.lt.s32.totalorder %s28, 5
        %s473 = scalar_select %p472, %s28, 5
        %s474 = scalar_lea.vmem %s5, %s473
      $region40: #{forward.8} parent=19 // pred_fallthru
        _
      // Predicated region
      $region41: #{forward.8} parent=19 // pred_check
        %p475 = pneg %p203
      $region42: #{forward.8} parent=19 // pred_check_branch
        %477 = sbr.rel (%p475) target = $region44
      $region43: #{forward.8} parent=19 // pred_region
        %p478 = scmp.lt.s32.totalorder %s28, 5
        %s479 = scalar_select %p478, %s28, 5
        %s480 = scalar_lea.vmem %s6, %s479
      $region44: #{forward.8} parent=19 // pred_fallthru
        _
      // Predicated region
      $region45: #{forward.8} parent=19 // pred_check
        %p481 = pneg %p229
      $region46: #{forward.8} parent=19 // pred_check_branch
        %483 = sbr.rel (%p481) target = $region48
      $region47: #{forward.8} parent=19 // pred_region
        %p484 = scmp.lt.s32.totalorder %s28, 5
        %s485 = scalar_select %p484, %s28, 5
        %s486 = scalar_lea.vmem %s7, %s485
      $region48: #{forward.8} parent=19 // pred_fallthru
        _
      // Predicated region
      $region49: #{forward.8} parent=19 // pred_check
        %p487 = pneg %p255
      $region50: #{forward.8} parent=19 // pred_check_branch
        %489 = sbr.rel (%p487) target = $region52
      $region51: #{forward.8} parent=19 // pred_region
        %p490 = scmp.lt.s32.totalorder %s28, 5
        %s491 = scalar_select %p490, %s28, 5
        %s492 = smul.addr %s491, 8
        %s493 = smul.addr %s492, 8
        %s494 = scalar_lea.vmem %s8, %s493
      $region52: #{forward.8} parent=19 // pred_fallthru
        _
      // Predicated region
      $region53: #{forward.8} parent=19 // pred_check
        %p495 = pneg %p281
      $region54: #{forward.8} parent=19 // pred_check_branch
        %497 = sbr.rel (%p495) target = $region56
      $region55: #{forward.8} parent=19 // pred_region
        %p498 = scmp.lt.s32.totalorder %s28, 5
        %s499 = scalar_select %p498, %s28, 5
        %s500 = scalar_lea.vmem %s9, %s499
      $region56: #{forward.8} parent=19 // pred_fallthru
        _
      // Predicated region
      $region57: #{forward.8} parent=19 // pred_check
        %p501 = pneg %p307
      $region58: #{forward.8} parent=19 // pred_check_branch
        %503 = sbr.rel (%p501) target = $region60
      $region59: #{forward.8} parent=19 // pred_region
        %p504 = scmp.lt.s32.totalorder %s28, 5
        %s505 = scalar_select %p504, %s28, 5
        %s506 = smul.addr %s505, 8
        %s507 = smul.addr %s506, 8
        %s508 = scalar_lea.vmem %s10, %s507
      $region60: #{forward.8} parent=19 // pred_fallthru
        _
      // Predicated region
      $region61: #{forward.8} parent=19 // pred_check
        %p509 = pneg %p333
      $region62: #{forward.8} parent=19 // pred_check_branch
        %511 = sbr.rel (%p509) target = $region64
      $region63: #{forward.8} parent=19 // pred_region
        %p512 = scmp.lt.s32.totalorder %s28, 5
        %s513 = scalar_select %p512, %s28, 5
        %s514 = scalar_lea.vmem %s11, %s513
      $region64: #{forward.8} parent=19 // pred_fallthru
        _
      // Predicated region
      $region65: #{forward.8} parent=19 // pred_check
        %p515 = pneg %p359
      $region66: #{forward.8} parent=19 // pred_check_branch
        %517 = sbr.rel (%p515) target = $region68
      $region67: #{forward.8} parent=19 // pred_region
        %p518 = scmp.lt.s32.totalorder %s28, 5
        %s519 = scalar_select %p518, %s28, 5
        %s520 = scalar_lea.vmem %s12, %s519
      $region68: #{forward.8} parent=19 // pred_fallthru
        _
      // Predicated region
      $region69: #{forward.8} parent=19 // pred_check
        %p521 = pneg %p385
      $region70: #{forward.8} parent=19 // pred_check_branch
        %523 = sbr.rel (%p521) target = $region72
      $region71: #{forward.8} parent=19 // pred_region
        %p524 = scmp.lt.s32.totalorder %s28, 5
        %s525 = scalar_select %p524, %s28, 5
        %s526 = scalar_lea.vmem %s13, %s525
      $region72: #{forward.8} parent=19 // pred_fallthru
        _
    $region20: #{forward.8} parent=5 // pred_fallthru
      _
    %p527 = scmp.le.s32.totalorder 1, %s20
    %p528 = scmp.lt.s32.totalorder %s20, 13
    %p529 = pnand %p527, %p528
    %p530 = pneg %p529
    // Predicated region
    $region73: #{forward.8} parent=5 // pred_check
      _
    $region74: #{forward.8} parent=5 // pred_check_branch
      %532 = sbr.rel (%p529) target = $region76
    $region75: #{forward.8} parent=5 // pred_region
      %s533 = ssub.s32 %s20, 1
      %p534 = scmp.lt.s32.totalorder %s29, 1
      %s535 = scalar_select %p534, %s29, 1
      %s536 = smul.addr %s535, 8
      %s537 = scalar_lea.vmem %s0, %s536
      %p538 = pneg %p58
      %p539 = pneg %p55
      %p540 = pneg %p79
      %p541 = pneg %p76
      %p542 = scmp.lt.s32.totalorder %s30, 5
      %s543 = scalar_select %p542, %s30, 5
      %s544 = smul.addr %s543, 16
      %s545 = smul.addr %s544, 8
      %s546 = scalar_lea.vmem %s2, %s545
      %p547 = pneg %p105
      %p548 = pneg %p102
      %p549 = scmp.lt.s32.totalorder %s30, 5
      %s550 = scalar_select %p549, %s30, 5
      %s551 = smul.addr %s550, 2
      %s552 = scalar_lea.vmem %s3, %s551
      %p553 = pneg %p131
      %p554 = pneg %p128
      %p555 = scmp.lt.s32.totalorder %s30, 5
      %s556 = scalar_select %p555, %s30, 5
      %s557 = smul.addr %s556, 8
      %s558 = smul.addr %s557, 8
      %s559 = scalar_lea.vmem %s4, %s558
      %p560 = pneg %p157
      %p561 = pneg %p154
      %p562 = scmp.lt.s32.totalorder %s30, 5
      %s563 = scalar_select %p562, %s30, 5
      %s564 = scalar_lea.vmem %s5, %s563
      %p565 = pneg %p183
      %p566 = pneg %p180
      %p567 = scmp.lt.s32.totalorder %s30, 5
      %s568 = scalar_select %p567, %s30, 5
      %s569 = scalar_lea.vmem %s6, %s568
      %p570 = pneg %p209
      %p571 = pneg %p206
      %p572 = scmp.lt.s32.totalorder %s30, 5
      %s573 = scalar_select %p572, %s30, 5
      %s574 = scalar_lea.vmem %s7, %s573
      %p575 = pneg %p235
      %p576 = pneg %p232
      %p577 = scmp.lt.s32.totalorder %s30, 5
      %s578 = scalar_select %p577, %s30, 5
      %s579 = smul.addr %s578, 8
      %s580 = smul.addr %s579, 8
      %s581 = scalar_lea.vmem %s8, %s580
      %p582 = pneg %p261
      %p583 = pneg %p258
      %p584 = scmp.lt.s32.totalorder %s30, 5
      %s585 = scalar_select %p584, %s30, 5
      %s586 = scalar_lea.vmem %s9, %s585
      %p587 = pneg %p287
      %p588 = pneg %p284
      %p589 = scmp.lt.s32.totalorder %s30, 5
      %s590 = scalar_select %p589, %s30, 5
      %s591 = smul.addr %s590, 8
      %s592 = smul.addr %s591, 8
      %s593 = scalar_lea.vmem %s10, %s592
      %p594 = pneg %p313
      %p595 = pneg %p310
      %p596 = scmp.lt.s32.totalorder %s30, 5
      %s597 = scalar_select %p596, %s30, 5
      %s598 = scalar_lea.vmem %s11, %s597
      %p599 = pneg %p339
      %p600 = pneg %p336
      %p601 = scmp.lt.s32.totalorder %s30, 5
      %s602 = scalar_select %p601, %s30, 5
      %s603 = scalar_lea.vmem %s12, %s602
      %p604 = pneg %p365
      %p605 = pneg %p362
      %p606 = scmp.lt.s32.totalorder %s30, 5
      %s607 = scalar_select %p606, %s30, 5
      %s608 = scalar_lea.vmem %s13, %s607
      %p609 = pneg %p391
      %p610 = pneg %p388
      %p611 = pneg %p417
      %p612 = pneg %p414
      %p613 = scmp.lt.s32.totalorder %s29, 1
      %s614 = scalar_select %p613, %s29, 1
      %s615 = smul.addr %s614, 8
      %s616 = scalar_lea.vmem %s14, %s615
      %p617 = scmp.lt.s32.totalorder %s29, 1
      %s618 = scalar_select %p617, %s29, 1
      %s619 = smul.addr %s618, 8
      %s620 = scalar_lea.vmem %s0, %s619
      %p621 = scmp.lt.s32.totalorder %s30, 5
      %s622 = scalar_select %p621, %s30, 5
      %s623 = smul.addr %s622, 16
      %s624 = smul.addr %s623, 8
      %s625 = scalar_lea.vmem %s2, %s624
      %p626 = scmp.lt.s32.totalorder %s30, 5
      %s627 = scalar_select %p626, %s30, 5
      %s628 = smul.addr %s627, 2
      %s629 = scalar_lea.vmem %s3, %s628
      %p630 = scmp.lt.s32.totalorder %s30, 5
      %s631 = scalar_select %p630, %s30, 5
      %s632 = smul.addr %s631, 8
      %s633 = smul.addr %s632, 8
      %s634 = scalar_lea.vmem %s4, %s633
      %p635 = scmp.lt.s32.totalorder %s30, 5
      %s636 = scalar_select %p635, %s30, 5
      %s637 = scalar_lea.vmem %s5, %s636
      %p638 = scmp.lt.s32.totalorder %s30, 5
      %s639 = scalar_select %p638, %s30, 5
      %s640 = scalar_lea.vmem %s6, %s639
      %p641 = scmp.lt.s32.totalorder %s30, 5
      %s642 = scalar_select %p641, %s30, 5
      %s643 = scalar_lea.vmem %s7, %s642
      %p644 = scmp.lt.s32.totalorder %s30, 5
      %s645 = scalar_select %p644, %s30, 5
      %s646 = smul.addr %s645, 8
      %s647 = smul.addr %s646, 8
      %s648 = scalar_lea.vmem %s8, %s647
      %p649 = scmp.lt.s32.totalorder %s30, 5
      %s650 = scalar_select %p649, %s30, 5
      %s651 = scalar_lea.vmem %s9, %s650
      %p652 = scmp.lt.s32.totalorder %s30, 5
      %s653 = scalar_select %p652, %s30, 5
      %s654 = smul.addr %s653, 8
      %s655 = smul.addr %s654, 8
      %s656 = scalar_lea.vmem %s10, %s655
      %p657 = scmp.lt.s32.totalorder %s30, 5
      %s658 = scalar_select %p657, %s30, 5
      %s659 = scalar_lea.vmem %s11, %s658
      %p660 = scmp.lt.s32.totalorder %s30, 5
      %s661 = scalar_select %p660, %s30, 5
      %s662 = scalar_lea.vmem %s12, %s661
      %p663 = scmp.lt.s32.totalorder %s30, 5
      %s664 = scalar_select %p663, %s30, 5
      %s665 = scalar_lea.vmem %s13, %s664
      %p666 = scmp.lt.s32.totalorder %s29, 1
      %s667 = scalar_select %p666, %s29, 1
      %s668 = smul.addr %s667, 8
      %s669 = scalar_lea.vmem %s14, %s668
      %p670 = scmp.eq.s32.totalorder %s30, 0
      // Predicated region
      $region77: #{forward.8} parent=75 // pred_check
        %p671 = pneg %p670
      $region78: #{forward.8} parent=75 // pred_check_branch
        %673 = sbr.rel (%p671) target = $region80
      $region79: #{forward.8} parent=75 // pred_region
        %v674 = vld [vmem:[%s620] sm:$0xff]
        %vm675 = vcmask 523264
        %676 = vst.msk [vmem:[%s669] sm:$0xff] %vm675, %v674
      $region80: #{forward.8} parent=75 // pred_fallthru
        _
      %v677 = vld [vmem:[%s669] sm:$0xff]
      %v678 = vld [vmem:[%s625] sm:$0xff]
      %v679 = vld [vmem:[%s625 + $0x8] sm:$0xff]
      %v680 = vld [vmem:[%s625 + $0x10] sm:$0xff]
      %v681 = vld [vmem:[%s625 + $0x18] sm:$0xff]
      %v682 = vld [vmem:[%s625 + $0x20] sm:$0xff]
      %v683 = vld [vmem:[%s625 + $0x28] sm:$0xff]
      %v684 = vld [vmem:[%s625 + $0x30] sm:$0xff]
      %v685 = vld [vmem:[%s625 + $0x38] sm:$0xff]
      %v686 = vld [vmem:[%s625 + $0x40] sm:$0xff]
      %v687 = vld [vmem:[%s625 + $0x48] sm:$0xff]
      %v688 = vld [vmem:[%s625 + $0x50] sm:$0xff]
      %v689 = vld [vmem:[%s625 + $0x58] sm:$0xff]
      %v690 = vld [vmem:[%s625 + $0x60] sm:$0xff]
      %v691 = vld [vmem:[%s625 + $0x68] sm:$0xff]
      %v692 = vld [vmem:[%s625 + $0x70] sm:$0xff]
      %v693 = vld [vmem:[%s625 + $0x78] sm:$0xff]
      %v694 = vld [vmem:[%s629] sm:$0x3]
      %v696 = vlaneseq
      %v697 = vshrl.u32 %v696, 7
      %v698 = vsub.s32 0, %v697
      %v699 = vrot.slane %v694, %v698
      %v700 = vlaneseq
      %v701 = vshrl.u32 %v700, 7
      %v702 = vsub.s32 1, %v701
      %v703 = vrot.slane %v694, %v702
      %vm706 = vcmask 523264
      %v708 = vsel %vm706, %v677, 0
      %710 = vmatprep.subr.mxu0 %v679
      %711 = vmatpush1.msra.mxu0 %v678
      %712 = vmatprep.subr.mxu0 %v681
      %713 = vmatpush1.msra.mxu0 %v680
      %714 = vmatprep.subr.mxu0 %v683
      %715 = vmatpush1.msra.mxu0 %v682
      %716 = vmatprep.subr.mxu0 %v685
      %717 = vmatpush1.msra.mxu0 %v684
      %718 = vmatprep.subr.mxu0 %v687
      %719 = vmatpush1.msra.mxu0 %v686
      %720 = vmatprep.subr.mxu0 %v689
      %721 = vmatpush1.msra.mxu0 %v688
      %722 = vmatprep.subr.mxu0 %v691
      %723 = vmatpush1.msra.mxu0 %v690
      %724 = vmatprep.subr.mxu0 %v693
      %725 = vmatpush1.msra.mxu0 %v692
      %726 = vmatprep.subr.mxu0 0.0
      %727 = vmatpush1.msra.mxu0 0.0
      %728 = vmatprep.subr.mxu0 0.0
      %729 = vmatpush1.msra.mxu0 0.0
      %730 = vmatprep.subr.mxu0 0.0
      %731 = vmatpush1.msra.mxu0 0.0
      %732 = vmatprep.subr.mxu0 0.0
      %733 = vmatpush1.msra.mxu0 0.0
      %734 = vmatprep.subr.mxu0 0.0
      %735 = vmatpush1.msra.mxu0 0.0
      %736 = vmatprep.subr.mxu0 0.0
      %737 = vmatpush1.msra.mxu0 0.0
      %738 = vmatprep.subr.mxu0 0.0
      %739 = vmatpush1.msra.mxu0 0.0
      %740 = vmatprep.subr.mxu0 0.0
      %741 = vmatpush1.msra.mxu0 0.0
      %742 = vmatprep.subr.mxu0 0.0
      %743 = vmatpush1.msra.mxu0 0.0
      %744 = vmatprep.subr.mxu0 0.0
      %745 = vmatpush1.msra.mxu0 0.0
      %746 = vmatprep.subr.mxu0 0.0
      %747 = vmatpush1.msra.mxu0 0.0
      %748 = vmatprep.subr.mxu0 0.0
      %749 = vmatpush1.msra.mxu0 0.0
      %750 = vmatprep.subr.mxu0 0.0
      %751 = vmatpush1.msra.mxu0 0.0
      %752 = vmatprep.subr.mxu0 0.0
      %753 = vmatpush1.msra.mxu0 0.0
      %754 = vmatprep.subr.mxu0 0.0
      %755 = vmatpush1.msra.mxu0 0.0
      %756 = vmatprep.subr.mxu0 0.0
      %757 = vmatpush1.msra.mxu0 0.0
      %758 = vmatprep.subr.mxu0 0.0
      %759 = vmatpush1.msra.mxu0 0.0
      %760 = vmatprep.subr.mxu0 0.0
      %761 = vmatpush1.msra.mxu0 0.0
      %762 = vmatprep.subr.mxu0 0.0
      %763 = vmatpush1.msra.mxu0 0.0
      %764 = vmatprep.subr.mxu0 0.0
      %765 = vmatpush1.msra.mxu0 0.0
      %766 = vmatprep.subr.mxu0 0.0
      %767 = vmatpush1.msra.mxu0 0.0
      %768 = vmatprep.subr.mxu0 0.0
      %769 = vmatpush1.msra.mxu0 0.0
      %770 = vmatprep.subr.mxu0 0.0
      %771 = vmatpush1.msra.mxu0 0.0
      %772 = vmatprep.subr.mxu0 0.0
      %773 = vmatpush1.msra.mxu0 0.0
      %774 = vmatprep.mubr.f32.mxu0 0.0
      %775 = vmatmul.mubr.f32.gmra.mrb[0].mxu0 %v708
      %v776 = vpop.f32.mrb[0].mxu0
      %v777 = vadd.f32 %v699, %v776
      %v778 = vpop.f32.mrb[0].mxu0
      %v779 = vadd.f32 %v703, %v778
      %780 = vdwg.mxu0
      %v781 = vld [vmem:[%s1] sm:$0xff]
      %783 = vrot.lane.b32.xlu0 %v777, 64
      %v784 = vpop.permute.xlu0 %783
      %vm785 = vcmask 64512
      %v786 = vsel %vm785, %v777, 0
      %v788 = vsel %vm785, %v784, 0
      %790 = vmatprep.subr.mxu0 0.0
      %791 = vmatpush1.xpose.msra.mxu0 %v788
      %792 = vmatprep.subr.mxu0 0.0
      %793 = vmatpush1.xpose.msra.mxu0 0.0
      %794 = vmatprep.subr.mxu0 0.0
      %795 = vmatpush1.xpose.msra.mxu0 0.0
      %796 = vmatprep.subr.mxu0 0.0
      %797 = vmatpush1.xpose.msra.mxu0 0.0
      %798 = vmatprep.subr.mxu0 0.0
      %799 = vmatpush1.xpose.msra.mxu0 0.0
      %800 = vmatprep.subr.mxu0 0.0
      %801 = vmatpush1.xpose.msra.mxu0 0.0
      %802 = vmatprep.subr.mxu0 0.0
      %803 = vmatpush1.xpose.msra.mxu0 0.0
      %804 = vmatprep.subr.mxu0 0.0
      %805 = vmatpush1.xpose.msra.mxu0 0.0
      %806 = vmatprep.subr.mxu0 0.0
      %807 = vmatpush1.xpose.msra.mxu0 0.0
      %808 = vmatprep.subr.mxu0 0.0
      %809 = vmatpush1.xpose.msra.mxu0 0.0
      %810 = vmatprep.subr.mxu0 0.0
      %811 = vmatpush1.xpose.msra.mxu0 0.0
      %812 = vmatprep.subr.mxu0 0.0
      %813 = vmatpush1.xpose.msra.mxu0 0.0
      %814 = vmatprep.subr.mxu0 0.0
      %815 = vmatpush1.xpose.msra.mxu0 0.0
      %816 = vmatprep.subr.mxu0 0.0
      %817 = vmatpush1.xpose.msra.mxu0 0.0
      %818 = vmatprep.subr.mxu0 0.0
      %819 = vmatpush1.xpose.msra.mxu0 0.0
      %820 = vmatprep.subr.mxu0 0.0
      %821 = vmatpush1.xpose.msra.mxu0 0.0
      %822 = vmatprep.subr.mxu0 0.0
      %823 = vmatpush1.xpose.msra.mxu0 0.0
      %824 = vmatprep.subr.mxu0 0.0
      %825 = vmatpush1.xpose.msra.mxu0 0.0
      %826 = vmatprep.subr.mxu0 0.0
      %827 = vmatpush1.xpose.msra.mxu0 0.0
      %828 = vmatprep.subr.mxu0 0.0
      %829 = vmatpush1.xpose.msra.mxu0 0.0
      %830 = vmatprep.subr.mxu0 0.0
      %831 = vmatpush1.xpose.msra.mxu0 0.0
      %832 = vmatprep.subr.mxu0 0.0
      %833 = vmatpush1.xpose.msra.mxu0 0.0
      %834 = vmatprep.subr.mxu0 0.0
      %835 = vmatpush1.xpose.msra.mxu0 0.0
      %836 = vmatprep.subr.mxu0 0.0
      %837 = vmatpush1.xpose.msra.mxu0 0.0
      %838 = vmatprep.subr.mxu0 0.0
      %839 = vmatpush1.xpose.msra.mxu0 0.0
      %840 = vmatprep.subr.mxu0 0.0
      %841 = vmatpush1.xpose.msra.mxu0 0.0
      %842 = vmatprep.subr.mxu0 0.0
      %843 = vmatpush1.xpose.msra.mxu0 0.0
      %844 = vmatprep.subr.mxu0 0.0
      %845 = vmatpush1.xpose.msra.mxu0 0.0
      %846 = vmatprep.subr.mxu0 0.0
      %847 = vmatpush1.xpose.msra.mxu0 0.0
      %848 = vmatprep.subr.mxu0 0.0
      %849 = vmatpush1.xpose.msra.mxu0 0.0
      %850 = vmatprep.subr.mxu0 0.0
      %851 = vmatpush1.xpose.msra.mxu0 0.0
      %852 = vmatprep.subr.mxu0 0.0
      %853 = vmatpush1.xpose.msra.mxu0 0.0
      %854 = vmatprep.mubr.f32.mxu0 0.0
      %855 = vmatmul.mubr.f32.gmra.mrb[0].mxu0 %v786
      %v856 = vpop.f32.mrb[0].mxu0
      %v857 = vadd.f32 0.0, %v856
      %v858 = vpop.f32.mrb[0].mxu0
      %859 = vdwg.mxu0
      %v860 = vmul.f32 %v857, 0.35355338
      %v861 = vadd.f32 %v860, %v781
      %v862 = vsel %vm785, %v861, -inf
      %863 = vmax.xlane.f32.xlu0 %v862
      %v864 = vpop.xlane.xlu0 %863
      %v865 = vsub.f32 %v861, %v864
      %v866 = vmul.f32 %v865, 1.442695
      %v867 = vpow.pop %v866
      %v868 = vsel %vm785, %v867, 0.0
      %869 = vadd.xlane.f32.xlu0 %v868
      %v870 = vpop.xlane.xlu0 %869
      %v871 = vrcp.pop %v870
      %v872 = vmul.f32 %v867, %v871
      %v874 = vsel %vm785, %v872, 0
      %876 = vmatprep.subr.mxu0 0.0
      %877 = vmatpush1.msra.mxu0 %v779
      %878 = vmatprep.subr.mxu0 0.0
      %879 = vmatpush1.msra.mxu0 0.0
      %880 = vmatprep.subr.mxu0 0.0
      %881 = vmatpush1.msra.mxu0 0.0
      %882 = vmatprep.subr.mxu0 0.0
      %883 = vmatpush1.msra.mxu0 0.0
      %884 = vmatprep.subr.mxu0 0.0
      %885 = vmatpush1.msra.mxu0 0.0
      %886 = vmatprep.subr.mxu0 0.0
      %887 = vmatpush1.msra.mxu0 0.0
      %888 = vmatprep.subr.mxu0 0.0
      %889 = vmatpush1.msra.mxu0 0.0
      %890 = vmatprep.subr.mxu0 0.0
      %891 = vmatpush1.msra.mxu0 0.0
      %892 = vmatprep.subr.mxu0 0.0
      %893 = vmatpush1.msra.mxu0 0.0
      %894 = vmatprep.subr.mxu0 0.0
      %895 = vmatpush1.msra.mxu0 0.0
      %896 = vmatprep.subr.mxu0 0.0
      %897 = vmatpush1.msra.mxu0 0.0
      %898 = vmatprep.subr.mxu0 0.0
      %899 = vmatpush1.msra.mxu0 0.0
      %900 = vmatprep.subr.mxu0 0.0
      %901 = vmatpush1.msra.mxu0 0.0
      %902 = vmatprep.subr.mxu0 0.0
      %903 = vmatpush1.msra.mxu0 0.0
      %904 = vmatprep.subr.mxu0 0.0
      %905 = vmatpush1.msra.mxu0 0.0
      %906 = vmatprep.subr.mxu0 0.0
      %907 = vmatpush1.msra.mxu0 0.0
      %908 = vmatprep.subr.mxu0 0.0
      %909 = vmatpush1.msra.mxu0 0.0
      %910 = vmatprep.subr.mxu0 0.0
      %911 = vmatpush1.msra.mxu0 0.0
      %912 = vmatprep.subr.mxu0 0.0
      %913 = vmatpush1.msra.mxu0 0.0
      %914 = vmatprep.subr.mxu0 0.0
      %915 = vmatpush1.msra.mxu0 0.0
      %916 = vmatprep.subr.mxu0 0.0
      %917 = vmatpush1.msra.mxu0 0.0
      %918 = vmatprep.subr.mxu0 0.0
      %919 = vmatpush1.msra.mxu0 0.0
      %920 = vmatprep.subr.mxu0 0.0
      %921 = vmatpush1.msra.mxu0 0.0
      %922 = vmatprep.subr.mxu0 0.0
      %923 = vmatpush1.msra.mxu0 0.0
      %924 = vmatprep.subr.mxu0 0.0
      %925 = vmatpush1.msra.mxu0 0.0
      %926 = vmatprep.subr.mxu0 0.0
      %927 = vmatpush1.msra.mxu0 0.0
      %928 = vmatprep.subr.mxu0 0.0
      %929 = vmatpush1.msra.mxu0 0.0
      %930 = vmatprep.subr.mxu0 0.0
      %931 = vmatpush1.msra.mxu0 0.0
      %932 = vmatprep.subr.mxu0 0.0
      %933 = vmatpush1.msra.mxu0 0.0
      %934 = vmatprep.subr.mxu0 0.0
      %935 = vmatpush1.msra.mxu0 0.0
      %936 = vmatprep.subr.mxu0 0.0
      %937 = vmatpush1.msra.mxu0 0.0
      %938 = vmatprep.subr.mxu0 0.0
      %939 = vmatpush1.msra.mxu0 0.0
      %940 = vmatprep.mubr.f32.mxu0 0.0
      %941 = vmatmul.mubr.f32.gmra.mrb[0].mxu0 %v874
      %v942 = vpop.f32.mrb[0].mxu0
      %v943 = vadd.f32 0.0, %v942
      %v944 = vpop.f32.mrb[0].mxu0
      %945 = vdwg.mxu0
      %946 = vst.msk [vmem:[#allocation2] sm:$0xff] %vm785, %v943
      %947 = vrot.lane.b32.xlu0 %v777, 120
      %v948 = vpop.permute.xlu0 %947
      %949 = vrot.lane.b32.xlu0 %v777, 56
      %v950 = vpop.permute.xlu0 %949
      %v951 = vsel %vm785, %v948, 0
      %v953 = vsel %vm785, %v950, 0
      %955 = vmatprep.subr.mxu0 0.0
      %956 = vmatpush1.xpose.msra.mxu0 %v953
      %957 = vmatprep.subr.mxu0 0.0
      %958 = vmatpush1.xpose.msra.mxu0 0.0
      %959 = vmatprep.subr.mxu0 0.0
      %960 = vmatpush1.xpose.msra.mxu0 0.0
      %961 = vmatprep.subr.mxu0 0.0
      %962 = vmatpush1.xpose.msra.mxu0 0.0
      %963 = vmatprep.subr.mxu0 0.0
      %964 = vmatpush1.xpose.msra.mxu0 0.0
      %965 = vmatprep.subr.mxu0 0.0
      %966 = vmatpush1.xpose.msra.mxu0 0.0
      %967 = vmatprep.subr.mxu0 0.0
      %968 = vmatpush1.xpose.msra.mxu0 0.0
      %969 = vmatprep.subr.mxu0 0.0
      %970 = vmatpush1.xpose.msra.mxu0 0.0
      %971 = vmatprep.subr.mxu0 0.0
      %972 = vmatpush1.xpose.msra.mxu0 0.0
      %973 = vmatprep.subr.mxu0 0.0
      %974 = vmatpush1.xpose.msra.mxu0 0.0
      %975 = vmatprep.subr.mxu0 0.0
      %976 = vmatpush1.xpose.msra.mxu0 0.0
      %977 = vmatprep.subr.mxu0 0.0
      %978 = vmatpush1.xpose.msra.mxu0 0.0
      %979 = vmatprep.subr.mxu0 0.0
      %980 = vmatpush1.xpose.msra.mxu0 0.0
      %981 = vmatprep.subr.mxu0 0.0
      %982 = vmatpush1.xpose.msra.mxu0 0.0
      %983 = vmatprep.subr.mxu0 0.0
      %984 = vmatpush1.xpose.msra.mxu0 0.0
      %985 = vmatprep.subr.mxu0 0.0
      %986 = vmatpush1.xpose.msra.mxu0 0.0
      %987 = vmatprep.subr.mxu0 0.0
      %988 = vmatpush1.xpose.msra.mxu0 0.0
      %989 = vmatprep.subr.mxu0 0.0
      %990 = vmatpush1.xpose.msra.mxu0 0.0
      %991 = vmatprep.subr.mxu0 0.0
      %992 = vmatpush1.xpose.msra.mxu0 0.0
      %993 = vmatprep.subr.mxu0 0.0
      %994 = vmatpush1.xpose.msra.mxu0 0.0
      %995 = vmatprep.subr.mxu0 0.0
      %996 = vmatpush1.xpose.msra.mxu0 0.0
      %997 = vmatprep.subr.mxu0 0.0
      %998 = vmatpush1.xpose.msra.mxu0 0.0
      %999 = vmatprep.subr.mxu0 0.0
      %1000 = vmatpush1.xpose.msra.mxu0 0.0
      %1001 = vmatprep.subr.mxu0 0.0
      %1002 = vmatpush1.xpose.msra.mxu0 0.0
      %1003 = vmatprep.subr.mxu0 0.0
      %1004 = vmatpush1.xpose.msra.mxu0 0.0
      %1005 = vmatprep.subr.mxu0 0.0
      %1006 = vmatpush1.xpose.msra.mxu0 0.0
      %1007 = vmatprep.subr.mxu0 0.0
      %1008 = vmatpush1.xpose.msra.mxu0 0.0
      %1009 = vmatprep.subr.mxu0 0.0
      %1010 = vmatpush1.xpose.msra.mxu0 0.0
      %1011 = vmatprep.subr.mxu0 0.0
      %1012 = vmatpush1.xpose.msra.mxu0 0.0
      %1013 = vmatprep.subr.mxu0 0.0
      %1014 = vmatpush1.xpose.msra.mxu0 0.0
      %1015 = vmatprep.subr.mxu0 0.0
      %1016 = vmatpush1.xpose.msra.mxu0 0.0
      %1017 = vmatprep.subr.mxu0 0.0
      %1018 = vmatpush1.xpose.msra.mxu0 0.0
      %1019 = vmatprep.mubr.f32.mxu0 0.0
      %1020 = vmatmul.mubr.f32.gmra.mrb[0].mxu0 %v951
      %v1021 = vpop.f32.mrb[0].mxu0
      %v1022 = vadd.f32 0.0, %v1021
      %v1023 = vpop.f32.mrb[0].mxu0
      %1024 = vdwg.mxu0
      %v1025 = vmul.f32 %v1022, 0.35355338
      %v1026 = vadd.f32 %v1025, %v781
      %v1027 = vsel %vm785, %v1026, -inf
      %1028 = vmax.xlane.f32.xlu0 %v1027
      %v1029 = vpop.xlane.xlu0 %1028
      %v1030 = vsub.f32 %v1026, %v1029
      %v1031 = vmul.f32 %v1030, 1.442695
      %v1032 = vpow.pop %v1031
      %v1033 = vsel %vm785, %v1032, 0.0
      %1034 = vadd.xlane.f32.xlu0 %v1033
      %v1035 = vpop.xlane.xlu0 %1034
      %v1036 = vrcp.pop %v1035
      %v1037 = vmul.f32 %v1032, %v1036
      %1039 = vrot.lane.b32.xlu0 %v779, 120
      %v1040 = vpop.permute.xlu0 %1039
      %v1043 = vsel %vm785, %v1037, 0
      %1045 = vmatprep.subr.mxu0 0.0
      %1046 = vmatpush1.msra.mxu0 %v1040
      %1047 = vmatprep.subr.mxu0 0.0
      %1048 = vmatpush1.msra.mxu0 0.0
      %1049 = vmatprep.subr.mxu0 0.0
      %1050 = vmatpush1.msra.mxu0 0.0
      %1051 = vmatprep.subr.mxu0 0.0
      %1052 = vmatpush1.msra.mxu0 0.0
      %1053 = vmatprep.subr.mxu0 0.0
      %1054 = vmatpush1.msra.mxu0 0.0
      %1055 = vmatprep.subr.mxu0 0.0
      %1056 = vmatpush1.msra.mxu0 0.0
      %1057 = vmatprep.subr.mxu0 0.0
      %1058 = vmatpush1.msra.mxu0 0.0
      %1059 = vmatprep.subr.mxu0 0.0
      %1060 = vmatpush1.msra.mxu0 0.0
      %1061 = vmatprep.subr.mxu0 0.0
      %1062 = vmatpush1.msra.mxu0 0.0
      %1063 = vmatprep.subr.mxu0 0.0
      %1064 = vmatpush1.msra.mxu0 0.0
      %1065 = vmatprep.subr.mxu0 0.0
      %1066 = vmatpush1.msra.mxu0 0.0
      %1067 = vmatprep.subr.mxu0 0.0
      %1068 = vmatpush1.msra.mxu0 0.0
      %1069 = vmatprep.subr.mxu0 0.0
      %1070 = vmatpush1.msra.mxu0 0.0
      %1071 = vmatprep.subr.mxu0 0.0
      %1072 = vmatpush1.msra.mxu0 0.0
      %1073 = vmatprep.subr.mxu0 0.0
      %1074 = vmatpush1.msra.mxu0 0.0
      %1075 = vmatprep.subr.mxu0 0.0
      %1076 = vmatpush1.msra.mxu0 0.0
      %1077 = vmatprep.subr.mxu0 0.0
      %1078 = vmatpush1.msra.mxu0 0.0
      %1079 = vmatprep.subr.mxu0 0.0
      %1080 = vmatpush1.msra.mxu0 0.0
      %1081 = vmatprep.subr.mxu0 0.0
      %1082 = vmatpush1.msra.mxu0 0.0
      %1083 = vmatprep.subr.mxu0 0.0
      %1084 = vmatpush1.msra.mxu0 0.0
      %1085 = vmatprep.subr.mxu0 0.0
      %1086 = vmatpush1.msra.mxu0 0.0
      %1087 = vmatprep.subr.mxu0 0.0
      %1088 = vmatpush1.msra.mxu0 0.0
      %1089 = vmatprep.subr.mxu0 0.0
      %1090 = vmatpush1.msra.mxu0 0.0
      %1091 = vmatprep.subr.mxu0 0.0
      %1092 = vmatpush1.msra.mxu0 0.0
      %1093 = vmatprep.subr.mxu0 0.0
      %1094 = vmatpush1.msra.mxu0 0.0
      %1095 = vmatprep.subr.mxu0 0.0
      %1096 = vmatpush1.msra.mxu0 0.0
      %1097 = vmatprep.subr.mxu0 0.0
      %1098 = vmatpush1.msra.mxu0 0.0
      %1099 = vmatprep.subr.mxu0 0.0
      %1100 = vmatpush1.msra.mxu0 0.0
      %1101 = vmatprep.subr.mxu0 0.0
      %1102 = vmatpush1.msra.mxu0 0.0
      %1103 = vmatprep.subr.mxu0 0.0
      %1104 = vmatpush1.msra.mxu0 0.0
      %1105 = vmatprep.subr.mxu0 0.0
      %1106 = vmatpush1.msra.mxu0 0.0
      %1107 = vmatprep.subr.mxu0 0.0
      %1108 = vmatpush1.msra.mxu0 0.0
      %1109 = vmatprep.mubr.f32.mxu0 0.0
      %1110 = vmatmul.mubr.f32.gmra.mrb[0].mxu0 %v1043
      %v1111 = vpop.f32.mrb[0].mxu0
      %v1112 = vadd.f32 0.0, %v1111
      %v1113 = vpop.f32.mrb[0].mxu0
      %1114 = vdwg.mxu0
      %1116 = vrot.lane.b32.xlu0 %v1112, 8
      %v1117 = vpop.permute.xlu0 %1116
      %vm1119 = vcmask 130112
      %1120 = vst.msk [vmem:[#allocation2] sm:$0xff] %vm1119, %v1117
      %1121 = vrot.lane.b32.xlu0 %v777, 112
      %v1122 = vpop.permute.xlu0 %1121
      %1123 = vrot.lane.b32.xlu0 %v777, 48
      %v1124 = vpop.permute.xlu0 %1123
      %v1125 = vsel %vm785, %v1122, 0
      %v1127 = vsel %vm785, %v1124, 0
      %1129 = vmatprep.subr.mxu0 0.0
      %1130 = vmatpush1.xpose.msra.mxu0 %v1127
      %1131 = vmatprep.subr.mxu0 0.0
      %1132 = vmatpush1.xpose.msra.mxu0 0.0
      %1133 = vmatprep.subr.mxu0 0.0
      %1134 = vmatpush1.xpose.msra.mxu0 0.0
      %1135 = vmatprep.subr.mxu0 0.0
      %1136 = vmatpush1.xpose.msra.mxu0 0.0
      %1137 = vmatprep.subr.mxu0 0.0
      %1138 = vmatpush1.xpose.msra.mxu0 0.0
      %1139 = vmatprep.subr.mxu0 0.0
      %1140 = vmatpush1.xpose.msra.mxu0 0.0
      %1141 = vmatprep.subr.mxu0 0.0
      %1142 = vmatpush1.xpose.msra.mxu0 0.0
      %1143 = vmatprep.subr.mxu0 0.0
      %1144 = vmatpush1.xpose.msra.mxu0 0.0
      %1145 = vmatprep.subr.mxu0 0.0
      %1146 = vmatpush1.xpose.msra.mxu0 0.0
      %1147 = vmatprep.subr.mxu0 0.0
      %1148 = vmatpush1.xpose.msra.mxu0 0.0
      %1149 = vmatprep.subr.mxu0 0.0
      %1150 = vmatpush1.xpose.msra.mxu0 0.0
      %1151 = vmatprep.subr.mxu0 0.0
      %1152 = vmatpush1.xpose.msra.mxu0 0.0
      %1153 = vmatprep.subr.mxu0 0.0
      %1154 = vmatpush1.xpose.msra.mxu0 0.0
      %1155 = vmatprep.subr.mxu0 0.0
      %1156 = vmatpush1.xpose.msra.mxu0 0.0
      %1157 = vmatprep.subr.mxu0 0.0
      %1158 = vmatpush1.xpose.msra.mxu0 0.0
      %1159 = vmatprep.subr.mxu0 0.0
      %1160 = vmatpush1.xpose.msra.mxu0 0.0
      %1161 = vmatprep.subr.mxu0 0.0
      %1162 = vmatpush1.xpose.msra.mxu0 0.0
      %1163 = vmatprep.subr.mxu0 0.0
      %1164 = vmatpush1.xpose.msra.mxu0 0.0
      %1165 = vmatprep.subr.mxu0 0.0
      %1166 = vmatpush1.xpose.msra.mxu0 0.0
      %1167 = vmatprep.subr.mxu0 0.0
      %1168 = vmatpush1.xpose.msra.mxu0 0.0
      %1169 = vmatprep.subr.mxu0 0.0
      %1170 = vmatpush1.xpose.msra.mxu0 0.0
      %1171 = vmatprep.subr.mxu0 0.0
      %1172 = vmatpush1.xpose.msra.mxu0 0.0
      %1173 = vmatprep.subr.mxu0 0.0
      %1174 = vmatpush1.xpose.msra.mxu0 0.0
      %1175 = vmatprep.subr.mxu0 0.0
      %1176 = vmatpush1.xpose.msra.mxu0 0.0
      %1177 = vmatprep.subr.mxu0 0.0
      %1178 = vmatpush1.xpose.msra.mxu0 0.0
      %1179 = vmatprep.subr.mxu0 0.0
      %1180 = vmatpush1.xpose.msra.mxu0 0.0
      %1181 = vmatprep.subr.mxu0 0.0
      %1182 = vmatpush1.xpose.msra.mxu0 0.0
      %1183 = vmatprep.subr.mxu0 0.0
      %1184 = vmatpush1.xpose.msra.mxu0 0.0
      %1185 = vmatprep.subr.mxu0 0.0
      %1186 = vmatpush1.xpose.msra.mxu0 0.0
      %1187 = vmatprep.subr.mxu0 0.0
      %1188 = vmatpush1.xpose.msra.mxu0 0.0
      %1189 = vmatprep.subr.mxu0 0.0
      %1190 = vmatpush1.xpose.msra.mxu0 0.0
      %1191 = vmatprep.subr.mxu0 0.0
      %1192 = vmatpush1.xpose.msra.mxu0 0.0
      %1193 = vmatprep.mubr.f32.mxu0 0.0
      %1194 = vmatmul.mubr.f32.gmra.mrb[0].mxu0 %v1125
      %v1195 = vpop.f32.mrb[0].mxu0
      %v1196 = vadd.f32 0.0, %v1195
      %v1197 = vpop.f32.mrb[0].mxu0
      %1198 = vdwg.mxu0
      %v1199 = vmul.f32 %v1196, 0.35355338
      %v1200 = vadd.f32 %v1199, %v781
      %v1201 = vsel %vm785, %v1200, -inf
      %1202 = vmax.xlane.f32.xlu0 %v1201
      %v1203 = vpop.xlane.xlu0 %1202
      %v1204 = vsub.f32 %v1200, %v1203
      %v1205 = vmul.f32 %v1204, 1.442695
      %v1206 = vpow.pop %v1205
      %v1207 = vsel %vm785, %v1206, 0.0
      %1208 = vadd.xlane.f32.xlu0 %v1207
      %v1209 = vpop.xlane.xlu0 %1208
      %v1210 = vrcp.pop %v1209
      %v1211 = vmul.f32 %v1206, %v1210
      %1212 = vrot.lane.b32.xlu0 %v779, 112
      %v1213 = vpop.permute.xlu0 %1212
      %v1216 = vsel %vm785, %v1211, 0
      %1218 = vmatprep.subr.mxu0 0.0
      %1219 = vmatpush1.msra.mxu0 %v1213
      %1220 = vmatprep.subr.mxu0 0.0
      %1221 = vmatpush1.msra.mxu0 0.0
      %1222 = vmatprep.subr.mxu0 0.0
      %1223 = vmatpush1.msra.mxu0 0.0
      %1224 = vmatprep.subr.mxu0 0.0
      %1225 = vmatpush1.msra.mxu0 0.0
      %1226 = vmatprep.subr.mxu0 0.0
      %1227 = vmatpush1.msra.mxu0 0.0
      %1228 = vmatprep.subr.mxu0 0.0
      %1229 = vmatpush1.msra.mxu0 0.0
      %1230 = vmatprep.subr.mxu0 0.0
      %1231 = vmatpush1.msra.mxu0 0.0
      %1232 = vmatprep.subr.mxu0 0.0
      %1233 = vmatpush1.msra.mxu0 0.0
      %1234 = vmatprep.subr.mxu0 0.0
      %1235 = vmatpush1.msra.mxu0 0.0
      %1236 = vmatprep.subr.mxu0 0.0
      %1237 = vmatpush1.msra.mxu0 0.0
      %1238 = vmatprep.subr.mxu0 0.0
      %1239 = vmatpush1.msra.mxu0 0.0
      %1240 = vmatprep.subr.mxu0 0.0
      %1241 = vmatpush1.msra.mxu0 0.0
      %1242 = vmatprep.subr.mxu0 0.0
      %1243 = vmatpush1.msra.mxu0 0.0
      %1244 = vmatprep.subr.mxu0 0.0
      %1245 = vmatpush1.msra.mxu0 0.0
      %1246 = vmatprep.subr.mxu0 0.0
      %1247 = vmatpush1.msra.mxu0 0.0
      %1248 = vmatprep.subr.mxu0 0.0
      %1249 = vmatpush1.msra.mxu0 0.0
      %1250 = vmatprep.subr.mxu0 0.0
      %1251 = vmatpush1.msra.mxu0 0.0
      %1252 = vmatprep.subr.mxu0 0.0
      %1253 = vmatpush1.msra.mxu0 0.0
      %1254 = vmatprep.subr.mxu0 0.0
      %1255 = vmatpush1.msra.mxu0 0.0
      %1256 = vmatprep.subr.mxu0 0.0
      %1257 = vmatpush1.msra.mxu0 0.0
      %1258 = vmatprep.subr.mxu0 0.0
      %1259 = vmatpush1.msra.mxu0 0.0
      %1260 = vmatprep.subr.mxu0 0.0
      %1261 = vmatpush1.msra.mxu0 0.0
      %1262 = vmatprep.subr.mxu0 0.0
      %1263 = vmatpush1.msra.mxu0 0.0
      %1264 = vmatprep.subr.mxu0 0.0
      %1265 = vmatpush1.msra.mxu0 0.0
      %1266 = vmatprep.subr.mxu0 0.0
      %1267 = vmatpush1.msra.mxu0 0.0
      %1268 = vmatprep.subr.mxu0 0.0
      %1269 = vmatpush1.msra.mxu0 0.0
      %1270 = vmatprep.subr.mxu0 0.0
      %1271 = vmatpush1.msra.mxu0 0.0
      %1272 = vmatprep.subr.mxu0 0.0
      %1273 = vmatpush1.msra.mxu0 0.0
      %1274 = vmatprep.subr.mxu0 0.0
      %1275 = vmatpush1.msra.mxu0 0.0
      %1276 = vmatprep.subr.mxu0 0.0
      %1277 = vmatpush1.msra.mxu0 0.0
      %1278 = vmatprep.subr.mxu0 0.0
      %1279 = vmatpush1.msra.mxu0 0.0
      %1280 = vmatprep.subr.mxu0 0.0
      %1281 = vmatpush1.msra.mxu0 0.0
      %1282 = vmatprep.mubr.f32.mxu0 0.0
      %1283 = vmatmul.mubr.f32.gmra.mrb[0].mxu0 %v1216
      %v1284 = vpop.f32.mrb[0].mxu0
      %v1285 = vadd.f32 0.0, %v1284
      %v1286 = vpop.f32.mrb[0].mxu0
      %1287 = vdwg.mxu0
      %1289 = vrot.lane.b32.xlu0 %v1285, 16
      %v1290 = vpop.permute.xlu0 %1289
      %vm1292 = vcmask 195712
      %1293 = vst.msk [vmem:[#allocation2] sm:$0xff] %vm1292, %v1290
      %1294 = vrot.lane.b32.xlu0 %v777, 104
      %v1295 = vpop.permute.xlu0 %1294
      %1296 = vrot.lane.b32.xlu0 %v777, 40
      %v1297 = vpop.permute.xlu0 %1296
      %v1298 = vsel %vm785, %v1295, 0
      %v1300 = vsel %vm785, %v1297, 0
      %1302 = vmatprep.subr.mxu0 0.0
      %1303 = vmatpush1.xpose.msra.mxu0 %v1300
      %1304 = vmatprep.subr.mxu0 0.0
      %1305 = vmatpush1.xpose.msra.mxu0 0.0
      %1306 = vmatprep.subr.mxu0 0.0
      %1307 = vmatpush1.xpose.msra.mxu0 0.0
      %1308 = vmatprep.subr.mxu0 0.0
      %1309 = vmatpush1.xpose.msra.mxu0 0.0
      %1310 = vmatprep.subr.mxu0 0.0
      %1311 = vmatpush1.xpose.msra.mxu0 0.0
      %1312 = vmatprep.subr.mxu0 0.0
      %1313 = vmatpush1.xpose.msra.mxu0 0.0
      %1314 = vmatprep.subr.mxu0 0.0
      %1315 = vmatpush1.xpose.msra.mxu0 0.0
      %1316 = vmatprep.subr.mxu0 0.0
      %1317 = vmatpush1.xpose.msra.mxu0 0.0
      %1318 = vmatprep.subr.mxu0 0.0
      %1319 = vmatpush1.xpose.msra.mxu0 0.0
      %1320 = vmatprep.subr.mxu0 0.0
      %1321 = vmatpush1.xpose.msra.mxu0 0.0
      %1322 = vmatprep.subr.mxu0 0.0
      %1323 = vmatpush1.xpose.msra.mxu0 0.0
      %1324 = vmatprep.subr.mxu0 0.0
      %1325 = vmatpush1.xpose.msra.mxu0 0.0
      %1326 = vmatprep.subr.mxu0 0.0
      %1327 = vmatpush1.xpose.msra.mxu0 0.0
      %1328 = vmatprep.subr.mxu0 0.0
      %1329 = vmatpush1.xpose.msra.mxu0 0.0
      %1330 = vmatprep.subr.mxu0 0.0
      %1331 = vmatpush1.xpose.msra.mxu0 0.0
      %1332 = vmatprep.subr.mxu0 0.0
      %1333 = vmatpush1.xpose.msra.mxu0 0.0
      %1334 = vmatprep.subr.mxu0 0.0
      %1335 = vmatpush1.xpose.msra.mxu0 0.0
      %1336 = vmatprep.subr.mxu0 0.0
      %1337 = vmatpush1.xpose.msra.mxu0 0.0
      %1338 = vmatprep.subr.mxu0 0.0
      %1339 = vmatpush1.xpose.msra.mxu0 0.0
      %1340 = vmatprep.subr.mxu0 0.0
      %1341 = vmatpush1.xpose.msra.mxu0 0.0
      %1342 = vmatprep.subr.mxu0 0.0
      %1343 = vmatpush1.xpose.msra.mxu0 0.0
      %1344 = vmatprep.subr.mxu0 0.0
      %1345 = vmatpush1.xpose.msra.mxu0 0.0
      %1346 = vmatprep.subr.mxu0 0.0
      %1347 = vmatpush1.xpose.msra.mxu0 0.0
      %1348 = vmatprep.subr.mxu0 0.0
      %1349 = vmatpush1.xpose.msra.mxu0 0.0
      %1350 = vmatprep.subr.mxu0 0.0
      %1351 = vmatpush1.xpose.msra.mxu0 0.0
      %1352 = vmatprep.subr.mxu0 0.0
      %1353 = vmatpush1.xpose.msra.mxu0 0.0
      %1354 = vmatprep.subr.mxu0 0.0
      %1355 = vmatpush1.xpose.msra.mxu0 0.0
      %1356 = vmatprep.subr.mxu0 0.0
      %1357 = vmatpush1.xpose.msra.mxu0 0.0
      %1358 = vmatprep.subr.mxu0 0.0
      %1359 = vmatpush1.xpose.msra.mxu0 0.0
      %1360 = vmatprep.subr.mxu0 0.0
      %1361 = vmatpush1.xpose.msra.mxu0 0.0
      %1362 = vmatprep.subr.mxu0 0.0
      %1363 = vmatpush1.xpose.msra.mxu0 0.0
      %1364 = vmatprep.subr.mxu0 0.0
      %1365 = vmatpush1.xpose.msra.mxu0 0.0
      %1366 = vmatprep.mubr.f32.mxu0 0.0
      %1367 = vmatmul.mubr.f32.gmra.mrb[0].mxu0 %v1298
      %v1368 = vpop.f32.mrb[0].mxu0
      %v1369 = vadd.f32 0.0, %v1368
      %v1370 = vpop.f32.mrb[0].mxu0
      %1371 = vdwg.mxu0
      %v1372 = vmul.f32 %v1369, 0.35355338
      %v1373 = vadd.f32 %v1372, %v781
      %v1374 = vsel %vm785, %v1373, -inf
      %1375 = vmax.xlane.f32.xlu0 %v1374
      %v1376 = vpop.xlane.xlu0 %1375
      %v1377 = vsub.f32 %v1373, %v1376
      %v1378 = vmul.f32 %v1377, 1.442695
      %v1379 = vpow.pop %v1378
      %v1380 = vsel %vm785, %v1379, 0.0
      %1381 = vadd.xlane.f32.xlu0 %v1380
      %v1382 = vpop.xlane.xlu0 %1381
      %v1383 = vrcp.pop %v1382
      %v1384 = vmul.f32 %v1379, %v1383
      %1385 = vrot.lane.b32.xlu0 %v779, 104
      %v1386 = vpop.permute.xlu0 %1385
      %v1389 = vsel %vm785, %v1384, 0
      %1391 = vmatprep.subr.mxu0 0.0
      %1392 = vmatpush1.msra.mxu0 %v1386
      %1393 = vmatprep.subr.mxu0 0.0
      %1394 = vmatpush1.msra.mxu0 0.0
      %1395 = vmatprep.subr.mxu0 0.0
      %1396 = vmatpush1.msra.mxu0 0.0
      %1397 = vmatprep.subr.mxu0 0.0
      %1398 = vmatpush1.msra.mxu0 0.0
      %1399 = vmatprep.subr.mxu0 0.0
      %1400 = vmatpush1.msra.mxu0 0.0
      %1401 = vmatprep.subr.mxu0 0.0
      %1402 = vmatpush1.msra.mxu0 0.0
      %1403 = vmatprep.subr.mxu0 0.0
      %1404 = vmatpush1.msra.mxu0 0.0
      %1405 = vmatprep.subr.mxu0 0.0
      %1406 = vmatpush1.msra.mxu0 0.0
      %1407 = vmatprep.subr.mxu0 0.0
      %1408 = vmatpush1.msra.mxu0 0.0
      %1409 = vmatprep.subr.mxu0 0.0
      %1410 = vmatpush1.msra.mxu0 0.0
      %1411 = vmatprep.subr.mxu0 0.0
      %1412 = vmatpush1.msra.mxu0 0.0
      %1413 = vmatprep.subr.mxu0 0.0
      %1414 = vmatpush1.msra.mxu0 0.0
      %1415 = vmatprep.subr.mxu0 0.0
      %1416 = vmatpush1.msra.mxu0 0.0
      %1417 = vmatprep.subr.mxu0 0.0
      %1418 = vmatpush1.msra.mxu0 0.0
      %1419 = vmatprep.subr.mxu0 0.0
      %1420 = vmatpush1.msra.mxu0 0.0
      %1421 = vmatprep.subr.mxu0 0.0
      %1422 = vmatpush1.msra.mxu0 0.0
      %1423 = vmatprep.subr.mxu0 0.0
      %1424 = vmatpush1.msra.mxu0 0.0
      %1425 = vmatprep.subr.mxu0 0.0
      %1426 = vmatpush1.msra.mxu0 0.0
      %1427 = vmatprep.subr.mxu0 0.0
      %1428 = vmatpush1.msra.mxu0 0.0
      %1429 = vmatprep.subr.mxu0 0.0
      %1430 = vmatpush1.msra.mxu0 0.0
      %1431 = vmatprep.subr.mxu0 0.0
      %1432 = vmatpush1.msra.mxu0 0.0
      %1433 = vmatprep.subr.mxu0 0.0
      %1434 = vmatpush1.msra.mxu0 0.0
      %1435 = vmatprep.subr.mxu0 0.0
      %1436 = vmatpush1.msra.mxu0 0.0
      %1437 = vmatprep.subr.mxu0 0.0
      %1438 = vmatpush1.msra.mxu0 0.0
      %1439 = vmatprep.subr.mxu0 0.0
      %1440 = vmatpush1.msra.mxu0 0.0
      %1441 = vmatprep.subr.mxu0 0.0
      %1442 = vmatpush1.msra.mxu0 0.0
      %1443 = vmatprep.subr.mxu0 0.0
      %1444 = vmatpush1.msra.mxu0 0.0
      %1445 = vmatprep.subr.mxu0 0.0
      %1446 = vmatpush1.msra.mxu0 0.0
      %1447 = vmatprep.subr.mxu0 0.0
      %1448 = vmatpush1.msra.mxu0 0.0
      %1449 = vmatprep.subr.mxu0 0.0
      %1450 = vmatpush1.msra.mxu0 0.0
      %1451 = vmatprep.subr.mxu0 0.0
      %1452 = vmatpush1.msra.mxu0 0.0
      %1453 = vmatprep.subr.mxu0 0.0
      %1454 = vmatpush1.msra.mxu0 0.0
      %1455 = vmatprep.mubr.f32.mxu0 0.0
      %1456 = vmatmul.mubr.f32.gmra.mrb[0].mxu0 %v1389
      %v1457 = vpop.f32.mrb[0].mxu0
      %v1458 = vadd.f32 0.0, %v1457
      %v1459 = vpop.f32.mrb[0].mxu0
      %1460 = vdwg.mxu0
      %1462 = vrot.lane.b32.xlu0 %v1458, 24
      %v1463 = vpop.permute.xlu0 %1462
      %vm1465 = vcmask 261312
      %1466 = vst.msk [vmem:[#allocation2] sm:$0xff] %vm1465, %v1463
      %1467 = vrot.lane.b32.xlu0 %v777, 96
      %v1468 = vpop.permute.xlu0 %1467
      %1469 = vrot.lane.b32.xlu0 %v777, 32
      %v1470 = vpop.permute.xlu0 %1469
      %v1471 = vsel %vm785, %v1468, 0
      %v1473 = vsel %vm785, %v1470, 0
      %1475 = vmatprep.subr.mxu0 0.0
      %1476 = vmatpush1.xpose.msra.mxu0 %v1473
      %1477 = vmatprep.subr.mxu0 0.0
      %1478 = vmatpush1.xpose.msra.mxu0 0.0
      %1479 = vmatprep.subr.mxu0 0.0
      %1480 = vmatpush1.xpose.msra.mxu0 0.0
      %1481 = vmatprep.subr.mxu0 0.0
      %1482 = vmatpush1.xpose.msra.mxu0 0.0
      %1483 = vmatprep.subr.mxu0 0.0
      %1484 = vmatpush1.xpose.msra.mxu0 0.0
      %1485 = vmatprep.subr.mxu0 0.0
      %1486 = vmatpush1.xpose.msra.mxu0 0.0
      %1487 = vmatprep.subr.mxu0 0.0
      %1488 = vmatpush1.xpose.msra.mxu0 0.0
      %1489 = vmatprep.subr.mxu0 0.0
      %1490 = vmatpush1.xpose.msra.mxu0 0.0
      %1491 = vmatprep.subr.mxu0 0.0
      %1492 = vmatpush1.xpose.msra.mxu0 0.0
      %1493 = vmatprep.subr.mxu0 0.0
      %1494 = vmatpush1.xpose.msra.mxu0 0.0
      %1495 = vmatprep.subr.mxu0 0.0
      %1496 = vmatpush1.xpose.msra.mxu0 0.0
      %1497 = vmatprep.subr.mxu0 0.0
      %1498 = vmatpush1.xpose.msra.mxu0 0.0
      %1499 = vmatprep.subr.mxu0 0.0
      %1500 = vmatpush1.xpose.msra.mxu0 0.0
      %1501 = vmatprep.subr.mxu0 0.0
      %1502 = vmatpush1.xpose.msra.mxu0 0.0
      %1503 = vmatprep.subr.mxu0 0.0
      %1504 = vmatpush1.xpose.msra.mxu0 0.0
      %1505 = vmatprep.subr.mxu0 0.0
      %1506 = vmatpush1.xpose.msra.mxu0 0.0
      %1507 = vmatprep.subr.mxu0 0.0
      %1508 = vmatpush1.xpose.msra.mxu0 0.0
      %1509 = vmatprep.subr.mxu0 0.0
      %1510 = vmatpush1.xpose.msra.mxu0 0.0
      %1511 = vmatprep.subr.mxu0 0.0
      %1512 = vmatpush1.xpose.msra.mxu0 0.0
      %1513 = vmatprep.subr.mxu0 0.0
      %1514 = vmatpush1.xpose.msra.mxu0 0.0
      %1515 = vmatprep.subr.mxu0 0.0
      %1516 = vmatpush1.xpose.msra.mxu0 0.0
      %1517 = vmatprep.subr.mxu0 0.0
      %1518 = vmatpush1.xpose.msra.mxu0 0.0
      %1519 = vmatprep.subr.mxu0 0.0
      %1520 = vmatpush1.xpose.msra.mxu0 0.0
      %1521 = vmatprep.subr.mxu0 0.0
      %1522 = vmatpush1.xpose.msra.mxu0 0.0
      %1523 = vmatprep.subr.mxu0 0.0
      %1524 = vmatpush1.xpose.msra.mxu0 0.0
      %1525 = vmatprep.subr.mxu0 0.0
      %1526 = vmatpush1.xpose.msra.mxu0 0.0
      %1527 = vmatprep.subr.mxu0 0.0
      %1528 = vmatpush1.xpose.msra.mxu0 0.0
      %1529 = vmatprep.subr.mxu0 0.0
      %1530 = vmatpush1.xpose.msra.mxu0 0.0
      %1531 = vmatprep.subr.mxu0 0.0
      %1532 = vmatpush1.xpose.msra.mxu0 0.0
      %1533 = vmatprep.subr.mxu0 0.0
      %1534 = vmatpush1.xpose.msra.mxu0 0.0
      %1535 = vmatprep.subr.mxu0 0.0
      %1536 = vmatpush1.xpose.msra.mxu0 0.0
      %1537 = vmatprep.subr.mxu0 0.0
      %1538 = vmatpush1.xpose.msra.mxu0 0.0
      %1539 = vmatprep.mubr.f32.mxu0 0.0
      %1540 = vmatmul.mubr.f32.gmra.mrb[0].mxu0 %v1471
      %v1541 = vpop.f32.mrb[0].mxu0
      %v1542 = vadd.f32 0.0, %v1541
      %v1543 = vpop.f32.mrb[0].mxu0
      %1544 = vdwg.mxu0
      %v1545 = vmul.f32 %v1542, 0.35355338
      %v1546 = vadd.f32 %v1545, %v781
      %v1547 = vsel %vm785, %v1546, -inf
      %1548 = vmax.xlane.f32.xlu0 %v1547
      %v1549 = vpop.xlane.xlu0 %1548
      %v1550 = vsub.f32 %v1546, %v1549
      %v1551 = vmul.f32 %v1550, 1.442695
      %v1552 = vpow.pop %v1551
      %v1553 = vsel %vm785, %v1552, 0.0
      %1554 = vadd.xlane.f32.xlu0 %v1553
      %v1555 = vpop.xlane.xlu0 %1554
      %v1556 = vrcp.pop %v1555
      %v1557 = vmul.f32 %v1552, %v1556
      %1558 = vrot.lane.b32.xlu0 %v779, 96
      %v1559 = vpop.permute.xlu0 %1558
      %v1562 = vsel %vm785, %v1557, 0
      %1564 = vmatprep.subr.mxu0 0.0
      %1565 = vmatpush1.msra.mxu0 %v1559
      %1566 = vmatprep.subr.mxu0 0.0
      %1567 = vmatpush1.msra.mxu0 0.0
      %1568 = vmatprep.subr.mxu0 0.0
      %1569 = vmatpush1.msra.mxu0 0.0
      %1570 = vmatprep.subr.mxu0 0.0
      %1571 = vmatpush1.msra.mxu0 0.0
      %1572 = vmatprep.subr.mxu0 0.0
      %1573 = vmatpush1.msra.mxu0 0.0
      %1574 = vmatprep.subr.mxu0 0.0
      %1575 = vmatpush1.msra.mxu0 0.0
      %1576 = vmatprep.subr.mxu0 0.0
      %1577 = vmatpush1.msra.mxu0 0.0
      %1578 = vmatprep.subr.mxu0 0.0
      %1579 = vmatpush1.msra.mxu0 0.0
      %1580 = vmatprep.subr.mxu0 0.0
      %1581 = vmatpush1.msra.mxu0 0.0
      %1582 = vmatprep.subr.mxu0 0.0
      %1583 = vmatpush1.msra.mxu0 0.0
      %1584 = vmatprep.subr.mxu0 0.0
      %1585 = vmatpush1.msra.mxu0 0.0
      %1586 = vmatprep.subr.mxu0 0.0
      %1587 = vmatpush1.msra.mxu0 0.0
      %1588 = vmatprep.subr.mxu0 0.0
      %1589 = vmatpush1.msra.mxu0 0.0
      %1590 = vmatprep.subr.mxu0 0.0
      %1591 = vmatpush1.msra.mxu0 0.0
      %1592 = vmatprep.subr.mxu0 0.0
      %1593 = vmatpush1.msra.mxu0 0.0
      %1594 = vmatprep.subr.mxu0 0.0
      %1595 = vmatpush1.msra.mxu0 0.0
      %1596 = vmatprep.subr.mxu0 0.0
      %1597 = vmatpush1.msra.mxu0 0.0
      %1598 = vmatprep.subr.mxu0 0.0
      %1599 = vmatpush1.msra.mxu0 0.0
      %1600 = vmatprep.subr.mxu0 0.0
      %1601 = vmatpush1.msra.mxu0 0.0
      %1602 = vmatprep.subr.mxu0 0.0
      %1603 = vmatpush1.msra.mxu0 0.0
      %1604 = vmatprep.subr.mxu0 0.0
      %1605 = vmatpush1.msra.mxu0 0.0
      %1606 = vmatprep.subr.mxu0 0.0
      %1607 = vmatpush1.msra.mxu0 0.0
      %1608 = vmatprep.subr.mxu0 0.0
      %1609 = vmatpush1.msra.mxu0 0.0
      %1610 = vmatprep.subr.mxu0 0.0
      %1611 = vmatpush1.msra.mxu0 0.0
      %1612 = vmatprep.subr.mxu0 0.0
      %1613 = vmatpush1.msra.mxu0 0.0
      %1614 = vmatprep.subr.mxu0 0.0
      %1615 = vmatpush1.msra.mxu0 0.0
      %1616 = vmatprep.subr.mxu0 0.0
      %1617 = vmatpush1.msra.mxu0 0.0
      %1618 = vmatprep.subr.mxu0 0.0
      %1619 = vmatpush1.msra.mxu0 0.0
      %1620 = vmatprep.subr.mxu0 0.0
      %1621 = vmatpush1.msra.mxu0 0.0
      %1622 = vmatprep.subr.mxu0 0.0
      %1623 = vmatpush1.msra.mxu0 0.0
      %1624 = vmatprep.subr.mxu0 0.0
      %1625 = vmatpush1.msra.mxu0 0.0
      %1626 = vmatprep.subr.mxu0 0.0
      %1627 = vmatpush1.msra.mxu0 0.0
      %1628 = vmatprep.mubr.f32.mxu0 0.0
      %1629 = vmatmul.mubr.f32.gmra.mrb[0].mxu0 %v1562
      %v1630 = vpop.f32.mrb[0].mxu0
      %v1631 = vadd.f32 0.0, %v1630
      %v1632 = vpop.f32.mrb[0].mxu0
      %1633 = vdwg.mxu0
      %1635 = vrot.lane.b32.xlu0 %v1631, 32
      %v1636 = vpop.permute.xlu0 %1635
      %vm1638 = vcmask 326912
      %1639 = vst.msk [vmem:[#allocation2] sm:$0xff] %vm1638, %v1636
      %1640 = vrot.lane.b32.xlu0 %v777, 88
      %v1641 = vpop.permute.xlu0 %1640
      %1642 = vrot.lane.b32.xlu0 %v777, 24
      %v1643 = vpop.permute.xlu0 %1642
      %v1644 = vsel %vm785, %v1641, 0
      %v1646 = vsel %vm785, %v1643, 0
      %1648 = vmatprep.subr.mxu0 0.0
      %1649 = vmatpush1.xpose.msra.mxu0 %v1646
      %1650 = vmatprep.subr.mxu0 0.0
      %1651 = vmatpush1.xpose.msra.mxu0 0.0
      %1652 = vmatprep.subr.mxu0 0.0
      %1653 = vmatpush1.xpose.msra.mxu0 0.0
      %1654 = vmatprep.subr.mxu0 0.0
      %1655 = vmatpush1.xpose.msra.mxu0 0.0
      %1656 = vmatprep.subr.mxu0 0.0
      %1657 = vmatpush1.xpose.msra.mxu0 0.0
      %1658 = vmatprep.subr.mxu0 0.0
      %1659 = vmatpush1.xpose.msra.mxu0 0.0
      %1660 = vmatprep.subr.mxu0 0.0
      %1661 = vmatpush1.xpose.msra.mxu0 0.0
      %1662 = vmatprep.subr.mxu0 0.0
      %1663 = vmatpush1.xpose.msra.mxu0 0.0
      %1664 = vmatprep.subr.mxu0 0.0
      %1665 = vmatpush1.xpose.msra.mxu0 0.0
      %1666 = vmatprep.subr.mxu0 0.0
      %1667 = vmatpush1.xpose.msra.mxu0 0.0
      %1668 = vmatprep.subr.mxu0 0.0
      %1669 = vmatpush1.xpose.msra.mxu0 0.0
      %1670 = vmatprep.subr.mxu0 0.0
      %1671 = vmatpush1.xpose.msra.mxu0 0.0
      %1672 = vmatprep.subr.mxu0 0.0
      %1673 = vmatpush1.xpose.msra.mxu0 0.0
      %1674 = vmatprep.subr.mxu0 0.0
      %1675 = vmatpush1.xpose.msra.mxu0 0.0
      %1676 = vmatprep.subr.mxu0 0.0
      %1677 = vmatpush1.xpose.msra.mxu0 0.0
      %1678 = vmatprep.subr.mxu0 0.0
      %1679 = vmatpush1.xpose.msra.mxu0 0.0
      %1680 = vmatprep.subr.mxu0 0.0
      %1681 = vmatpush1.xpose.msra.mxu0 0.0
      %1682 = vmatprep.subr.mxu0 0.0
      %1683 = vmatpush1.xpose.msra.mxu0 0.0
      %1684 = vmatprep.subr.mxu0 0.0
      %1685 = vmatpush1.xpose.msra.mxu0 0.0
      %1686 = vmatprep.subr.mxu0 0.0
      %1687 = vmatpush1.xpose.msra.mxu0 0.0
      %1688 = vmatprep.subr.mxu0 0.0
      %1689 = vmatpush1.xpose.msra.mxu0 0.0
      %1690 = vmatprep.subr.mxu0 0.0
      %1691 = vmatpush1.xpose.msra.mxu0 0.0
      %1692 = vmatprep.subr.mxu0 0.0
      %1693 = vmatpush1.xpose.msra.mxu0 0.0
      %1694 = vmatprep.subr.mxu0 0.0
      %1695 = vmatpush1.xpose.msra.mxu0 0.0
      %1696 = vmatprep.subr.mxu0 0.0
      %1697 = vmatpush1.xpose.msra.mxu0 0.0
      %1698 = vmatprep.subr.mxu0 0.0
      %1699 = vmatpush1.xpose.msra.mxu0 0.0
      %1700 = vmatprep.subr.mxu0 0.0
      %1701 = vmatpush1.xpose.msra.mxu0 0.0
      %1702 = vmatprep.subr.mxu0 0.0
      %1703 = vmatpush1.xpose.msra.mxu0 0.0
      %1704 = vmatprep.subr.mxu0 0.0
      %1705 = vmatpush1.xpose.msra.mxu0 0.0
      %1706 = vmatprep.subr.mxu0 0.0
      %1707 = vmatpush1.xpose.msra.mxu0 0.0
      %1708 = vmatprep.subr.mxu0 0.0
      %1709 = vmatpush1.xpose.msra.mxu0 0.0
      %1710 = vmatprep.subr.mxu0 0.0
      %1711 = vmatpush1.xpose.msra.mxu0 0.0
      %1712 = vmatprep.mubr.f32.mxu0 0.0
      %1713 = vmatmul.mubr.f32.gmra.mrb[0].mxu0 %v1644
      %v1714 = vpop.f32.mrb[0].mxu0
      %v1715 = vadd.f32 0.0, %v1714
      %v1716 = vpop.f32.mrb[0].mxu0
      %1717 = vdwg.mxu0
      %v1718 = vmul.f32 %v1715, 0.35355338
      %v1719 = vadd.f32 %v1718, %v781
      %v1720 = vsel %vm785, %v1719, -inf
      %1721 = vmax.xlane.f32.xlu0 %v1720
      %v1722 = vpop.xlane.xlu0 %1721
      %v1723 = vsub.f32 %v1719, %v1722
      %v1724 = vmul.f32 %v1723, 1.442695
      %v1725 = vpow.pop %v1724
      %v1726 = vsel %vm785, %v1725, 0.0
      %1727 = vadd.xlane.f32.xlu0 %v1726
      %v1728 = vpop.xlane.xlu0 %1727
      %v1729 = vrcp.pop %v1728
      %v1730 = vmul.f32 %v1725, %v1729
      %1731 = vrot.lane.b32.xlu0 %v779, 88
      %v1732 = vpop.permute.xlu0 %1731
      %v1735 = vsel %vm785, %v1730, 0
      %1737 = vmatprep.subr.mxu0 0.0
      %1738 = vmatpush1.msra.mxu0 %v1732
      %1739 = vmatprep.subr.mxu0 0.0
      %1740 = vmatpush1.msra.mxu0 0.0
      %1741 = vmatprep.subr.mxu0 0.0
      %1742 = vmatpush1.msra.mxu0 0.0
      %1743 = vmatprep.subr.mxu0 0.0
      %1744 = vmatpush1.msra.mxu0 0.0
      %1745 = vmatprep.subr.mxu0 0.0
      %1746 = vmatpush1.msra.mxu0 0.0
      %1747 = vmatprep.subr.mxu0 0.0
      %1748 = vmatpush1.msra.mxu0 0.0
      %1749 = vmatprep.subr.mxu0 0.0
      %1750 = vmatpush1.msra.mxu0 0.0
      %1751 = vmatprep.subr.mxu0 0.0
      %1752 = vmatpush1.msra.mxu0 0.0
      %1753 = vmatprep.subr.mxu0 0.0
      %1754 = vmatpush1.msra.mxu0 0.0
      %1755 = vmatprep.subr.mxu0 0.0
      %1756 = vmatpush1.msra.mxu0 0.0
      %1757 = vmatprep.subr.mxu0 0.0
      %1758 = vmatpush1.msra.mxu0 0.0
      %1759 = vmatprep.subr.mxu0 0.0
      %1760 = vmatpush1.msra.mxu0 0.0
      %1761 = vmatprep.subr.mxu0 0.0
      %1762 = vmatpush1.msra.mxu0 0.0
      %1763 = vmatprep.subr.mxu0 0.0
      %1764 = vmatpush1.msra.mxu0 0.0
      %1765 = vmatprep.subr.mxu0 0.0
      %1766 = vmatpush1.msra.mxu0 0.0
      %1767 = vmatprep.subr.mxu0 0.0
      %1768 = vmatpush1.msra.mxu0 0.0
      %1769 = vmatprep.subr.mxu0 0.0
      %1770 = vmatpush1.msra.mxu0 0.0
      %1771 = vmatprep.subr.mxu0 0.0
      %1772 = vmatpush1.msra.mxu0 0.0
      %1773 = vmatprep.subr.mxu0 0.0
      %1774 = vmatpush1.msra.mxu0 0.0
      %1775 = vmatprep.subr.mxu0 0.0
      %1776 = vmatpush1.msra.mxu0 0.0
      %1777 = vmatprep.subr.mxu0 0.0
      %1778 = vmatpush1.msra.mxu0 0.0
      %1779 = vmatprep.subr.mxu0 0.0
      %1780 = vmatpush1.msra.mxu0 0.0
      %1781 = vmatprep.subr.mxu0 0.0
      %1782 = vmatpush1.msra.mxu0 0.0
      %1783 = vmatprep.subr.mxu0 0.0
      %1784 = vmatpush1.msra.mxu0 0.0
      %1785 = vmatprep.subr.mxu0 0.0
      %1786 = vmatpush1.msra.mxu0 0.0
      %1787 = vmatprep.subr.mxu0 0.0
      %1788 = vmatpush1.msra.mxu0 0.0
      %1789 = vmatprep.subr.mxu0 0.0
      %1790 = vmatpush1.msra.mxu0 0.0
      %1791 = vmatprep.subr.mxu0 0.0
      %1792 = vmatpush1.msra.mxu0 0.0
      %1793 = vmatprep.subr.mxu0 0.0
      %1794 = vmatpush1.msra.mxu0 0.0
      %1795 = vmatprep.subr.mxu0 0.0
      %1796 = vmatpush1.msra.mxu0 0.0
      %1797 = vmatprep.subr.mxu0 0.0
      %1798 = vmatpush1.msra.mxu0 0.0
      %1799 = vmatprep.subr.mxu0 0.0
      %1800 = vmatpush1.msra.mxu0 0.0
      %1801 = vmatprep.mubr.f32.mxu0 0.0
      %1802 = vmatmul.mubr.f32.gmra.mrb[0].mxu0 %v1735
      %v1803 = vpop.f32.mrb[0].mxu0
      %v1804 = vadd.f32 0.0, %v1803
      %v1805 = vpop.f32.mrb[0].mxu0
      %1806 = vdwg.mxu0
      %1808 = vrot.lane.b32.xlu0 %v1804, 40
      %v1809 = vpop.permute.xlu0 %1808
      %vm1811 = vcmask 392512
      %1812 = vst.msk [vmem:[#allocation2] sm:$0xff] %vm1811, %v1809
      %1813 = vrot.lane.b32.xlu0 %v777, 80
      %v1814 = vpop.permute.xlu0 %1813
      %1815 = vrot.lane.b32.xlu0 %v777, 16
      %v1816 = vpop.permute.xlu0 %1815
      %v1817 = vsel %vm785, %v1814, 0
      %v1819 = vsel %vm785, %v1816, 0
      %1821 = vmatprep.subr.mxu0 0.0
      %1822 = vmatpush1.xpose.msra.mxu0 %v1819
      %1823 = vmatprep.subr.mxu0 0.0
      %1824 = vmatpush1.xpose.msra.mxu0 0.0
      %1825 = vmatprep.subr.mxu0 0.0
      %1826 = vmatpush1.xpose.msra.mxu0 0.0
      %1827 = vmatprep.subr.mxu0 0.0
      %1828 = vmatpush1.xpose.msra.mxu0 0.0
      %1829 = vmatprep.subr.mxu0 0.0
      %1830 = vmatpush1.xpose.msra.mxu0 0.0
      %1831 = vmatprep.subr.mxu0 0.0
      %1832 = vmatpush1.xpose.msra.mxu0 0.0
      %1833 = vmatprep.subr.mxu0 0.0
      %1834 = vmatpush1.xpose.msra.mxu0 0.0
      %1835 = vmatprep.subr.mxu0 0.0
      %1836 = vmatpush1.xpose.msra.mxu0 0.0
      %1837 = vmatprep.subr.mxu0 0.0
      %1838 = vmatpush1.xpose.msra.mxu0 0.0
      %1839 = vmatprep.subr.mxu0 0.0
      %1840 = vmatpush1.xpose.msra.mxu0 0.0
      %1841 = vmatprep.subr.mxu0 0.0
      %1842 = vmatpush1.xpose.msra.mxu0 0.0
      %1843 = vmatprep.subr.mxu0 0.0
      %1844 = vmatpush1.xpose.msra.mxu0 0.0
      %1845 = vmatprep.subr.mxu0 0.0
      %1846 = vmatpush1.xpose.msra.mxu0 0.0
      %1847 = vmatprep.subr.mxu0 0.0
      %1848 = vmatpush1.xpose.msra.mxu0 0.0
      %1849 = vmatprep.subr.mxu0 0.0
      %1850 = vmatpush1.xpose.msra.mxu0 0.0
      %1851 = vmatprep.subr.mxu0 0.0
      %1852 = vmatpush1.xpose.msra.mxu0 0.0
      %1853 = vmatprep.subr.mxu0 0.0
      %1854 = vmatpush1.xpose.msra.mxu0 0.0
      %1855 = vmatprep.subr.mxu0 0.0
      %1856 = vmatpush1.xpose.msra.mxu0 0.0
      %1857 = vmatprep.subr.mxu0 0.0
      %1858 = vmatpush1.xpose.msra.mxu0 0.0
      %1859 = vmatprep.subr.mxu0 0.0
      %1860 = vmatpush1.xpose.msra.mxu0 0.0
      %1861 = vmatprep.subr.mxu0 0.0
      %1862 = vmatpush1.xpose.msra.mxu0 0.0
      %1863 = vmatprep.subr.mxu0 0.0
      %1864 = vmatpush1.xpose.msra.mxu0 0.0
      %1865 = vmatprep.subr.mxu0 0.0
      %1866 = vmatpush1.xpose.msra.mxu0 0.0
      %1867 = vmatprep.subr.mxu0 0.0
      %1868 = vmatpush1.xpose.msra.mxu0 0.0
      %1869 = vmatprep.subr.mxu0 0.0
      %1870 = vmatpush1.xpose.msra.mxu0 0.0
      %1871 = vmatprep.subr.mxu0 0.0
      %1872 = vmatpush1.xpose.msra.mxu0 0.0
      %1873 = vmatprep.subr.mxu0 0.0
      %1874 = vmatpush1.xpose.msra.mxu0 0.0
      %1875 = vmatprep.subr.mxu0 0.0
      %1876 = vmatpush1.xpose.msra.mxu0 0.0
      %1877 = vmatprep.subr.mxu0 0.0
      %1878 = vmatpush1.xpose.msra.mxu0 0.0
      %1879 = vmatprep.subr.mxu0 0.0
      %1880 = vmatpush1.xpose.msra.mxu0 0.0
      %1881 = vmatprep.subr.mxu0 0.0
      %1882 = vmatpush1.xpose.msra.mxu0 0.0
      %1883 = vmatprep.subr.mxu0 0.0
      %1884 = vmatpush1.xpose.msra.mxu0 0.0
      %1885 = vmatprep.mubr.f32.mxu0 0.0
      %1886 = vmatmul.mubr.f32.gmra.mrb[0].mxu0 %v1817
      %v1887 = vpop.f32.mrb[0].mxu0
      %v1888 = vadd.f32 0.0, %v1887
      %v1889 = vpop.f32.mrb[0].mxu0
      %1890 = vdwg.mxu0
      %v1891 = vmul.f32 %v1888, 0.35355338
      %v1892 = vadd.f32 %v1891, %v781
      %v1893 = vsel %vm785, %v1892, -inf
      %1894 = vmax.xlane.f32.xlu0 %v1893
      %v1895 = vpop.xlane.xlu0 %1894
      %v1896 = vsub.f32 %v1892, %v1895
      %v1897 = vmul.f32 %v1896, 1.442695
      %v1898 = vpow.pop %v1897
      %v1899 = vsel %vm785, %v1898, 0.0
      %1900 = vadd.xlane.f32.xlu0 %v1899
      %v1901 = vpop.xlane.xlu0 %1900
      %v1902 = vrcp.pop %v1901
      %v1903 = vmul.f32 %v1898, %v1902
      %1904 = vrot.lane.b32.xlu0 %v779, 80
      %v1905 = vpop.permute.xlu0 %1904
      %v1908 = vsel %vm785, %v1903, 0
      %1910 = vmatprep.subr.mxu0 0.0
      %1911 = vmatpush1.msra.mxu0 %v1905
      %1912 = vmatprep.subr.mxu0 0.0
      %1913 = vmatpush1.msra.mxu0 0.0
      %1914 = vmatprep.subr.mxu0 0.0
      %1915 = vmatpush1.msra.mxu0 0.0
      %1916 = vmatprep.subr.mxu0 0.0
      %1917 = vmatpush1.msra.mxu0 0.0
      %1918 = vmatprep.subr.mxu0 0.0
      %1919 = vmatpush1.msra.mxu0 0.0
      %1920 = vmatprep.subr.mxu0 0.0
      %1921 = vmatpush1.msra.mxu0 0.0
      %1922 = vmatprep.subr.mxu0 0.0
      %1923 = vmatpush1.msra.mxu0 0.0
      %1924 = vmatprep.subr.mxu0 0.0
      %1925 = vmatpush1.msra.mxu0 0.0
      %1926 = vmatprep.subr.mxu0 0.0
      %1927 = vmatpush1.msra.mxu0 0.0
      %1928 = vmatprep.subr.mxu0 0.0
      %1929 = vmatpush1.msra.mxu0 0.0
      %1930 = vmatprep.subr.mxu0 0.0
      %1931 = vmatpush1.msra.mxu0 0.0
      %1932 = vmatprep.subr.mxu0 0.0
      %1933 = vmatpush1.msra.mxu0 0.0
      %1934 = vmatprep.subr.mxu0 0.0
      %1935 = vmatpush1.msra.mxu0 0.0
      %1936 = vmatprep.subr.mxu0 0.0
      %1937 = vmatpush1.msra.mxu0 0.0
      %1938 = vmatprep.subr.mxu0 0.0
      %1939 = vmatpush1.msra.mxu0 0.0
      %1940 = vmatprep.subr.mxu0 0.0
      %1941 = vmatpush1.msra.mxu0 0.0
      %1942 = vmatprep.subr.mxu0 0.0
      %1943 = vmatpush1.msra.mxu0 0.0
      %1944 = vmatprep.subr.mxu0 0.0
      %1945 = vmatpush1.msra.mxu0 0.0
      %1946 = vmatprep.subr.mxu0 0.0
      %1947 = vmatpush1.msra.mxu0 0.0
      %1948 = vmatprep.subr.mxu0 0.0
      %1949 = vmatpush1.msra.mxu0 0.0
      %1950 = vmatprep.subr.mxu0 0.0
      %1951 = vmatpush1.msra.mxu0 0.0
      %1952 = vmatprep.subr.mxu0 0.0
      %1953 = vmatpush1.msra.mxu0 0.0
      %1954 = vmatprep.subr.mxu0 0.0
      %1955 = vmatpush1.msra.mxu0 0.0
      %1956 = vmatprep.subr.mxu0 0.0
      %1957 = vmatpush1.msra.mxu0 0.0
      %1958 = vmatprep.subr.mxu0 0.0
      %1959 = vmatpush1.msra.mxu0 0.0
      %1960 = vmatprep.subr.mxu0 0.0
      %1961 = vmatpush1.msra.mxu0 0.0
      %1962 = vmatprep.subr.mxu0 0.0
      %1963 = vmatpush1.msra.mxu0 0.0
      %1964 = vmatprep.subr.mxu0 0.0
      %1965 = vmatpush1.msra.mxu0 0.0
      %1966 = vmatprep.subr.mxu0 0.0
      %1967 = vmatpush1.msra.mxu0 0.0
      %1968 = vmatprep.subr.mxu0 0.0
      %1969 = vmatpush1.msra.mxu0 0.0
      %1970 = vmatprep.subr.mxu0 0.0
      %1971 = vmatpush1.msra.mxu0 0.0
      %1972 = vmatprep.subr.mxu0 0.0
      %1973 = vmatpush1.msra.mxu0 0.0
      %1974 = vmatprep.mubr.f32.mxu0 0.0
      %1975 = vmatmul.mubr.f32.gmra.mrb[0].mxu0 %v1908
      %v1976 = vpop.f32.mrb[0].mxu0
      %v1977 = vadd.f32 0.0, %v1976
      %v1978 = vpop.f32.mrb[0].mxu0
      %1979 = vdwg.mxu0
      %1981 = vrot.lane.b32.xlu0 %v1977, 48
      %v1982 = vpop.permute.xlu0 %1981
      %vm1984 = vcmask 458112
      %1985 = vst.msk [vmem:[#allocation2] sm:$0xff] %vm1984, %v1982
      %1986 = vrot.lane.b32.xlu0 %v777, 72
      %v1987 = vpop.permute.xlu0 %1986
      %1988 = vrot.lane.b32.xlu0 %v777, 8
      %v1989 = vpop.permute.xlu0 %1988
      %v1990 = vsel %vm785, %v1987, 0
      %v1992 = vsel %vm785, %v1989, 0
      %1994 = vmatprep.subr.mxu0 0.0
      %1995 = vmatpush1.xpose.msra.mxu0 %v1992
      %1996 = vmatprep.subr.mxu0 0.0
      %1997 = vmatpush1.xpose.msra.mxu0 0.0
      %1998 = vmatprep.subr.mxu0 0.0
      %1999 = vmatpush1.xpose.msra.mxu0 0.0
      %2000 = vmatprep.subr.mxu0 0.0
      %2001 = vmatpush1.xpose.msra.mxu0 0.0
      %2002 = vmatprep.subr.mxu0 0.0
      %2003 = vmatpush1.xpose.msra.mxu0 0.0
      %2004 = vmatprep.subr.mxu0 0.0
      %2005 = vmatpush1.xpose.msra.mxu0 0.0
      %2006 = vmatprep.subr.mxu0 0.0
      %2007 = vmatpush1.xpose.msra.mxu0 0.0
      %2008 = vmatprep.subr.mxu0 0.0
      %2009 = vmatpush1.xpose.msra.mxu0 0.0
      %2010 = vmatprep.subr.mxu0 0.0
      %2011 = vmatpush1.xpose.msra.mxu0 0.0
      %2012 = vmatprep.subr.mxu0 0.0
      %2013 = vmatpush1.xpose.msra.mxu0 0.0
      %2014 = vmatprep.subr.mxu0 0.0
      %2015 = vmatpush1.xpose.msra.mxu0 0.0
      %2016 = vmatprep.subr.mxu0 0.0
      %2017 = vmatpush1.xpose.msra.mxu0 0.0
      %2018 = vmatprep.subr.mxu0 0.0
      %2019 = vmatpush1.xpose.msra.mxu0 0.0
      %2020 = vmatprep.subr.mxu0 0.0
      %2021 = vmatpush1.xpose.msra.mxu0 0.0
      %2022 = vmatprep.subr.mxu0 0.0
      %2023 = vmatpush1.xpose.msra.mxu0 0.0
      %2024 = vmatprep.subr.mxu0 0.0
      %2025 = vmatpush1.xpose.msra.mxu0 0.0
      %2026 = vmatprep.subr.mxu0 0.0
      %2027 = vmatpush1.xpose.msra.mxu0 0.0
      %2028 = vmatprep.subr.mxu0 0.0
      %2029 = vmatpush1.xpose.msra.mxu0 0.0
      %2030 = vmatprep.subr.mxu0 0.0
      %2031 = vmatpush1.xpose.msra.mxu0 0.0
      %2032 = vmatprep.subr.mxu0 0.0
      %2033 = vmatpush1.xpose.msra.mxu0 0.0
      %2034 = vmatprep.subr.mxu0 0.0
      %2035 = vmatpush1.xpose.msra.mxu0 0.0
      %2036 = vmatprep.subr.mxu0 0.0
      %2037 = vmatpush1.xpose.msra.mxu0 0.0
      %2038 = vmatprep.subr.mxu0 0.0
      %2039 = vmatpush1.xpose.msra.mxu0 0.0
      %2040 = vmatprep.subr.mxu0 0.0
      %2041 = vmatpush1.xpose.msra.mxu0 0.0
      %2042 = vmatprep.subr.mxu0 0.0
      %2043 = vmatpush1.xpose.msra.mxu0 0.0
      %2044 = vmatprep.subr.mxu0 0.0
      %2045 = vmatpush1.xpose.msra.mxu0 0.0
      %2046 = vmatprep.subr.mxu0 0.0
      %2047 = vmatpush1.xpose.msra.mxu0 0.0
      %2048 = vmatprep.subr.mxu0 0.0
      %2049 = vmatpush1.xpose.msra.mxu0 0.0
      %2050 = vmatprep.subr.mxu0 0.0
      %2051 = vmatpush1.xpose.msra.mxu0 0.0
      %2052 = vmatprep.subr.mxu0 0.0
      %2053 = vmatpush1.xpose.msra.mxu0 0.0
      %2054 = vmatprep.subr.mxu0 0.0
      %2055 = vmatpush1.xpose.msra.mxu0 0.0
      %2056 = vmatprep.subr.mxu0 0.0
      %2057 = vmatpush1.xpose.msra.mxu0 0.0
      %2058 = vmatprep.mubr.f32.mxu0 0.0
      %2059 = vmatmul.mubr.f32.gmra.mrb[0].mxu0 %v1990
      %v2060 = vpop.f32.mrb[0].mxu0
      %v2061 = vadd.f32 0.0, %v2060
      %v2062 = vpop.f32.mrb[0].mxu0
      %2063 = vdwg.mxu0
      %v2064 = vmul.f32 %v2061, 0.35355338
      %v2065 = vadd.f32 %v2064, %v781
      %v2066 = vsel %vm785, %v2065, -inf
      %2067 = vmax.xlane.f32.xlu0 %v2066
      %v2068 = vpop.xlane.xlu0 %2067
      %v2069 = vsub.f32 %v2065, %v2068
      %v2070 = vmul.f32 %v2069, 1.442695
      %v2071 = vpow.pop %v2070
      %v2072 = vsel %vm785, %v2071, 0.0
      %2073 = vadd.xlane.f32.xlu0 %v2072
      %v2074 = vpop.xlane.xlu0 %2073
      %v2075 = vrcp.pop %v2074
      %v2076 = vmul.f32 %v2071, %v2075
      %2077 = vrot.lane.b32.xlu0 %v779, 72
      %v2078 = vpop.permute.xlu0 %2077
      %v2081 = vsel %vm785, %v2076, 0
      %2083 = vmatprep.subr.mxu0 0.0
      %2084 = vmatpush1.msra.mxu0 %v2078
      %2085 = vmatprep.subr.mxu0 0.0
      %2086 = vmatpush1.msra.mxu0 0.0
      %2087 = vmatprep.subr.mxu0 0.0
      %2088 = vmatpush1.msra.mxu0 0.0
      %2089 = vmatprep.subr.mxu0 0.0
      %2090 = vmatpush1.msra.mxu0 0.0
      %2091 = vmatprep.subr.mxu0 0.0
      %2092 = vmatpush1.msra.mxu0 0.0
      %2093 = vmatprep.subr.mxu0 0.0
      %2094 = vmatpush1.msra.mxu0 0.0
      %2095 = vmatprep.subr.mxu0 0.0
      %2096 = vmatpush1.msra.mxu0 0.0
      %2097 = vmatprep.subr.mxu0 0.0
      %2098 = vmatpush1.msra.mxu0 0.0
      %2099 = vmatprep.subr.mxu0 0.0
      %2100 = vmatpush1.msra.mxu0 0.0
      %2101 = vmatprep.subr.mxu0 0.0
      %2102 = vmatpush1.msra.mxu0 0.0
      %2103 = vmatprep.subr.mxu0 0.0
      %2104 = vmatpush1.msra.mxu0 0.0
      %2105 = vmatprep.subr.mxu0 0.0
      %2106 = vmatpush1.msra.mxu0 0.0
      %2107 = vmatprep.subr.mxu0 0.0
      %2108 = vmatpush1.msra.mxu0 0.0
      %2109 = vmatprep.subr.mxu0 0.0
      %2110 = vmatpush1.msra.mxu0 0.0
      %2111 = vmatprep.subr.mxu0 0.0
      %2112 = vmatpush1.msra.mxu0 0.0
      %2113 = vmatprep.subr.mxu0 0.0
      %2114 = vmatpush1.msra.mxu0 0.0
      %2115 = vmatprep.subr.mxu0 0.0
      %2116 = vmatpush1.msra.mxu0 0.0
      %2117 = vmatprep.subr.mxu0 0.0
      %2118 = vmatpush1.msra.mxu0 0.0
      %2119 = vmatprep.subr.mxu0 0.0
      %2120 = vmatpush1.msra.mxu0 0.0
      %2121 = vmatprep.subr.mxu0 0.0
      %2122 = vmatpush1.msra.mxu0 0.0
      %2123 = vmatprep.subr.mxu0 0.0
      %2124 = vmatpush1.msra.mxu0 0.0
      %2125 = vmatprep.subr.mxu0 0.0
      %2126 = vmatpush1.msra.mxu0 0.0
      %2127 = vmatprep.subr.mxu0 0.0
      %2128 = vmatpush1.msra.mxu0 0.0
      %2129 = vmatprep.subr.mxu0 0.0
      %2130 = vmatpush1.msra.mxu0 0.0
      %2131 = vmatprep.subr.mxu0 0.0
      %2132 = vmatpush1.msra.mxu0 0.0
      %2133 = vmatprep.subr.mxu0 0.0
      %2134 = vmatpush1.msra.mxu0 0.0
      %2135 = vmatprep.subr.mxu0 0.0
      %2136 = vmatpush1.msra.mxu0 0.0
      %2137 = vmatprep.subr.mxu0 0.0
      %2138 = vmatpush1.msra.mxu0 0.0
      %2139 = vmatprep.subr.mxu0 0.0
      %2140 = vmatpush1.msra.mxu0 0.0
      %2141 = vmatprep.subr.mxu0 0.0
      %2142 = vmatpush1.msra.mxu0 0.0
      %2143 = vmatprep.subr.mxu0 0.0
      %2144 = vmatpush1.msra.mxu0 0.0
      %2145 = vmatprep.subr.mxu0 0.0
      %2146 = vmatpush1.msra.mxu0 0.0
      %2147 = vmatprep.mubr.f32.mxu0 0.0
      %2148 = vmatmul.mubr.f32.gmra.mrb[0].mxu0 %v2081
      %v2149 = vpop.f32.mrb[0].mxu0
      %v2150 = vadd.f32 0.0, %v2149
      %v2151 = vpop.f32.mrb[0].mxu0
      %2152 = vdwg.mxu0
      %2154 = vrot.lane.b32.xlu0 %v2150, 56
      %v2155 = vpop.permute.xlu0 %2154
      %vm2157 = vcmask 523712
      %2158 = vst.msk [vmem:[#allocation2] sm:$0xff] %vm2157, %v2155
      %v2159 = vld [vmem:[#allocation2] sm:$0xff]
      %v2160 = vld [vmem:[%s634] sm:$0xff]
      %v2161 = vld [vmem:[%s634 + $0x8] sm:$0xff]
      %v2162 = vld [vmem:[%s634 + $0x10] sm:$0xff]
      %v2163 = vld [vmem:[%s634 + $0x18] sm:$0xff]
      %v2164 = vld [vmem:[%s634 + $0x20] sm:$0xff]
      %v2165 = vld [vmem:[%s634 + $0x28] sm:$0xff]
      %v2166 = vld [vmem:[%s634 + $0x30] sm:$0xff]
      %v2167 = vld [vmem:[%s634 + $0x38] sm:$0xff]
      %v2168 = vld [vmem:[%s637] sm:$0x1]
      %v2170 = vlaneseq
      %v2171 = vshrl.u32 %v2170, 7
      %v2172 = vsub.s32 0, %v2171
      %v2173 = vrot.slane %v2168, %v2172
      %v2176 = vsel %vm706, %v2159, 0
      %2178 = vmatprep.subr.mxu0 0.0
      %2179 = vmatpush1.msra.mxu0 %v2160
      %2180 = vmatprep.subr.mxu0 0.0
      %2181 = vmatpush1.msra.mxu0 %v2161
      %2182 = vmatprep.subr.mxu0 0.0
      %2183 = vmatpush1.msra.mxu0 %v2162
      %2184 = vmatprep.subr.mxu0 0.0
      %2185 = vmatpush1.msra.mxu0 %v2163
      %2186 = vmatprep.subr.mxu0 0.0
      %2187 = vmatpush1.msra.mxu0 %v2164
      %2188 = vmatprep.subr.mxu0 0.0
      %2189 = vmatpush1.msra.mxu0 %v2165
      %2190 = vmatprep.subr.mxu0 0.0
      %2191 = vmatpush1.msra.mxu0 %v2166
      %2192 = vmatprep.subr.mxu0 0.0
      %2193 = vmatpush1.msra.mxu0 %v2167
      %2194 = vmatprep.subr.mxu0 0.0
      %2195 = vmatpush1.msra.mxu0 0.0
      %2196 = vmatprep.subr.mxu0 0.0
      %2197 = vmatpush1.msra.mxu0 0.0
      %2198 = vmatprep.subr.mxu0 0.0
      %2199 = vmatpush1.msra.mxu0 0.0
      %2200 = vmatprep.subr.mxu0 0.0
      %2201 = vmatpush1.msra.mxu0 0.0
      %2202 = vmatprep.subr.mxu0 0.0
      %2203 = vmatpush1.msra.mxu0 0.0
      %2204 = vmatprep.subr.mxu0 0.0
      %2205 = vmatpush1.msra.mxu0 0.0
      %2206 = vmatprep.subr.mxu0 0.0
      %2207 = vmatpush1.msra.mxu0 0.0
      %2208 = vmatprep.subr.mxu0 0.0
      %2209 = vmatpush1.msra.mxu0 0.0
      %2210 = vmatprep.subr.mxu0 0.0
      %2211 = vmatpush1.msra.mxu0 0.0
      %2212 = vmatprep.subr.mxu0 0.0
      %2213 = vmatpush1.msra.mxu0 0.0
      %2214 = vmatprep.subr.mxu0 0.0
      %2215 = vmatpush1.msra.mxu0 0.0
      %2216 = vmatprep.subr.mxu0 0.0
      %2217 = vmatpush1.msra.mxu0 0.0
      %2218 = vmatprep.subr.mxu0 0.0
      %2219 = vmatpush1.msra.mxu0 0.0
      %2220 = vmatprep.subr.mxu0 0.0
      %2221 = vmatpush1.msra.mxu0 0.0
      %2222 = vmatprep.subr.mxu0 0.0
      %2223 = vmatpush1.msra.mxu0 0.0
      %2224 = vmatprep.subr.mxu0 0.0
      %2225 = vmatpush1.msra.mxu0 0.0
      %2226 = vmatprep.subr.mxu0 0.0
      %2227 = vmatpush1.msra.mxu0 0.0
      %2228 = vmatprep.subr.mxu0 0.0
      %2229 = vmatpush1.msra.mxu0 0.0
      %2230 = vmatprep.subr.mxu0 0.0
      %2231 = vmatpush1.msra.mxu0 0.0
      %2232 = vmatprep.subr.mxu0 0.0
      %2233 = vmatpush1.msra.mxu0 0.0
      %2234 = vmatprep.subr.mxu0 0.0
      %2235 = vmatpush1.msra.mxu0 0.0
      %2236 = vmatprep.subr.mxu0 0.0
      %2237 = vmatpush1.msra.mxu0 0.0
      %2238 = vmatprep.subr.mxu0 0.0
      %2239 = vmatpush1.msra.mxu0 0.0
      %2240 = vmatprep.subr.mxu0 0.0
      %2241 = vmatpush1.msra.mxu0 0.0
      %2242 = vmatprep.mubr.f32.mxu0 0.0
      %2243 = vmatmul.mubr.f32.gmra.mrb[0].mxu0 %v2176
      %v2244 = vpop.f32.mrb[0].mxu0
      %v2245 = vadd.f32 %v2173, %v2244
      %v2246 = vpop.f32.mrb[0].mxu0
      %2247 = vdwg.mxu0
      %v2248 = vadd.f32 %v2245, %v677
      %v2249 = vld [vmem:[%s640] sm:$0x1]
      %v2250 = vld [vmem:[%s643] sm:$0x1]
      %v2251 = vsel %vm706, %v2248, 0.0
      %2252 = vadd.xlane.f32.xlu0 %v2251
      %v2253 = vpop.xlane.xlu0 %2252
      %v2254 = vrcp.pop 64.0
      %v2255 = vmul.f32 %v2253, %v2254
      %v2256 = vsub.f32 %v2248, %v2255
      %v2257 = vmul.f32 %v2256, %v2256
      %v2258 = vsel %vm706, %v2257, 0.0
      %2259 = vadd.xlane.f32.xlu0 %v2258
      %v2260 = vpop.xlane.xlu0 %2259
      %v2261 = vmul.f32 %v2260, %v2254
      %v2262 = vadd.f32 %v2261, 1e-05
      %v2263 = vrsqrt.pop %v2262
      %v2264 = vmul.f32 %v2256, %v2263
      %v2266 = vlaneseq
      %v2267 = vshrl.u32 %v2266, 7
      %v2268 = vsub.s32 0, %v2267
      %v2269 = vrot.slane %v2249, %v2268
      %v2271 = vmul.f32 %v2264, %v2269
      %v2273 = vlaneseq
      %v2274 = vshrl.u32 %v2273, 7
      %v2275 = vsub.s32 0, %v2274
      %v2276 = vrot.slane %v2250, %v2275
      %v2278 = vadd.f32 %v2271, %v2276
      %v2279 = vld [vmem:[%s648] sm:$0xff]
      %v2280 = vld [vmem:[%s648 + $0x8] sm:$0xff]
      %v2281 = vld [vmem:[%s648 + $0x10] sm:$0xff]
      %v2282 = vld [vmem:[%s648 + $0x18] sm:$0xff]
      %v2283 = vld [vmem:[%s648 + $0x20] sm:$0xff]
      %v2284 = vld [vmem:[%s648 + $0x28] sm:$0xff]
      %v2285 = vld [vmem:[%s648 + $0x30] sm:$0xff]
      %v2286 = vld [vmem:[%s648 + $0x38] sm:$0xff]
      %v2287 = vld [vmem:[%s651] sm:$0x1]
      %v2289 = vlaneseq
      %v2290 = vshrl.u32 %v2289, 7
      %v2291 = vsub.s32 0, %v2290
      %v2292 = vrot.slane %v2287, %v2291
      %v2295 = vsel %vm706, %v2278, 0
      %2297 = vmatprep.subr.mxu0 0.0
      %2298 = vmatpush1.msra.mxu0 %v2279
      %2299 = vmatprep.subr.mxu0 0.0
      %2300 = vmatpush1.msra.mxu0 %v2280
      %2301 = vmatprep.subr.mxu0 0.0
      %2302 = vmatpush1.msra.mxu0 %v2281
      %2303 = vmatprep.subr.mxu0 0.0
      %2304 = vmatpush1.msra.mxu0 %v2282
      %2305 = vmatprep.subr.mxu0 0.0
      %2306 = vmatpush1.msra.mxu0 %v2283
      %2307 = vmatprep.subr.mxu0 0.0
      %2308 = vmatpush1.msra.mxu0 %v2284
      %2309 = vmatprep.subr.mxu0 0.0
      %2310 = vmatpush1.msra.mxu0 %v2285
      %2311 = vmatprep.subr.mxu0 0.0
      %2312 = vmatpush1.msra.mxu0 %v2286
      %2313 = vmatprep.subr.mxu0 0.0
      %2314 = vmatpush1.msra.mxu0 0.0
      %2315 = vmatprep.subr.mxu0 0.0
      %2316 = vmatpush1.msra.mxu0 0.0
      %2317 = vmatprep.subr.mxu0 0.0
      %2318 = vmatpush1.msra.mxu0 0.0
      %2319 = vmatprep.subr.mxu0 0.0
      %2320 = vmatpush1.msra.mxu0 0.0
      %2321 = vmatprep.subr.mxu0 0.0
      %2322 = vmatpush1.msra.mxu0 0.0
      %2323 = vmatprep.subr.mxu0 0.0
      %2324 = vmatpush1.msra.mxu0 0.0
      %2325 = vmatprep.subr.mxu0 0.0
      %2326 = vmatpush1.msra.mxu0 0.0
      %2327 = vmatprep.subr.mxu0 0.0
      %2328 = vmatpush1.msra.mxu0 0.0
      %2329 = vmatprep.subr.mxu0 0.0
      %2330 = vmatpush1.msra.mxu0 0.0
      %2331 = vmatprep.subr.mxu0 0.0
      %2332 = vmatpush1.msra.mxu0 0.0
      %2333 = vmatprep.subr.mxu0 0.0
      %2334 = vmatpush1.msra.mxu0 0.0
      %2335 = vmatprep.subr.mxu0 0.0
      %2336 = vmatpush1.msra.mxu0 0.0
      %2337 = vmatprep.subr.mxu0 0.0
      %2338 = vmatpush1.msra.mxu0 0.0
      %2339 = vmatprep.subr.mxu0 0.0
      %2340 = vmatpush1.msra.mxu0 0.0
      %2341 = vmatprep.subr.mxu0 0.0
      %2342 = vmatpush1.msra.mxu0 0.0
      %2343 = vmatprep.subr.mxu0 0.0
      %2344 = vmatpush1.msra.mxu0 0.0
      %2345 = vmatprep.subr.mxu0 0.0
      %2346 = vmatpush1.msra.mxu0 0.0
      %2347 = vmatprep.subr.mxu0 0.0
      %2348 = vmatpush1.msra.mxu0 0.0
      %2349 = vmatprep.subr.mxu0 0.0
      %2350 = vmatpush1.msra.mxu0 0.0
      %2351 = vmatprep.subr.mxu0 0.0
      %2352 = vmatpush1.msra.mxu0 0.0
      %2353 = vmatprep.subr.mxu0 0.0
      %2354 = vmatpush1.msra.mxu0 0.0
      %2355 = vmatprep.subr.mxu0 0.0
      %2356 = vmatpush1.msra.mxu0 0.0
      %2357 = vmatprep.subr.mxu0 0.0
      %2358 = vmatpush1.msra.mxu0 0.0
      %2359 = vmatprep.subr.mxu0 0.0
      %2360 = vmatpush1.msra.mxu0 0.0
      %2361 = vmatprep.mubr.f32.mxu0 0.0
      %2362 = vmatmul.mubr.f32.gmra.mrb[0].mxu0 %v2295
      %v2363 = vpop.f32.mrb[0].mxu0
      %v2364 = vadd.f32 %v2292, %v2363
      %v2365 = vpop.f32.mrb[0].mxu0
      %2366 = vdwg.mxu0
      %v2367 = vmax.f32 %v2364, 0.0
      %v2368 = vld [vmem:[%s656] sm:$0xff]
      %v2369 = vld [vmem:[%s656 + $0x8] sm:$0xff]
      %v2370 = vld [vmem:[%s656 + $0x10] sm:$0xff]
      %v2371 = vld [vmem:[%s656 + $0x18] sm:$0xff]
      %v2372 = vld [vmem:[%s656 + $0x20] sm:$0xff]
      %v2373 = vld [vmem:[%s656 + $0x28] sm:$0xff]
      %v2374 = vld [vmem:[%s656 + $0x30] sm:$0xff]
      %v2375 = vld [vmem:[%s656 + $0x38] sm:$0xff]
      %v2376 = vld [vmem:[%s659] sm:$0x1]
      %v2378 = vlaneseq
      %v2379 = vshrl.u32 %v2378, 7
      %v2380 = vsub.s32 0, %v2379
      %v2381 = vrot.slane %v2376, %v2380
      %v2384 = vsel %vm706, %v2367, 0
      %2386 = vmatprep.subr.mxu0 0.0
      %2387 = vmatpush1.msra.mxu0 %v2368
      %2388 = vmatprep.subr.mxu0 0.0
      %2389 = vmatpush1.msra.mxu0 %v2369
      %2390 = vmatprep.subr.mxu0 0.0
      %2391 = vmatpush1.msra.mxu0 %v2370
      %2392 = vmatprep.subr.mxu0 0.0
      %2393 = vmatpush1.msra.mxu0 %v2371
      %2394 = vmatprep.subr.mxu0 0.0
      %2395 = vmatpush1.msra.mxu0 %v2372
      %2396 = vmatprep.subr.mxu0 0.0
      %2397 = vmatpush1.msra.mxu0 %v2373
      %2398 = vmatprep.subr.mxu0 0.0
      %2399 = vmatpush1.msra.mxu0 %v2374
      %2400 = vmatprep.subr.mxu0 0.0
      %2401 = vmatpush1.msra.mxu0 %v2375
      %2402 = vmatprep.subr.mxu0 0.0
      %2403 = vmatpush1.msra.mxu0 0.0
      %2404 = vmatprep.subr.mxu0 0.0
      %2405 = vmatpush1.msra.mxu0 0.0
      %2406 = vmatprep.subr.mxu0 0.0
      %2407 = vmatpush1.msra.mxu0 0.0
      %2408 = vmatprep.subr.mxu0 0.0
      %2409 = vmatpush1.msra.mxu0 0.0
      %2410 = vmatprep.subr.mxu0 0.0
      %2411 = vmatpush1.msra.mxu0 0.0
      %2412 = vmatprep.subr.mxu0 0.0
      %2413 = vmatpush1.msra.mxu0 0.0
      %2414 = vmatprep.subr.mxu0 0.0
      %2415 = vmatpush1.msra.mxu0 0.0
      %2416 = vmatprep.subr.mxu0 0.0
      %2417 = vmatpush1.msra.mxu0 0.0
      %2418 = vmatprep.subr.mxu0 0.0
      %2419 = vmatpush1.msra.mxu0 0.0
      %2420 = vmatprep.subr.mxu0 0.0
      %2421 = vmatpush1.msra.mxu0 0.0
      %2422 = vmatprep.subr.mxu0 0.0
      %2423 = vmatpush1.msra.mxu0 0.0
      %2424 = vmatprep.subr.mxu0 0.0
      %2425 = vmatpush1.msra.mxu0 0.0
      %2426 = vmatprep.subr.mxu0 0.0
      %2427 = vmatpush1.msra.mxu0 0.0
      %2428 = vmatprep.subr.mxu0 0.0
      %2429 = vmatpush1.msra.mxu0 0.0
      %2430 = vmatprep.subr.mxu0 0.0
      %2431 = vmatpush1.msra.mxu0 0.0
      %2432 = vmatprep.subr.mxu0 0.0
      %2433 = vmatpush1.msra.mxu0 0.0
      %2434 = vmatprep.subr.mxu0 0.0
      %2435 = vmatpush1.msra.mxu0 0.0
      %2436 = vmatprep.subr.mxu0 0.0
      %2437 = vmatpush1.msra.mxu0 0.0
      %2438 = vmatprep.subr.mxu0 0.0
      %2439 = vmatpush1.msra.mxu0 0.0
      %2440 = vmatprep.subr.mxu0 0.0
      %2441 = vmatpush1.msra.mxu0 0.0
      %2442 = vmatprep.subr.mxu0 0.0
      %2443 = vmatpush1.msra.mxu0 0.0
      %2444 = vmatprep.subr.mxu0 0.0
      %2445 = vmatpush1.msra.mxu0 0.0
      %2446 = vmatprep.subr.mxu0 0.0
      %2447 = vmatpush1.msra.mxu0 0.0
      %2448 = vmatprep.subr.mxu0 0.0
      %2449 = vmatpush1.msra.mxu0 0.0
      %2450 = vmatprep.mubr.f32.mxu0 0.0
      %2451 = vmatmul.mubr.f32.gmra.mrb[0].mxu0 %v2384
      %v2452 = vpop.f32.mrb[0].mxu0
      %v2453 = vadd.f32 %v2381, %v2452
      %v2454 = vpop.f32.mrb[0].mxu0
      %2455 = vdwg.mxu0
      %v2456 = vadd.f32 %v2453, %v2278
      %v2457 = vld [vmem:[%s662] sm:$0x1]
      %v2458 = vld [vmem:[%s665] sm:$0x1]
      %v2459 = vsel %vm706, %v2456, 0.0
      %2460 = vadd.xlane.f32.xlu0 %v2459
      %v2461 = vpop.xlane.xlu0 %2460
      %v2462 = vmul.f32 %v2461, %v2254
      %v2463 = vsub.f32 %v2456, %v2462
      %v2464 = vmul.f32 %v2463, %v2463
      %v2465 = vsel %vm706, %v2464, 0.0
      %2466 = vadd.xlane.f32.xlu0 %v2465
      %v2467 = vpop.xlane.xlu0 %2466
      %v2468 = vmul.f32 %v2467, %v2254
      %v2469 = vadd.f32 %v2468, 1e-05
      %v2470 = vrsqrt.pop %v2469
      %v2471 = vmul.f32 %v2463, %v2470
      %v2473 = vlaneseq
      %v2474 = vshrl.u32 %v2473, 7
      %v2475 = vsub.s32 0, %v2474
      %v2476 = vrot.slane %v2457, %v2475
      %v2478 = vmul.f32 %v2471, %v2476
      %v2480 = vlaneseq
      %v2481 = vshrl.u32 %v2480, 7
      %v2482 = vsub.s32 0, %v2481
      %v2483 = vrot.slane %v2458, %v2482
      %v2485 = vadd.f32 %v2478, %v2483
      %2486 = vst.msk [vmem:[%s669] sm:$0xff] %vm706, %v2485
      %p2487 = scmp.lt.s32.totalorder %s29, 1
      %s2488 = scalar_select %p2487, %s29, 1
      %s2489 = smul.addr %s2488, 8
      %s2490 = scalar_lea.vmem %s14, %s2489
      // Predicated region
      $region81: #{forward.8} parent=75 // pred_check
        %p2491 = pneg %p414
      $region82: #{forward.8} parent=75 // pred_check_branch
        %2493 = sbr.rel (%p2491) target = $region84
      $region83: #{forward.8} parent=75 // pred_region
        _
      $region84: #{forward.8} parent=75 // pred_fallthru
        _
    $region76: #{forward.8} parent=5 // pred_fallthru
      _
    %p2494 = scmp.le.s32.totalorder 2, %s20
    // Predicated region
    $region85: #{forward.8} parent=5 // pred_check
      %p2495 = pneg %p2494
    $region86: #{forward.8} parent=5 // pred_check_branch
      %2497 = sbr.rel (%p2495) target = $region88
    $region87: #{forward.8} parent=5 // pred_region
      %s2498 = ssub.s32 %s20, 2
      // Predicated region
      $region89: #{forward.8} parent=87 // pred_check
        %p2499 = pneg %p420
      $region90: #{forward.8} parent=87 // pred_check_branch
        %2501 = sbr.rel (%p2499) target = $region92
      $region91: #{forward.8} parent=87 // pred_region
        %p2502 = scmp.lt.s32.totalorder %s31, 1
        %s2503 = scalar_select %p2502, %s31, 1
        %s2504 = smul.addr %s2503, 8
        %s2505 = scalar_lea.vmem %s14, %s2504
      $region92: #{forward.8} parent=87 // pred_fallthru
        _
    $region88: #{forward.8} parent=5 // pred_fallthru
      _
  $region6: #{forward.8} parent=0 // loop_footer
    %s24 = sadd.s32 1, %s20
  $region7: #{forward.8} parent=0 // loop_footer_branch
    %19 = sbr.rel target = $region3
  $region8: #{forward.8} parent=0 // loop_exit
    _

// kernel: forward.6
$region0: #{forward.6}
  #allocation0 [shape = 'u32[]', space=smem, size = 0x4, offset = 0x4, fixed_abs, tag = 'smem constant byte address 0x4 - core index']
  #allocation1 [shape = 'u32[144,128]{1,0:T(1,128)}', space=vmem, size = 0x12000, scoped, tag = 'internal scratch']
  #allocation2 [shape = 'f32[32,64]{1,0:T(8,128)}', space=vmem, size = 0x4000, scoped, tag = 'scratch operand']
  %s0 = inlined_call_operand.vmem [shape: f32[64,64], index: 0, kind: input, shape index: {}]
  %s1 = inlined_call_operand.vmem [shape: f32[32,32], index: 1, kind: input, shape index: {}]
  %s2 = inlined_call_operand.vmem [shape: f32[6,64,192], index: 2, kind: input, shape index: {}]
  %s3 = inlined_call_operand.vmem [shape: f32[6,1,192], index: 3, kind: input, shape index: {}]
  %s4 = inlined_call_operand.vmem [shape: f32[6,64,64], index: 4, kind: input, shape index: {}]
  %s5 = inlined_call_operand.vmem [shape: f32[6,1,64], index: 5, kind: input, shape index: {}]
  %s6 = inlined_call_operand.vmem [shape: f32[6,1,64], index: 6, kind: input, shape index: {}]
  %s7 = inlined_call_operand.vmem [shape: f32[6,1,64], index: 7, kind: input, shape index: {}]
  %s8 = inlined_call_operand.vmem [shape: f32[6,64,64], index: 8, kind: input, shape index: {}]
  %s9 = inlined_call_operand.vmem [shape: f32[6,1,64], index: 9, kind: input, shape index: {}]
  %s10 = inlined_call_operand.vmem [shape: f32[6,64,64], index: 10, kind: input, shape index: {}]
  %s11 = inlined_call_operand.vmem [shape: f32[6,1,64], index: 11, kind: input, shape index: {}]
  %s12 = inlined_call_operand.vmem [shape: f32[6,1,64], index: 12, kind: input, shape index: {}]
  %s13 = inlined_call_operand.vmem [shape: f32[6,1,64], index: 13, kind: input, shape index: {}]
  %s14 = inlined_call_operand.vmem [shape: f32[64,64], index: 14, kind: output, shape index: {}]
  %s15 = sld [smem:[#allocation0]]
  $region93: #{forward.6} parent=0
    _
  %s17 = ssub.s32 1, %s15
  %s18 = scalar_select 0, %s17, %s15
  loop: start=0, step=1, limit=14
  $region2: #{forward.6} parent=0 // loop_pre_header
    _
  $region3: #{forward.6} parent=0 // loop_header
    %s20 = sphi 0, %s24
    %p21 = scmp.ge.s32.totalorder %s20, 14
    %s27 = sphi 0, %s39
    %s28 = sphi 0, %s35
    %s29 = sphi 0, %s27
    %s30 = sphi 0, %s28
    %s31 = sphi 0, %s29
    %s32 = sphi 0, %s30
    %s42 = sphi 0, %s44
    %s45 = sphi 0, %s42
    %s46 = sphi 0, %s45
    %s62 = sphi 0, %s46
    %s66 = sphi 0, %s66
    %s68 = sphi 0, %s66
    %s69 = sphi 0, %s68
    %s83 = sphi 0, %s69
    %s89 = sphi 0, %s91
    %s92 = sphi 0, %s89
    %s93 = sphi 0, %s92
    %s109 = sphi 0, %s93
    %s115 = sphi 0, %s117
    %s118 = sphi 0, %s115
    %s119 = sphi 0, %s118
    %s135 = sphi 0, %s119
    %s141 = sphi 0, %s143
    %s144 = sphi 0, %s141
    %s145 = sphi 0, %s144
    %s161 = sphi 0, %s145
    %s167 = sphi 0, %s169
    %s170 = sphi 0, %s167
    %s171 = sphi 0, %s170
    %s187 = sphi 0, %s171
    %s193 = sphi 0, %s195
    %s196 = sphi 0, %s193
    %s197 = sphi 0, %s196
    %s213 = sphi 0, %s197
    %s219 = sphi 0, %s221
    %s222 = sphi 0, %s219
    %s223 = sphi 0, %s222
    %s239 = sphi 0, %s223
    %s245 = sphi 0, %s247
    %s248 = sphi 0, %s245
    %s249 = sphi 0, %s248
    %s265 = sphi 0, %s249
    %s271 = sphi 0, %s273
    %s274 = sphi 0, %s271
    %s275 = sphi 0, %s274
    %s291 = sphi 0, %s275
    %s297 = sphi 0, %s299
    %s300 = sphi 0, %s297
    %s301 = sphi 0, %s300
    %s317 = sphi 0, %s301
    %s323 = sphi 0, %s325
    %s326 = sphi 0, %s323
    %s327 = sphi 0, %s326
    %s343 = sphi 0, %s327
    %s349 = sphi 0, %s351
    %s352 = sphi 0, %s349
    %s353 = sphi 0, %s352
    %s369 = sphi 0, %s353
    %s375 = sphi 0, %s377
    %s378 = sphi 0, %s375
    %s379 = sphi 0, %s378
    %s395 = sphi 0, %s379
    %s401 = sphi 0, %s403
    %s404 = sphi 0, %s401
    %s405 = sphi 0, %s404
    %s421 = sphi 0, %s405
  $region4: #{forward.6} parent=0 // loop_header_branch
    %23 = sbr.rel (%p21) target = $region8
  $region5: #{forward.6} parent=0 // loop_body
    %s25 = ssub.s32 %s20, 1
    %s26 = ssub.s32 %s20, 2
    %s33 = sadd.s32 1, %s28
    %p34 = scmp.ge.s32.totalorder %s33, 6
    %s35 = scalar_select %p34, 0, %s33
    %s36 = sadd.s32 1, %s27
    %s37 = scalar_select %p34, %s36, %s27
    %p38 = scmp.ge.s32.totalorder %s37, 2
    %s39 = scalar_select %p38, 0, %s37
    %s40 = ssub.s32 %s27, %s39
    %p41 = scmp.eq.s32.totalorder %s40, 0
    %s43 = sadd.s32 %s42, 1
    %s44 = scalar_select %p41, %s42, %s43
    %p47 = pneg %p41
    %p48 = scmp.eq.s32.totalorder %s20, 11
    %p49 = por %p47, %p48
    %p50 = scmp.ne.s32.totalorder %s42, %s45
    %p51 = scmp.eq.s32.totalorder %s20, 0
    %p52 = por %p50, %p51
    %p53 = scmp.ne.s32.totalorder %s42, %s45
    %p54 = scmp.eq.s32.totalorder %s25, 11
    %p55 = por %p53, %p54
    %p56 = scmp.ne.s32.totalorder %s45, %s46
    %p57 = scmp.eq.s32.totalorder %s25, 0
    %p58 = por %p56, %p57
    %p59 = scmp.ne.s32.totalorder %s45, %s46
    %p60 = scmp.eq.s32.totalorder %s26, 11
    %p61 = por %p59, %p60
    %p63 = scmp.ne.s32.totalorder %s46, %s62
    %p64 = scmp.eq.s32.totalorder %s26, 0
    %p65 = por %p63, %p64
    %s67 = sadd.s32 %s66, 1
    %p70 = scmp.eq.s32.totalorder %s20, 11
    %p71 = scmp.ne.s32.totalorder %s66, %s68
    %p72 = scmp.eq.s32.totalorder %s20, 0
    %p73 = por %p71, %p72
    %p74 = scmp.ne.s32.totalorder %s66, %s68
    %p75 = scmp.eq.s32.totalorder %s25, 11
    %p76 = por %p74, %p75
    %p77 = scmp.ne.s32.totalorder %s68, %s69
    %p78 = scmp.eq.s32.totalorder %s25, 0
    %p79 = por %p77, %p78
    %p80 = scmp.ne.s32.totalorder %s68, %s69
    %p81 = scmp.eq.s32.totalorder %s26, 11
    %p82 = por %p80, %p81
    %p84 = scmp.ne.s32.totalorder %s69, %s83
    %p85 = scmp.eq.s32.totalorder %s26, 0
    %p86 = por %p84, %p85
    %s87 = ssub.s32 %s28, %s35
    %p88 = scmp.eq.s32.totalorder %s87, 0
    %s90 = sadd.s32 %s89, 1
    %s91 = scalar_select %p88, %s89, %s90
    %p94 = pneg %p88
    %p95 = scmp.eq.s32.totalorder %s20, 11
    %p96 = por %p94, %p95
    %p97 = scmp.ne.s32.totalorder %s89, %s92
    %p98 = scmp.eq.s32.totalorder %s20, 0
    %p99 = por %p97, %p98
    %p100 = scmp.ne.s32.totalorder %s89, %s92
    %p101 = scmp.eq.s32.totalorder %s25, 11
    %p102 = por %p100, %p101
    %p103 = scmp.ne.s32.totalorder %s92, %s93
    %p104 = scmp.eq.s32.totalorder %s25, 0
    %p105 = por %p103, %p104
    %p106 = scmp.ne.s32.totalorder %s92, %s93
    %p107 = scmp.eq.s32.totalorder %s26, 11
    %p108 = por %p106, %p107
    %p110 = scmp.ne.s32.totalorder %s93, %s109
    %p111 = scmp.eq.s32.totalorder %s26, 0
    %p112 = por %p110, %p111
    %s113 = ssub.s32 %s28, %s35
    %p114 = scmp.eq.s32.totalorder %s113, 0
    %s116 = sadd.s32 %s115, 1
    %s117 = scalar_select %p114, %s115, %s116
    %p120 = pneg %p114
    %p121 = scmp.eq.s32.totalorder %s20, 11
    %p122 = por %p120, %p121
    %p123 = scmp.ne.s32.totalorder %s115, %s118
    %p124 = scmp.eq.s32.totalorder %s20, 0
    %p125 = por %p123, %p124
    %p126 = scmp.ne.s32.totalorder %s115, %s118
    %p127 = scmp.eq.s32.totalorder %s25, 11
    %p128 = por %p126, %p127
    %p129 = scmp.ne.s32.totalorder %s118, %s119
    %p130 = scmp.eq.s32.totalorder %s25, 0
    %p131 = por %p129, %p130
    %p132 = scmp.ne.s32.totalorder %s118, %s119
    %p133 = scmp.eq.s32.totalorder %s26, 11
    %p134 = por %p132, %p133
    %p136 = scmp.ne.s32.totalorder %s119, %s135
    %p137 = scmp.eq.s32.totalorder %s26, 0
    %p138 = por %p136, %p137
    %s139 = ssub.s32 %s28, %s35
    %p140 = scmp.eq.s32.totalorder %s139, 0
    %s142 = sadd.s32 %s141, 1
    %s143 = scalar_select %p140, %s141, %s142
    %p146 = pneg %p140
    %p147 = scmp.eq.s32.totalorder %s20, 11
    %p148 = por %p146, %p147
    %p149 = scmp.ne.s32.totalorder %s141, %s144
    %p150 = scmp.eq.s32.totalorder %s20, 0
    %p151 = por %p149, %p150
    %p152 = scmp.ne.s32.totalorder %s141, %s144
    %p153 = scmp.eq.s32.totalorder %s25, 11
    %p154 = por %p152, %p153
    %p155 = scmp.ne.s32.totalorder %s144, %s145
    %p156 = scmp.eq.s32.totalorder %s25, 0
    %p157 = por %p155, %p156
    %p158 = scmp.ne.s32.totalorder %s144, %s145
    %p159 = scmp.eq.s32.totalorder %s26, 11
    %p160 = por %p158, %p159
    %p162 = scmp.ne.s32.totalorder %s145, %s161
    %p163 = scmp.eq.s32.totalorder %s26, 0
    %p164 = por %p162, %p163
    %s165 = ssub.s32 %s28, %s35
    %p166 = scmp.eq.s32.totalorder %s165, 0
    %s168 = sadd.s32 %s167, 1
    %s169 = scalar_select %p166, %s167, %s168
    %p172 = pneg %p166
    %p173 = scmp.eq.s32.totalorder %s20, 11
    %p174 = por %p172, %p173
    %p175 = scmp.ne.s32.totalorder %s167, %s170
    %p176 = scmp.eq.s32.totalorder %s20, 0
    %p177 = por %p175, %p176
    %p178 = scmp.ne.s32.totalorder %s167, %s170
    %p179 = scmp.eq.s32.totalorder %s25, 11
    %p180 = por %p178, %p179
    %p181 = scmp.ne.s32.totalorder %s170, %s171
    %p182 = scmp.eq.s32.totalorder %s25, 0
    %p183 = por %p181, %p182
    %p184 = scmp.ne.s32.totalorder %s170, %s171
    %p185 = scmp.eq.s32.totalorder %s26, 11
    %p186 = por %p184, %p185
    %p188 = scmp.ne.s32.totalorder %s171, %s187
    %p189 = scmp.eq.s32.totalorder %s26, 0
    %p190 = por %p188, %p189
    %s191 = ssub.s32 %s28, %s35
    %p192 = scmp.eq.s32.totalorder %s191, 0
    %s194 = sadd.s32 %s193, 1
    %s195 = scalar_select %p192, %s193, %s194
    %p198 = pneg %p192
    %p199 = scmp.eq.s32.totalorder %s20, 11
    %p200 = por %p198, %p199
    %p201 = scmp.ne.s32.totalorder %s193, %s196
    %p202 = scmp.eq.s32.totalorder %s20, 0
    %p203 = por %p201, %p202
    %p204 = scmp.ne.s32.totalorder %s193, %s196
    %p205 = scmp.eq.s32.totalorder %s25, 11
    %p206 = por %p204, %p205
    %p207 = scmp.ne.s32.totalorder %s196, %s197
    %p208 = scmp.eq.s32.totalorder %s25, 0
    %p209 = por %p207, %p208
    %p210 = scmp.ne.s32.totalorder %s196, %s197
    %p211 = scmp.eq.s32.totalorder %s26, 11
    %p212 = por %p210, %p211
    %p214 = scmp.ne.s32.totalorder %s197, %s213
    %p215 = scmp.eq.s32.totalorder %s26, 0
    %p216 = por %p214, %p215
    %s217 = ssub.s32 %s28, %s35
    %p218 = scmp.eq.s32.totalorder %s217, 0
    %s220 = sadd.s32 %s219, 1
    %s221 = scalar_select %p218, %s219, %s220
    %p224 = pneg %p218
    %p225 = scmp.eq.s32.totalorder %s20, 11
    %p226 = por %p224, %p225
    %p227 = scmp.ne.s32.totalorder %s219, %s222
    %p228 = scmp.eq.s32.totalorder %s20, 0
    %p229 = por %p227, %p228
    %p230 = scmp.ne.s32.totalorder %s219, %s222
    %p231 = scmp.eq.s32.totalorder %s25, 11
    %p232 = por %p230, %p231
    %p233 = scmp.ne.s32.totalorder %s222, %s223
    %p234 = scmp.eq.s32.totalorder %s25, 0
    %p235 = por %p233, %p234
    %p236 = scmp.ne.s32.totalorder %s222, %s223
    %p237 = scmp.eq.s32.totalorder %s26, 11
    %p238 = por %p236, %p237
    %p240 = scmp.ne.s32.totalorder %s223, %s239
    %p241 = scmp.eq.s32.totalorder %s26, 0
    %p242 = por %p240, %p241
    %s243 = ssub.s32 %s28, %s35
    %p244 = scmp.eq.s32.totalorder %s243, 0
    %s246 = sadd.s32 %s245, 1
    %s247 = scalar_select %p244, %s245, %s246
    %p250 = pneg %p244
    %p251 = scmp.eq.s32.totalorder %s20, 11
    %p252 = por %p250, %p251
    %p253 = scmp.ne.s32.totalorder %s245, %s248
    %p254 = scmp.eq.s32.totalorder %s20, 0
    %p255 = por %p253, %p254
    %p256 = scmp.ne.s32.totalorder %s245, %s248
    %p257 = scmp.eq.s32.totalorder %s25, 11
    %p258 = por %p256, %p257
    %p259 = scmp.ne.s32.totalorder %s248, %s249
    %p260 = scmp.eq.s32.totalorder %s25, 0
    %p261 = por %p259, %p260
    %p262 = scmp.ne.s32.totalorder %s248, %s249
    %p263 = scmp.eq.s32.totalorder %s26, 11
    %p264 = por %p262, %p263
    %p266 = scmp.ne.s32.totalorder %s249, %s265
    %p267 = scmp.eq.s32.totalorder %s26, 0
    %p268 = por %p266, %p267
    %s269 = ssub.s32 %s28, %s35
    %p270 = scmp.eq.s32.totalorder %s269, 0
    %s272 = sadd.s32 %s271, 1
    %s273 = scalar_select %p270, %s271, %s272
    %p276 = pneg %p270
    %p277 = scmp.eq.s32.totalorder %s20, 11
    %p278 = por %p276, %p277
    %p279 = scmp.ne.s32.totalorder %s271, %s274
    %p280 = scmp.eq.s32.totalorder %s20, 0
    %p281 = por %p279, %p280
    %p282 = scmp.ne.s32.totalorder %s271, %s274
    %p283 = scmp.eq.s32.totalorder %s25, 11
    %p284 = por %p282, %p283
    %p285 = scmp.ne.s32.totalorder %s274, %s275
    %p286 = scmp.eq.s32.totalorder %s25, 0
    %p287 = por %p285, %p286
    %p288 = scmp.ne.s32.totalorder %s274, %s275
    %p289 = scmp.eq.s32.totalorder %s26, 11
    %p290 = por %p288, %p289
    %p292 = scmp.ne.s32.totalorder %s275, %s291
    %p293 = scmp.eq.s32.totalorder %s26, 0
    %p294 = por %p292, %p293
    %s295 = ssub.s32 %s28, %s35
    %p296 = scmp.eq.s32.totalorder %s295, 0
    %s298 = sadd.s32 %s297, 1
    %s299 = scalar_select %p296, %s297, %s298
    %p302 = pneg %p296
    %p303 = scmp.eq.s32.totalorder %s20, 11
    %p304 = por %p302, %p303
    %p305 = scmp.ne.s32.totalorder %s297, %s300
    %p306 = scmp.eq.s32.totalorder %s20, 0
    %p307 = por %p305, %p306
    %p308 = scmp.ne.s32.totalorder %s297, %s300
    %p309 = scmp.eq.s32.totalorder %s25, 11
    %p310 = por %p308, %p309
    %p311 = scmp.ne.s32.totalorder %s300, %s301
    %p312 = scmp.eq.s32.totalorder %s25, 0
    %p313 = por %p311, %p312
    %p314 = scmp.ne.s32.totalorder %s300, %s301
    %p315 = scmp.eq.s32.totalorder %s26, 11
    %p316 = por %p314, %p315
    %p318 = scmp.ne.s32.totalorder %s301, %s317
    %p319 = scmp.eq.s32.totalorder %s26, 0
    %p320 = por %p318, %p319
    %s321 = ssub.s32 %s28, %s35
    %p322 = scmp.eq.s32.totalorder %s321, 0
    %s324 = sadd.s32 %s323, 1
    %s325 = scalar_select %p322, %s323, %s324
    %p328 = pneg %p322
    %p329 = scmp.eq.s32.totalorder %s20, 11
    %p330 = por %p328, %p329
    %p331 = scmp.ne.s32.totalorder %s323, %s326
    %p332 = scmp.eq.s32.totalorder %s20, 0
    %p333 = por %p331, %p332
    %p334 = scmp.ne.s32.totalorder %s323, %s326
    %p335 = scmp.eq.s32.totalorder %s25, 11
    %p336 = por %p334, %p335
    %p337 = scmp.ne.s32.totalorder %s326, %s327
    %p338 = scmp.eq.s32.totalorder %s25, 0
    %p339 = por %p337, %p338
    %p340 = scmp.ne.s32.totalorder %s326, %s327
    %p341 = scmp.eq.s32.totalorder %s26, 11
    %p342 = por %p340, %p341
    %p344 = scmp.ne.s32.totalorder %s327, %s343
    %p345 = scmp.eq.s32.totalorder %s26, 0
    %p346 = por %p344, %p345
    %s347 = ssub.s32 %s28, %s35
    %p348 = scmp.eq.s32.totalorder %s347, 0
    %s350 = sadd.s32 %s349, 1
    %s351 = scalar_select %p348, %s349, %s350
    %p354 = pneg %p348
    %p355 = scmp.eq.s32.totalorder %s20, 11
    %p356 = por %p354, %p355
    %p357 = scmp.ne.s32.totalorder %s349, %s352
    %p358 = scmp.eq.s32.totalorder %s20, 0
    %p359 = por %p357, %p358
    %p360 = scmp.ne.s32.totalorder %s349, %s352
    %p361 = scmp.eq.s32.totalorder %s25, 11
    %p362 = por %p360, %p361
    %p363 = scmp.ne.s32.totalorder %s352, %s353
    %p364 = scmp.eq.s32.totalorder %s25, 0
    %p365 = por %p363, %p364
    %p366 = scmp.ne.s32.totalorder %s352, %s353
    %p367 = scmp.eq.s32.totalorder %s26, 11
    %p368 = por %p366, %p367
    %p370 = scmp.ne.s32.totalorder %s353, %s369
    %p371 = scmp.eq.s32.totalorder %s26, 0
    %p372 = por %p370, %p371
    %s373 = ssub.s32 %s28, %s35
    %p374 = scmp.eq.s32.totalorder %s373, 0
    %s376 = sadd.s32 %s375, 1
    %s377 = scalar_select %p374, %s375, %s376
    %p380 = pneg %p374
    %p381 = scmp.eq.s32.totalorder %s20, 11
    %p382 = por %p380, %p381
    %p383 = scmp.ne.s32.totalorder %s375, %s378
    %p384 = scmp.eq.s32.totalorder %s20, 0
    %p385 = por %p383, %p384
    %p386 = scmp.ne.s32.totalorder %s375, %s378
    %p387 = scmp.eq.s32.totalorder %s25, 11
    %p388 = por %p386, %p387
    %p389 = scmp.ne.s32.totalorder %s378, %s379
    %p390 = scmp.eq.s32.totalorder %s25, 0
    %p391 = por %p389, %p390
    %p392 = scmp.ne.s32.totalorder %s378, %s379
    %p393 = scmp.eq.s32.totalorder %s26, 11
    %p394 = por %p392, %p393
    %p396 = scmp.ne.s32.totalorder %s379, %s395
    %p397 = scmp.eq.s32.totalorder %s26, 0
    %p398 = por %p396, %p397
    %s399 = ssub.s32 %s27, %s39
    %p400 = scmp.eq.s32.totalorder %s399, 0
    %s402 = sadd.s32 %s401, 1
    %s403 = scalar_select %p400, %s401, %s402
    %p406 = pneg %p400
    %p407 = scmp.eq.s32.totalorder %s20, 11
    %p408 = por %p406, %p407
    %p409 = scmp.ne.s32.totalorder %s401, %s404
    %p410 = scmp.eq.s32.totalorder %s20, 0
    %p411 = por %p409, %p410
    %p412 = scmp.ne.s32.totalorder %s401, %s404
    %p413 = scmp.eq.s32.totalorder %s25, 11
    %p414 = por %p412, %p413
    %p415 = scmp.ne.s32.totalorder %s404, %s405
    %p416 = scmp.eq.s32.totalorder %s25, 0
    %p417 = por %p415, %p416
    %p418 = scmp.ne.s32.totalorder %s404, %s405
    %p419 = scmp.eq.s32.totalorder %s26, 11
    %p420 = por %p418, %p419
    %p422 = scmp.ne.s32.totalorder %s405, %s421
    %p423 = scmp.eq.s32.totalorder %s26, 0
    %p424 = por %p422, %p423
    %p425 = scmp.le.s32.totalorder 1, %s20
    %p426 = scmp.lt.s32.totalorder %s20, 13
    %p427 = pnand %p425, %p426
    %p428 = pneg %p427
    // Predicated region
    $region9: #{forward.6} parent=5 // pred_check
      _
    $region10: #{forward.6} parent=5 // pred_check_branch
      %430 = sbr.rel (%p427) target = $region12
    $region11: #{forward.6} parent=5 // pred_region
      %s431 = ssub.s32 %s20, 1
      // Predicated region
      $region13: #{forward.6} parent=11 // pred_check
        %p432 = pneg %p79
      $region14: #{forward.6} parent=11 // pred_check_branch
        %434 = sbr.rel (%p432) target = $region16
      $region15: #{forward.6} parent=11 // pred_region
        _
      $region16: #{forward.6} parent=11 // pred_fallthru
        _
    $region12: #{forward.6} parent=5 // pred_fallthru
      _
    %p435 = scmp.lt.s32.totalorder %s20, 12
    // Predicated region
    $region17: #{forward.6} parent=5 // pred_check
      %p436 = pneg %p435
    $region18: #{forward.6} parent=5 // pred_check_branch
      %438 = sbr.rel (%p436) target = $region20
    $region19: #{forward.6} parent=5 // pred_region
      // Predicated region
      $region21: #{forward.6} parent=19 // pred_check
        %p439 = pneg %p52
      $region22: #{forward.6} parent=19 // pred_check_branch
        %441 = sbr.rel (%p439) target = $region24
      $region23: #{forward.6} parent=19 // pred_region
        %s442 = smul.u32 4, %s27
        %p443 = scmp.lt.s32.totalorder %s442, 7
        %s444 = scalar_select %p443, %s442, 7
        %s445 = smul.addr %s444, 8
        %s446 = scalar_lea.vmem %s0, %s445
        %s447 = smul.u32 4, %s27
      $region24: #{forward.6} parent=19 // pred_fallthru
        _
      // Predicated region
      $region25: #{forward.6} parent=19 // pred_check
        %p448 = pneg %p99
      $region26: #{forward.6} parent=19 // pred_check_branch
        %450 = sbr.rel (%p448) target = $region28
      $region27: #{forward.6} parent=19 // pred_region
        %p451 = scmp.lt.s32.totalorder %s28, 5
        %s452 = scalar_select %p451, %s28, 5
        %s453 = smul.addr %s452, 16
        %s454 = smul.addr %s453, 8
        %s455 = scalar_lea.vmem %s2, %s454
      $region28: #{forward.6} parent=19 // pred_fallthru
        _
      // Predicated region
      $region29: #{forward.6} parent=19 // pred_check
        %p456 = pneg %p125
      $region30: #{forward.6} parent=19 // pred_check_branch
        %458 = sbr.rel (%p456) target = $region32
      $region31: #{forward.6} parent=19 // pred_region
        %p459 = scmp.lt.s32.totalorder %s28, 5
        %s460 = scalar_select %p459, %s28, 5
        %s461 = smul.addr %s460, 2
        %s462 = scalar_lea.vmem %s3, %s461
      $region32: #{forward.6} parent=19 // pred_fallthru
        _
      // Predicated region
      $region33: #{forward.6} parent=19 // pred_check
        %p463 = pneg %p151
      $region34: #{forward.6} parent=19 // pred_check_branch
        %465 = sbr.rel (%p463) target = $region36
      $region35: #{forward.6} parent=19 // pred_region
        %p466 = scmp.lt.s32.totalorder %s28, 5
        %s467 = scalar_select %p466, %s28, 5
        %s468 = smul.addr %s467, 8
        %s469 = smul.addr %s468, 8
        %s470 = scalar_lea.vmem %s4, %s469
      $region36: #{forward.6} parent=19 // pred_fallthru
        _
      // Predicated region
      $region37: #{forward.6} parent=19 // pred_check
        %p471 = pneg %p177
      $region38: #{forward.6} parent=19 // pred_check_branch
        %473 = sbr.rel (%p471) target = $region40
      $region39: #{forward.6} parent=19 // pred_region
        %p474 = scmp.lt.s32.totalorder %s28, 5
        %s475 = scalar_select %p474, %s28, 5
        %s476 = scalar_lea.vmem %s5, %s475
      $region40: #{forward.6} parent=19 // pred_fallthru
        _
      // Predicated region
      $region41: #{forward.6} parent=19 // pred_check
        %p477 = pneg %p203
      $region42: #{forward.6} parent=19 // pred_check_branch
        %479 = sbr.rel (%p477) target = $region44
      $region43: #{forward.6} parent=19 // pred_region
        %p480 = scmp.lt.s32.totalorder %s28, 5
        %s481 = scalar_select %p480, %s28, 5
        %s482 = scalar_lea.vmem %s6, %s481
      $region44: #{forward.6} parent=19 // pred_fallthru
        _
      // Predicated region
      $region45: #{forward.6} parent=19 // pred_check
        %p483 = pneg %p229
      $region46: #{forward.6} parent=19 // pred_check_branch
        %485 = sbr.rel (%p483) target = $region48
      $region47: #{forward.6} parent=19 // pred_region
        %p486 = scmp.lt.s32.totalorder %s28, 5
        %s487 = scalar_select %p486, %s28, 5
        %s488 = scalar_lea.vmem %s7, %s487
      $region48: #{forward.6} parent=19 // pred_fallthru
        _
      // Predicated region
      $region49: #{forward.6} parent=19 // pred_check
        %p489 = pneg %p255
      $region50: #{forward.6} parent=19 // pred_check_branch
        %491 = sbr.rel (%p489) target = $region52
      $region51: #{forward.6} parent=19 // pred_region
        %p492 = scmp.lt.s32.totalorder %s28, 5
        %s493 = scalar_select %p492, %s28, 5
        %s494 = smul.addr %s493, 8
        %s495 = smul.addr %s494, 8
        %s496 = scalar_lea.vmem %s8, %s495
      $region52: #{forward.6} parent=19 // pred_fallthru
        _
      // Predicated region
      $region53: #{forward.6} parent=19 // pred_check
        %p497 = pneg %p281
      $region54: #{forward.6} parent=19 // pred_check_branch
        %499 = sbr.rel (%p497) target = $region56
      $region55: #{forward.6} parent=19 // pred_region
        %p500 = scmp.lt.s32.totalorder %s28, 5
        %s501 = scalar_select %p500, %s28, 5
        %s502 = scalar_lea.vmem %s9, %s501
      $region56: #{forward.6} parent=19 // pred_fallthru
        _
      // Predicated region
      $region57: #{forward.6} parent=19 // pred_check
        %p503 = pneg %p307
      $region58: #{forward.6} parent=19 // pred_check_branch
        %505 = sbr.rel (%p503) target = $region60
      $region59: #{forward.6} parent=19 // pred_region
        %p506 = scmp.lt.s32.totalorder %s28, 5
        %s507 = scalar_select %p506, %s28, 5
        %s508 = smul.addr %s507, 8
        %s509 = smul.addr %s508, 8
        %s510 = scalar_lea.vmem %s10, %s509
      $region60: #{forward.6} parent=19 // pred_fallthru
        _
      // Predicated region
      $region61: #{forward.6} parent=19 // pred_check
        %p511 = pneg %p333
      $region62: #{forward.6} parent=19 // pred_check_branch
        %513 = sbr.rel (%p511) target = $region64
      $region63: #{forward.6} parent=19 // pred_region
        %p514 = scmp.lt.s32.totalorder %s28, 5
        %s515 = scalar_select %p514, %s28, 5
        %s516 = scalar_lea.vmem %s11, %s515
      $region64: #{forward.6} parent=19 // pred_fallthru
        _
      // Predicated region
      $region65: #{forward.6} parent=19 // pred_check
        %p517 = pneg %p359
      $region66: #{forward.6} parent=19 // pred_check_branch
        %519 = sbr.rel (%p517) target = $region68
      $region67: #{forward.6} parent=19 // pred_region
        %p520 = scmp.lt.s32.totalorder %s28, 5
        %s521 = scalar_select %p520, %s28, 5
        %s522 = scalar_lea.vmem %s12, %s521
      $region68: #{forward.6} parent=19 // pred_fallthru
        _
      // Predicated region
      $region69: #{forward.6} parent=19 // pred_check
        %p523 = pneg %p385
      $region70: #{forward.6} parent=19 // pred_check_branch
        %525 = sbr.rel (%p523) target = $region72
      $region71: #{forward.6} parent=19 // pred_region
        %p526 = scmp.lt.s32.totalorder %s28, 5
        %s527 = scalar_select %p526, %s28, 5
        %s528 = scalar_lea.vmem %s13, %s527
      $region72: #{forward.6} parent=19 // pred_fallthru
        _
    $region20: #{forward.6} parent=5 // pred_fallthru
      _
    %p529 = scmp.le.s32.totalorder 1, %s20
    %p530 = scmp.lt.s32.totalorder %s20, 13
    %p531 = pnand %p529, %p530
    %p532 = pneg %p531
    // Predicated region
    $region73: #{forward.6} parent=5 // pred_check
      _
    $region74: #{forward.6} parent=5 // pred_check_branch
      %534 = sbr.rel (%p531) target = $region76
    $region75: #{forward.6} parent=5 // pred_region
      %s535 = ssub.s32 %s20, 1
      %s536 = smul.u32 4, %s29
      %p537 = scmp.lt.s32.totalorder %s536, 7
      %s538 = scalar_select %p537, %s536, 7
      %s539 = smul.addr %s538, 8
      %s540 = scalar_lea.vmem %s0, %s539
      %p541 = pneg %p58
      %p542 = pneg %p55
      %p543 = pneg %p79
      %p544 = pneg %p76
      %p545 = scmp.lt.s32.totalorder %s30, 5
      %s546 = scalar_select %p545, %s30, 5
      %s547 = smul.addr %s546, 16
      %s548 = smul.addr %s547, 8
      %s549 = scalar_lea.vmem %s2, %s548
      %p550 = pneg %p105
      %p551 = pneg %p102
      %p552 = scmp.lt.s32.totalorder %s30, 5
      %s553 = scalar_select %p552, %s30, 5
      %s554 = smul.addr %s553, 2
      %s555 = scalar_lea.vmem %s3, %s554
      %p556 = pneg %p131
      %p557 = pneg %p128
      %p558 = scmp.lt.s32.totalorder %s30, 5
      %s559 = scalar_select %p558, %s30, 5
      %s560 = smul.addr %s559, 8
      %s561 = smul.addr %s560, 8
      %s562 = scalar_lea.vmem %s4, %s561
      %p563 = pneg %p157
      %p564 = pneg %p154
      %p565 = scmp.lt.s32.totalorder %s30, 5
      %s566 = scalar_select %p565, %s30, 5
      %s567 = scalar_lea.vmem %s5, %s566
      %p568 = pneg %p183
      %p569 = pneg %p180
      %p570 = scmp.lt.s32.totalorder %s30, 5
      %s571 = scalar_select %p570, %s30, 5
      %s572 = scalar_lea.vmem %s6, %s571
      %p573 = pneg %p209
      %p574 = pneg %p206
      %p575 = scmp.lt.s32.totalorder %s30, 5
      %s576 = scalar_select %p575, %s30, 5
      %s577 = scalar_lea.vmem %s7, %s576
      %p578 = pneg %p235
      %p579 = pneg %p232
      %p580 = scmp.lt.s32.totalorder %s30, 5
      %s581 = scalar_select %p580, %s30, 5
      %s582 = smul.addr %s581, 8
      %s583 = smul.addr %s582, 8
      %s584 = scalar_lea.vmem %s8, %s583
      %p585 = pneg %p261
      %p586 = pneg %p258
      %p587 = scmp.lt.s32.totalorder %s30, 5
      %s588 = scalar_select %p587, %s30, 5
      %s589 = scalar_lea.vmem %s9, %s588
      %p590 = pneg %p287
      %p591 = pneg %p284
      %p592 = scmp.lt.s32.totalorder %s30, 5
      %s593 = scalar_select %p592, %s30, 5
      %s594 = smul.addr %s593, 8
      %s595 = smul.addr %s594, 8
      %s596 = scalar_lea.vmem %s10, %s595
      %p597 = pneg %p313
      %p598 = pneg %p310
      %p599 = scmp.lt.s32.totalorder %s30, 5
      %s600 = scalar_select %p599, %s30, 5
      %s601 = scalar_lea.vmem %s11, %s600
      %p602 = pneg %p339
      %p603 = pneg %p336
      %p604 = scmp.lt.s32.totalorder %s30, 5
      %s605 = scalar_select %p604, %s30, 5
      %s606 = scalar_lea.vmem %s12, %s605
      %p607 = pneg %p365
      %p608 = pneg %p362
      %p609 = scmp.lt.s32.totalorder %s30, 5
      %s610 = scalar_select %p609, %s30, 5
      %s611 = scalar_lea.vmem %s13, %s610
      %p612 = pneg %p391
      %p613 = pneg %p388
      %p614 = pneg %p417
      %p615 = pneg %p414
      %s616 = smul.u32 4, %s29
      %p617 = scmp.lt.s32.totalorder %s616, 7
      %s618 = scalar_select %p617, %s616, 7
      %s619 = smul.addr %s618, 8
      %s620 = scalar_lea.vmem %s14, %s619
      %s621 = smul.u32 4, %s29
      %p622 = scmp.lt.s32.totalorder %s621, 7
      %s623 = scalar_select %p622, %s621, 7
      %s624 = smul.addr %s623, 8
      %s625 = scalar_lea.vmem %s0, %s624
      %s626 = smul.u32 4, %s29
      %p627 = scmp.lt.s32.totalorder %s30, 5
      %s628 = scalar_select %p627, %s30, 5
      %s629 = smul.addr %s628, 16
      %s630 = smul.addr %s629, 8
      %s631 = scalar_lea.vmem %s2, %s630
      %p632 = scmp.lt.s32.totalorder %s30, 5
      %s633 = scalar_select %p632, %s30, 5
      %s634 = smul.addr %s633, 2
      %s635 = scalar_lea.vmem %s3, %s634
      %p636 = scmp.lt.s32.totalorder %s30, 5
      %s637 = scalar_select %p636, %s30, 5
      %s638 = smul.addr %s637, 8
      %s639 = smul.addr %s638, 8
      %s640 = scalar_lea.vmem %s4, %s639
      %p641 = scmp.lt.s32.totalorder %s30, 5
      %s642 = scalar_select %p641, %s30, 5
      %s643 = scalar_lea.vmem %s5, %s642
      %p644 = scmp.lt.s32.totalorder %s30, 5
      %s645 = scalar_select %p644, %s30, 5
      %s646 = scalar_lea.vmem %s6, %s645
      %p647 = scmp.lt.s32.totalorder %s30, 5
      %s648 = scalar_select %p647, %s30, 5
      %s649 = scalar_lea.vmem %s7, %s648
      %p650 = scmp.lt.s32.totalorder %s30, 5
      %s651 = scalar_select %p650, %s30, 5
      %s652 = smul.addr %s651, 8
      %s653 = smul.addr %s652, 8
      %s654 = scalar_lea.vmem %s8, %s653
      %p655 = scmp.lt.s32.totalorder %s30, 5
      %s656 = scalar_select %p655, %s30, 5
      %s657 = scalar_lea.vmem %s9, %s656
      %p658 = scmp.lt.s32.totalorder %s30, 5
      %s659 = scalar_select %p658, %s30, 5
      %s660 = smul.addr %s659, 8
      %s661 = smul.addr %s660, 8
      %s662 = scalar_lea.vmem %s10, %s661
      %p663 = scmp.lt.s32.totalorder %s30, 5
      %s664 = scalar_select %p663, %s30, 5
      %s665 = scalar_lea.vmem %s11, %s664
      %p666 = scmp.lt.s32.totalorder %s30, 5
      %s667 = scalar_select %p666, %s30, 5
      %s668 = scalar_lea.vmem %s12, %s667
      %p669 = scmp.lt.s32.totalorder %s30, 5
      %s670 = scalar_select %p669, %s30, 5
      %s671 = scalar_lea.vmem %s13, %s670
      %s672 = smul.u32 4, %s29
      %p673 = scmp.lt.s32.totalorder %s672, 7
      %s674 = scalar_select %p673, %s672, 7
      %s675 = smul.addr %s674, 8
      %s676 = scalar_lea.vmem %s14, %s675
      %s677 = smul.u32 4, %s29
      %p678 = scmp.eq.s32.totalorder %s30, 0
      // Predicated region
      $region77: #{forward.6} parent=75 // pred_check
        %p679 = pneg %p678
      $region78: #{forward.6} parent=75 // pred_check_branch
        %681 = sbr.rel (%p679) target = $region80
      $region79: #{forward.6} parent=75 // pred_region
        %v682 = vld [vmem:[%s625] sm:$0xff]
        %v683 = vld [vmem:[%s625 + $0x8] sm:$0xff]
        %v684 = vld [vmem:[%s625 + $0x10] sm:$0xff]
        %v685 = vld [vmem:[%s625 + $0x18] sm:$0xff]
        %vm686 = vcmask 523264
        %687 = vst.msk [vmem:[%s676] sm:$0xff] %vm686, %v682
        %688 = vst.msk [vmem:[%s676 + $0x8] sm:$0xff] %vm686, %v683
        %689 = vst.msk [vmem:[%s676 + $0x10] sm:$0xff] %vm686, %v684
        %690 = vst.msk [vmem:[%s676 + $0x18] sm:$0xff] %vm686, %v685
      $region80: #{forward.6} parent=75 // pred_fallthru
        _
      %v691 = vld [vmem:[%s676] sm:$0xff]
      %v692 = vld [vmem:[%s676 + $0x8] sm:$0xff]
      %v693 = vld [vmem:[%s676 + $0x10] sm:$0xff]
      %v694 = vld [vmem:[%s676 + $0x18] sm:$0xff]
      %v695 = vld [vmem:[%s631] sm:$0xff]
      %v696 = vld [vmem:[%s631 + $0x8] sm:$0xff]
      %v697 = vld [vmem:[%s631 + $0x10] sm:$0xff]
      %v698 = vld [vmem:[%s631 + $0x18] sm:$0xff]
      %v699 = vld [vmem:[%s631 + $0x20] sm:$0xff]
      %v700 = vld [vmem:[%s631 + $0x28] sm:$0xff]
      %v701 = vld [vmem:[%s631 + $0x30] sm:$0xff]
      %v702 = vld [vmem:[%s631 + $0x38] sm:$0xff]
      %v703 = vld [vmem:[%s631 + $0x40] sm:$0xff]
      %v704 = vld [vmem:[%s631 + $0x48] sm:$0xff]
      %v705 = vld [vmem:[%s631 + $0x50] sm:$0xff]
      %v706 = vld [vmem:[%s631 + $0x58] sm:$0xff]
      %v707 = vld [vmem:[%s631 + $0x60] sm:$0xff]
      %v708 = vld [vmem:[%s631 + $0x68] sm:$0xff]
      %v709 = vld [vmem:[%s631 + $0x70] sm:$0xff]
      %v710 = vld [vmem:[%s631 + $0x78] sm:$0xff]
      %v711 = vld [vmem:[%s635] sm:$0x3]
      %v713 = vlaneseq
      %v714 = vshrl.u32 %v713, 7
      %v715 = vsub.s32 0, %v714
      %v716 = vrot.slane %v711, %v715
      %v717 = vlaneseq
      %v718 = vshrl.u32 %v717, 7
      %v719 = vsub.s32 1, %v718
      %v720 = vrot.slane %v711, %v719
      %vm723 = vcmask 523264
      %v725 = vsel %vm723, %v691, 0
      %v728 = vsel %vm723, %v692, 0
      %v731 = vsel %vm723, %v693, 0
      %v734 = vsel %vm723, %v694, 0
      %736 = vmatprep.subr.mxu0 %v696
      %737 = vmatpush1.msra.mxu0 %v695
      %738 = vmatprep.subr.mxu0 %v698
      %739 = vmatpush1.msra.mxu0 %v697
      %740 = vmatprep.subr.mxu0 %v700
      %741 = vmatpush1.msra.mxu0 %v699
      %742 = vmatprep.subr.mxu0 %v702
      %743 = vmatpush1.msra.mxu0 %v701
      %744 = vmatprep.subr.mxu0 %v704
      %745 = vmatpush1.msra.mxu0 %v703
      %746 = vmatprep.subr.mxu0 %v706
      %747 = vmatpush1.msra.mxu0 %v705
      %748 = vmatprep.subr.mxu0 %v708
      %749 = vmatpush1.msra.mxu0 %v707
      %750 = vmatprep.subr.mxu0 %v710
      %751 = vmatpush1.msra.mxu0 %v709
      %752 = vmatprep.subr.mxu0 0.0
      %753 = vmatpush1.msra.mxu0 0.0
      %754 = vmatprep.subr.mxu0 0.0
      %755 = vmatpush1.msra.mxu0 0.0
      %756 = vmatprep.subr.mxu0 0.0
      %757 = vmatpush1.msra.mxu0 0.0
      %758 = vmatprep.subr.mxu0 0.0
      %759 = vmatpush1.msra.mxu0 0.0
      %760 = vmatprep.subr.mxu0 0.0
      %761 = vmatpush1.msra.mxu0 0.0
      %762 = vmatprep.subr.mxu0 0.0
      %763 = vmatpush1.msra.mxu0 0.0
      %764 = vmatprep.subr.mxu0 0.0
      %765 = vmatpush1.msra.mxu0 0.0
      %766 = vmatprep.subr.mxu0 0.0
      %767 = vmatpush1.msra.mxu0 0.0
      %768 = vmatprep.subr.mxu0 0.0
      %769 = vmatpush1.msra.mxu0 0.0
      %770 = vmatprep.subr.mxu0 0.0
      %771 = vmatpush1.msra.mxu0 0.0
      %772 = vmatprep.subr.mxu0 0.0
      %773 = vmatpush1.msra.mxu0 0.0
      %774 = vmatprep.subr.mxu0 0.0
      %775 = vmatpush1.msra.mxu0 0.0
      %776 = vmatprep.subr.mxu0 0.0
      %777 = vmatpush1.msra.mxu0 0.0
      %778 = vmatprep.subr.mxu0 0.0
      %779 = vmatpush1.msra.mxu0 0.0
      %780 = vmatprep.subr.mxu0 0.0
      %781 = vmatpush1.msra.mxu0 0.0
      %782 = vmatprep.subr.mxu0 0.0
      %783 = vmatpush1.msra.mxu0 0.0
      %784 = vmatprep.subr.mxu0 0.0
      %785 = vmatpush1.msra.mxu0 0.0
      %786 = vmatprep.subr.mxu0 0.0
      %787 = vmatpush1.msra.mxu0 0.0
      %788 = vmatprep.subr.mxu0 0.0
      %789 = vmatpush1.msra.mxu0 0.0
      %790 = vmatprep.subr.mxu0 0.0
      %791 = vmatpush1.msra.mxu0 0.0
      %792 = vmatprep.subr.mxu0 0.0
      %793 = vmatpush1.msra.mxu0 0.0
      %794 = vmatprep.subr.mxu0 0.0
      %795 = vmatpush1.msra.mxu0 0.0
      %796 = vmatprep.subr.mxu0 0.0
      %797 = vmatpush1.msra.mxu0 0.0
      %798 = vmatprep.subr.mxu0 0.0
      %799 = vmatpush1.msra.mxu0 0.0
      %800 = vmatprep.mubr.f32.mxu0 0.0
      %801 = vmatmul.mubr.f32.gmra.mrb[0].mxu0 %v725
      %v802 = vpop.f32.mrb[0].mxu0
      %v803 = vadd.f32 %v716, %v802
      %v804 = vpop.f32.mrb[0].mxu0
      %v805 = vadd.f32 %v720, %v804
      %806 = vmatprep.mubr.f32.mxu0 0.0
      %807 = vmatmul.mubr.f32.gmra.mrb[0].mxu0 %v728
      %v808 = vpop.f32.mrb[0].mxu0
      %v809 = vadd.f32 %v716, %v808
      %v810 = vpop.f32.mrb[0].mxu0
      %v811 = vadd.f32 %v720, %v810
      %812 = vmatprep.mubr.f32.mxu0 0.0
      %813 = vmatmul.mubr.f32.gmra.mrb[0].mxu0 %v731
      %v814 = vpop.f32.mrb[0].mxu0
      %v815 = vadd.f32 %v716, %v814
      %v816 = vpop.f32.mrb[0].mxu0
      %v817 = vadd.f32 %v720, %v816
      %818 = vmatprep.mubr.f32.mxu0 0.0
      %819 = vmatmul.mubr.f32.gmra.mrb[0].mxu0 %v734
      %v820 = vpop.f32.mrb[0].mxu0
      %v821 = vadd.f32 %v716, %v820
      %v822 = vpop.f32.mrb[0].mxu0
      %v823 = vadd.f32 %v720, %v822
      %824 = vdwg.mxu0
      %v825 = vld [vmem:[%s1] sm:$0xff]
      %v826 = vld [vmem:[%s1 + $0x8] sm:$0xff]
      %v827 = vld [vmem:[%s1 + $0x10] sm:$0xff]
      %v828 = vld [vmem:[%s1 + $0x18] sm:$0xff]
      %833 = vrot.lane.b32.xlu0 %v803, 64
      %v834 = vpop.permute.xlu0 %833
      %835 = vrot.lane.b32.xlu0 %v809, 64
      %v836 = vpop.permute.xlu0 %835
      %837 = vrot.lane.b32.xlu0 %v815, 64
      %v838 = vpop.permute.xlu0 %837
      %839 = vrot.lane.b32.xlu0 %v821, 64
      %v840 = vpop.permute.xlu0 %839
      %vm841 = vcmask 64512
      %v842 = vsel %vm841, %v803, 0
      %v844 = vsel %vm841, %v809, 0
      %v846 = vsel %vm841, %v815, 0
      %v848 = vsel %vm841, %v821, 0
      %v850 = vsel %vm841, %v834, 0
      %v852 = vsel %vm841, %v836, 0
      %v854 = vsel %vm841, %v838, 0
      %v856 = vsel %vm841, %v840, 0
      %858 = vmatprep.subr.mxu0 0.0
      %859 = vmatpush1.xpose.msra.mxu0 %v850
      %860 = vmatprep.subr.mxu0 0.0
      %861 = vmatpush1.xpose.msra.mxu0 %v852
      %862 = vmatprep.subr.mxu0 0.0
      %863 = vmatpush1.xpose.msra.mxu0 %v854
      %864 = vmatprep.subr.mxu0 0.0
      %865 = vmatpush1.xpose.msra.mxu0 %v856
      %866 = vmatprep.subr.mxu0 0.0
      %867 = vmatpush1.xpose.msra.mxu0 0.0
      %868 = vmatprep.subr.mxu0 0.0
      %869 = vmatpush1.xpose.msra.mxu0 0.0
      %870 = vmatprep.subr.mxu0 0.0
      %871 = vmatpush1.xpose.msra.mxu0 0.0
      %872 = vmatprep.subr.mxu0 0.0
      %873 = vmatpush1.xpose.msra.mxu0 0.0
      %874 = vmatprep.subr.mxu0 0.0
      %875 = vmatpush1.xpose.msra.mxu0 0.0
      %876 = vmatprep.subr.mxu0 0.0
      %877 = vmatpush1.xpose.msra.mxu0 0.0
      %878 = vmatprep.subr.mxu0 0.0
      %879 = vmatpush1.xpose.msra.mxu0 0.0
      %880 = vmatprep.subr.mxu0 0.0
      %881 = vmatpush1.xpose.msra.mxu0 0.0
      %882 = vmatprep.subr.mxu0 0.0
      %883 = vmatpush1.xpose.msra.mxu0 0.0
      %884 = vmatprep.subr.mxu0 0.0
      %885 = vmatpush1.xpose.msra.mxu0 0.0
      %886 = vmatprep.subr.mxu0 0.0
      %887 = vmatpush1.xpose.msra.mxu0 0.0
      %888 = vmatprep.subr.mxu0 0.0
      %889 = vmatpush1.xpose.msra.mxu0 0.0
      %890 = vmatprep.subr.mxu0 0.0
      %891 = vmatpush1.xpose.msra.mxu0 0.0
      %892 = vmatprep.subr.mxu0 0.0
      %893 = vmatpush1.xpose.msra.mxu0 0.0
      %894 = vmatprep.subr.mxu0 0.0
      %895 = vmatpush1.xpose.msra.mxu0 0.0
      %896 = vmatprep.subr.mxu0 0.0
      %897 = vmatpush1.xpose.msra.mxu0 0.0
      %898 = vmatprep.subr.mxu0 0.0
      %899 = vmatpush1.xpose.msra.mxu0 0.0
      %900 = vmatprep.subr.mxu0 0.0
      %901 = vmatpush1.xpose.msra.mxu0 0.0
      %902 = vmatprep.subr.mxu0 0.0
      %903 = vmatpush1.xpose.msra.mxu0 0.0
      %904 = vmatprep.subr.mxu0 0.0
      %905 = vmatpush1.xpose.msra.mxu0 0.0
      %906 = vmatprep.subr.mxu0 0.0
      %907 = vmatpush1.xpose.msra.mxu0 0.0
      %908 = vmatprep.subr.mxu0 0.0
      %909 = vmatpush1.xpose.msra.mxu0 0.0
      %910 = vmatprep.subr.mxu0 0.0
      %911 = vmatpush1.xpose.msra.mxu0 0.0
      %912 = vmatprep.subr.mxu0 0.0
      %913 = vmatpush1.xpose.msra.mxu0 0.0
      %914 = vmatprep.subr.mxu0 0.0
      %915 = vmatpush1.xpose.msra.mxu0 0.0
      %916 = vmatprep.subr.mxu0 0.0
      %917 = vmatpush1.xpose.msra.mxu0 0.0
      %918 = vmatprep.subr.mxu0 0.0
      %919 = vmatpush1.xpose.msra.mxu0 0.0
      %920 = vmatprep.subr.mxu0 0.0
      %921 = vmatpush1.xpose.msra.mxu0 0.0
      %922 = vmatprep.mubr.f32.mxu0 0.0
      %923 = vmatmul.mubr.f32.gmra.mrb[0].mxu0 %v842
      %v924 = vpop.f32.mrb[0].mxu0
      %v925 = vadd.f32 0.0, %v924
      %v926 = vpop.f32.mrb[0].mxu0
      %927 = vmatprep.mubr.f32.mxu0 0.0
      %928 = vmatmul.mubr.f32.gmra.mrb[0].mxu0 %v844
      %v929 = vpop.f32.mrb[0].mxu0
      %v930 = vadd.f32 0.0, %v929
      %v931 = vpop.f32.mrb[0].mxu0
      %932 = vmatprep.mubr.f32.mxu0 0.0
      %933 = vmatmul.mubr.f32.gmra.mrb[0].mxu0 %v846
      %v934 = vpop.f32.mrb[0].mxu0
      %v935 = vadd.f32 0.0, %v934
      %v936 = vpop.f32.mrb[0].mxu0
      %937 = vmatprep.mubr.f32.mxu0 0.0
      %938 = vmatmul.mubr.f32.gmra.mrb[0].mxu0 %v848
      %v939 = vpop.f32.mrb[0].mxu0
      %v940 = vadd.f32 0.0, %v939
      %v941 = vpop.f32.mrb[0].mxu0
      %942 = vdwg.mxu0
      %v943 = vmul.f32 %v925, 0.35355338
      %v944 = vmul.f32 %v930, 0.35355338
      %v945 = vmul.f32 %v935, 0.35355338
      %v946 = vmul.f32 %v940, 0.35355338
      %v947 = vadd.f32 %v943, %v825
      %v948 = vadd.f32 %v944, %v826
      %v949 = vadd.f32 %v945, %v827
      %v950 = vadd.f32 %v946, %v828
      %vm951 = vcmask 261120
      %v952 = vsel %vm951, %v947, -inf
      %953 = vmax.xlane.f32.xlu0 %v952
      %v954 = vpop.xlane.xlu0 %953
      %v955 = vsel %vm951, %v948, -inf
      %956 = vmax.xlane.f32.xlu0 %v955
      %v957 = vpop.xlane.xlu0 %956
      %v958 = vsel %vm951, %v949, -inf
      %959 = vmax.xlane.f32.xlu0 %v958
      %v960 = vpop.xlane.xlu0 %959
      %v961 = vsel %vm951, %v950, -inf
      %962 = vmax.xlane.f32.xlu0 %v961
      %v963 = vpop.xlane.xlu0 %962
      %v964 = vsub.f32 %v947, %v954
      %v965 = vsub.f32 %v948, %v957
      %v966 = vsub.f32 %v949, %v960
      %v967 = vsub.f32 %v950, %v963
      %v968 = vmul.f32 %v964, 1.442695
      %v969 = vpow.pop %v968
      %v970 = vmul.f32 %v965, 1.442695
      %v971 = vpow.pop %v970
      %v972 = vmul.f32 %v966, 1.442695
      %v973 = vpow.pop %v972
      %v974 = vmul.f32 %v967, 1.442695
      %v975 = vpow.pop %v974
      %v976 = vsel %vm951, %v969, 0.0
      %977 = vadd.xlane.f32.xlu0 %v976
      %v978 = vpop.xlane.xlu0 %977
      %v979 = vsel %vm951, %v971, 0.0
      %980 = vadd.xlane.f32.xlu0 %v979
      %v981 = vpop.xlane.xlu0 %980
      %v982 = vsel %vm951, %v973, 0.0
      %983 = vadd.xlane.f32.xlu0 %v982
      %v984 = vpop.xlane.xlu0 %983
      %v985 = vsel %vm951, %v975, 0.0
      %986 = vadd.xlane.f32.xlu0 %v985
      %v987 = vpop.xlane.xlu0 %986
      %v988 = vrcp.pop %v978
      %v989 = vrcp.pop %v981
      %v990 = vrcp.pop %v984
      %v991 = vrcp.pop %v987
      %v992 = vmul.f32 %v969, %v988
      %v993 = vmul.f32 %v971, %v989
      %v994 = vmul.f32 %v973, %v990
      %v995 = vmul.f32 %v975, %v991
      %v997 = vsel %vm951, %v992, 0
      %v1000 = vsel %vm951, %v993, 0
      %v1003 = vsel %vm951, %v994, 0
      %v1006 = vsel %vm951, %v995, 0
      %1008 = vmatprep.subr.mxu0 0.0
      %1009 = vmatpush1.msra.mxu0 %v805
      %1010 = vmatprep.subr.mxu0 0.0
      %1011 = vmatpush1.msra.mxu0 %v811
      %1012 = vmatprep.subr.mxu0 0.0
      %1013 = vmatpush1.msra.mxu0 %v817
      %1014 = vmatprep.subr.mxu0 0.0
      %1015 = vmatpush1.msra.mxu0 %v823
      %1016 = vmatprep.subr.mxu0 0.0
      %1017 = vmatpush1.msra.mxu0 0.0
      %1018 = vmatprep.subr.mxu0 0.0
      %1019 = vmatpush1.msra.mxu0 0.0
      %1020 = vmatprep.subr.mxu0 0.0
      %1021 = vmatpush1.msra.mxu0 0.0
      %1022 = vmatprep.subr.mxu0 0.0
      %1023 = vmatpush1.msra.mxu0 0.0
      %1024 = vmatprep.subr.mxu0 0.0
      %1025 = vmatpush1.msra.mxu0 0.0
      %1026 = vmatprep.subr.mxu0 0.0
      %1027 = vmatpush1.msra.mxu0 0.0
      %1028 = vmatprep.subr.mxu0 0.0
      %1029 = vmatpush1.msra.mxu0 0.0
      %1030 = vmatprep.subr.mxu0 0.0
      %1031 = vmatpush1.msra.mxu0 0.0
      %1032 = vmatprep.subr.mxu0 0.0
      %1033 = vmatpush1.msra.mxu0 0.0
      %1034 = vmatprep.subr.mxu0 0.0
      %1035 = vmatpush1.msra.mxu0 0.0
      %1036 = vmatprep.subr.mxu0 0.0
      %1037 = vmatpush1.msra.mxu0 0.0
      %1038 = vmatprep.subr.mxu0 0.0
      %1039 = vmatpush1.msra.mxu0 0.0
      %1040 = vmatprep.subr.mxu0 0.0
      %1041 = vmatpush1.msra.mxu0 0.0
      %1042 = vmatprep.subr.mxu0 0.0
      %1043 = vmatpush1.msra.mxu0 0.0
      %1044 = vmatprep.subr.mxu0 0.0
      %1045 = vmatpush1.msra.mxu0 0.0
      %1046 = vmatprep.subr.mxu0 0.0
      %1047 = vmatpush1.msra.mxu0 0.0
      %1048 = vmatprep.subr.mxu0 0.0
      %1049 = vmatpush1.msra.mxu0 0.0
      %1050 = vmatprep.subr.mxu0 0.0
      %1051 = vmatpush1.msra.mxu0 0.0
      %1052 = vmatprep.subr.mxu0 0.0
      %1053 = vmatpush1.msra.mxu0 0.0
      %1054 = vmatprep.subr.mxu0 0.0
      %1055 = vmatpush1.msra.mxu0 0.0
      %1056 = vmatprep.subr.mxu0 0.0
      %1057 = vmatpush1.msra.mxu0 0.0
      %1058 = vmatprep.subr.mxu0 0.0
      %1059 = vmatpush1.msra.mxu0 0.0
      %1060 = vmatprep.subr.mxu0 0.0
      %1061 = vmatpush1.msra.mxu0 0.0
      %1062 = vmatprep.subr.mxu0 0.0
      %1063 = vmatpush1.msra.mxu0 0.0
      %1064 = vmatprep.subr.mxu0 0.0
      %1065 = vmatpush1.msra.mxu0 0.0
      %1066 = vmatprep.subr.mxu0 0.0
      %1067 = vmatpush1.msra.mxu0 0.0
      %1068 = vmatprep.subr.mxu0 0.0
      %1069 = vmatpush1.msra.mxu0 0.0
      %1070 = vmatprep.subr.mxu0 0.0
      %1071 = vmatpush1.msra.mxu0 0.0
      %1072 = vmatprep.mubr.f32.mxu0 0.0
      %1073 = vmatmul.mubr.f32.gmra.mrb[0].mxu0 %v997
      %v1074 = vpop.f32.mrb[0].mxu0
      %v1075 = vadd.f32 0.0, %v1074
      %v1076 = vpop.f32.mrb[0].mxu0
      %1077 = vmatprep.mubr.f32.mxu0 0.0
      %1078 = vmatmul.mubr.f32.gmra.mrb[0].mxu0 %v1000
      %v1079 = vpop.f32.mrb[0].mxu0
      %v1080 = vadd.f32 0.0, %v1079
      %v1081 = vpop.f32.mrb[0].mxu0
      %1082 = vmatprep.mubr.f32.mxu0 0.0
      %1083 = vmatmul.mubr.f32.gmra.mrb[0].mxu0 %v1003
      %v1084 = vpop.f32.mrb[0].mxu0
      %v1085 = vadd.f32 0.0, %v1084
      %v1086 = vpop.f32.mrb[0].mxu0
      %1087 = vmatprep.mubr.f32.mxu0 0.0
      %1088 = vmatmul.mubr.f32.gmra.mrb[0].mxu0 %v1006
      %v1089 = vpop.f32.mrb[0].mxu0
      %v1090 = vadd.f32 0.0, %v1089
      %v1091 = vpop.f32.mrb[0].mxu0
      %1092 = vdwg.mxu0
      %1093 = vst.msk [vmem:[#allocation2] sm:$0xff] %vm841, %v1075
      %1094 = vst.msk [vmem:[#allocation2 + $0x8] sm:$0xff] %vm841, %v1080
      %1095 = vst.msk [vmem:[#allocation2 + $0x10] sm:$0xff] %vm841, %v1085
      %1096 = vst.msk [vmem:[#allocation2 + $0x18] sm:$0xff] %vm841, %v1090
      %1097 = vrot.lane.b32.xlu0 %v803, 120
      %v1098 = vpop.permute.xlu0 %1097
      %1099 = vrot.lane.b32.xlu0 %v809, 120
      %v1100 = vpop.permute.xlu0 %1099
      %1101 = vrot.lane.b32.xlu0 %v815, 120
      %v1102 = vpop.permute.xlu0 %1101
      %1103 = vrot.lane.b32.xlu0 %v821, 120
      %v1104 = vpop.permute.xlu0 %1103
      %1105 = vrot.lane.b32.xlu0 %v803, 56
      %v1106 = vpop.permute.xlu0 %1105
      %1107 = vrot.lane.b32.xlu0 %v809, 56
      %v1108 = vpop.permute.xlu0 %1107
      %1109 = vrot.lane.b32.xlu0 %v815, 56
      %v1110 = vpop.permute.xlu0 %1109
      %1111 = vrot.lane.b32.xlu0 %v821, 56
      %v1112 = vpop.permute.xlu0 %1111
      %v1113 = vsel %vm841, %v1098, 0
      %v1115 = vsel %vm841, %v1100, 0
      %v1117 = vsel %vm841, %v1102, 0
      %v1119 = vsel %vm841, %v1104, 0
      %v1121 = vsel %vm841, %v1106, 0
      %v1123 = vsel %vm841, %v1108, 0
      %v1125 = vsel %vm841, %v1110, 0
      %v1127 = vsel %vm841, %v1112, 0
      %1129 = vmatprep.subr.mxu0 0.0
      %1130 = vmatpush1.xpose.msra.mxu0 %v1121
      %1131 = vmatprep.subr.mxu0 0.0
      %1132 = vmatpush1.xpose.msra.mxu0 %v1123
      %1133 = vmatprep.subr.mxu0 0.0
      %1134 = vmatpush1.xpose.msra.mxu0 %v1125
      %1135 = vmatprep.subr.mxu0 0.0
      %1136 = vmatpush1.xpose.msra.mxu0 %v1127
      %1137 = vmatprep.subr.mxu0 0.0
      %1138 = vmatpush1.xpose.msra.mxu0 0.0
      %1139 = vmatprep.subr.mxu0 0.0
      %1140 = vmatpush1.xpose.msra.mxu0 0.0
      %1141 = vmatprep.subr.mxu0 0.0
      %1142 = vmatpush1.xpose.msra.mxu0 0.0
      %1143 = vmatprep.subr.mxu0 0.0
      %1144 = vmatpush1.xpose.msra.mxu0 0.0
      %1145 = vmatprep.subr.mxu0 0.0
      %1146 = vmatpush1.xpose.msra.mxu0 0.0
      %1147 = vmatprep.subr.mxu0 0.0
      %1148 = vmatpush1.xpose.msra.mxu0 0.0
      %1149 = vmatprep.subr.mxu0 0.0
      %1150 = vmatpush1.xpose.msra.mxu0 0.0
      %1151 = vmatprep.subr.mxu0 0.0
      %1152 = vmatpush1.xpose.msra.mxu0 0.0
      %1153 = vmatprep.subr.mxu0 0.0
      %1154 = vmatpush1.xpose.msra.mxu0 0.0
      %1155 = vmatprep.subr.mxu0 0.0
      %1156 = vmatpush1.xpose.msra.mxu0 0.0
      %1157 = vmatprep.subr.mxu0 0.0
      %1158 = vmatpush1.xpose.msra.mxu0 0.0
      %1159 = vmatprep.subr.mxu0 0.0
      %1160 = vmatpush1.xpose.msra.mxu0 0.0
      %1161 = vmatprep.subr.mxu0 0.0
      %1162 = vmatpush1.xpose.msra.mxu0 0.0
      %1163 = vmatprep.subr.mxu0 0.0
      %1164 = vmatpush1.xpose.msra.mxu0 0.0
      %1165 = vmatprep.subr.mxu0 0.0
      %1166 = vmatpush1.xpose.msra.mxu0 0.0
      %1167 = vmatprep.subr.mxu0 0.0
      %1168 = vmatpush1.xpose.msra.mxu0 0.0
      %1169 = vmatprep.subr.mxu0 0.0
      %1170 = vmatpush1.xpose.msra.mxu0 0.0
      %1171 = vmatprep.subr.mxu0 0.0
      %1172 = vmatpush1.xpose.msra.mxu0 0.0
      %1173 = vmatprep.subr.mxu0 0.0
      %1174 = vmatpush1.xpose.msra.mxu0 0.0
      %1175 = vmatprep.subr.mxu0 0.0
      %1176 = vmatpush1.xpose.msra.mxu0 0.0
      %1177 = vmatprep.subr.mxu0 0.0
      %1178 = vmatpush1.xpose.msra.mxu0 0.0
      %1179 = vmatprep.subr.mxu0 0.0
      %1180 = vmatpush1.xpose.msra.mxu0 0.0
      %1181 = vmatprep.subr.mxu0 0.0
      %1182 = vmatpush1.xpose.msra.mxu0 0.0
      %1183 = vmatprep.subr.mxu0 0.0
      %1184 = vmatpush1.xpose.msra.mxu0 0.0
      %1185 = vmatprep.subr.mxu0 0.0
      %1186 = vmatpush1.xpose.msra.mxu0 0.0
      %1187 = vmatprep.subr.mxu0 0.0
      %1188 = vmatpush1.xpose.msra.mxu0 0.0
      %1189 = vmatprep.subr.mxu0 0.0
      %1190 = vmatpush1.xpose.msra.mxu0 0.0
      %1191 = vmatprep.subr.mxu0 0.0
      %1192 = vmatpush1.xpose.msra.mxu0 0.0
      %1193 = vmatprep.mubr.f32.mxu0 0.0
      %1194 = vmatmul.mubr.f32.gmra.mrb[0].mxu0 %v1113
      %v1195 = vpop.f32.mrb[0].mxu0
      %v1196 = vadd.f32 0.0, %v1195
      %v1197 = vpop.f32.mrb[0].mxu0
      %1198 = vmatprep.mubr.f32.mxu0 0.0
      %1199 = vmatmul.mubr.f32.gmra.mrb[0].mxu0 %v1115
      %v1200 = vpop.f32.mrb[0].mxu0
      %v1201 = vadd.f32 0.0, %v1200
      %v1202 = vpop.f32.mrb[0].mxu0
      %1203 = vmatprep.mubr.f32.mxu0 0.0
      %1204 = vmatmul.mubr.f32.gmra.mrb[0].mxu0 %v1117
      %v1205 = vpop.f32.mrb[0].mxu0
      %v1206 = vadd.f32 0.0, %v1205
      %v1207 = vpop.f32.mrb[0].mxu0
      %1208 = vmatprep.mubr.f32.mxu0 0.0
      %1209 = vmatmul.mubr.f32.gmra.mrb[0].mxu0 %v1119
      %v1210 = vpop.f32.mrb[0].mxu0
      %v1211 = vadd.f32 0.0, %v1210
      %v1212 = vpop.f32.mrb[0].mxu0
      %1213 = vdwg.mxu0
      %v1214 = vmul.f32 %v1196, 0.35355338
      %v1215 = vmul.f32 %v1201, 0.35355338
      %v1216 = vmul.f32 %v1206, 0.35355338
      %v1217 = vmul.f32 %v1211, 0.35355338
      %v1218 = vadd.f32 %v1214, %v825
      %v1219 = vadd.f32 %v1215, %v826
      %v1220 = vadd.f32 %v1216, %v827
      %v1221 = vadd.f32 %v1217, %v828
      %v1222 = vsel %vm951, %v1218, -inf
      %1223 = vmax.xlane.f32.xlu0 %v1222
      %v1224 = vpop.xlane.xlu0 %1223
      %v1225 = vsel %vm951, %v1219, -inf
      %1226 = vmax.xlane.f32.xlu0 %v1225
      %v1227 = vpop.xlane.xlu0 %1226
      %v1228 = vsel %vm951, %v1220, -inf
      %1229 = vmax.xlane.f32.xlu0 %v1228
      %v1230 = vpop.xlane.xlu0 %1229
      %v1231 = vsel %vm951, %v1221, -inf
      %1232 = vmax.xlane.f32.xlu0 %v1231
      %v1233 = vpop.xlane.xlu0 %1232
      %v1234 = vsub.f32 %v1218, %v1224
      %v1235 = vsub.f32 %v1219, %v1227
      %v1236 = vsub.f32 %v1220, %v1230
      %v1237 = vsub.f32 %v1221, %v1233
      %v1238 = vmul.f32 %v1234, 1.442695
      %v1239 = vpow.pop %v1238
      %v1240 = vmul.f32 %v1235, 1.442695
      %v1241 = vpow.pop %v1240
      %v1242 = vmul.f32 %v1236, 1.442695
      %v1243 = vpow.pop %v1242
      %v1244 = vmul.f32 %v1237, 1.442695
      %v1245 = vpow.pop %v1244
      %v1246 = vsel %vm951, %v1239, 0.0
      %1247 = vadd.xlane.f32.xlu0 %v1246
      %v1248 = vpop.xlane.xlu0 %1247
      %v1249 = vsel %vm951, %v1241, 0.0
      %1250 = vadd.xlane.f32.xlu0 %v1249
      %v1251 = vpop.xlane.xlu0 %1250
      %v1252 = vsel %vm951, %v1243, 0.0
      %1253 = vadd.xlane.f32.xlu0 %v1252
      %v1254 = vpop.xlane.xlu0 %1253
      %v1255 = vsel %vm951, %v1245, 0.0
      %1256 = vadd.xlane.f32.xlu0 %v1255
      %v1257 = vpop.xlane.xlu0 %1256
      %v1258 = vrcp.pop %v1248
      %v1259 = vrcp.pop %v1251
      %v1260 = vrcp.pop %v1254
      %v1261 = vrcp.pop %v1257
      %v1262 = vmul.f32 %v1239, %v1258
      %v1263 = vmul.f32 %v1241, %v1259
      %v1264 = vmul.f32 %v1243, %v1260
      %v1265 = vmul.f32 %v1245, %v1261
      %1270 = vrot.lane.b32.xlu0 %v805, 120
      %v1271 = vpop.permute.xlu0 %1270
      %1272 = vrot.lane.b32.xlu0 %v811, 120
      %v1273 = vpop.permute.xlu0 %1272
      %1274 = vrot.lane.b32.xlu0 %v817, 120
      %v1275 = vpop.permute.xlu0 %1274
      %1276 = vrot.lane.b32.xlu0 %v823, 120
      %v1277 = vpop.permute.xlu0 %1276
      %v1283 = vsel %vm951, %v1262, 0
      %v1286 = vsel %vm951, %v1263, 0
      %v1289 = vsel %vm951, %v1264, 0
      %v1292 = vsel %vm951, %v1265, 0
      %1294 = vmatprep.subr.mxu0 0.0
      %1295 = vmatpush1.msra.mxu0 %v1271
      %1296 = vmatprep.subr.mxu0 0.0
      %1297 = vmatpush1.msra.mxu0 %v1273
      %1298 = vmatprep.subr.mxu0 0.0
      %1299 = vmatpush1.msra.mxu0 %v1275
      %1300 = vmatprep.subr.mxu0 0.0
      %1301 = vmatpush1.msra.mxu0 %v1277
      %1302 = vmatprep.subr.mxu0 0.0
      %1303 = vmatpush1.msra.mxu0 0.0
      %1304 = vmatprep.subr.mxu0 0.0
      %1305 = vmatpush1.msra.mxu0 0.0
      %1306 = vmatprep.subr.mxu0 0.0
      %1307 = vmatpush1.msra.mxu0 0.0
      %1308 = vmatprep.subr.mxu0 0.0
      %1309 = vmatpush1.msra.mxu0 0.0
      %1310 = vmatprep.subr.mxu0 0.0
      %1311 = vmatpush1.msra.mxu0 0.0
      %1312 = vmatprep.subr.mxu0 0.0
      %1313 = vmatpush1.msra.mxu0 0.0
      %1314 = vmatprep.subr.mxu0 0.0
      %1315 = vmatpush1.msra.mxu0 0.0
      %1316 = vmatprep.subr.mxu0 0.0
      %1317 = vmatpush1.msra.mxu0 0.0
      %1318 = vmatprep.subr.mxu0 0.0
      %1319 = vmatpush1.msra.mxu0 0.0
      %1320 = vmatprep.subr.mxu0 0.0
      %1321 = vmatpush1.msra.mxu0 0.0
      %1322 = vmatprep.subr.mxu0 0.0
      %1323 = vmatpush1.msra.mxu0 0.0
      %1324 = vmatprep.subr.mxu0 0.0
      %1325 = vmatpush1.msra.mxu0 0.0
      %1326 = vmatprep.subr.mxu0 0.0
      %1327 = vmatpush1.msra.mxu0 0.0
      %1328 = vmatprep.subr.mxu0 0.0
      %1329 = vmatpush1.msra.mxu0 0.0
      %1330 = vmatprep.subr.mxu0 0.0
      %1331 = vmatpush1.msra.mxu0 0.0
      %1332 = vmatprep.subr.mxu0 0.0
      %1333 = vmatpush1.msra.mxu0 0.0
      %1334 = vmatprep.subr.mxu0 0.0
      %1335 = vmatpush1.msra.mxu0 0.0
      %1336 = vmatprep.subr.mxu0 0.0
      %1337 = vmatpush1.msra.mxu0 0.0
      %1338 = vmatprep.subr.mxu0 0.0
      %1339 = vmatpush1.msra.mxu0 0.0
      %1340 = vmatprep.subr.mxu0 0.0
      %1341 = vmatpush1.msra.mxu0 0.0
      %1342 = vmatprep.subr.mxu0 0.0
      %1343 = vmatpush1.msra.mxu0 0.0
      %1344 = vmatprep.subr.mxu0 0.0
      %1345 = vmatpush1.msra.mxu0 0.0
      %1346 = vmatprep.subr.mxu0 0.0
      %1347 = vmatpush1.msra.mxu0 0.0
      %1348 = vmatprep.subr.mxu0 0.0
      %1349 = vmatpush1.msra.mxu0 0.0
      %1350 = vmatprep.subr.mxu0 0.0
      %1351 = vmatpush1.msra.mxu0 0.0
      %1352 = vmatprep.subr.mxu0 0.0
      %1353 = vmatpush1.msra.mxu0 0.0
      %1354 = vmatprep.subr.mxu0 0.0
      %1355 = vmatpush1.msra.mxu0 0.0
      %1356 = vmatprep.subr.mxu0 0.0
      %1357 = vmatpush1.msra.mxu0 0.0
      %1358 = vmatprep.mubr.f32.mxu0 0.0
      %1359 = vmatmul.mubr.f32.gmra.mrb[0].mxu0 %v1283
      %v1360 = vpop.f32.mrb[0].mxu0
      %v1361 = vadd.f32 0.0, %v1360
      %v1362 = vpop.f32.mrb[0].mxu0
      %1363 = vmatprep.mubr.f32.mxu0 0.0
      %1364 = vmatmul.mubr.f32.gmra.mrb[0].mxu0 %v1286
      %v1365 = vpop.f32.mrb[0].mxu0
      %v1366 = vadd.f32 0.0, %v1365
      %v1367 = vpop.f32.mrb[0].mxu0
      %1368 = vmatprep.mubr.f32.mxu0 0.0
      %1369 = vmatmul.mubr.f32.gmra.mrb[0].mxu0 %v1289
      %v1370 = vpop.f32.mrb[0].mxu0
      %v1371 = vadd.f32 0.0, %v1370
      %v1372 = vpop.f32.mrb[0].mxu0
      %1373 = vmatprep.mubr.f32.mxu0 0.0
      %1374 = vmatmul.mubr.f32.gmra.mrb[0].mxu0 %v1292
      %v1375 = vpop.f32.mrb[0].mxu0
      %v1376 = vadd.f32 0.0, %v1375
      %v1377 = vpop.f32.mrb[0].mxu0
      %1378 = vdwg.mxu0
      %1383 = vrot.lane.b32.xlu0 %v1361, 8
      %v1384 = vpop.permute.xlu0 %1383
      %1385 = vrot.lane.b32.xlu0 %v1366, 8
      %v1386 = vpop.permute.xlu0 %1385
      %1387 = vrot.lane.b32.xlu0 %v1371, 8
      %v1388 = vpop.permute.xlu0 %1387
      %1389 = vrot.lane.b32.xlu0 %v1376, 8
      %v1390 = vpop.permute.xlu0 %1389
      %vm1395 = vcmask 130112
      %1396 = vst.msk [vmem:[#allocation2] sm:$0xff] %vm1395, %v1384
      %1397 = vst.msk [vmem:[#allocation2 + $0x8] sm:$0xff] %vm1395, %v1386
      %1398 = vst.msk [vmem:[#allocation2 + $0x10] sm:$0xff] %vm1395, %v1388
      %1399 = vst.msk [vmem:[#allocation2 + $0x18] sm:$0xff] %vm1395, %v1390
      %1400 = vrot.lane.b32.xlu0 %v803, 112
      %v1401 = vpop.permute.xlu0 %1400
      %1402 = vrot.lane.b32.xlu0 %v809, 112
      %v1403 = vpop.permute.xlu0 %1402
      %1404 = vrot.lane.b32.xlu0 %v815, 112
      %v1405 = vpop.permute.xlu0 %1404
      %1406 = vrot.lane.b32.xlu0 %v821, 112
      %v1407 = vpop.permute.xlu0 %1406
      %1408 = vrot.lane.b32.xlu0 %v803, 48
      %v1409 = vpop.permute.xlu0 %1408
      %1410 = vrot.lane.b32.xlu0 %v809, 48
      %v1411 = vpop.permute.xlu0 %1410
      %1412 = vrot.lane.b32.xlu0 %v815, 48
      %v1413 = vpop.permute.xlu0 %1412
      %1414 = vrot.lane.b32.xlu0 %v821, 48
      %v1415 = vpop.permute.xlu0 %1414
      %v1416 = vsel %vm841, %v1401, 0
      %v1418 = vsel %vm841, %v1403, 0
      %v1420 = vsel %vm841, %v1405, 0
      %v1422 = vsel %vm841, %v1407, 0
      %v1424 = vsel %vm841, %v1409, 0
      %v1426 = vsel %vm841, %v1411, 0
      %v1428 = vsel %vm841, %v1413, 0
      %v1430 = vsel %vm841, %v1415, 0
      %1432 = vmatprep.subr.mxu0 0.0
      %1433 = vmatpush1.xpose.msra.mxu0 %v1424
      %1434 = vmatprep.subr.mxu0 0.0
      %1435 = vmatpush1.xpose.msra.mxu0 %v1426
      %1436 = vmatprep.subr.mxu0 0.0
      %1437 = vmatpush1.xpose.msra.mxu0 %v1428
      %1438 = vmatprep.subr.mxu0 0.0
      %1439 = vmatpush1.xpose.msra.mxu0 %v1430
      %1440 = vmatprep.subr.mxu0 0.0
      %1441 = vmatpush1.xpose.msra.mxu0 0.0
      %1442 = vmatprep.subr.mxu0 0.0
      %1443 = vmatpush1.xpose.msra.mxu0 0.0
      %1444 = vmatprep.subr.mxu0 0.0
      %1445 = vmatpush1.xpose.msra.mxu0 0.0
      %1446 = vmatprep.subr.mxu0 0.0
      %1447 = vmatpush1.xpose.msra.mxu0 0.0
      %1448 = vmatprep.subr.mxu0 0.0
      %1449 = vmatpush1.xpose.msra.mxu0 0.0
      %1450 = vmatprep.subr.mxu0 0.0
      %1451 = vmatpush1.xpose.msra.mxu0 0.0
      %1452 = vmatprep.subr.mxu0 0.0
      %1453 = vmatpush1.xpose.msra.mxu0 0.0
      %1454 = vmatprep.subr.mxu0 0.0
      %1455 = vmatpush1.xpose.msra.mxu0 0.0
      %1456 = vmatprep.subr.mxu0 0.0
      %1457 = vmatpush1.xpose.msra.mxu0 0.0
      %1458 = vmatprep.subr.mxu0 0.0
      %1459 = vmatpush1.xpose.msra.mxu0 0.0
      %1460 = vmatprep.subr.mxu0 0.0
      %1461 = vmatpush1.xpose.msra.mxu0 0.0
      %1462 = vmatprep.subr.mxu0 0.0
      %1463 = vmatpush1.xpose.msra.mxu0 0.0
      %1464 = vmatprep.subr.mxu0 0.0
      %1465 = vmatpush1.xpose.msra.mxu0 0.0
      %1466 = vmatprep.subr.mxu0 0.0
      %1467 = vmatpush1.xpose.msra.mxu0 0.0
      %1468 = vmatprep.subr.mxu0 0.0
      %1469 = vmatpush1.xpose.msra.mxu0 0.0
      %1470 = vmatprep.subr.mxu0 0.0
      %1471 = vmatpush1.xpose.msra.mxu0 0.0
      %1472 = vmatprep.subr.mxu0 0.0
      %1473 = vmatpush1.xpose.msra.mxu0 0.0
      %1474 = vmatprep.subr.mxu0 0.0
      %1475 = vmatpush1.xpose.msra.mxu0 0.0
      %1476 = vmatprep.subr.mxu0 0.0
      %1477 = vmatpush1.xpose.msra.mxu0 0.0
      %1478 = vmatprep.subr.mxu0 0.0
      %1479 = vmatpush1.xpose.msra.mxu0 0.0
      %1480 = vmatprep.subr.mxu0 0.0
      %1481 = vmatpush1.xpose.msra.mxu0 0.0
      %1482 = vmatprep.subr.mxu0 0.0
      %1483 = vmatpush1.xpose.msra.mxu0 0.0
      %1484 = vmatprep.subr.mxu0 0.0
      %1485 = vmatpush1.xpose.msra.mxu0 0.0
      %1486 = vmatprep.subr.mxu0 0.0
      %1487 = vmatpush1.xpose.msra.mxu0 0.0
      %1488 = vmatprep.subr.mxu0 0.0
      %1489 = vmatpush1.xpose.msra.mxu0 0.0
      %1490 = vmatprep.subr.mxu0 0.0
      %1491 = vmatpush1.xpose.msra.mxu0 0.0
      %1492 = vmatprep.subr.mxu0 0.0
      %1493 = vmatpush1.xpose.msra.mxu0 0.0
      %1494 = vmatprep.subr.mxu0 0.0
      %1495 = vmatpush1.xpose.msra.mxu0 0.0
      %1496 = vmatprep.mubr.f32.mxu0 0.0
      %1497 = vmatmul.mubr.f32.gmra.mrb[0].mxu0 %v1416
      %v1498 = vpop.f32.mrb[0].mxu0
      %v1499 = vadd.f32 0.0, %v1498
      %v1500 = vpop.f32.mrb[0].mxu0
      %1501 = vmatprep.mubr.f32.mxu0 0.0
      %1502 = vmatmul.mubr.f32.gmra.mrb[0].mxu0 %v1418
      %v1503 = vpop.f32.mrb[0].mxu0
      %v1504 = vadd.f32 0.0, %v1503
      %v1505 = vpop.f32.mrb[0].mxu0
      %1506 = vmatprep.mubr.f32.mxu0 0.0
      %1507 = vmatmul.mubr.f32.gmra.mrb[0].mxu0 %v1420
      %v1508 = vpop.f32.mrb[0].mxu0
      %v1509 = vadd.f32 0.0, %v1508
      %v1510 = vpop.f32.mrb[0].mxu0
      %1511 = vmatprep.mubr.f32.mxu0 0.0
      %1512 = vmatmul.mubr.f32.gmra.mrb[0].mxu0 %v1422
      %v1513 = vpop.f32.mrb[0].mxu0
      %v1514 = vadd.f32 0.0, %v1513
      %v1515 = vpop.f32.mrb[0].mxu0
      %1516 = vdwg.mxu0
      %v1517 = vmul.f32 %v1499, 0.35355338
      %v1518 = vmul.f32 %v1504, 0.35355338
      %v1519 = vmul.f32 %v1509, 0.35355338
      %v1520 = vmul.f32 %v1514, 0.35355338
      %v1521 = vadd.f32 %v1517, %v825
      %v1522 = vadd.f32 %v1518, %v826
      %v1523 = vadd.f32 %v1519, %v827
      %v1524 = vadd.f32 %v1520, %v828
      %v1525 = vsel %vm951, %v1521, -inf
      %1526 = vmax.xlane.f32.xlu0 %v1525
      %v1527 = vpop.xlane.xlu0 %1526
      %v1528 = vsel %vm951, %v1522, -inf
      %1529 = vmax.xlane.f32.xlu0 %v1528
      %v1530 = vpop.xlane.xlu0 %1529
      %v1531 = vsel %vm951, %v1523, -inf
      %1532 = vmax.xlane.f32.xlu0 %v1531
      %v1533 = vpop.xlane.xlu0 %1532
      %v1534 = vsel %vm951, %v1524, -inf
      %1535 = vmax.xlane.f32.xlu0 %v1534
      %v1536 = vpop.xlane.xlu0 %1535
      %v1537 = vsub.f32 %v1521, %v1527
      %v1538 = vsub.f32 %v1522, %v1530
      %v1539 = vsub.f32 %v1523, %v1533
      %v1540 = vsub.f32 %v1524, %v1536
      %v1541 = vmul.f32 %v1537, 1.442695
      %v1542 = vpow.pop %v1541
      %v1543 = vmul.f32 %v1538, 1.442695
      %v1544 = vpow.pop %v1543
      %v1545 = vmul.f32 %v1539, 1.442695
      %v1546 = vpow.pop %v1545
      %v1547 = vmul.f32 %v1540, 1.442695
      %v1548 = vpow.pop %v1547
      %v1549 = vsel %vm951, %v1542, 0.0
      %1550 = vadd.xlane.f32.xlu0 %v1549
      %v1551 = vpop.xlane.xlu0 %1550
      %v1552 = vsel %vm951, %v1544, 0.0
      %1553 = vadd.xlane.f32.xlu0 %v1552
      %v1554 = vpop.xlane.xlu0 %1553
      %v1555 = vsel %vm951, %v1546, 0.0
      %1556 = vadd.xlane.f32.xlu0 %v1555
      %v1557 = vpop.xlane.xlu0 %1556
      %v1558 = vsel %vm951, %v1548, 0.0
      %1559 = vadd.xlane.f32.xlu0 %v1558
      %v1560 = vpop.xlane.xlu0 %1559
      %v1561 = vrcp.pop %v1551
      %v1562 = vrcp.pop %v1554
      %v1563 = vrcp.pop %v1557
      %v1564 = vrcp.pop %v1560
      %v1565 = vmul.f32 %v1542, %v1561
      %v1566 = vmul.f32 %v1544, %v1562
      %v1567 = vmul.f32 %v1546, %v1563
      %v1568 = vmul.f32 %v1548, %v1564
      %1569 = vrot.lane.b32.xlu0 %v805, 112
      %v1570 = vpop.permute.xlu0 %1569
      %1571 = vrot.lane.b32.xlu0 %v811, 112
      %v1572 = vpop.permute.xlu0 %1571
      %1573 = vrot.lane.b32.xlu0 %v817, 112
      %v1574 = vpop.permute.xlu0 %1573
      %1575 = vrot.lane.b32.xlu0 %v823, 112
      %v1576 = vpop.permute.xlu0 %1575
      %v1582 = vsel %vm951, %v1565, 0
      %v1585 = vsel %vm951, %v1566, 0
      %v1588 = vsel %vm951, %v1567, 0
      %v1591 = vsel %vm951, %v1568, 0
      %1593 = vmatprep.subr.mxu0 0.0
      %1594 = vmatpush1.msra.mxu0 %v1570
      %1595 = vmatprep.subr.mxu0 0.0
      %1596 = vmatpush1.msra.mxu0 %v1572
      %1597 = vmatprep.subr.mxu0 0.0
      %1598 = vmatpush1.msra.mxu0 %v1574
      %1599 = vmatprep.subr.mxu0 0.0
      %1600 = vmatpush1.msra.mxu0 %v1576
      %1601 = vmatprep.subr.mxu0 0.0
      %1602 = vmatpush1.msra.mxu0 0.0
      %1603 = vmatprep.subr.mxu0 0.0
      %1604 = vmatpush1.msra.mxu0 0.0
      %1605 = vmatprep.subr.mxu0 0.0
      %1606 = vmatpush1.msra.mxu0 0.0
      %1607 = vmatprep.subr.mxu0 0.0
      %1608 = vmatpush1.msra.mxu0 0.0
      %1609 = vmatprep.subr.mxu0 0.0
      %1610 = vmatpush1.msra.mxu0 0.0
      %1611 = vmatprep.subr.mxu0 0.0
      %1612 = vmatpush1.msra.mxu0 0.0
      %1613 = vmatprep.subr.mxu0 0.0
      %1614 = vmatpush1.msra.mxu0 0.0
      %1615 = vmatprep.subr.mxu0 0.0
      %1616 = vmatpush1.msra.mxu0 0.0
      %1617 = vmatprep.subr.mxu0 0.0
      %1618 = vmatpush1.msra.mxu0 0.0
      %1619 = vmatprep.subr.mxu0 0.0
      %1620 = vmatpush1.msra.mxu0 0.0
      %1621 = vmatprep.subr.mxu0 0.0
      %1622 = vmatpush1.msra.mxu0 0.0
      %1623 = vmatprep.subr.mxu0 0.0
      %1624 = vmatpush1.msra.mxu0 0.0
      %1625 = vmatprep.subr.mxu0 0.0
      %1626 = vmatpush1.msra.mxu0 0.0
      %1627 = vmatprep.subr.mxu0 0.0
      %1628 = vmatpush1.msra.mxu0 0.0
      %1629 = vmatprep.subr.mxu0 0.0
      %1630 = vmatpush1.msra.mxu0 0.0
      %1631 = vmatprep.subr.mxu0 0.0
      %1632 = vmatpush1.msra.mxu0 0.0
      %1633 = vmatprep.subr.mxu0 0.0
      %1634 = vmatpush1.msra.mxu0 0.0
      %1635 = vmatprep.subr.mxu0 0.0
      %1636 = vmatpush1.msra.mxu0 0.0
      %1637 = vmatprep.subr.mxu0 0.0
      %1638 = vmatpush1.msra.mxu0 0.0
      %1639 = vmatprep.subr.mxu0 0.0
      %1640 = vmatpush1.msra.mxu0 0.0
      %1641 = vmatprep.subr.mxu0 0.0
      %1642 = vmatpush1.msra.mxu0 0.0
      %1643 = vmatprep.subr.mxu0 0.0
      %1644 = vmatpush1.msra.mxu0 0.0
      %1645 = vmatprep.subr.mxu0 0.0
      %1646 = vmatpush1.msra.mxu0 0.0
      %1647 = vmatprep.subr.mxu0 0.0
      %1648 = vmatpush1.msra.mxu0 0.0
      %1649 = vmatprep.subr.mxu0 0.0
      %1650 = vmatpush1.msra.mxu0 0.0
      %1651 = vmatprep.subr.mxu0 0.0
      %1652 = vmatpush1.msra.mxu0 0.0
      %1653 = vmatprep.subr.mxu0 0.0
      %1654 = vmatpush1.msra.mxu0 0.0
      %1655 = vmatprep.subr.mxu0 0.0
      %1656 = vmatpush1.msra.mxu0 0.0
      %1657 = vmatprep.mubr.f32.mxu0 0.0
      %1658 = vmatmul.mubr.f32.gmra.mrb[0].mxu0 %v1582
      %v1659 = vpop.f32.mrb[0].mxu0
      %v1660 = vadd.f32 0.0, %v1659
      %v1661 = vpop.f32.mrb[0].mxu0
      %1662 = vmatprep.mubr.f32.mxu0 0.0
      %1663 = vmatmul.mubr.f32.gmra.mrb[0].mxu0 %v1585
      %v1664 = vpop.f32.mrb[0].mxu0
      %v1665 = vadd.f32 0.0, %v1664
      %v1666 = vpop.f32.mrb[0].mxu0
      %1667 = vmatprep.mubr.f32.mxu0 0.0
      %1668 = vmatmul.mubr.f32.gmra.mrb[0].mxu0 %v1588
      %v1669 = vpop.f32.mrb[0].mxu0
      %v1670 = vadd.f32 0.0, %v1669
      %v1671 = vpop.f32.mrb[0].mxu0
      %1672 = vmatprep.mubr.f32.mxu0 0.0
      %1673 = vmatmul.mubr.f32.gmra.mrb[0].mxu0 %v1591
      %v1674 = vpop.f32.mrb[0].mxu0
      %v1675 = vadd.f32 0.0, %v1674
      %v1676 = vpop.f32.mrb[0].mxu0
      %1677 = vdwg.mxu0
      %1682 = vrot.lane.b32.xlu0 %v1660, 16
      %v1683 = vpop.permute.xlu0 %1682
      %1684 = vrot.lane.b32.xlu0 %v1665, 16
      %v1685 = vpop.permute.xlu0 %1684
      %1686 = vrot.lane.b32.xlu0 %v1670, 16
      %v1687 = vpop.permute.xlu0 %1686
      %1688 = vrot.lane.b32.xlu0 %v1675, 16
      %v1689 = vpop.permute.xlu0 %1688
      %vm1694 = vcmask 195712
      %1695 = vst.msk [vmem:[#allocation2] sm:$0xff] %vm1694, %v1683
      %1696 = vst.msk [vmem:[#allocation2 + $0x8] sm:$0xff] %vm1694, %v1685
      %1697 = vst.msk [vmem:[#allocation2 + $0x10] sm:$0xff] %vm1694, %v1687
      %1698 = vst.msk [vmem:[#allocation2 + $0x18] sm:$0xff] %vm1694, %v1689
      %1699 = vrot.lane.b32.xlu0 %v803, 104
      %v1700 = vpop.permute.xlu0 %1699
      %1701 = vrot.lane.b32.xlu0 %v809, 104
      %v1702 = vpop.permute.xlu0 %1701
      %1703 = vrot.lane.b32.xlu0 %v815, 104
      %v1704 = vpop.permute.xlu0 %1703
      %1705 = vrot.lane.b32.xlu0 %v821, 104
      %v1706 = vpop.permute.xlu0 %1705
      %1707 = vrot.lane.b32.xlu0 %v803, 40
      %v1708 = vpop.permute.xlu0 %1707
      %1709 = vrot.lane.b32.xlu0 %v809, 40
      %v1710 = vpop.permute.xlu0 %1709
      %1711 = vrot.lane.b32.xlu0 %v815, 40
      %v1712 = vpop.permute.xlu0 %1711
      %1713 = vrot.lane.b32.xlu0 %v821, 40
      %v1714 = vpop.permute.xlu0 %1713
      %v1715 = vsel %vm841, %v1700, 0
      %v1717 = vsel %vm841, %v1702, 0
      %v1719 = vsel %vm841, %v1704, 0
      %v1721 = vsel %vm841, %v1706, 0
      %v1723 = vsel %vm841, %v1708, 0
      %v1725 = vsel %vm841, %v1710, 0
      %v1727 = vsel %vm841, %v1712, 0
      %v1729 = vsel %vm841, %v1714, 0
      %1731 = vmatprep.subr.mxu0 0.0
      %1732 = vmatpush1.xpose.msra.mxu0 %v1723
      %1733 = vmatprep.subr.mxu0 0.0
      %1734 = vmatpush1.xpose.msra.mxu0 %v1725
      %1735 = vmatprep.subr.mxu0 0.0
      %1736 = vmatpush1.xpose.msra.mxu0 %v1727
      %1737 = vmatprep.subr.mxu0 0.0
      %1738 = vmatpush1.xpose.msra.mxu0 %v1729
      %1739 = vmatprep.subr.mxu0 0.0
      %1740 = vmatpush1.xpose.msra.mxu0 0.0
      %1741 = vmatprep.subr.mxu0 0.0
      %1742 = vmatpush1.xpose.msra.mxu0 0.0
      %1743 = vmatprep.subr.mxu0 0.0
      %1744 = vmatpush1.xpose.msra.mxu0 0.0
      %1745 = vmatprep.subr.mxu0 0.0
      %1746 = vmatpush1.xpose.msra.mxu0 0.0
      %1747 = vmatprep.subr.mxu0 0.0
      %1748 = vmatpush1.xpose.msra.mxu0 0.0
      %1749 = vmatprep.subr.mxu0 0.0
      %1750 = vmatpush1.xpose.msra.mxu0 0.0
      %1751 = vmatprep.subr.mxu0 0.0
      %1752 = vmatpush1.xpose.msra.mxu0 0.0
      %1753 = vmatprep.subr.mxu0 0.0
      %1754 = vmatpush1.xpose.msra.mxu0 0.0
      %1755 = vmatprep.subr.mxu0 0.0
      %1756 = vmatpush1.xpose.msra.mxu0 0.0
      %1757 = vmatprep.subr.mxu0 0.0
      %1758 = vmatpush1.xpose.msra.mxu0 0.0
      %1759 = vmatprep.subr.mxu0 0.0
      %1760 = vmatpush1.xpose.msra.mxu0 0.0
      %1761 = vmatprep.subr.mxu0 0.0
      %1762 = vmatpush1.xpose.msra.mxu0 0.0
      %1763 = vmatprep.subr.mxu0 0.0
      %1764 = vmatpush1.xpose.msra.mxu0 0.0
      %1765 = vmatprep.subr.mxu0 0.0
      %1766 = vmatpush1.xpose.msra.mxu0 0.0
      %1767 = vmatprep.subr.mxu0 0.0
      %1768 = vmatpush1.xpose.msra.mxu0 0.0
      %1769 = vmatprep.subr.mxu0 0.0
      %1770 = vmatpush1.xpose.msra.mxu0 0.0
      %1771 = vmatprep.subr.mxu0 0.0
      %1772 = vmatpush1.xpose.msra.mxu0 0.0
      %1773 = vmatprep.subr.mxu0 0.0
      %1774 = vmatpush1.xpose.msra.mxu0 0.0
      %1775 = vmatprep.subr.mxu0 0.0
      %1776 = vmatpush1.xpose.msra.mxu0 0.0
      %1777 = vmatprep.subr.mxu0 0.0
      %1778 = vmatpush1.xpose.msra.mxu0 0.0
      %1779 = vmatprep.subr.mxu0 0.0
      %1780 = vmatpush1.xpose.msra.mxu0 0.0
      %1781 = vmatprep.subr.mxu0 0.0
      %1782 = vmatpush1.xpose.msra.mxu0 0.0
      %1783 = vmatprep.subr.mxu0 0.0
      %1784 = vmatpush1.xpose.msra.mxu0 0.0
      %1785 = vmatprep.subr.mxu0 0.0
      %1786 = vmatpush1.xpose.msra.mxu0 0.0
      %1787 = vmatprep.subr.mxu0 0.0
      %1788 = vmatpush1.xpose.msra.mxu0 0.0
      %1789 = vmatprep.subr.mxu0 0.0
      %1790 = vmatpush1.xpose.msra.mxu0 0.0
      %1791 = vmatprep.subr.mxu0 0.0
      %1792 = vmatpush1.xpose.msra.mxu0 0.0
      %1793 = vmatprep.subr.mxu0 0.0
      %1794 = vmatpush1.xpose.msra.mxu0 0.0
      %1795 = vmatprep.mubr.f32.mxu0 0.0
      %1796 = vmatmul.mubr.f32.gmra.mrb[0].mxu0 %v1715
      %v1797 = vpop.f32.mrb[0].mxu0
      %v1798 = vadd.f32 0.0, %v1797
      %v1799 = vpop.f32.mrb[0].mxu0
      %1800 = vmatprep.mubr.f32.mxu0 0.0
      %1801 = vmatmul.mubr.f32.gmra.mrb[0].mxu0 %v1717
      %v1802 = vpop.f32.mrb[0].mxu0
      %v1803 = vadd.f32 0.0, %v1802
      %v1804 = vpop.f32.mrb[0].mxu0
      %1805 = vmatprep.mubr.f32.mxu0 0.0
      %1806 = vmatmul.mubr.f32.gmra.mrb[0].mxu0 %v1719
      %v1807 = vpop.f32.mrb[0].mxu0
      %v1808 = vadd.f32 0.0, %v1807
      %v1809 = vpop.f32.mrb[0].mxu0
      %1810 = vmatprep.mubr.f32.mxu0 0.0
      %1811 = vmatmul.mubr.f32.gmra.mrb[0].mxu0 %v1721
      %v1812 = vpop.f32.mrb[0].mxu0
      %v1813 = vadd.f32 0.0, %v1812
      %v1814 = vpop.f32.mrb[0].mxu0
      %1815 = vdwg.mxu0
      %v1816 = vmul.f32 %v1798, 0.35355338
      %v1817 = vmul.f32 %v1803, 0.35355338
      %v1818 = vmul.f32 %v1808, 0.35355338
      %v1819 = vmul.f32 %v1813, 0.35355338
      %v1820 = vadd.f32 %v1816, %v825
      %v1821 = vadd.f32 %v1817, %v826
      %v1822 = vadd.f32 %v1818, %v827
      %v1823 = vadd.f32 %v1819, %v828
      %v1824 = vsel %vm951, %v1820, -inf
      %1825 = vmax.xlane.f32.xlu0 %v1824
      %v1826 = vpop.xlane.xlu0 %1825
      %v1827 = vsel %vm951, %v1821, -inf
      %1828 = vmax.xlane.f32.xlu0 %v1827
      %v1829 = vpop.xlane.xlu0 %1828
      %v1830 = vsel %vm951, %v1822, -inf
      %1831 = vmax.xlane.f32.xlu0 %v1830
      %v1832 = vpop.xlane.xlu0 %1831
      %v1833 = vsel %vm951, %v1823, -inf
      %1834 = vmax.xlane.f32.xlu0 %v1833
      %v1835 = vpop.xlane.xlu0 %1834
      %v1836 = vsub.f32 %v1820, %v1826
      %v1837 = vsub.f32 %v1821, %v1829
      %v1838 = vsub.f32 %v1822, %v1832
      %v1839 = vsub.f32 %v1823, %v1835
      %v1840 = vmul.f32 %v1836, 1.442695
      %v1841 = vpow.pop %v1840
      %v1842 = vmul.f32 %v1837, 1.442695
      %v1843 = vpow.pop %v1842
      %v1844 = vmul.f32 %v1838, 1.442695
      %v1845 = vpow.pop %v1844
      %v1846 = vmul.f32 %v1839, 1.442695
      %v1847 = vpow.pop %v1846
      %v1848 = vsel %vm951, %v1841, 0.0
      %1849 = vadd.xlane.f32.xlu0 %v1848
      %v1850 = vpop.xlane.xlu0 %1849
      %v1851 = vsel %vm951, %v1843, 0.0
      %1852 = vadd.xlane.f32.xlu0 %v1851
      %v1853 = vpop.xlane.xlu0 %1852
      %v1854 = vsel %vm951, %v1845, 0.0
      %1855 = vadd.xlane.f32.xlu0 %v1854
      %v1856 = vpop.xlane.xlu0 %1855
      %v1857 = vsel %vm951, %v1847, 0.0
      %1858 = vadd.xlane.f32.xlu0 %v1857
      %v1859 = vpop.xlane.xlu0 %1858
      %v1860 = vrcp.pop %v1850
      %v1861 = vrcp.pop %v1853
      %v1862 = vrcp.pop %v1856
      %v1863 = vrcp.pop %v1859
      %v1864 = vmul.f32 %v1841, %v1860
      %v1865 = vmul.f32 %v1843, %v1861
      %v1866 = vmul.f32 %v1845, %v1862
      %v1867 = vmul.f32 %v1847, %v1863
      %1868 = vrot.lane.b32.xlu0 %v805, 104
      %v1869 = vpop.permute.xlu0 %1868
      %1870 = vrot.lane.b32.xlu0 %v811, 104
      %v1871 = vpop.permute.xlu0 %1870
      %1872 = vrot.lane.b32.xlu0 %v817, 104
      %v1873 = vpop.permute.xlu0 %1872
      %1874 = vrot.lane.b32.xlu0 %v823, 104
      %v1875 = vpop.permute.xlu0 %1874
      %v1881 = vsel %vm951, %v1864, 0
      %v1884 = vsel %vm951, %v1865, 0
      %v1887 = vsel %vm951, %v1866, 0
      %v1890 = vsel %vm951, %v1867, 0
      %1892 = vmatprep.subr.mxu0 0.0
      %1893 = vmatpush1.msra.mxu0 %v1869
      %1894 = vmatprep.subr.mxu0 0.0
      %1895 = vmatpush1.msra.mxu0 %v1871
      %1896 = vmatprep.subr.mxu0 0.0
      %1897 = vmatpush1.msra.mxu0 %v1873
      %1898 = vmatprep.subr.mxu0 0.0
      %1899 = vmatpush1.msra.mxu0 %v1875
      %1900 = vmatprep.subr.mxu0 0.0
      %1901 = vmatpush1.msra.mxu0 0.0
      %1902 = vmatprep.subr.mxu0 0.0
      %1903 = vmatpush1.msra.mxu0 0.0
      %1904 = vmatprep.subr.mxu0 0.0
      %1905 = vmatpush1.msra.mxu0 0.0
      %1906 = vmatprep.subr.mxu0 0.0
      %1907 = vmatpush1.msra.mxu0 0.0
      %1908 = vmatprep.subr.mxu0 0.0
      %1909 = vmatpush1.msra.mxu0 0.0
      %1910 = vmatprep.subr.mxu0 0.0
      %1911 = vmatpush1.msra.mxu0 0.0
      %1912 = vmatprep.subr.mxu0 0.0
      %1913 = vmatpush1.msra.mxu0 0.0
      %1914 = vmatprep.subr.mxu0 0.0
      %1915 = vmatpush1.msra.mxu0 0.0
      %1916 = vmatprep.subr.mxu0 0.0
      %1917 = vmatpush1.msra.mxu0 0.0
      %1918 = vmatprep.subr.mxu0 0.0
      %1919 = vmatpush1.msra.mxu0 0.0
      %1920 = vmatprep.subr.mxu0 0.0
      %1921 = vmatpush1.msra.mxu0 0.0
      %1922 = vmatprep.subr.mxu0 0.0
      %1923 = vmatpush1.msra.mxu0 0.0
      %1924 = vmatprep.subr.mxu0 0.0
      %1925 = vmatpush1.msra.mxu0 0.0
      %1926 = vmatprep.subr.mxu0 0.0
      %1927 = vmatpush1.msra.mxu0 0.0
      %1928 = vmatprep.subr.mxu0 0.0
      %1929 = vmatpush1.msra.mxu0 0.0
      %1930 = vmatprep.subr.mxu0 0.0
      %1931 = vmatpush1.msra.mxu0 0.0
      %1932 = vmatprep.subr.mxu0 0.0
      %1933 = vmatpush1.msra.mxu0 0.0
      %1934 = vmatprep.subr.mxu0 0.0
      %1935 = vmatpush1.msra.mxu0 0.0
      %1936 = vmatprep.subr.mxu0 0.0
      %1937 = vmatpush1.msra.mxu0 0.0
      %1938 = vmatprep.subr.mxu0 0.0
      %1939 = vmatpush1.msra.mxu0 0.0
      %1940 = vmatprep.subr.mxu0 0.0
      %1941 = vmatpush1.msra.mxu0 0.0
      %1942 = vmatprep.subr.mxu0 0.0
      %1943 = vmatpush1.msra.mxu0 0.0
      %1944 = vmatprep.subr.mxu0 0.0
      %1945 = vmatpush1.msra.mxu0 0.0
      %1946 = vmatprep.subr.mxu0 0.0
      %1947 = vmatpush1.msra.mxu0 0.0
      %1948 = vmatprep.subr.mxu0 0.0
      %1949 = vmatpush1.msra.mxu0 0.0
      %1950 = vmatprep.subr.mxu0 0.0
      %1951 = vmatpush1.msra.mxu0 0.0
      %1952 = vmatprep.subr.mxu0 0.0
      %1953 = vmatpush1.msra.mxu0 0.0
      %1954 = vmatprep.subr.mxu0 0.0
      %1955 = vmatpush1.msra.mxu0 0.0
      %1956 = vmatprep.mubr.f32.mxu0 0.0
      %1957 = vmatmul.mubr.f32.gmra.mrb[0].mxu0 %v1881
      %v1958 = vpop.f32.mrb[0].mxu0
      %v1959 = vadd.f32 0.0, %v1958
      %v1960 = vpop.f32.mrb[0].mxu0
      %1961 = vmatprep.mubr.f32.mxu0 0.0
      %1962 = vmatmul.mubr.f32.gmra.mrb[0].mxu0 %v1884
      %v1963 = vpop.f32.mrb[0].mxu0
      %v1964 = vadd.f32 0.0, %v1963
      %v1965 = vpop.f32.mrb[0].mxu0
      %1966 = vmatprep.mubr.f32.mxu0 0.0
      %1967 = vmatmul.mubr.f32.gmra.mrb[0].mxu0 %v1887
      %v1968 = vpop.f32.mrb[0].mxu0
      %v1969 = vadd.f32 0.0, %v1968
      %v1970 = vpop.f32.mrb[0].mxu0
      %1971 = vmatprep.mubr.f32.mxu0 0.0
      %1972 = vmatmul.mubr.f32.gmra.mrb[0].mxu0 %v1890
      %v1973 = vpop.f32.mrb[0].mxu0
      %v1974 = vadd.f32 0.0, %v1973
      %v1975 = vpop.f32.mrb[0].mxu0
      %1976 = vdwg.mxu0
      %1981 = vrot.lane.b32.xlu0 %v1959, 24
      %v1982 = vpop.permute.xlu0 %1981
      %1983 = vrot.lane.b32.xlu0 %v1964, 24
      %v1984 = vpop.permute.xlu0 %1983
      %1985 = vrot.lane.b32.xlu0 %v1969, 24
      %v1986 = vpop.permute.xlu0 %1985
      %1987 = vrot.lane.b32.xlu0 %v1974, 24
      %v1988 = vpop.permute.xlu0 %1987
      %vm1993 = vcmask 261312
      %1994 = vst.msk [vmem:[#allocation2] sm:$0xff] %vm1993, %v1982
      %1995 = vst.msk [vmem:[#allocation2 + $0x8] sm:$0xff] %vm1993, %v1984
      %1996 = vst.msk [vmem:[#allocation2 + $0x10] sm:$0xff] %vm1993, %v1986
      %1997 = vst.msk [vmem:[#allocation2 + $0x18] sm:$0xff] %vm1993, %v1988
      %1998 = vrot.lane.b32.xlu0 %v803, 96
      %v1999 = vpop.permute.xlu0 %1998
      %2000 = vrot.lane.b32.xlu0 %v809, 96
      %v2001 = vpop.permute.xlu0 %2000
      %2002 = vrot.lane.b32.xlu0 %v815, 96
      %v2003 = vpop.permute.xlu0 %2002
      %2004 = vrot.lane.b32.xlu0 %v821, 96
      %v2005 = vpop.permute.xlu0 %2004
      %2006 = vrot.lane.b32.xlu0 %v803, 32
      %v2007 = vpop.permute.xlu0 %2006
      %2008 = vrot.lane.b32.xlu0 %v809, 32
      %v2009 = vpop.permute.xlu0 %2008
      %2010 = vrot.lane.b32.xlu0 %v815, 32
      %v2011 = vpop.permute.xlu0 %2010
      %2012 = vrot.lane.b32.xlu0 %v821, 32
      %v2013 = vpop.permute.xlu0 %2012
      %v2014 = vsel %vm841, %v1999, 0
      %v2016 = vsel %vm841, %v2001, 0
      %v2018 = vsel %vm841, %v2003, 0
      %v2020 = vsel %vm841, %v2005, 0
      %v2022 = vsel %vm841, %v2007, 0
      %v2024 = vsel %vm841, %v2009, 0
      %v2026 = vsel %vm841, %v2011, 0
      %v2028 = vsel %vm841, %v2013, 0
      %2030 = vmatprep.subr.mxu0 0.0
      %2031 = vmatpush1.xpose.msra.mxu0 %v2022
      %2032 = vmatprep.subr.mxu0 0.0
      %2033 = vmatpush1.xpose.msra.mxu0 %v2024
      %2034 = vmatprep.subr.mxu0 0.0
      %2035 = vmatpush1.xpose.msra.mxu0 %v2026
      %2036 = vmatprep.subr.mxu0 0.0
      %2037 = vmatpush1.xpose.msra.mxu0 %v2028
      %2038 = vmatprep.subr.mxu0 0.0
      %2039 = vmatpush1.xpose.msra.mxu0 0.0
      %2040 = vmatprep.subr.mxu0 0.0
      %2041 = vmatpush1.xpose.msra.mxu0 0.0
      %2042 = vmatprep.subr.mxu0 0.0
      %2043 = vmatpush1.xpose.msra.mxu0 0.0
      %2044 = vmatprep.subr.mxu0 0.0
      %2045 = vmatpush1.xpose.msra.mxu0 0.0
      %2046 = vmatprep.subr.mxu0 0.0
      %2047 = vmatpush1.xpose.msra.mxu0 0.0
      %2048 = vmatprep.subr.mxu0 0.0
      %2049 = vmatpush1.xpose.msra.mxu0 0.0
      %2050 = vmatprep.subr.mxu0 0.0
      %2051 = vmatpush1.xpose.msra.mxu0 0.0
      %2052 = vmatprep.subr.mxu0 0.0
      %2053 = vmatpush1.xpose.msra.mxu0 0.0
      %2054 = vmatprep.subr.mxu0 0.0
      %2055 = vmatpush1.xpose.msra.mxu0 0.0
      %2056 = vmatprep.subr.mxu0 0.0
      %2057 = vmatpush1.xpose.msra.mxu0 0.0
      %2058 = vmatprep.subr.mxu0 0.0
      %2059 = vmatpush1.xpose.msra.mxu0 0.0
      %2060 = vmatprep.subr.mxu0 0.0
      %2061 = vmatpush1.xpose.msra.mxu0 0.0
      %2062 = vmatprep.subr.mxu0 0.0
      %2063 = vmatpush1.xpose.msra.mxu0 0.0
      %2064 = vmatprep.subr.mxu0 0.0
      %2065 = vmatpush1.xpose.msra.mxu0 0.0
      %2066 = vmatprep.subr.mxu0 0.0
      %2067 = vmatpush1.xpose.msra.mxu0 0.0
      %2068 = vmatprep.subr.mxu0 0.0
      %2069 = vmatpush1.xpose.msra.mxu0 0.0
      %2070 = vmatprep.subr.mxu0 0.0
      %2071 = vmatpush1.xpose.msra.mxu0 0.0
      %2072 = vmatprep.subr.mxu0 0.0
      %2073 = vmatpush1.xpose.msra.mxu0 0.0
      %2074 = vmatprep.subr.mxu0 0.0
      %2075 = vmatpush1.xpose.msra.mxu0 0.0
      %2076 = vmatprep.subr.mxu0 0.0
      %2077 = vmatpush1.xpose.msra.mxu0 0.0
      %2078 = vmatprep.subr.mxu0 0.0
      %2079 = vmatpush1.xpose.msra.mxu0 0.0
      %2080 = vmatprep.subr.mxu0 0.0
      %2081 = vmatpush1.xpose.msra.mxu0 0.0
      %2082 = vmatprep.subr.mxu0 0.0
      %2083 = vmatpush1.xpose.msra.mxu0 0.0
      %2084 = vmatprep.subr.mxu0 0.0
      %2085 = vmatpush1.xpose.msra.mxu0 0.0
      %2086 = vmatprep.subr.mxu0 0.0
      %2087 = vmatpush1.xpose.msra.mxu0 0.0
      %2088 = vmatprep.subr.mxu0 0.0
      %2089 = vmatpush1.xpose.msra.mxu0 0.0
      %2090 = vmatprep.subr.mxu0 0.0
      %2091 = vmatpush1.xpose.msra.mxu0 0.0
      %2092 = vmatprep.subr.mxu0 0.0
      %2093 = vmatpush1.xpose.msra.mxu0 0.0
      %2094 = vmatprep.mubr.f32.mxu0 0.0
      %2095 = vmatmul.mubr.f32.gmra.mrb[0].mxu0 %v2014
      %v2096 = vpop.f32.mrb[0].mxu0
      %v2097 = vadd.f32 0.0, %v2096
      %v2098 = vpop.f32.mrb[0].mxu0
      %2099 = vmatprep.mubr.f32.mxu0 0.0
      %2100 = vmatmul.mubr.f32.gmra.mrb[0].mxu0 %v2016
      %v2101 = vpop.f32.mrb[0].mxu0
      %v2102 = vadd.f32 0.0, %v2101
      %v2103 = vpop.f32.mrb[0].mxu0
      %2104 = vmatprep.mubr.f32.mxu0 0.0
      %2105 = vmatmul.mubr.f32.gmra.mrb[0].mxu0 %v2018
      %v2106 = vpop.f32.mrb[0].mxu0
      %v2107 = vadd.f32 0.0, %v2106
      %v2108 = vpop.f32.mrb[0].mxu0
      %2109 = vmatprep.mubr.f32.mxu0 0.0
      %2110 = vmatmul.mubr.f32.gmra.mrb[0].mxu0 %v2020
      %v2111 = vpop.f32.mrb[0].mxu0
      %v2112 = vadd.f32 0.0, %v2111
      %v2113 = vpop.f32.mrb[0].mxu0
      %2114 = vdwg.mxu0
      %v2115 = vmul.f32 %v2097, 0.35355338
      %v2116 = vmul.f32 %v2102, 0.35355338
      %v2117 = vmul.f32 %v2107, 0.35355338
      %v2118 = vmul.f32 %v2112, 0.35355338
      %v2119 = vadd.f32 %v2115, %v825
      %v2120 = vadd.f32 %v2116, %v826
      %v2121 = vadd.f32 %v2117, %v827
      %v2122 = vadd.f32 %v2118, %v828
      %v2123 = vsel %vm951, %v2119, -inf
      %2124 = vmax.xlane.f32.xlu0 %v2123
      %v2125 = vpop.xlane.xlu0 %2124
      %v2126 = vsel %vm951, %v2120, -inf
      %2127 = vmax.xlane.f32.xlu0 %v2126
      %v2128 = vpop.xlane.xlu0 %2127
      %v2129 = vsel %vm951, %v2121, -inf
      %2130 = vmax.xlane.f32.xlu0 %v2129
      %v2131 = vpop.xlane.xlu0 %2130
      %v2132 = vsel %vm951, %v2122, -inf
      %2133 = vmax.xlane.f32.xlu0 %v2132
      %v2134 = vpop.xlane.xlu0 %2133
      %v2135 = vsub.f32 %v2119, %v2125
      %v2136 = vsub.f32 %v2120, %v2128
      %v2137 = vsub.f32 %v2121, %v2131
      %v2138 = vsub.f32 %v2122, %v2134
      %v2139 = vmul.f32 %v2135, 1.442695
      %v2140 = vpow.pop %v2139
      %v2141 = vmul.f32 %v2136, 1.442695
      %v2142 = vpow.pop %v2141
      %v2143 = vmul.f32 %v2137, 1.442695
      %v2144 = vpow.pop %v2143
      %v2145 = vmul.f32 %v2138, 1.442695
      %v2146 = vpow.pop %v2145
      %v2147 = vsel %vm951, %v2140, 0.0
      %2148 = vadd.xlane.f32.xlu0 %v2147
      %v2149 = vpop.xlane.xlu0 %2148
      %v2150 = vsel %vm951, %v2142, 0.0
      %2151 = vadd.xlane.f32.xlu0 %v2150
      %v2152 = vpop.xlane.xlu0 %2151
      %v2153 = vsel %vm951, %v2144, 0.0
      %2154 = vadd.xlane.f32.xlu0 %v2153
      %v2155 = vpop.xlane.xlu0 %2154
      %v2156 = vsel %vm951, %v2146, 0.0
      %2157 = vadd.xlane.f32.xlu0 %v2156
      %v2158 = vpop.xlane.xlu0 %2157
      %v2159 = vrcp.pop %v2149
      %v2160 = vrcp.pop %v2152
      %v2161 = vrcp.pop %v2155
      %v2162 = vrcp.pop %v2158
      %v2163 = vmul.f32 %v2140, %v2159
      %v2164 = vmul.f32 %v2142, %v2160
      %v2165 = vmul.f32 %v2144, %v2161
      %v2166 = vmul.f32 %v2146, %v2162
      %2167 = vrot.lane.b32.xlu0 %v805, 96
      %v2168 = vpop.permute.xlu0 %2167
      %2169 = vrot.lane.b32.xlu0 %v811, 96
      %v2170 = vpop.permute.xlu0 %2169
      %2171 = vrot.lane.b32.xlu0 %v817, 96
      %v2172 = vpop.permute.xlu0 %2171
      %2173 = vrot.lane.b32.xlu0 %v823, 96
      %v2174 = vpop.permute.xlu0 %2173
      %v2180 = vsel %vm951, %v2163, 0
      %v2183 = vsel %vm951, %v2164, 0
      %v2186 = vsel %vm951, %v2165, 0
      %v2189 = vsel %vm951, %v2166, 0
      %2191 = vmatprep.subr.mxu0 0.0
      %2192 = vmatpush1.msra.mxu0 %v2168
      %2193 = vmatprep.subr.mxu0 0.0
      %2194 = vmatpush1.msra.mxu0 %v2170
      %2195 = vmatprep.subr.mxu0 0.0
      %2196 = vmatpush1.msra.mxu0 %v2172
      %2197 = vmatprep.subr.mxu0 0.0
      %2198 = vmatpush1.msra.mxu0 %v2174
      %2199 = vmatprep.subr.mxu0 0.0
      %2200 = vmatpush1.msra.mxu0 0.0
      %2201 = vmatprep.subr.mxu0 0.0
      %2202 = vmatpush1.msra.mxu0 0.0
      %2203 = vmatprep.subr.mxu0 0.0
      %2204 = vmatpush1.msra.mxu0 0.0
      %2205 = vmatprep.subr.mxu0 0.0
      %2206 = vmatpush1.msra.mxu0 0.0
      %2207 = vmatprep.subr.mxu0 0.0
      %2208 = vmatpush1.msra.mxu0 0.0
      %2209 = vmatprep.subr.mxu0 0.0
      %2210 = vmatpush1.msra.mxu0 0.0
      %2211 = vmatprep.subr.mxu0 0.0
      %2212 = vmatpush1.msra.mxu0 0.0
      %2213 = vmatprep.subr.mxu0 0.0
      %2214 = vmatpush1.msra.mxu0 0.0
      %2215 = vmatprep.subr.mxu0 0.0
      %2216 = vmatpush1.msra.mxu0 0.0
      %2217 = vmatprep.subr.mxu0 0.0
      %2218 = vmatpush1.msra.mxu0 0.0
      %2219 = vmatprep.subr.mxu0 0.0
      %2220 = vmatpush1.msra.mxu0 0.0
      %2221 = vmatprep.subr.mxu0 0.0
      %2222 = vmatpush1.msra.mxu0 0.0
      %2223 = vmatprep.subr.mxu0 0.0
      %2224 = vmatpush1.msra.mxu0 0.0
      %2225 = vmatprep.subr.mxu0 0.0
      %2226 = vmatpush1.msra.mxu0 0.0
      %2227 = vmatprep.subr.mxu0 0.0
      %2228 = vmatpush1.msra.mxu0 0.0
      %2229 = vmatprep.subr.mxu0 0.0
      %2230 = vmatpush1.msra.mxu0 0.0
      %2231 = vmatprep.subr.mxu0 0.0
      %2232 = vmatpush1.msra.mxu0 0.0
      %2233 = vmatprep.subr.mxu0 0.0
      %2234 = vmatpush1.msra.mxu0 0.0
      %2235 = vmatprep.subr.mxu0 0.0
      %2236 = vmatpush1.msra.mxu0 0.0
      %2237 = vmatprep.subr.mxu0 0.0
      %2238 = vmatpush1.msra.mxu0 0.0
      %2239 = vmatprep.subr.mxu0 0.0
      %2240 = vmatpush1.msra.mxu0 0.0
      %2241 = vmatprep.subr.mxu0 0.0
      %2242 = vmatpush1.msra.mxu0 0.0
      %2243 = vmatprep.subr.mxu0 0.0
      %2244 = vmatpush1.msra.mxu0 0.0
      %2245 = vmatprep.subr.mxu0 0.0
      %2246 = vmatpush1.msra.mxu0 0.0
      %2247 = vmatprep.subr.mxu0 0.0
      %2248 = vmatpush1.msra.mxu0 0.0
      %2249 = vmatprep.subr.mxu0 0.0
      %2250 = vmatpush1.msra.mxu0 0.0
      %2251 = vmatprep.subr.mxu0 0.0
      %2252 = vmatpush1.msra.mxu0 0.0
      %2253 = vmatprep.subr.mxu0 0.0
      %2254 = vmatpush1.msra.mxu0 0.0
      %2255 = vmatprep.mubr.f32.mxu0 0.0
      %2256 = vmatmul.mubr.f32.gmra.mrb[0].mxu0 %v2180
      %v2257 = vpop.f32.mrb[0].mxu0
      %v2258 = vadd.f32 0.0, %v2257
      %v2259 = vpop.f32.mrb[0].mxu0
      %2260 = vmatprep.mubr.f32.mxu0 0.0
      %2261 = vmatmul.mubr.f32.gmra.mrb[0].mxu0 %v2183
      %v2262 = vpop.f32.mrb[0].mxu0
      %v2263 = vadd.f32 0.0, %v2262
      %v2264 = vpop.f32.mrb[0].mxu0
      %2265 = vmatprep.mubr.f32.mxu0 0.0
      %2266 = vmatmul.mubr.f32.gmra.mrb[0].mxu0 %v2186
      %v2267 = vpop.f32.mrb[0].mxu0
      %v2268 = vadd.f32 0.0, %v2267
      %v2269 = vpop.f32.mrb[0].mxu0
      %2270 = vmatprep.mubr.f32.mxu0 0.0
      %2271 = vmatmul.mubr.f32.gmra.mrb[0].mxu0 %v2189
      %v2272 = vpop.f32.mrb[0].mxu0
      %v2273 = vadd.f32 0.0, %v2272
      %v2274 = vpop.f32.mrb[0].mxu0
      %2275 = vdwg.mxu0
      %2280 = vrot.lane.b32.xlu0 %v2258, 32
      %v2281 = vpop.permute.xlu0 %2280
      %2282 = vrot.lane.b32.xlu0 %v2263, 32
      %v2283 = vpop.permute.xlu0 %2282
      %2284 = vrot.lane.b32.xlu0 %v2268, 32
      %v2285 = vpop.permute.xlu0 %2284
      %2286 = vrot.lane.b32.xlu0 %v2273, 32
      %v2287 = vpop.permute.xlu0 %2286
      %vm2292 = vcmask 326912
      %2293 = vst.msk [vmem:[#allocation2] sm:$0xff] %vm2292, %v2281
      %2294 = vst.msk [vmem:[#allocation2 + $0x8] sm:$0xff] %vm2292, %v2283
      %2295 = vst.msk [vmem:[#allocation2 + $0x10] sm:$0xff] %vm2292, %v2285
      %2296 = vst.msk [vmem:[#allocation2 + $0x18] sm:$0xff] %vm2292, %v2287
      %2297 = vrot.lane.b32.xlu0 %v803, 88
      %v2298 = vpop.permute.xlu0 %2297
      %2299 = vrot.lane.b32.xlu0 %v809, 88
      %v2300 = vpop.permute.xlu0 %2299
      %2301 = vrot.lane.b32.xlu0 %v815, 88
      %v2302 = vpop.permute.xlu0 %2301
      %2303 = vrot.lane.b32.xlu0 %v821, 88
      %v2304 = vpop.permute.xlu0 %2303
      %2305 = vrot.lane.b32.xlu0 %v803, 24
      %v2306 = vpop.permute.xlu0 %2305
      %2307 = vrot.lane.b32.xlu0 %v809, 24
      %v2308 = vpop.permute.xlu0 %2307
      %2309 = vrot.lane.b32.xlu0 %v815, 24
      %v2310 = vpop.permute.xlu0 %2309
      %2311 = vrot.lane.b32.xlu0 %v821, 24
      %v2312 = vpop.permute.xlu0 %2311
      %v2313 = vsel %vm841, %v2298, 0
      %v2315 = vsel %vm841, %v2300, 0
      %v2317 = vsel %vm841, %v2302, 0
      %v2319 = vsel %vm841, %v2304, 0
      %v2321 = vsel %vm841, %v2306, 0
      %v2323 = vsel %vm841, %v2308, 0
      %v2325 = vsel %vm841, %v2310, 0
      %v2327 = vsel %vm841, %v2312, 0
      %2329 = vmatprep.subr.mxu0 0.0
      %2330 = vmatpush1.xpose.msra.mxu0 %v2321
      %2331 = vmatprep.subr.mxu0 0.0
      %2332 = vmatpush1.xpose.msra.mxu0 %v2323
      %2333 = vmatprep.subr.mxu0 0.0
      %2334 = vmatpush1.xpose.msra.mxu0 %v2325
      %2335 = vmatprep.subr.mxu0 0.0
      %2336 = vmatpush1.xpose.msra.mxu0 %v2327
      %2337 = vmatprep.subr.mxu0 0.0
      %2338 = vmatpush1.xpose.msra.mxu0 0.0
      %2339 = vmatprep.subr.mxu0 0.0
      %2340 = vmatpush1.xpose.msra.mxu0 0.0
      %2341 = vmatprep.subr.mxu0 0.0
      %2342 = vmatpush1.xpose.msra.mxu0 0.0
      %2343 = vmatprep.subr.mxu0 0.0
      %2344 = vmatpush1.xpose.msra.mxu0 0.0
      %2345 = vmatprep.subr.mxu0 0.0
      %2346 = vmatpush1.xpose.msra.mxu0 0.0
      %2347 = vmatprep.subr.mxu0 0.0
      %2348 = vmatpush1.xpose.msra.mxu0 0.0
      %2349 = vmatprep.subr.mxu0 0.0
      %2350 = vmatpush1.xpose.msra.mxu0 0.0
      %2351 = vmatprep.subr.mxu0 0.0
      %2352 = vmatpush1.xpose.msra.mxu0 0.0
      %2353 = vmatprep.subr.mxu0 0.0
      %2354 = vmatpush1.xpose.msra.mxu0 0.0
      %2355 = vmatprep.subr.mxu0 0.0
      %2356 = vmatpush1.xpose.msra.mxu0 0.0
      %2357 = vmatprep.subr.mxu0 0.0
      %2358 = vmatpush1.xpose.msra.mxu0 0.0
      %2359 = vmatprep.subr.mxu0 0.0
      %2360 = vmatpush1.xpose.msra.mxu0 0.0
      %2361 = vmatprep.subr.mxu0 0.0
      %2362 = vmatpush1.xpose.msra.mxu0 0.0
      %2363 = vmatprep.subr.mxu0 0.0
      %2364 = vmatpush1.xpose.msra.mxu0 0.0
      %2365 = vmatprep.subr.mxu0 0.0
      %2366 = vmatpush1.xpose.msra.mxu0 0.0
      %2367 = vmatprep.subr.mxu0 0.0
      %2368 = vmatpush1.xpose.msra.mxu0 0.0
      %2369 = vmatprep.subr.mxu0 0.0
      %2370 = vmatpush1.xpose.msra.mxu0 0.0
      %2371 = vmatprep.subr.mxu0 0.0
      %2372 = vmatpush1.xpose.msra.mxu0 0.0
      %2373 = vmatprep.subr.mxu0 0.0
      %2374 = vmatpush1.xpose.msra.mxu0 0.0
      %2375 = vmatprep.subr.mxu0 0.0
      %2376 = vmatpush1.xpose.msra.mxu0 0.0
      %2377 = vmatprep.subr.mxu0 0.0
      %2378 = vmatpush1.xpose.msra.mxu0 0.0
      %2379 = vmatprep.subr.mxu0 0.0
      %2380 = vmatpush1.xpose.msra.mxu0 0.0
      %2381 = vmatprep.subr.mxu0 0.0
      %2382 = vmatpush1.xpose.msra.mxu0 0.0
      %2383 = vmatprep.subr.mxu0 0.0
      %2384 = vmatpush1.xpose.msra.mxu0 0.0
      %2385 = vmatprep.subr.mxu0 0.0
      %2386 = vmatpush1.xpose.msra.mxu0 0.0
      %2387 = vmatprep.subr.mxu0 0.0
      %2388 = vmatpush1.xpose.msra.mxu0 0.0
      %2389 = vmatprep.subr.mxu0 0.0
      %2390 = vmatpush1.xpose.msra.mxu0 0.0
      %2391 = vmatprep.subr.mxu0 0.0
      %2392 = vmatpush1.xpose.msra.mxu0 0.0
      %2393 = vmatprep.mubr.f32.mxu0 0.0
      %2394 = vmatmul.mubr.f32.gmra.mrb[0].mxu0 %v2313
      %v2395 = vpop.f32.mrb[0].mxu0
      %v2396 = vadd.f32 0.0, %v2395
      %v2397 = vpop.f32.mrb[0].mxu0
      %2398 = vmatprep.mubr.f32.mxu0 0.0
      %2399 = vmatmul.mubr.f32.gmra.mrb[0].mxu0 %v2315
      %v2400 = vpop.f32.mrb[0].mxu0
      %v2401 = vadd.f32 0.0, %v2400
      %v2402 = vpop.f32.mrb[0].mxu0
      %2403 = vmatprep.mubr.f32.mxu0 0.0
      %2404 = vmatmul.mubr.f32.gmra.mrb[0].mxu0 %v2317
      %v2405 = vpop.f32.mrb[0].mxu0
      %v2406 = vadd.f32 0.0, %v2405
      %v2407 = vpop.f32.mrb[0].mxu0
      %2408 = vmatprep.mubr.f32.mxu0 0.0
      %2409 = vmatmul.mubr.f32.gmra.mrb[0].mxu0 %v2319
      %v2410 = vpop.f32.mrb[0].mxu0
      %v2411 = vadd.f32 0.0, %v2410
      %v2412 = vpop.f32.mrb[0].mxu0
      %2413 = vdwg.mxu0
      %v2414 = vmul.f32 %v2396, 0.35355338
      %v2415 = vmul.f32 %v2401, 0.35355338
      %v2416 = vmul.f32 %v2406, 0.35355338
      %v2417 = vmul.f32 %v2411, 0.35355338
      %v2418 = vadd.f32 %v2414, %v825
      %v2419 = vadd.f32 %v2415, %v826
      %v2420 = vadd.f32 %v2416, %v827
      %v2421 = vadd.f32 %v2417, %v828
      %v2422 = vsel %vm951, %v2418, -inf
      %2423 = vmax.xlane.f32.xlu0 %v2422
      %v2424 = vpop.xlane.xlu0 %2423
      %v2425 = vsel %vm951, %v2419, -inf
      %2426 = vmax.xlane.f32.xlu0 %v2425
      %v2427 = vpop.xlane.xlu0 %2426
      %v2428 = vsel %vm951, %v2420, -inf
      %2429 = vmax.xlane.f32.xlu0 %v2428
      %v2430 = vpop.xlane.xlu0 %2429
      %v2431 = vsel %vm951, %v2421, -inf
      %2432 = vmax.xlane.f32.xlu0 %v2431
      %v2433 = vpop.xlane.xlu0 %2432
      %v2434 = vsub.f32 %v2418, %v2424
      %v2435 = vsub.f32 %v2419, %v2427
      %v2436 = vsub.f32 %v2420, %v2430
      %v2437 = vsub.f32 %v2421, %v2433
      %v2438 = vmul.f32 %v2434, 1.442695
      %v2439 = vpow.pop %v2438
      %v2440 = vmul.f32 %v2435, 1.442695
      %v2441 = vpow.pop %v2440
      %v2442 = vmul.f32 %v2436, 1.442695
      %v2443 = vpow.pop %v2442
      %v2444 = vmul.f32 %v2437, 1.442695
      %v2445 = vpow.pop %v2444
      %v2446 = vsel %vm951, %v2439, 0.0
      %2447 = vadd.xlane.f32.xlu0 %v2446
      %v2448 = vpop.xlane.xlu0 %2447
      %v2449 = vsel %vm951, %v2441, 0.0
      %2450 = vadd.xlane.f32.xlu0 %v2449
      %v2451 = vpop.xlane.xlu0 %2450
      %v2452 = vsel %vm951, %v2443, 0.0
      %2453 = vadd.xlane.f32.xlu0 %v2452
      %v2454 = vpop.xlane.xlu0 %2453
      %v2455 = vsel %vm951, %v2445, 0.0
      %2456 = vadd.xlane.f32.xlu0 %v2455
      %v2457 = vpop.xlane.xlu0 %2456
      %v2458 = vrcp.pop %v2448
      %v2459 = vrcp.pop %v2451
      %v2460 = vrcp.pop %v2454
      %v2461 = vrcp.pop %v2457
      %v2462 = vmul.f32 %v2439, %v2458
      %v2463 = vmul.f32 %v2441, %v2459
      %v2464 = vmul.f32 %v2443, %v2460
      %v2465 = vmul.f32 %v2445, %v2461
      %2466 = vrot.lane.b32.xlu0 %v805, 88
      %v2467 = vpop.permute.xlu0 %2466
      %2468 = vrot.lane.b32.xlu0 %v811, 88
      %v2469 = vpop.permute.xlu0 %2468
      %2470 = vrot.lane.b32.xlu0 %v817, 88
      %v2471 = vpop.permute.xlu0 %2470
      %2472 = vrot.lane.b32.xlu0 %v823, 88
      %v2473 = vpop.permute.xlu0 %2472
      %v2479 = vsel %vm951, %v2462, 0
      %v2482 = vsel %vm951, %v2463, 0
      %v2485 = vsel %vm951, %v2464, 0
      %v2488 = vsel %vm951, %v2465, 0
      %2490 = vmatprep.subr.mxu0 0.0
      %2491 = vmatpush1.msra.mxu0 %v2467
      %2492 = vmatprep.subr.mxu0 0.0
      %2493 = vmatpush1.msra.mxu0 %v2469
      %2494 = vmatprep.subr.mxu0 0.0
      %2495 = vmatpush1.msra.mxu0 %v2471
      %2496 = vmatprep.subr.mxu0 0.0
      %2497 = vmatpush1.msra.mxu0 %v2473
      %2498 = vmatprep.subr.mxu0 0.0
      %2499 = vmatpush1.msra.mxu0 0.0
      %2500 = vmatprep.subr.mxu0 0.0
      %2501 = vmatpush1.msra.mxu0 0.0
      %2502 = vmatprep.subr.mxu0 0.0
      %2503 = vmatpush1.msra.mxu0 0.0
      %2504 = vmatprep.subr.mxu0 0.0
      %2505 = vmatpush1.msra.mxu0 0.0
      %2506 = vmatprep.subr.mxu0 0.0
      %2507 = vmatpush1.msra.mxu0 0.0
      %2508 = vmatprep.subr.mxu0 0.0
      %2509 = vmatpush1.msra.mxu0 0.0
      %2510 = vmatprep.subr.mxu0 0.0
      %2511 = vmatpush1.msra.mxu0 0.0
      %2512 = vmatprep.subr.mxu0 0.0
      %2513 = vmatpush1.msra.mxu0 0.0
      %2514 = vmatprep.subr.mxu0 0.0
      %2515 = vmatpush1.msra.mxu0 0.0
      %2516 = vmatprep.subr.mxu0 0.0
      %2517 = vmatpush1.msra.mxu0 0.0
      %2518 = vmatprep.subr.mxu0 0.0
      %2519 = vmatpush1.msra.mxu0 0.0
      %2520 = vmatprep.subr.mxu0 0.0
      %2521 = vmatpush1.msra.mxu0 0.0
      %2522 = vmatprep.subr.mxu0 0.0
      %2523 = vmatpush1.msra.mxu0 0.0
      %2524 = vmatprep.subr.mxu0 0.0
      %2525 = vmatpush1.msra.mxu0 0.0
      %2526 = vmatprep.subr.mxu0 0.0
      %2527 = vmatpush1.msra.mxu0 0.0
      %2528 = vmatprep.subr.mxu0 0.0
      %2529 = vmatpush1.msra.mxu0 0.0
      %2530 = vmatprep.subr.mxu0 0.0
      %2531 = vmatpush1.msra.mxu0 0.0
      %2532 = vmatprep.subr.mxu0 0.0
      %2533 = vmatpush1.msra.mxu0 0.0
      %2534 = vmatprep.subr.mxu0 0.0
      %2535 = vmatpush1.msra.mxu0 0.0
      %2536 = vmatprep.subr.mxu0 0.0
      %2537 = vmatpush1.msra.mxu0 0.0
      %2538 = vmatprep.subr.mxu0 0.0
      %2539 = vmatpush1.msra.mxu0 0.0
      %2540 = vmatprep.subr.mxu0 0.0
      %2541 = vmatpush1.msra.mxu0 0.0
      %2542 = vmatprep.subr.mxu0 0.0
      %2543 = vmatpush1.msra.mxu0 0.0
      %2544 = vmatprep.subr.mxu0 0.0
      %2545 = vmatpush1.msra.mxu0 0.0
      %2546 = vmatprep.subr.mxu0 0.0
      %2547 = vmatpush1.msra.mxu0 0.0
      %2548 = vmatprep.subr.mxu0 0.0
      %2549 = vmatpush1.msra.mxu0 0.0
      %2550 = vmatprep.subr.mxu0 0.0
      %2551 = vmatpush1.msra.mxu0 0.0
      %2552 = vmatprep.subr.mxu0 0.0
      %2553 = vmatpush1.msra.mxu0 0.0
      %2554 = vmatprep.mubr.f32.mxu0 0.0
      %2555 = vmatmul.mubr.f32.gmra.mrb[0].mxu0 %v2479
      %v2556 = vpop.f32.mrb[0].mxu0
      %v2557 = vadd.f32 0.0, %v2556
      %v2558 = vpop.f32.mrb[0].mxu0
      %2559 = vmatprep.mubr.f32.mxu0 0.0
      %2560 = vmatmul.mubr.f32.gmra.mrb[0].mxu0 %v2482
      %v2561 = vpop.f32.mrb[0].mxu0
      %v2562 = vadd.f32 0.0, %v2561
      %v2563 = vpop.f32.mrb[0].mxu0
      %2564 = vmatprep.mubr.f32.mxu0 0.0
      %2565 = vmatmul.mubr.f32.gmra.mrb[0].mxu0 %v2485
      %v2566 = vpop.f32.mrb[0].mxu0
      %v2567 = vadd.f32 0.0, %v2566
      %v2568 = vpop.f32.mrb[0].mxu0
      %2569 = vmatprep.mubr.f32.mxu0 0.0
      %2570 = vmatmul.mubr.f32.gmra.mrb[0].mxu0 %v2488
      %v2571 = vpop.f32.mrb[0].mxu0
      %v2572 = vadd.f32 0.0, %v2571
      %v2573 = vpop.f32.mrb[0].mxu0
      %2574 = vdwg.mxu0
      %2579 = vrot.lane.b32.xlu0 %v2557, 40
      %v2580 = vpop.permute.xlu0 %2579
      %2581 = vrot.lane.b32.xlu0 %v2562, 40
      %v2582 = vpop.permute.xlu0 %2581
      %2583 = vrot.lane.b32.xlu0 %v2567, 40
      %v2584 = vpop.permute.xlu0 %2583
      %2585 = vrot.lane.b32.xlu0 %v2572, 40
      %v2586 = vpop.permute.xlu0 %2585
      %vm2591 = vcmask 392512
      %2592 = vst.msk [vmem:[#allocation2] sm:$0xff] %vm2591, %v2580
      %2593 = vst.msk [vmem:[#allocation2 + $0x8] sm:$0xff] %vm2591, %v2582
      %2594 = vst.msk [vmem:[#allocation2 + $0x10] sm:$0xff] %vm2591, %v2584
      %2595 = vst.msk [vmem:[#allocation2 + $0x18] sm:$0xff] %vm2591, %v2586
      %2596 = vrot.lane.b32.xlu0 %v803, 80
      %v2597 = vpop.permute.xlu0 %2596
      %2598 = vrot.lane.b32.xlu0 %v809, 80
      %v2599 = vpop.permute.xlu0 %2598
      %2600 = vrot.lane.b32.xlu0 %v815, 80
      %v2601 = vpop.permute.xlu0 %2600
      %2602 = vrot.lane.b32.xlu0 %v821, 80
      %v2603 = vpop.permute.xlu0 %2602
      %2604 = vrot.lane.b32.xlu0 %v803, 16
      %v2605 = vpop.permute.xlu0 %2604
      %2606 = vrot.lane.b32.xlu0 %v809, 16
      %v2607 = vpop.permute.xlu0 %2606
      %2608 = vrot.lane.b32.xlu0 %v815, 16
      %v2609 = vpop.permute.xlu0 %2608
      %2610 = vrot.lane.b32.xlu0 %v821, 16
      %v2611 = vpop.permute.xlu0 %2610
      %v2612 = vsel %vm841, %v2597, 0
      %v2614 = vsel %vm841, %v2599, 0
      %v2616 = vsel %vm841, %v2601, 0
      %v2618 = vsel %vm841, %v2603, 0
      %v2620 = vsel %vm841, %v2605, 0
      %v2622 = vsel %vm841, %v2607, 0
      %v2624 = vsel %vm841, %v2609, 0
      %v2626 = vsel %vm841, %v2611, 0
      %2628 = vmatprep.subr.mxu0 0.0
      %2629 = vmatpush1.xpose.msra.mxu0 %v2620
      %2630 = vmatprep.subr.mxu0 0.0
      %2631 = vmatpush1.xpose.msra.mxu0 %v2622
      %2632 = vmatprep.subr.mxu0 0.0
      %2633 = vmatpush1.xpose.msra.mxu0 %v2624
      %2634 = vmatprep.subr.mxu0 0.0
      %2635 = vmatpush1.xpose.msra.mxu0 %v2626
      %2636 = vmatprep.subr.mxu0 0.0
      %2637 = vmatpush1.xpose.msra.mxu0 0.0
      %2638 = vmatprep.subr.mxu0 0.0
      %2639 = vmatpush1.xpose.msra.mxu0 0.0
      %2640 = vmatprep.subr.mxu0 0.0
      %2641 = vmatpush1.xpose.msra.mxu0 0.0
      %2642 = vmatprep.subr.mxu0 0.0
      %2643 = vmatpush1.xpose.msra.mxu0 0.0
      %2644 = vmatprep.subr.mxu0 0.0
      %2645 = vmatpush1.xpose.msra.mxu0 0.0
      %2646 = vmatprep.subr.mxu0 0.0
      %2647 = vmatpush1.xpose.msra.mxu0 0.0
      %2648 = vmatprep.subr.mxu0 0.0
      %2649 = vmatpush1.xpose.msra.mxu0 0.0
      %2650 = vmatprep.subr.mxu0 0.0
      %2651 = vmatpush1.xpose.msra.mxu0 0.0
      %2652 = vmatprep.subr.mxu0 0.0
      %2653 = vmatpush1.xpose.msra.mxu0 0.0
      %2654 = vmatprep.subr.mxu0 0.0
      %2655 = vmatpush1.xpose.msra.mxu0 0.0
      %2656 = vmatprep.subr.mxu0 0.0
      %2657 = vmatpush1.xpose.msra.mxu0 0.0
      %2658 = vmatprep.subr.mxu0 0.0
      %2659 = vmatpush1.xpose.msra.mxu0 0.0
      %2660 = vmatprep.subr.mxu0 0.0
      %2661 = vmatpush1.xpose.msra.mxu0 0.0
      %2662 = vmatprep.subr.mxu0 0.0
      %2663 = vmatpush1.xpose.msra.mxu0 0.0
      %2664 = vmatprep.subr.mxu0 0.0
      %2665 = vmatpush1.xpose.msra.mxu0 0.0
      %2666 = vmatprep.subr.mxu0 0.0
      %2667 = vmatpush1.xpose.msra.mxu0 0.0
      %2668 = vmatprep.subr.mxu0 0.0
      %2669 = vmatpush1.xpose.msra.mxu0 0.0
      %2670 = vmatprep.subr.mxu0 0.0
      %2671 = vmatpush1.xpose.msra.mxu0 0.0
      %2672 = vmatprep.subr.mxu0 0.0
      %2673 = vmatpush1.xpose.msra.mxu0 0.0
      %2674 = vmatprep.subr.mxu0 0.0
      %2675 = vmatpush1.xpose.msra.mxu0 0.0
      %2676 = vmatprep.subr.mxu0 0.0
      %2677 = vmatpush1.xpose.msra.mxu0 0.0
      %2678 = vmatprep.subr.mxu0 0.0
      %2679 = vmatpush1.xpose.msra.mxu0 0.0
      %2680 = vmatprep.subr.mxu0 0.0
      %2681 = vmatpush1.xpose.msra.mxu0 0.0
      %2682 = vmatprep.subr.mxu0 0.0
      %2683 = vmatpush1.xpose.msra.mxu0 0.0
      %2684 = vmatprep.subr.mxu0 0.0
      %2685 = vmatpush1.xpose.msra.mxu0 0.0
      %2686 = vmatprep.subr.mxu0 0.0
      %2687 = vmatpush1.xpose.msra.mxu0 0.0
      %2688 = vmatprep.subr.mxu0 0.0
      %2689 = vmatpush1.xpose.msra.mxu0 0.0
      %2690 = vmatprep.subr.mxu0 0.0
      %2691 = vmatpush1.xpose.msra.mxu0 0.0
      %2692 = vmatprep.mubr.f32.mxu0 0.0
      %2693 = vmatmul.mubr.f32.gmra.mrb[0].mxu0 %v2612
      %v2694 = vpop.f32.mrb[0].mxu0
      %v2695 = vadd.f32 0.0, %v2694
      %v2696 = vpop.f32.mrb[0].mxu0
      %2697 = vmatprep.mubr.f32.mxu0 0.0
      %2698 = vmatmul.mubr.f32.gmra.mrb[0].mxu0 %v2614
      %v2699 = vpop.f32.mrb[0].mxu0
      %v2700 = vadd.f32 0.0, %v2699
      %v2701 = vpop.f32.mrb[0].mxu0
      %2702 = vmatprep.mubr.f32.mxu0 0.0
      %2703 = vmatmul.mubr.f32.gmra.mrb[0].mxu0 %v2616
      %v2704 = vpop.f32.mrb[0].mxu0
      %v2705 = vadd.f32 0.0, %v2704
      %v2706 = vpop.f32.mrb[0].mxu0
      %2707 = vmatprep.mubr.f32.mxu0 0.0
      %2708 = vmatmul.mubr.f32.gmra.mrb[0].mxu0 %v2618
      %v2709 = vpop.f32.mrb[0].mxu0
      %v2710 = vadd.f32 0.0, %v2709
      %v2711 = vpop.f32.mrb[0].mxu0
      %2712 = vdwg.mxu0
      %v2713 = vmul.f32 %v2695, 0.35355338
      %v2714 = vmul.f32 %v2700, 0.35355338
      %v2715 = vmul.f32 %v2705, 0.35355338
      %v2716 = vmul.f32 %v2710, 0.35355338
      %v2717 = vadd.f32 %v2713, %v825
      %v2718 = vadd.f32 %v2714, %v826
      %v2719 = vadd.f32 %v2715, %v827
      %v2720 = vadd.f32 %v2716, %v828
      %v2721 = vsel %vm951, %v2717, -inf
      %2722 = vmax.xlane.f32.xlu0 %v2721
      %v2723 = vpop.xlane.xlu0 %2722
      %v2724 = vsel %vm951, %v2718, -inf
      %2725 = vmax.xlane.f32.xlu0 %v2724
      %v2726 = vpop.xlane.xlu0 %2725
      %v2727 = vsel %vm951, %v2719, -inf
      %2728 = vmax.xlane.f32.xlu0 %v2727
      %v2729 = vpop.xlane.xlu0 %2728
      %v2730 = vsel %vm951, %v2720, -inf
      %2731 = vmax.xlane.f32.xlu0 %v2730
      %v2732 = vpop.xlane.xlu0 %2731
      %v2733 = vsub.f32 %v2717, %v2723
      %v2734 = vsub.f32 %v2718, %v2726
      %v2735 = vsub.f32 %v2719, %v2729
      %v2736 = vsub.f32 %v2720, %v2732
      %v2737 = vmul.f32 %v2733, 1.442695
      %v2738 = vpow.pop %v2737
      %v2739 = vmul.f32 %v2734, 1.442695
      %v2740 = vpow.pop %v2739
      %v2741 = vmul.f32 %v2735, 1.442695
      %v2742 = vpow.pop %v2741
      %v2743 = vmul.f32 %v2736, 1.442695
      %v2744 = vpow.pop %v2743
      %v2745 = vsel %vm951, %v2738, 0.0
      %2746 = vadd.xlane.f32.xlu0 %v2745
      %v2747 = vpop.xlane.xlu0 %2746
      %v2748 = vsel %vm951, %v2740, 0.0
      %2749 = vadd.xlane.f32.xlu0 %v2748
      %v2750 = vpop.xlane.xlu0 %2749
      %v2751 = vsel %vm951, %v2742, 0.0
      %2752 = vadd.xlane.f32.xlu0 %v2751
      %v2753 = vpop.xlane.xlu0 %2752
      %v2754 = vsel %vm951, %v2744, 0.0
      %2755 = vadd.xlane.f32.xlu0 %v2754
      %v2756 = vpop.xlane.xlu0 %2755
      %v2757 = vrcp.pop %v2747
      %v2758 = vrcp.pop %v2750
      %v2759 = vrcp.pop %v2753
      %v2760 = vrcp.pop %v2756
      %v2761 = vmul.f32 %v2738, %v2757
      %v2762 = vmul.f32 %v2740, %v2758
      %v2763 = vmul.f32 %v2742, %v2759
      %v2764 = vmul.f32 %v2744, %v2760
      %2765 = vrot.lane.b32.xlu0 %v805, 80
      %v2766 = vpop.permute.xlu0 %2765
      %2767 = vrot.lane.b32.xlu0 %v811, 80
      %v2768 = vpop.permute.xlu0 %2767
      %2769 = vrot.lane.b32.xlu0 %v817, 80
      %v2770 = vpop.permute.xlu0 %2769
      %2771 = vrot.lane.b32.xlu0 %v823, 80
      %v2772 = vpop.permute.xlu0 %2771
      %v2778 = vsel %vm951, %v2761, 0
      %v2781 = vsel %vm951, %v2762, 0
      %v2784 = vsel %vm951, %v2763, 0
      %v2787 = vsel %vm951, %v2764, 0
      %2789 = vmatprep.subr.mxu0 0.0
      %2790 = vmatpush1.msra.mxu0 %v2766
      %2791 = vmatprep.subr.mxu0 0.0
      %2792 = vmatpush1.msra.mxu0 %v2768
      %2793 = vmatprep.subr.mxu0 0.0
      %2794 = vmatpush1.msra.mxu0 %v2770
      %2795 = vmatprep.subr.mxu0 0.0
      %2796 = vmatpush1.msra.mxu0 %v2772
      %2797 = vmatprep.subr.mxu0 0.0
      %2798 = vmatpush1.msra.mxu0 0.0
      %2799 = vmatprep.subr.mxu0 0.0
      %2800 = vmatpush1.msra.mxu0 0.0
      %2801 = vmatprep.subr.mxu0 0.0
      %2802 = vmatpush1.msra.mxu0 0.0
      %2803 = vmatprep.subr.mxu0 0.0
      %2804 = vmatpush1.msra.mxu0 0.0
      %2805 = vmatprep.subr.mxu0 0.0
      %2806 = vmatpush1.msra.mxu0 0.0
      %2807 = vmatprep.subr.mxu0 0.0
      %2808 = vmatpush1.msra.mxu0 0.0
      %2809 = vmatprep.subr.mxu0 0.0
      %2810 = vmatpush1.msra.mxu0 0.0
      %2811 = vmatprep.subr.mxu0 0.0
      %2812 = vmatpush1.msra.mxu0 0.0
      %2813 = vmatprep.subr.mxu0 0.0
      %2814 = vmatpush1.msra.mxu0 0.0
      %2815 = vmatprep.subr.mxu0 0.0
      %2816 = vmatpush1.msra.mxu0 0.0
      %2817 = vmatprep.subr.mxu0 0.0
      %2818 = vmatpush1.msra.mxu0 0.0
      %2819 = vmatprep.subr.mxu0 0.0
      %2820 = vmatpush1.msra.mxu0 0.0
      %2821 = vmatprep.subr.mxu0 0.0
      %2822 = vmatpush1.msra.mxu0 0.0
      %2823 = vmatprep.subr.mxu0 0.0
      %2824 = vmatpush1.msra.mxu0 0.0
      %2825 = vmatprep.subr.mxu0 0.0
      %2826 = vmatpush1.msra.mxu0 0.0
      %2827 = vmatprep.subr.mxu0 0.0
      %2828 = vmatpush1.msra.mxu0 0.0
      %2829 = vmatprep.subr.mxu0 0.0
      %2830 = vmatpush1.msra.mxu0 0.0
      %2831 = vmatprep.subr.mxu0 0.0
      %2832 = vmatpush1.msra.mxu0 0.0
      %2833 = vmatprep.subr.mxu0 0.0
      %2834 = vmatpush1.msra.mxu0 0.0
      %2835 = vmatprep.subr.mxu0 0.0
      %2836 = vmatpush1.msra.mxu0 0.0
      %2837 = vmatprep.subr.mxu0 0.0
      %2838 = vmatpush1.msra.mxu0 0.0
      %2839 = vmatprep.subr.mxu0 0.0
      %2840 = vmatpush1.msra.mxu0 0.0
      %2841 = vmatprep.subr.mxu0 0.0
      %2842 = vmatpush1.msra.mxu0 0.0
      %2843 = vmatprep.subr.mxu0 0.0
      %2844 = vmatpush1.msra.mxu0 0.0
      %2845 = vmatprep.subr.mxu0 0.0
      %2846 = vmatpush1.msra.mxu0 0.0
      %2847 = vmatprep.subr.mxu0 0.0
      %2848 = vmatpush1.msra.mxu0 0.0
      %2849 = vmatprep.subr.mxu0 0.0
      %2850 = vmatpush1.msra.mxu0 0.0
      %2851 = vmatprep.subr.mxu0 0.0
      %2852 = vmatpush1.msra.mxu0 0.0
      %2853 = vmatprep.mubr.f32.mxu0 0.0
      %2854 = vmatmul.mubr.f32.gmra.mrb[0].mxu0 %v2778
      %v2855 = vpop.f32.mrb[0].mxu0
      %v2856 = vadd.f32 0.0, %v2855
      %v2857 = vpop.f32.mrb[0].mxu0
      %2858 = vmatprep.mubr.f32.mxu0 0.0
      %2859 = vmatmul.mubr.f32.gmra.mrb[0].mxu0 %v2781
      %v2860 = vpop.f32.mrb[0].mxu0
      %v2861 = vadd.f32 0.0, %v2860
      %v2862 = vpop.f32.mrb[0].mxu0
      %2863 = vmatprep.mubr.f32.mxu0 0.0
      %2864 = vmatmul.mubr.f32.gmra.mrb[0].mxu0 %v2784
      %v2865 = vpop.f32.mrb[0].mxu0
      %v2866 = vadd.f32 0.0, %v2865
      %v2867 = vpop.f32.mrb[0].mxu0
      %2868 = vmatprep.mubr.f32.mxu0 0.0
      %2869 = vmatmul.mubr.f32.gmra.mrb[0].mxu0 %v2787
      %v2870 = vpop.f32.mrb[0].mxu0
      %v2871 = vadd.f32 0.0, %v2870
      %v2872 = vpop.f32.mrb[0].mxu0
      %2873 = vdwg.mxu0
      %2878 = vrot.lane.b32.xlu0 %v2856, 48
      %v2879 = vpop.permute.xlu0 %2878
      %2880 = vrot.lane.b32.xlu0 %v2861, 48
      %v2881 = vpop.permute.xlu0 %2880
      %2882 = vrot.lane.b32.xlu0 %v2866, 48
      %v2883 = vpop.permute.xlu0 %2882
      %2884 = vrot.lane.b32.xlu0 %v2871, 48
      %v2885 = vpop.permute.xlu0 %2884
      %vm2890 = vcmask 458112
      %2891 = vst.msk [vmem:[#allocation2] sm:$0xff] %vm2890, %v2879
      %2892 = vst.msk [vmem:[#allocation2 + $0x8] sm:$0xff] %vm2890, %v2881
      %2893 = vst.msk [vmem:[#allocation2 + $0x10] sm:$0xff] %vm2890, %v2883
      %2894 = vst.msk [vmem:[#allocation2 + $0x18] sm:$0xff] %vm2890, %v2885
      %2895 = vrot.lane.b32.xlu0 %v803, 72
      %v2896 = vpop.permute.xlu0 %2895
      %2897 = vrot.lane.b32.xlu0 %v809, 72
      %v2898 = vpop.permute.xlu0 %2897
      %2899 = vrot.lane.b32.xlu0 %v815, 72
      %v2900 = vpop.permute.xlu0 %2899
      %2901 = vrot.lane.b32.xlu0 %v821, 72
      %v2902 = vpop.permute.xlu0 %2901
      %2903 = vrot.lane.b32.xlu0 %v803, 8
      %v2904 = vpop.permute.xlu0 %2903
      %2905 = vrot.lane.b32.xlu0 %v809, 8
      %v2906 = vpop.permute.xlu0 %2905
      %2907 = vrot.lane.b32.xlu0 %v815, 8
      %v2908 = vpop.permute.xlu0 %2907
      %2909 = vrot.lane.b32.xlu0 %v821, 8
      %v2910 = vpop.permute.xlu0 %2909
      %v2911 = vsel %vm841, %v2896, 0
      %v2913 = vsel %vm841, %v2898, 0
      %v2915 = vsel %vm841, %v2900, 0
      %v2917 = vsel %vm841, %v2902, 0
      %v2919 = vsel %vm841, %v2904, 0
      %v2921 = vsel %vm841, %v2906, 0
      %v2923 = vsel %vm841, %v2908, 0
      %v2925 = vsel %vm841, %v2910, 0
      %2927 = vmatprep.subr.mxu0 0.0
      %2928 = vmatpush1.xpose.msra.mxu0 %v2919
      %2929 = vmatprep.subr.mxu0 0.0
      %2930 = vmatpush1.xpose.msra.mxu0 %v2921
      %2931 = vmatprep.subr.mxu0 0.0
      %2932 = vmatpush1.xpose.msra.mxu0 %v2923
      %2933 = vmatprep.subr.mxu0 0.0
      %2934 = vmatpush1.xpose.msra.mxu0 %v2925
      %2935 = vmatprep.subr.mxu0 0.0
      %2936 = vmatpush1.xpose.msra.mxu0 0.0
      %2937 = vmatprep.subr.mxu0 0.0
      %2938 = vmatpush1.xpose.msra.mxu0 0.0
      %2939 = vmatprep.subr.mxu0 0.0
      %2940 = vmatpush1.xpose.msra.mxu0 0.0
      %2941 = vmatprep.subr.mxu0 0.0
      %2942 = vmatpush1.xpose.msra.mxu0 0.0
      %2943 = vmatprep.subr.mxu0 0.0
      %2944 = vmatpush1.xpose.msra.mxu0 0.0
      %2945 = vmatprep.subr.mxu0 0.0
      %2946 = vmatpush1.xpose.msra.mxu0 0.0
      %2947 = vmatprep.subr.mxu0 0.0
      %2948 = vmatpush1.xpose.msra.mxu0 0.0
      %2949 = vmatprep.subr.mxu0 0.0
      %2950 = vmatpush1.xpose.msra.mxu0 0.0
      %2951 = vmatprep.subr.mxu0 0.0
      %2952 = vmatpush1.xpose.msra.mxu0 0.0
      %2953 = vmatprep.subr.mxu0 0.0
      %2954 = vmatpush1.xpose.msra.mxu0 0.0
      %2955 = vmatprep.subr.mxu0 0.0
      %2956 = vmatpush1.xpose.msra.mxu0 0.0
      %2957 = vmatprep.subr.mxu0 0.0
      %2958 = vmatpush1.xpose.msra.mxu0 0.0
      %2959 = vmatprep.subr.mxu0 0.0
      %2960 = vmatpush1.xpose.msra.mxu0 0.0
      %2961 = vmatprep.subr.mxu0 0.0
      %2962 = vmatpush1.xpose.msra.mxu0 0.0
      %2963 = vmatprep.subr.mxu0 0.0
      %2964 = vmatpush1.xpose.msra.mxu0 0.0
      %2965 = vmatprep.subr.mxu0 0.0
      %2966 = vmatpush1.xpose.msra.mxu0 0.0
      %2967 = vmatprep.subr.mxu0 0.0
      %2968 = vmatpush1.xpose.msra.mxu0 0.0
      %2969 = vmatprep.subr.mxu0 0.0
      %2970 = vmatpush1.xpose.msra.mxu0 0.0
      %2971 = vmatprep.subr.mxu0 0.0
      %2972 = vmatpush1.xpose.msra.mxu0 0.0
      %2973 = vmatprep.subr.mxu0 0.0
      %2974 = vmatpush1.xpose.msra.mxu0 0.0
      %2975 = vmatprep.subr.mxu0 0.0
      %2976 = vmatpush1.xpose.msra.mxu0 0.0
      %2977 = vmatprep.subr.mxu0 0.0
      %2978 = vmatpush1.xpose.msra.mxu0 0.0
      %2979 = vmatprep.subr.mxu0 0.0
      %2980 = vmatpush1.xpose.msra.mxu0 0.0
      %2981 = vmatprep.subr.mxu0 0.0
      %2982 = vmatpush1.xpose.msra.mxu0 0.0
      %2983 = vmatprep.subr.mxu0 0.0
      %2984 = vmatpush1.xpose.msra.mxu0 0.0
      %2985 = vmatprep.subr.mxu0 0.0
      %2986 = vmatpush1.xpose.msra.mxu0 0.0
      %2987 = vmatprep.subr.mxu0 0.0
      %2988 = vmatpush1.xpose.msra.mxu0 0.0
      %2989 = vmatprep.subr.mxu0 0.0
      %2990 = vmatpush1.xpose.msra.mxu0 0.0
      %2991 = vmatprep.mubr.f32.mxu0 0.0
      %2992 = vmatmul.mubr.f32.gmra.mrb[0].mxu0 %v2911
      %v2993 = vpop.f32.mrb[0].mxu0
      %v2994 = vadd.f32 0.0, %v2993
      %v2995 = vpop.f32.mrb[0].mxu0
      %2996 = vmatprep.mubr.f32.mxu0 0.0
      %2997 = vmatmul.mubr.f32.gmra.mrb[0].mxu0 %v2913
      %v2998 = vpop.f32.mrb[0].mxu0
      %v2999 = vadd.f32 0.0, %v2998
      %v3000 = vpop.f32.mrb[0].mxu0
      %3001 = vmatprep.mubr.f32.mxu0 0.0
      %3002 = vmatmul.mubr.f32.gmra.mrb[0].mxu0 %v2915
      %v3003 = vpop.f32.mrb[0].mxu0
      %v3004 = vadd.f32 0.0, %v3003
      %v3005 = vpop.f32.mrb[0].mxu0
      %3006 = vmatprep.mubr.f32.mxu0 0.0
      %3007 = vmatmul.mubr.f32.gmra.mrb[0].mxu0 %v2917
      %v3008 = vpop.f32.mrb[0].mxu0
      %v3009 = vadd.f32 0.0, %v3008
      %v3010 = vpop.f32.mrb[0].mxu0
      %3011 = vdwg.mxu0
      %v3012 = vmul.f32 %v2994, 0.35355338
      %v3013 = vmul.f32 %v2999, 0.35355338
      %v3014 = vmul.f32 %v3004, 0.35355338
      %v3015 = vmul.f32 %v3009, 0.35355338
      %v3016 = vadd.f32 %v3012, %v825
      %v3017 = vadd.f32 %v3013, %v826
      %v3018 = vadd.f32 %v3014, %v827
      %v3019 = vadd.f32 %v3015, %v828
      %v3020 = vsel %vm951, %v3016, -inf
      %3021 = vmax.xlane.f32.xlu0 %v3020
      %v3022 = vpop.xlane.xlu0 %3021
      %v3023 = vsel %vm951, %v3017, -inf
      %3024 = vmax.xlane.f32.xlu0 %v3023
      %v3025 = vpop.xlane.xlu0 %3024
      %v3026 = vsel %vm951, %v3018, -inf
      %3027 = vmax.xlane.f32.xlu0 %v3026
      %v3028 = vpop.xlane.xlu0 %3027
      %v3029 = vsel %vm951, %v3019, -inf
      %3030 = vmax.xlane.f32.xlu0 %v3029
      %v3031 = vpop.xlane.xlu0 %3030
      %v3032 = vsub.f32 %v3016, %v3022
      %v3033 = vsub.f32 %v3017, %v3025
      %v3034 = vsub.f32 %v3018, %v3028
      %v3035 = vsub.f32 %v3019, %v3031
      %v3036 = vmul.f32 %v3032, 1.442695
      %v3037 = vpow.pop %v3036
      %v3038 = vmul.f32 %v3033, 1.442695
      %v3039 = vpow.pop %v3038
      %v3040 = vmul.f32 %v3034, 1.442695
      %v3041 = vpow.pop %v3040
      %v3042 = vmul.f32 %v3035, 1.442695
      %v3043 = vpow.pop %v3042
      %v3044 = vsel %vm951, %v3037, 0.0
      %3045 = vadd.xlane.f32.xlu0 %v3044
      %v3046 = vpop.xlane.xlu0 %3045
      %v3047 = vsel %vm951, %v3039, 0.0
      %3048 = vadd.xlane.f32.xlu0 %v3047
      %v3049 = vpop.xlane.xlu0 %3048
      %v3050 = vsel %vm951, %v3041, 0.0
      %3051 = vadd.xlane.f32.xlu0 %v3050
      %v3052 = vpop.xlane.xlu0 %3051
      %v3053 = vsel %vm951, %v3043, 0.0
      %3054 = vadd.xlane.f32.xlu0 %v3053
      %v3055 = vpop.xlane.xlu0 %3054
      %v3056 = vrcp.pop %v3046
      %v3057 = vrcp.pop %v3049
      %v3058 = vrcp.pop %v3052
      %v3059 = vrcp.pop %v3055
      %v3060 = vmul.f32 %v3037, %v3056
      %v3061 = vmul.f32 %v3039, %v3057
      %v3062 = vmul.f32 %v3041, %v3058
      %v3063 = vmul.f32 %v3043, %v3059
      %3064 = vrot.lane.b32.xlu0 %v805, 72
      %v3065 = vpop.permute.xlu0 %3064
      %3066 = vrot.lane.b32.xlu0 %v811, 72
      %v3067 = vpop.permute.xlu0 %3066
      %3068 = vrot.lane.b32.xlu0 %v817, 72
      %v3069 = vpop.permute.xlu0 %3068
      %3070 = vrot.lane.b32.xlu0 %v823, 72
      %v3071 = vpop.permute.xlu0 %3070
      %v3077 = vsel %vm951, %v3060, 0
      %v3080 = vsel %vm951, %v3061, 0
      %v3083 = vsel %vm951, %v3062, 0
      %v3086 = vsel %vm951, %v3063, 0
      %3088 = vmatprep.subr.mxu0 0.0
      %3089 = vmatpush1.msra.mxu0 %v3065
      %3090 = vmatprep.subr.mxu0 0.0
      %3091 = vmatpush1.msra.mxu0 %v3067
      %3092 = vmatprep.subr.mxu0 0.0
      %3093 = vmatpush1.msra.mxu0 %v3069
      %3094 = vmatprep.subr.mxu0 0.0
      %3095 = vmatpush1.msra.mxu0 %v3071
      %3096 = vmatprep.subr.mxu0 0.0
      %3097 = vmatpush1.msra.mxu0 0.0
      %3098 = vmatprep.subr.mxu0 0.0
      %3099 = vmatpush1.msra.mxu0 0.0
      %3100 = vmatprep.subr.mxu0 0.0
      %3101 = vmatpush1.msra.mxu0 0.0
      %3102 = vmatprep.subr.mxu0 0.0
      %3103 = vmatpush1.msra.mxu0 0.0
      %3104 = vmatprep.subr.mxu0 0.0
      %3105 = vmatpush1.msra.mxu0 0.0
      %3106 = vmatprep.subr.mxu0 0.0
      %3107 = vmatpush1.msra.mxu0 0.0
      %3108 = vmatprep.subr.mxu0 0.0
      %3109 = vmatpush1.msra.mxu0 0.0
      %3110 = vmatprep.subr.mxu0 0.0
      %3111 = vmatpush1.msra.mxu0 0.0
      %3112 = vmatprep.subr.mxu0 0.0
      %3113 = vmatpush1.msra.mxu0 0.0
      %3114 = vmatprep.subr.mxu0 0.0
      %3115 = vmatpush1.msra.mxu0 0.0
      %3116 = vmatprep.subr.mxu0 0.0
      %3117 = vmatpush1.msra.mxu0 0.0
      %3118 = vmatprep.subr.mxu0 0.0
      %3119 = vmatpush1.msra.mxu0 0.0
      %3120 = vmatprep.subr.mxu0 0.0
      %3121 = vmatpush1.msra.mxu0 0.0
      %3122 = vmatprep.subr.mxu0 0.0
      %3123 = vmatpush1.msra.mxu0 0.0
      %3124 = vmatprep.subr.mxu0 0.0
      %3125 = vmatpush1.msra.mxu0 0.0
      %3126 = vmatprep.subr.mxu0 0.0
      %3127 = vmatpush1.msra.mxu0 0.0
      %3128 = vmatprep.subr.mxu0 0.0
      %3129 = vmatpush1.msra.mxu0 0.0
      %3130 = vmatprep.subr.mxu0 0.0
      %3131 = vmatpush1.msra.mxu0 0.0
      %3132 = vmatprep.subr.mxu0 0.0
      %3133 = vmatpush1.msra.mxu0 0.0
      %3134 = vmatprep.subr.mxu0 0.0
      %3135 = vmatpush1.msra.mxu0 0.0
      %3136 = vmatprep.subr.mxu0 0.0
      %3137 = vmatpush1.msra.mxu0 0.0
      %3138 = vmatprep.subr.mxu0 0.0
      %3139 = vmatpush1.msra.mxu0 0.0
      %3140 = vmatprep.subr.mxu0 0.0
      %3141 = vmatpush1.msra.mxu0 0.0
      %3142 = vmatprep.subr.mxu0 0.0
      %3143 = vmatpush1.msra.mxu0 0.0
      %3144 = vmatprep.subr.mxu0 0.0
      %3145 = vmatpush1.msra.mxu0 0.0
      %3146 = vmatprep.subr.mxu0 0.0
      %3147 = vmatpush1.msra.mxu0 0.0
      %3148 = vmatprep.subr.mxu0 0.0
      %3149 = vmatpush1.msra.mxu0 0.0
      %3150 = vmatprep.subr.mxu0 0.0
      %3151 = vmatpush1.msra.mxu0 0.0
      %3152 = vmatprep.mubr.f32.mxu0 0.0
      %3153 = vmatmul.mubr.f32.gmra.mrb[0].mxu0 %v3077
      %v3154 = vpop.f32.mrb[0].mxu0
      %v3155 = vadd.f32 0.0, %v3154
      %v3156 = vpop.f32.mrb[0].mxu0
      %3157 = vmatprep.mubr.f32.mxu0 0.0
      %3158 = vmatmul.mubr.f32.gmra.mrb[0].mxu0 %v3080
      %v3159 = vpop.f32.mrb[0].mxu0
      %v3160 = vadd.f32 0.0, %v3159
      %v3161 = vpop.f32.mrb[0].mxu0
      %3162 = vmatprep.mubr.f32.mxu0 0.0
      %3163 = vmatmul.mubr.f32.gmra.mrb[0].mxu0 %v3083
      %v3164 = vpop.f32.mrb[0].mxu0
      %v3165 = vadd.f32 0.0, %v3164
      %v3166 = vpop.f32.mrb[0].mxu0
      %3167 = vmatprep.mubr.f32.mxu0 0.0
      %3168 = vmatmul.mubr.f32.gmra.mrb[0].mxu0 %v3086
      %v3169 = vpop.f32.mrb[0].mxu0
      %v3170 = vadd.f32 0.0, %v3169
      %v3171 = vpop.f32.mrb[0].mxu0
      %3172 = vdwg.mxu0
      %3177 = vrot.lane.b32.xlu0 %v3155, 56
      %v3178 = vpop.permute.xlu0 %3177
      %3179 = vrot.lane.b32.xlu0 %v3160, 56
      %v3180 = vpop.permute.xlu0 %3179
      %3181 = vrot.lane.b32.xlu0 %v3165, 56
      %v3182 = vpop.permute.xlu0 %3181
      %3183 = vrot.lane.b32.xlu0 %v3170, 56
      %v3184 = vpop.permute.xlu0 %3183
      %vm3189 = vcmask 523712
      %3190 = vst.msk [vmem:[#allocation2] sm:$0xff] %vm3189, %v3178
      %3191 = vst.msk [vmem:[#allocation2 + $0x8] sm:$0xff] %vm3189, %v3180
      %3192 = vst.msk [vmem:[#allocation2 + $0x10] sm:$0xff] %vm3189, %v3182
      %3193 = vst.msk [vmem:[#allocation2 + $0x18] sm:$0xff] %vm3189, %v3184
      %v3194 = vld [vmem:[#allocation2] sm:$0xff]
      %v3195 = vld [vmem:[#allocation2 + $0x8] sm:$0xff]
      %v3196 = vld [vmem:[#allocation2 + $0x10] sm:$0xff]
      %v3197 = vld [vmem:[#allocation2 + $0x18] sm:$0xff]
      %v3198 = vld [vmem:[%s640] sm:$0xff]
      %v3199 = vld [vmem:[%s640 + $0x8] sm:$0xff]
      %v3200 = vld [vmem:[%s640 + $0x10] sm:$0xff]
      %v3201 = vld [vmem:[%s640 + $0x18] sm:$0xff]
      %v3202 = vld [vmem:[%s640 + $0x20] sm:$0xff]
      %v3203 = vld [vmem:[%s640 + $0x28] sm:$0xff]
      %v3204 = vld [vmem:[%s640 + $0x30] sm:$0xff]
      %v3205 = vld [vmem:[%s640 + $0x38] sm:$0xff]
      %v3206 = vld [vmem:[%s643] sm:$0x1]
      %v3208 = vlaneseq
      %v3209 = vshrl.u32 %v3208, 7
      %v3210 = vsub.s32 0, %v3209
      %v3211 = vrot.slane %v3206, %v3210
      %v3214 = vsel %vm723, %v3194, 0
      %v3217 = vsel %vm723, %v3195, 0
      %v3220 = vsel %vm723, %v3196, 0
      %v3223 = vsel %vm723, %v3197, 0
      %3225 = vmatprep.subr.mxu0 0.0
      %3226 = vmatpush1.msra.mxu0 %v3198
      %3227 = vmatprep.subr.mxu0 0.0
      %3228 = vmatpush1.msra.mxu0 %v3199
      %3229 = vmatprep.subr.mxu0 0.0
      %3230 = vmatpush1.msra.mxu0 %v3200
      %3231 = vmatprep.subr.mxu0 0.0
      %3232 = vmatpush1.msra.mxu0 %v3201
      %3233 = vmatprep.subr.mxu0 0.0
      %3234 = vmatpush1.msra.mxu0 %v3202
      %3235 = vmatprep.subr.mxu0 0.0
      %3236 = vmatpush1.msra.mxu0 %v3203
      %3237 = vmatprep.subr.mxu0 0.0
      %3238 = vmatpush1.msra.mxu0 %v3204
      %3239 = vmatprep.subr.mxu0 0.0
      %3240 = vmatpush1.msra.mxu0 %v3205
      %3241 = vmatprep.subr.mxu0 0.0
      %3242 = vmatpush1.msra.mxu0 0.0
      %3243 = vmatprep.subr.mxu0 0.0
      %3244 = vmatpush1.msra.mxu0 0.0
      %3245 = vmatprep.subr.mxu0 0.0
      %3246 = vmatpush1.msra.mxu0 0.0
      %3247 = vmatprep.subr.mxu0 0.0
      %3248 = vmatpush1.msra.mxu0 0.0
      %3249 = vmatprep.subr.mxu0 0.0
      %3250 = vmatpush1.msra.mxu0 0.0
      %3251 = vmatprep.subr.mxu0 0.0
      %3252 = vmatpush1.msra.mxu0 0.0
      %3253 = vmatprep.subr.mxu0 0.0
      %3254 = vmatpush1.msra.mxu0 0.0
      %3255 = vmatprep.subr.mxu0 0.0
      %3256 = vmatpush1.msra.mxu0 0.0
      %3257 = vmatprep.subr.mxu0 0.0
      %3258 = vmatpush1.msra.mxu0 0.0
      %3259 = vmatprep.subr.mxu0 0.0
      %3260 = vmatpush1.msra.mxu0 0.0
      %3261 = vmatprep.subr.mxu0 0.0
      %3262 = vmatpush1.msra.mxu0 0.0
      %3263 = vmatprep.subr.mxu0 0.0
      %3264 = vmatpush1.msra.mxu0 0.0
      %3265 = vmatprep.subr.mxu0 0.0
      %3266 = vmatpush1.msra.mxu0 0.0
      %3267 = vmatprep.subr.mxu0 0.0
      %3268 = vmatpush1.msra.mxu0 0.0
      %3269 = vmatprep.subr.mxu0 0.0
      %3270 = vmatpush1.msra.mxu0 0.0
      %3271 = vmatprep.subr.mxu0 0.0
      %3272 = vmatpush1.msra.mxu0 0.0
      %3273 = vmatprep.subr.mxu0 0.0
      %3274 = vmatpush1.msra.mxu0 0.0
      %3275 = vmatprep.subr.mxu0 0.0
      %3276 = vmatpush1.msra.mxu0 0.0
      %3277 = vmatprep.subr.mxu0 0.0
      %3278 = vmatpush1.msra.mxu0 0.0
      %3279 = vmatprep.subr.mxu0 0.0
      %3280 = vmatpush1.msra.mxu0 0.0
      %3281 = vmatprep.subr.mxu0 0.0
      %3282 = vmatpush1.msra.mxu0 0.0
      %3283 = vmatprep.subr.mxu0 0.0
      %3284 = vmatpush1.msra.mxu0 0.0
      %3285 = vmatprep.subr.mxu0 0.0
      %3286 = vmatpush1.msra.mxu0 0.0
      %3287 = vmatprep.subr.mxu0 0.0
      %3288 = vmatpush1.msra.mxu0 0.0
      %3289 = vmatprep.mubr.f32.mxu0 0.0
      %3290 = vmatmul.mubr.f32.gmra.mrb[0].mxu0 %v3214
      %v3291 = vpop.f32.mrb[0].mxu0
      %v3292 = vadd.f32 %v3211, %v3291
      %v3293 = vpop.f32.mrb[0].mxu0
      %3294 = vmatprep.mubr.f32.mxu0 0.0
      %3295 = vmatmul.mubr.f32.gmra.mrb[0].mxu0 %v3217
      %v3296 = vpop.f32.mrb[0].mxu0
      %v3297 = vadd.f32 %v3211, %v3296
      %v3298 = vpop.f32.mrb[0].mxu0
      %3299 = vmatprep.mubr.f32.mxu0 0.0
      %3300 = vmatmul.mubr.f32.gmra.mrb[0].mxu0 %v3220
      %v3301 = vpop.f32.mrb[0].mxu0
      %v3302 = vadd.f32 %v3211, %v3301
      %v3303 = vpop.f32.mrb[0].mxu0
      %3304 = vmatprep.mubr.f32.mxu0 0.0
      %3305 = vmatmul.mubr.f32.gmra.mrb[0].mxu0 %v3223
      %v3306 = vpop.f32.mrb[0].mxu0
      %v3307 = vadd.f32 %v3211, %v3306
      %v3308 = vpop.f32.mrb[0].mxu0
      %3309 = vdwg.mxu0
      %v3310 = vadd.f32 %v3292, %v691
      %v3311 = vadd.f32 %v3297, %v692
      %v3312 = vadd.f32 %v3302, %v693
      %v3313 = vadd.f32 %v3307, %v694
      %v3314 = vld [vmem:[%s646] sm:$0x1]
      %v3315 = vld [vmem:[%s649] sm:$0x1]
      %v3316 = vsel %vm723, %v3310, 0.0
      %3317 = vadd.xlane.f32.xlu0 %v3316
      %v3318 = vpop.xlane.xlu0 %3317
      %v3319 = vsel %vm723, %v3311, 0.0
      %3320 = vadd.xlane.f32.xlu0 %v3319
      %v3321 = vpop.xlane.xlu0 %3320
      %v3322 = vsel %vm723, %v3312, 0.0
      %3323 = vadd.xlane.f32.xlu0 %v3322
      %v3324 = vpop.xlane.xlu0 %3323
      %v3325 = vsel %vm723, %v3313, 0.0
      %3326 = vadd.xlane.f32.xlu0 %v3325
      %v3327 = vpop.xlane.xlu0 %3326
      %v3328 = vrcp.pop 64.0
      %v3329 = vmul.f32 %v3318, %v3328
      %v3330 = vmul.f32 %v3321, %v3328
      %v3331 = vmul.f32 %v3324, %v3328
      %v3332 = vmul.f32 %v3327, %v3328
      %v3333 = vsub.f32 %v3310, %v3329
      %v3334 = vsub.f32 %v3311, %v3330
      %v3335 = vsub.f32 %v3312, %v3331
      %v3336 = vsub.f32 %v3313, %v3332
      %v3337 = vmul.f32 %v3333, %v3333
      %v3338 = vmul.f32 %v3334, %v3334
      %v3339 = vmul.f32 %v3335, %v3335
      %v3340 = vmul.f32 %v3336, %v3336
      %v3341 = vsel %vm723, %v3337, 0.0
      %3342 = vadd.xlane.f32.xlu0 %v3341
      %v3343 = vpop.xlane.xlu0 %3342
      %v3344 = vsel %vm723, %v3338, 0.0
      %3345 = vadd.xlane.f32.xlu0 %v3344
      %v3346 = vpop.xlane.xlu0 %3345
      %v3347 = vsel %vm723, %v3339, 0.0
      %3348 = vadd.xlane.f32.xlu0 %v3347
      %v3349 = vpop.xlane.xlu0 %3348
      %v3350 = vsel %vm723, %v3340, 0.0
      %3351 = vadd.xlane.f32.xlu0 %v3350
      %v3352 = vpop.xlane.xlu0 %3351
      %v3353 = vmul.f32 %v3343, %v3328
      %v3354 = vmul.f32 %v3346, %v3328
      %v3355 = vmul.f32 %v3349, %v3328
      %v3356 = vmul.f32 %v3352, %v3328
      %v3357 = vadd.f32 %v3353, 1e-05
      %v3358 = vadd.f32 %v3354, 1e-05
      %v3359 = vadd.f32 %v3355, 1e-05
      %v3360 = vadd.f32 %v3356, 1e-05
      %v3361 = vrsqrt.pop %v3357
      %v3362 = vrsqrt.pop %v3358
      %v3363 = vrsqrt.pop %v3359
      %v3364 = vrsqrt.pop %v3360
      %v3365 = vmul.f32 %v3333, %v3361
      %v3366 = vmul.f32 %v3334, %v3362
      %v3367 = vmul.f32 %v3335, %v3363
      %v3368 = vmul.f32 %v3336, %v3364
      %v3370 = vlaneseq
      %v3371 = vshrl.u32 %v3370, 7
      %v3372 = vsub.s32 0, %v3371
      %v3373 = vrot.slane %v3314, %v3372
      %v3375 = vmul.f32 %v3365, %v3373
      %v3376 = vmul.f32 %v3366, %v3373
      %v3377 = vmul.f32 %v3367, %v3373
      %v3378 = vmul.f32 %v3368, %v3373
      %v3380 = vlaneseq
      %v3381 = vshrl.u32 %v3380, 7
      %v3382 = vsub.s32 0, %v3381
      %v3383 = vrot.slane %v3315, %v3382
      %v3385 = vadd.f32 %v3375, %v3383
      %v3386 = vadd.f32 %v3376, %v3383
      %v3387 = vadd.f32 %v3377, %v3383
      %v3388 = vadd.f32 %v3378, %v3383
      %v3389 = vld [vmem:[%s654] sm:$0xff]
      %v3390 = vld [vmem:[%s654 + $0x8] sm:$0xff]
      %v3391 = vld [vmem:[%s654 + $0x10] sm:$0xff]
      %v3392 = vld [vmem:[%s654 + $0x18] sm:$0xff]
      %v3393 = vld [vmem:[%s654 + $0x20] sm:$0xff]
      %v3394 = vld [vmem:[%s654 + $0x28] sm:$0xff]
      %v3395 = vld [vmem:[%s654 + $0x30] sm:$0xff]
      %v3396 = vld [vmem:[%s654 + $0x38] sm:$0xff]
      %v3397 = vld [vmem:[%s657] sm:$0x1]
      %v3399 = vlaneseq
      %v3400 = vshrl.u32 %v3399, 7
      %v3401 = vsub.s32 0, %v3400
      %v3402 = vrot.slane %v3397, %v3401
      %v3405 = vsel %vm723, %v3385, 0
      %v3408 = vsel %vm723, %v3386, 0
      %v3411 = vsel %vm723, %v3387, 0
      %v3414 = vsel %vm723, %v3388, 0
      %3416 = vmatprep.subr.mxu0 0.0
      %3417 = vmatpush1.msra.mxu0 %v3389
      %3418 = vmatprep.subr.mxu0 0.0
      %3419 = vmatpush1.msra.mxu0 %v3390
      %3420 = vmatprep.subr.mxu0 0.0
      %3421 = vmatpush1.msra.mxu0 %v3391
      %3422 = vmatprep.subr.mxu0 0.0
      %3423 = vmatpush1.msra.mxu0 %v3392
      %3424 = vmatprep.subr.mxu0 0.0
      %3425 = vmatpush1.msra.mxu0 %v3393
      %3426 = vmatprep.subr.mxu0 0.0
      %3427 = vmatpush1.msra.mxu0 %v3394
      %3428 = vmatprep.subr.mxu0 0.0
      %3429 = vmatpush1.msra.mxu0 %v3395
      %3430 = vmatprep.subr.mxu0 0.0
      %3431 = vmatpush1.msra.mxu0 %v3396
      %3432 = vmatprep.subr.mxu0 0.0
      %3433 = vmatpush1.msra.mxu0 0.0
      %3434 = vmatprep.subr.mxu0 0.0
      %3435 = vmatpush1.msra.mxu0 0.0
      %3436 = vmatprep.subr.mxu0 0.0
      %3437 = vmatpush1.msra.mxu0 0.0
      %3438 = vmatprep.subr.mxu0 0.0
      %3439 = vmatpush1.msra.mxu0 0.0
      %3440 = vmatprep.subr.mxu0 0.0
      %3441 = vmatpush1.msra.mxu0 0.0
      %3442 = vmatprep.subr.mxu0 0.0
      %3443 = vmatpush1.msra.mxu0 0.0
      %3444 = vmatprep.subr.mxu0 0.0
      %3445 = vmatpush1.msra.mxu0 0.0
      %3446 = vmatprep.subr.mxu0 0.0
      %3447 = vmatpush1.msra.mxu0 0.0
      %3448 = vmatprep.subr.mxu0 0.0
      %3449 = vmatpush1.msra.mxu0 0.0
      %3450 = vmatprep.subr.mxu0 0.0
      %3451 = vmatpush1.msra.mxu0 0.0
      %3452 = vmatprep.subr.mxu0 0.0
      %3453 = vmatpush1.msra.mxu0 0.0
      %3454 = vmatprep.subr.mxu0 0.0
      %3455 = vmatpush1.msra.mxu0 0.0
      %3456 = vmatprep.subr.mxu0 0.0
      %3457 = vmatpush1.msra.mxu0 0.0
      %3458 = vmatprep.subr.mxu0 0.0
      %3459 = vmatpush1.msra.mxu0 0.0
      %3460 = vmatprep.subr.mxu0 0.0
      %3461 = vmatpush1.msra.mxu0 0.0
      %3462 = vmatprep.subr.mxu0 0.0
      %3463 = vmatpush1.msra.mxu0 0.0
      %3464 = vmatprep.subr.mxu0 0.0
      %3465 = vmatpush1.msra.mxu0 0.0
      %3466 = vmatprep.subr.mxu0 0.0
      %3467 = vmatpush1.msra.mxu0 0.0
      %3468 = vmatprep.subr.mxu0 0.0
      %3469 = vmatpush1.msra.mxu0 0.0
      %3470 = vmatprep.subr.mxu0 0.0
      %3471 = vmatpush1.msra.mxu0 0.0
      %3472 = vmatprep.subr.mxu0 0.0
      %3473 = vmatpush1.msra.mxu0 0.0
      %3474 = vmatprep.subr.mxu0 0.0
      %3475 = vmatpush1.msra.mxu0 0.0
      %3476 = vmatprep.subr.mxu0 0.0
      %3477 = vmatpush1.msra.mxu0 0.0
      %3478 = vmatprep.subr.mxu0 0.0
      %3479 = vmatpush1.msra.mxu0 0.0
      %3480 = vmatprep.mubr.f32.mxu0 0.0
      %3481 = vmatmul.mubr.f32.gmra.mrb[0].mxu0 %v3405
      %v3482 = vpop.f32.mrb[0].mxu0
      %v3483 = vadd.f32 %v3402, %v3482
      %v3484 = vpop.f32.mrb[0].mxu0
      %3485 = vmatprep.mubr.f32.mxu0 0.0
      %3486 = vmatmul.mubr.f32.gmra.mrb[0].mxu0 %v3408
      %v3487 = vpop.f32.mrb[0].mxu0
      %v3488 = vadd.f32 %v3402, %v3487
      %v3489 = vpop.f32.mrb[0].mxu0
      %3490 = vmatprep.mubr.f32.mxu0 0.0
      %3491 = vmatmul.mubr.f32.gmra.mrb[0].mxu0 %v3411
      %v3492 = vpop.f32.mrb[0].mxu0
      %v3493 = vadd.f32 %v3402, %v3492
      %v3494 = vpop.f32.mrb[0].mxu0
      %3495 = vmatprep.mubr.f32.mxu0 0.0
      %3496 = vmatmul.mubr.f32.gmra.mrb[0].mxu0 %v3414
      %v3497 = vpop.f32.mrb[0].mxu0
      %v3498 = vadd.f32 %v3402, %v3497
      %v3499 = vpop.f32.mrb[0].mxu0
      %3500 = vdwg.mxu0
      %v3501 = vmax.f32 %v3483, 0.0
      %v3502 = vmax.f32 %v3488, 0.0
      %v3503 = vmax.f32 %v3493, 0.0
      %v3504 = vmax.f32 %v3498, 0.0
      %v3505 = vld [vmem:[%s662] sm:$0xff]
      %v3506 = vld [vmem:[%s662 + $0x8] sm:$0xff]
      %v3507 = vld [vmem:[%s662 + $0x10] sm:$0xff]
      %v3508 = vld [vmem:[%s662 + $0x18] sm:$0xff]
      %v3509 = vld [vmem:[%s662 + $0x20] sm:$0xff]
      %v3510 = vld [vmem:[%s662 + $0x28] sm:$0xff]
      %v3511 = vld [vmem:[%s662 + $0x30] sm:$0xff]
      %v3512 = vld [vmem:[%s662 + $0x38] sm:$0xff]
      %v3513 = vld [vmem:[%s665] sm:$0x1]
      %v3515 = vlaneseq
      %v3516 = vshrl.u32 %v3515, 7
      %v3517 = vsub.s32 0, %v3516
      %v3518 = vrot.slane %v3513, %v3517
      %v3521 = vsel %vm723, %v3501, 0
      %v3524 = vsel %vm723, %v3502, 0
      %v3527 = vsel %vm723, %v3503, 0
      %v3530 = vsel %vm723, %v3504, 0
      %3532 = vmatprep.subr.mxu0 0.0
      %3533 = vmatpush1.msra.mxu0 %v3505
      %3534 = vmatprep.subr.mxu0 0.0
      %3535 = vmatpush1.msra.mxu0 %v3506
      %3536 = vmatprep.subr.mxu0 0.0
      %3537 = vmatpush1.msra.mxu0 %v3507
      %3538 = vmatprep.subr.mxu0 0.0
      %3539 = vmatpush1.msra.mxu0 %v3508
      %3540 = vmatprep.subr.mxu0 0.0
      %3541 = vmatpush1.msra.mxu0 %v3509
      %3542 = vmatprep.subr.mxu0 0.0
      %3543 = vmatpush1.msra.mxu0 %v3510
      %3544 = vmatprep.subr.mxu0 0.0
      %3545 = vmatpush1.msra.mxu0 %v3511
      %3546 = vmatprep.subr.mxu0 0.0
      %3547 = vmatpush1.msra.mxu0 %v3512
      %3548 = vmatprep.subr.mxu0 0.0
      %3549 = vmatpush1.msra.mxu0 0.0
      %3550 = vmatprep.subr.mxu0 0.0
      %3551 = vmatpush1.msra.mxu0 0.0
      %3552 = vmatprep.subr.mxu0 0.0
      %3553 = vmatpush1.msra.mxu0 0.0
      %3554 = vmatprep.subr.mxu0 0.0
      %3555 = vmatpush1.msra.mxu0 0.0
      %3556 = vmatprep.subr.mxu0 0.0
      %3557 = vmatpush1.msra.mxu0 0.0
      %3558 = vmatprep.subr.mxu0 0.0
      %3559 = vmatpush1.msra.mxu0 0.0
      %3560 = vmatprep.subr.mxu0 0.0
      %3561 = vmatpush1.msra.mxu0 0.0
      %3562 = vmatprep.subr.mxu0 0.0
      %3563 = vmatpush1.msra.mxu0 0.0
      %3564 = vmatprep.subr.mxu0 0.0
      %3565 = vmatpush1.msra.mxu0 0.0
      %3566 = vmatprep.subr.mxu0 0.0
      %3567 = vmatpush1.msra.mxu0 0.0
      %3568 = vmatprep.subr.mxu0 0.0
      %3569 = vmatpush1.msra.mxu0 0.0
      %3570 = vmatprep.subr.mxu0 0.0
      %3571 = vmatpush1.msra.mxu0 0.0
      %3572 = vmatprep.subr.mxu0 0.0
      %3573 = vmatpush1.msra.mxu0 0.0
      %3574 = vmatprep.subr.mxu0 0.0
      %3575 = vmatpush1.msra.mxu0 0.0
      %3576 = vmatprep.subr.mxu0 0.0
      %3577 = vmatpush1.msra.mxu0 0.0
      %3578 = vmatprep.subr.mxu0 0.0
      %3579 = vmatpush1.msra.mxu0 0.0
      %3580 = vmatprep.subr.mxu0 0.0
      %3581 = vmatpush1.msra.mxu0 0.0
      %3582 = vmatprep.subr.mxu0 0.0
      %3583 = vmatpush1.msra.mxu0 0.0
      %3584 = vmatprep.subr.mxu0 0.0
      %3585 = vmatpush1.msra.mxu0 0.0
      %3586 = vmatprep.subr.mxu0 0.0
      %3587 = vmatpush1.msra.mxu0 0.0
      %3588 = vmatprep.subr.mxu0 0.0
      %3589 = vmatpush1.msra.mxu0 0.0
      %3590 = vmatprep.subr.mxu0 0.0
      %3591 = vmatpush1.msra.mxu0 0.0
      %3592 = vmatprep.subr.mxu0 0.0
      %3593 = vmatpush1.msra.mxu0 0.0
      %3594 = vmatprep.subr.mxu0 0.0
      %3595 = vmatpush1.msra.mxu0 0.0
      %3596 = vmatprep.mubr.f32.mxu0 0.0
      %3597 = vmatmul.mubr.f32.gmra.mrb[0].mxu0 %v3521
      %v3598 = vpop.f32.mrb[0].mxu0
      %v3599 = vadd.f32 %v3518, %v3598
      %v3600 = vpop.f32.mrb[0].mxu0
      %3601 = vmatprep.mubr.f32.mxu0 0.0
      %3602 = vmatmul.mubr.f32.gmra.mrb[0].mxu0 %v3524
      %v3603 = vpop.f32.mrb[0].mxu0
      %v3604 = vadd.f32 %v3518, %v3603
      %v3605 = vpop.f32.mrb[0].mxu0
      %3606 = vmatprep.mubr.f32.mxu0 0.0
      %3607 = vmatmul.mubr.f32.gmra.mrb[0].mxu0 %v3527
      %v3608 = vpop.f32.mrb[0].mxu0
      %v3609 = vadd.f32 %v3518, %v3608
      %v3610 = vpop.f32.mrb[0].mxu0
      %3611 = vmatprep.mubr.f32.mxu0 0.0
      %3612 = vmatmul.mubr.f32.gmra.mrb[0].mxu0 %v3530
      %v3613 = vpop.f32.mrb[0].mxu0
      %v3614 = vadd.f32 %v3518, %v3613
      %v3615 = vpop.f32.mrb[0].mxu0
      %3616 = vdwg.mxu0
      %v3617 = vadd.f32 %v3599, %v3385
      %v3618 = vadd.f32 %v3604, %v3386
      %v3619 = vadd.f32 %v3609, %v3387
      %v3620 = vadd.f32 %v3614, %v3388
      %v3621 = vld [vmem:[%s668] sm:$0x1]
      %v3622 = vld [vmem:[%s671] sm:$0x1]
      %v3623 = vsel %vm723, %v3617, 0.0
      %3624 = vadd.xlane.f32.xlu0 %v3623
      %v3625 = vpop.xlane.xlu0 %3624
      %v3626 = vsel %vm723, %v3618, 0.0
      %3627 = vadd.xlane.f32.xlu0 %v3626
      %v3628 = vpop.xlane.xlu0 %3627
      %v3629 = vsel %vm723, %v3619, 0.0
      %3630 = vadd.xlane.f32.xlu0 %v3629
      %v3631 = vpop.xlane.xlu0 %3630
      %v3632 = vsel %vm723, %v3620, 0.0
      %3633 = vadd.xlane.f32.xlu0 %v3632
      %v3634 = vpop.xlane.xlu0 %3633
      %v3635 = vmul.f32 %v3625, %v3328
      %v3636 = vmul.f32 %v3628, %v3328
      %v3637 = vmul.f32 %v3631, %v3328
      %v3638 = vmul.f32 %v3634, %v3328
      %v3639 = vsub.f32 %v3617, %v3635
      %v3640 = vsub.f32 %v3618, %v3636
      %v3641 = vsub.f32 %v3619, %v3637
      %v3642 = vsub.f32 %v3620, %v3638
      %v3643 = vmul.f32 %v3639, %v3639
      %v3644 = vmul.f32 %v3640, %v3640
      %v3645 = vmul.f32 %v3641, %v3641
      %v3646 = vmul.f32 %v3642, %v3642
      %v3647 = vsel %vm723, %v3643, 0.0
      %3648 = vadd.xlane.f32.xlu0 %v3647
      %v3649 = vpop.xlane.xlu0 %3648
      %v3650 = vsel %vm723, %v3644, 0.0
      %3651 = vadd.xlane.f32.xlu0 %v3650
      %v3652 = vpop.xlane.xlu0 %3651
      %v3653 = vsel %vm723, %v3645, 0.0
      %3654 = vadd.xlane.f32.xlu0 %v3653
      %v3655 = vpop.xlane.xlu0 %3654
      %v3656 = vsel %vm723, %v3646, 0.0
      %3657 = vadd.xlane.f32.xlu0 %v3656
      %v3658 = vpop.xlane.xlu0 %3657
      %v3659 = vmul.f32 %v3649, %v3328
      %v3660 = vmul.f32 %v3652, %v3328
      %v3661 = vmul.f32 %v3655, %v3328
      %v3662 = vmul.f32 %v3658, %v3328
      %v3663 = vadd.f32 %v3659, 1e-05
      %v3664 = vadd.f32 %v3660, 1e-05
      %v3665 = vadd.f32 %v3661, 1e-05
      %v3666 = vadd.f32 %v3662, 1e-05
      %v3667 = vrsqrt.pop %v3663
      %v3668 = vrsqrt.pop %v3664
      %v3669 = vrsqrt.pop %v3665
      %v3670 = vrsqrt.pop %v3666
      %v3671 = vmul.f32 %v3639, %v3667
      %v3672 = vmul.f32 %v3640, %v3668
      %v3673 = vmul.f32 %v3641, %v3669
      %v3674 = vmul.f32 %v3642, %v3670
      %v3676 = vlaneseq
      %v3677 = vshrl.u32 %v3676, 7
      %v3678 = vsub.s32 0, %v3677
      %v3679 = vrot.slane %v3621, %v3678
      %v3681 = vmul.f32 %v3671, %v3679
      %v3682 = vmul.f32 %v3672, %v3679
      %v3683 = vmul.f32 %v3673, %v3679
      %v3684 = vmul.f32 %v3674, %v3679
      %v3686 = vlaneseq
      %v3687 = vshrl.u32 %v3686, 7
      %v3688 = vsub.s32 0, %v3687
      %v3689 = vrot.slane %v3622, %v3688
      %v3691 = vadd.f32 %v3681, %v3689
      %v3692 = vadd.f32 %v3682, %v3689
      %v3693 = vadd.f32 %v3683, %v3689
      %v3694 = vadd.f32 %v3684, %v3689
      %3695 = vst.msk [vmem:[%s676] sm:$0xff] %vm723, %v3691
      %3696 = vst.msk [vmem:[%s676 + $0x8] sm:$0xff] %vm723, %v3692
      %3697 = vst.msk [vmem:[%s676 + $0x10] sm:$0xff] %vm723, %v3693
      %3698 = vst.msk [vmem:[%s676 + $0x18] sm:$0xff] %vm723, %v3694
      %s3699 = smul.u32 4, %s29
      %p3700 = scmp.lt.s32.totalorder %s3699, 7
      %s3701 = scalar_select %p3700, %s3699, 7
      %s3702 = smul.addr %s3701, 8
      %s3703 = scalar_lea.vmem %s14, %s3702
      // Predicated region
      $region81: #{forward.6} parent=75 // pred_check
        %p3704 = pneg %p414
      $region82: #{forward.6} parent=75 // pred_check_branch
        %3706 = sbr.rel (%p3704) target = $region84
      $region83: #{forward.6} parent=75 // pred_region
        %s3707 = smul.u32 4, %s29
      $region84: #{forward.6} parent=75 // pred_fallthru
        _
    $region76: #{forward.6} parent=5 // pred_fallthru
      _
    %p3708 = scmp.le.s32.totalorder 2, %s20
    // Predicated region
    $region85: #{forward.6} parent=5 // pred_check
      %p3709 = pneg %p3708
    $region86: #{forward.6} parent=5 // pred_check_branch
      %3711 = sbr.rel (%p3709) target = $region88
    $region87: #{forward.6} parent=5 // pred_region
      %s3712 = ssub.s32 %s20, 2
      // Predicated region
      $region89: #{forward.6} parent=87 // pred_check
        %p3713 = pneg %p420
      $region90: #{forward.6} parent=87 // pred_check_branch
        %3715 = sbr.rel (%p3713) target = $region92
      $region91: #{forward.6} parent=87 // pred_region
        %s3716 = smul.u32 4, %s31
        %p3717 = scmp.lt.s32.totalorder %s3716, 7
        %s3718 = scalar_select %p3717, %s3716, 7
        %s3719 = smul.addr %s3718, 8
        %s3720 = scalar_lea.vmem %s14, %s3719
      $region92: #{forward.6} parent=87 // pred_fallthru
        _
    $region88: #{forward.6} parent=5 // pred_fallthru
      _
  $region6: #{forward.6} parent=0 // loop_footer
    %s24 = sadd.s32 1, %s20
  $region7: #{forward.6} parent=0 // loop_footer_branch
    %19 = sbr.rel target = $region3
  $region8: #{forward.6} parent=0 // loop_exit
    _

// kernel: forward.9
$region0: #{forward.9}
  #allocation0 [shape = 'u32[]', space=smem, size = 0x4, offset = 0x4, fixed_abs, tag = 'smem constant byte address 0x4 - core index']
  #allocation1 [shape = 'u32[144,128]{1,0:T(1,128)}', space=vmem, size = 0x12000, scoped, tag = 'internal scratch']
  %s0 = inlined_call_operand.vmem [shape: f32[2,512], index: 0, kind: input, shape index: {}]
  %s1 = inlined_call_operand.vmem [shape: f32[512,256], index: 1, kind: input, shape index: {}]
  %s2 = inlined_call_operand.vmem [shape: f32[1,256], index: 2, kind: input, shape index: {}]
  %s3 = inlined_call_operand.vmem [shape: f32[256,64], index: 3, kind: input, shape index: {}]
  %s4 = inlined_call_operand.vmem [shape: f32[1,64], index: 4, kind: input, shape index: {}]
  %s5 = inlined_call_operand.vmem [shape: f32[1,64], index: 5, kind: input, shape index: {}]
  %s6 = inlined_call_operand.vmem [shape: f32[64,64], index: 6, kind: input, shape index: {}]
  %s7 = inlined_call_operand.vmem [shape: f32[1,64], index: 7, kind: input, shape index: {}]
  %s8 = inlined_call_operand.vmem [shape: f32[64,512], index: 8, kind: input, shape index: {}]
  %s9 = inlined_call_operand.vmem [shape: f32[1,512], index: 9, kind: input, shape index: {}]
  %s10 = inlined_call_operand.vmem [shape: f32[512,16], index: 10, kind: input, shape index: {}]
  %s11 = inlined_call_operand.vmem [shape: f32[1,16], index: 11, kind: input, shape index: {}]
  %s12 = inlined_call_operand.hbm [shape: f32[2,16], index: 12, kind: output, shape index: {}]
  %s13 = sld [smem:[#allocation0]]
  $region58: #{forward.9} parent=0
    _
  %s15 = ssub.s32 1, %s13
  %s16 = scalar_select 0, %s15, %s13
  $region1: #{forward.9} parent=0
    #allocation2 [shape = 'u8[1024]{0}', space=vmem, size = 0x400, scoped, tag = 'output window, operand 0, single buffered']
    #allocation3 [shape = 's32[1]{0}', space=sflag, size = 0x4, scoped, tag = 'scoped memory for forward.9']
    %17 = vsyncpa [#allocation3], 0
    // Predicated region
    $region2: #{forward.9} parent=1 // pred_check
      _
    $region3: #{forward.9} parent=1 // pred_check_branch
      %19 = sbr.rel (0) target = $region5
    $region4: #{forward.9} parent=1 // pred_region
      _
    $region5: #{forward.9} parent=1 // pred_fallthru
      _
    // Predicated region
    $region6: #{forward.9} parent=1 // pred_check
      _
    $region7: #{forward.9} parent=1 // pred_check_branch
      %21 = sbr.rel (0) target = $region9
    $region8: #{forward.9} parent=1 // pred_region
      _
    $region9: #{forward.9} parent=1 // pred_fallthru
      _
    // Predicated region
    $region10: #{forward.9} parent=1 // pred_check
      _
    $region11: #{forward.9} parent=1 // pred_check_branch
      %23 = sbr.rel (0) target = $region13
    $region12: #{forward.9} parent=1 // pred_region
      _
    $region13: #{forward.9} parent=1 // pred_fallthru
      _
    // Predicated region
    $region14: #{forward.9} parent=1 // pred_check
      _
    $region15: #{forward.9} parent=1 // pred_check_branch
      %25 = sbr.rel (0) target = $region17
    $region16: #{forward.9} parent=1 // pred_region
      _
    $region17: #{forward.9} parent=1 // pred_fallthru
      _
    // Predicated region
    $region18: #{forward.9} parent=1 // pred_check
      _
    $region19: #{forward.9} parent=1 // pred_check_branch
      %27 = sbr.rel (0) target = $region21
    $region20: #{forward.9} parent=1 // pred_region
      _
    $region21: #{forward.9} parent=1 // pred_fallthru
      _
    // Predicated region
    $region22: #{forward.9} parent=1 // pred_check
      _
    $region23: #{forward.9} parent=1 // pred_check_branch
      %29 = sbr.rel (0) target = $region25
    $region24: #{forward.9} parent=1 // pred_region
      _
    $region25: #{forward.9} parent=1 // pred_fallthru
      _
    // Predicated region
    $region26: #{forward.9} parent=1 // pred_check
      _
    $region27: #{forward.9} parent=1 // pred_check_branch
      %31 = sbr.rel (0) target = $region29
    $region28: #{forward.9} parent=1 // pred_region
      _
    $region29: #{forward.9} parent=1 // pred_fallthru
      _
    // Predicated region
    $region30: #{forward.9} parent=1 // pred_check
      _
    $region31: #{forward.9} parent=1 // pred_check_branch
      %33 = sbr.rel (0) target = $region33
    $region32: #{forward.9} parent=1 // pred_region
      _
    $region33: #{forward.9} parent=1 // pred_fallthru
      _
    // Predicated region
    $region34: #{forward.9} parent=1 // pred_check
      _
    $region35: #{forward.9} parent=1 // pred_check_branch
      %35 = sbr.rel (0) target = $region37
    $region36: #{forward.9} parent=1 // pred_region
      _
    $region37: #{forward.9} parent=1 // pred_fallthru
      _
    // Predicated region
    $region38: #{forward.9} parent=1 // pred_check
      _
    $region39: #{forward.9} parent=1 // pred_check_branch
      %37 = sbr.rel (0) target = $region41
    $region40: #{forward.9} parent=1 // pred_region
      _
    $region41: #{forward.9} parent=1 // pred_fallthru
      _
    // Predicated region
    $region42: #{forward.9} parent=1 // pred_check
      _
    $region43: #{forward.9} parent=1 // pred_check_branch
      %39 = sbr.rel (0) target = $region45
    $region44: #{forward.9} parent=1 // pred_region
      _
    $region45: #{forward.9} parent=1 // pred_fallthru
      _
    // Predicated region
    $region46: #{forward.9} parent=1 // pred_check
      _
    $region47: #{forward.9} parent=1 // pred_check_branch
      %41 = sbr.rel (0) target = $region49
    $region48: #{forward.9} parent=1 // pred_region
      _
    $region49: #{forward.9} parent=1 // pred_fallthru
      _
    %v42 = vld [vmem:[%s0] sm:$0xff]
    %v43 = vld [vmem:[%s1] sm:$0xff]
    %v44 = vld [vmem:[%s1 + $0x8] sm:$0xff]
    %v45 = vld [vmem:[%s1 + $0x10] sm:$0xff]
    %v46 = vld [vmem:[%s1 + $0x18] sm:$0xff]
    %v47 = vld [vmem:[%s1 + $0x20] sm:$0xff]
    %v48 = vld [vmem:[%s1 + $0x28] sm:$0xff]
    %v49 = vld [vmem:[%s1 + $0x30] sm:$0xff]
    %v50 = vld [vmem:[%s1 + $0x38] sm:$0xff]
    %v51 = vld [vmem:[%s1 + $0x40] sm:$0xff]
    %v52 = vld [vmem:[%s1 + $0x48] sm:$0xff]
    %v53 = vld [vmem:[%s1 + $0x50] sm:$0xff]
    %v54 = vld [vmem:[%s1 + $0x58] sm:$0xff]
    %v55 = vld [vmem:[%s1 + $0x60] sm:$0xff]
    %v56 = vld [vmem:[%s1 + $0x68] sm:$0xff]
    %v57 = vld [vmem:[%s1 + $0x70] sm:$0xff]
    %v58 = vld [vmem:[%s1 + $0x78] sm:$0xff]
    %v59 = vld [vmem:[%s1 + $0x80] sm:$0xff]
    %v60 = vld [vmem:[%s1 + $0x88] sm:$0xff]
    %v61 = vld [vmem:[%s1 + $0x90] sm:$0xff]
    %v62 = vld [vmem:[%s1 + $0x98] sm:$0xff]
    %v63 = vld [vmem:[%s1 + $0xa0] sm:$0xff]
    %v64 = vld [vmem:[%s1 + $0xa8] sm:$0xff]
    %v65 = vld [vmem:[%s1 + $0xb0] sm:$0xff]
    %v66 = vld [vmem:[%s1 + $0xb8] sm:$0xff]
    %v67 = vld [vmem:[%s1 + $0xc0] sm:$0xff]
    %v68 = vld [vmem:[%s1 + $0xc8] sm:$0xff]
    %v69 = vld [vmem:[%s1 + $0xd0] sm:$0xff]
    %v70 = vld [vmem:[%s1 + $0xd8] sm:$0xff]
    %v71 = vld [vmem:[%s1 + $0xe0] sm:$0xff]
    %v72 = vld [vmem:[%s1 + $0xe8] sm:$0xff]
    %v73 = vld [vmem:[%s1 + $0xf0] sm:$0xff]
    %v74 = vld [vmem:[%s1 + $0xf8] sm:$0xff]
    %v75 = vld [vmem:[%s1 + $0x100] sm:$0xff]
    %v76 = vld [vmem:[%s1 + $0x108] sm:$0xff]
    %v77 = vld [vmem:[%s1 + $0x110] sm:$0xff]
    %v78 = vld [vmem:[%s1 + $0x118] sm:$0xff]
    %v79 = vld [vmem:[%s1 + $0x120] sm:$0xff]
    %v80 = vld [vmem:[%s1 + $0x128] sm:$0xff]
    %v81 = vld [vmem:[%s1 + $0x130] sm:$0xff]
    %v82 = vld [vmem:[%s1 + $0x138] sm:$0xff]
    %v83 = vld [vmem:[%s1 + $0x140] sm:$0xff]
    %v84 = vld [vmem:[%s1 + $0x148] sm:$0xff]
    %v85 = vld [vmem:[%s1 + $0x150] sm:$0xff]
    %v86 = vld [vmem:[%s1 + $0x158] sm:$0xff]
    %v87 = vld [vmem:[%s1 + $0x160] sm:$0xff]
    %v88 = vld [vmem:[%s1 + $0x168] sm:$0xff]
    %v89 = vld [vmem:[%s1 + $0x170] sm:$0xff]
    %v90 = vld [vmem:[%s1 + $0x178] sm:$0xff]
    %v91 = vld [vmem:[%s1 + $0x180] sm:$0xff]
    %v92 = vld [vmem:[%s1 + $0x188] sm:$0xff]
    %v93 = vld [vmem:[%s1 + $0x190] sm:$0xff]
    %v94 = vld [vmem:[%s1 + $0x198] sm:$0xff]
    %v95 = vld [vmem:[%s1 + $0x1a0] sm:$0xff]
    %v96 = vld [vmem:[%s1 + $0x1a8] sm:$0xff]
    %v97 = vld [vmem:[%s1 + $0x1b0] sm:$0xff]
    %v98 = vld [vmem:[%s1 + $0x1b8] sm:$0xff]
    %v99 = vld [vmem:[%s1 + $0x1c0] sm:$0xff]
    %v100 = vld [vmem:[%s1 + $0x1c8] sm:$0xff]
    %v101 = vld [vmem:[%s1 + $0x1d0] sm:$0xff]
    %v102 = vld [vmem:[%s1 + $0x1d8] sm:$0xff]
    %v103 = vld [vmem:[%s1 + $0x1e0] sm:$0xff]
    %v104 = vld [vmem:[%s1 + $0x1e8] sm:$0xff]
    %v105 = vld [vmem:[%s1 + $0x1f0] sm:$0xff]
    %v106 = vld [vmem:[%s1 + $0x1f8] sm:$0xff]
    %v107 = vld [vmem:[%s1 + $0x200] sm:$0xff]
    %v108 = vld [vmem:[%s1 + $0x208] sm:$0xff]
    %v109 = vld [vmem:[%s1 + $0x210] sm:$0xff]
    %v110 = vld [vmem:[%s1 + $0x218] sm:$0xff]
    %v111 = vld [vmem:[%s1 + $0x220] sm:$0xff]
    %v112 = vld [vmem:[%s1 + $0x228] sm:$0xff]
    %v113 = vld [vmem:[%s1 + $0x230] sm:$0xff]
    %v114 = vld [vmem:[%s1 + $0x238] sm:$0xff]
    %v115 = vld [vmem:[%s1 + $0x240] sm:$0xff]
    %v116 = vld [vmem:[%s1 + $0x248] sm:$0xff]
    %v117 = vld [vmem:[%s1 + $0x250] sm:$0xff]
    %v118 = vld [vmem:[%s1 + $0x258] sm:$0xff]
    %v119 = vld [vmem:[%s1 + $0x260] sm:$0xff]
    %v120 = vld [vmem:[%s1 + $0x268] sm:$0xff]
    %v121 = vld [vmem:[%s1 + $0x270] sm:$0xff]
    %v122 = vld [vmem:[%s1 + $0x278] sm:$0xff]
    %v123 = vld [vmem:[%s1 + $0x280] sm:$0xff]
    %v124 = vld [vmem:[%s1 + $0x288] sm:$0xff]
    %v125 = vld [vmem:[%s1 + $0x290] sm:$0xff]
    %v126 = vld [vmem:[%s1 + $0x298] sm:$0xff]
    %v127 = vld [vmem:[%s1 + $0x2a0] sm:$0xff]
    %v128 = vld [vmem:[%s1 + $0x2a8] sm:$0xff]
    %v129 = vld [vmem:[%s1 + $0x2b0] sm:$0xff]
    %v130 = vld [vmem:[%s1 + $0x2b8] sm:$0xff]
    %v131 = vld [vmem:[%s1 + $0x2c0] sm:$0xff]
    %v132 = vld [vmem:[%s1 + $0x2c8] sm:$0xff]
    %v133 = vld [vmem:[%s1 + $0x2d0] sm:$0xff]
    %v134 = vld [vmem:[%s1 + $0x2d8] sm:$0xff]
    %v135 = vld [vmem:[%s1 + $0x2e0] sm:$0xff]
    %v136 = vld [vmem:[%s1 + $0x2e8] sm:$0xff]
    %v137 = vld [vmem:[%s1 + $0x2f0] sm:$0xff]
    %v138 = vld [vmem:[%s1 + $0x2f8] sm:$0xff]
    %v139 = vld [vmem:[%s1 + $0x300] sm:$0xff]
    %v140 = vld [vmem:[%s1 + $0x308] sm:$0xff]
    %v141 = vld [vmem:[%s1 + $0x310] sm:$0xff]
    %v142 = vld [vmem:[%s1 + $0x318] sm:$0xff]
    %v143 = vld [vmem:[%s1 + $0x320] sm:$0xff]
    %v144 = vld [vmem:[%s1 + $0x328] sm:$0xff]
    %v145 = vld [vmem:[%s1 + $0x330] sm:$0xff]
    %v146 = vld [vmem:[%s1 + $0x338] sm:$0xff]
    %v147 = vld [vmem:[%s1 + $0x340] sm:$0xff]
    %v148 = vld [vmem:[%s1 + $0x348] sm:$0xff]
    %v149 = vld [vmem:[%s1 + $0x350] sm:$0xff]
    %v150 = vld [vmem:[%s1 + $0x358] sm:$0xff]
    %v151 = vld [vmem:[%s1 + $0x360] sm:$0xff]
    %v152 = vld [vmem:[%s1 + $0x368] sm:$0xff]
    %v153 = vld [vmem:[%s1 + $0x370] sm:$0xff]
    %v154 = vld [vmem:[%s1 + $0x378] sm:$0xff]
    %v155 = vld [vmem:[%s1 + $0x380] sm:$0xff]
    %v156 = vld [vmem:[%s1 + $0x388] sm:$0xff]
    %v157 = vld [vmem:[%s1 + $0x390] sm:$0xff]
    %v158 = vld [vmem:[%s1 + $0x398] sm:$0xff]
    %v159 = vld [vmem:[%s1 + $0x3a0] sm:$0xff]
    %v160 = vld [vmem:[%s1 + $0x3a8] sm:$0xff]
    %v161 = vld [vmem:[%s1 + $0x3b0] sm:$0xff]
    %v162 = vld [vmem:[%s1 + $0x3b8] sm:$0xff]
    %v163 = vld [vmem:[%s1 + $0x3c0] sm:$0xff]
    %v164 = vld [vmem:[%s1 + $0x3c8] sm:$0xff]
    %v165 = vld [vmem:[%s1 + $0x3d0] sm:$0xff]
    %v166 = vld [vmem:[%s1 + $0x3d8] sm:$0xff]
    %v167 = vld [vmem:[%s1 + $0x3e0] sm:$0xff]
    %v168 = vld [vmem:[%s1 + $0x3e8] sm:$0xff]
    %v169 = vld [vmem:[%s1 + $0x3f0] sm:$0xff]
    %v170 = vld [vmem:[%s1 + $0x3f8] sm:$0xff]
    %v171 = vld [vmem:[%s2] sm:$0x3]
    %v173 = vlaneseq
    %v174 = vshrl.u32 %v173, 7
    %v175 = vsub.s32 0, %v174
    %v176 = vrot.slane %v171, %v175
    %v177 = vlaneseq
    %v178 = vshrl.u32 %v177, 7
    %v179 = vsub.s32 1, %v178
    %v180 = vrot.slane %v171, %v179
    %v184 = vcombine.high %v42, %v42
    %v186 = vunpack.c.l.s4 1983009808
    %v187 = vunpack.c.0.s8 %v186
    %v188 = vlaneseq
    %v189 = vshrl.u32 %v188, 7
    %v190 = vsub.s32 %v187, %v189
    %v191 = vrot.slane %v42, %v190
    %v193 = vunpack.c.l.s4 1983009808
    %v194 = vunpack.c.0.s8 %v193
    %v195 = vlaneseq
    %v196 = vshrl.u32 %v195, 7
    %v197 = vsub.s32 %v194, %v196
    %v198 = vrot.slane %v184, %v197
    %v199 = vcombine.high %v191, %v191
    %v200 = vcombine.high %v198, %v198
    %205 = vmatprep.subr.mxu0 %v44
    %206 = vmatpush1.msra.mxu0 %v43
    %207 = vmatprep.subr.mxu0 %v46
    %208 = vmatpush1.msra.mxu0 %v45
    %209 = vmatprep.subr.mxu0 %v48
    %210 = vmatpush1.msra.mxu0 %v47
    %211 = vmatprep.subr.mxu0 %v50
    %212 = vmatpush1.msra.mxu0 %v49
    %213 = vmatprep.subr.mxu0 %v52
    %214 = vmatpush1.msra.mxu0 %v51
    %215 = vmatprep.subr.mxu0 %v54
    %216 = vmatpush1.msra.mxu0 %v53
    %217 = vmatprep.subr.mxu0 %v56
    %218 = vmatpush1.msra.mxu0 %v55
    %219 = vmatprep.subr.mxu0 %v58
    %220 = vmatpush1.msra.mxu0 %v57
    %221 = vmatprep.subr.mxu0 %v60
    %222 = vmatpush1.msra.mxu0 %v59
    %223 = vmatprep.subr.mxu0 %v62
    %224 = vmatpush1.msra.mxu0 %v61
    %225 = vmatprep.subr.mxu0 %v64
    %226 = vmatpush1.msra.mxu0 %v63
    %227 = vmatprep.subr.mxu0 %v66
    %228 = vmatpush1.msra.mxu0 %v65
    %229 = vmatprep.subr.mxu0 %v68
    %230 = vmatpush1.msra.mxu0 %v67
    %231 = vmatprep.subr.mxu0 %v70
    %232 = vmatpush1.msra.mxu0 %v69
    %233 = vmatprep.subr.mxu0 %v72
    %234 = vmatpush1.msra.mxu0 %v71
    %235 = vmatprep.subr.mxu0 %v74
    %236 = vmatpush1.msra.mxu0 %v73
    %237 = vmatprep.subr.mxu0 %v76
    %238 = vmatpush1.msra.mxu0 %v75
    %239 = vmatprep.subr.mxu0 %v78
    %240 = vmatpush1.msra.mxu0 %v77
    %241 = vmatprep.subr.mxu0 %v80
    %242 = vmatpush1.msra.mxu0 %v79
    %243 = vmatprep.subr.mxu0 %v82
    %244 = vmatpush1.msra.mxu0 %v81
    %245 = vmatprep.subr.mxu0 %v84
    %246 = vmatpush1.msra.mxu0 %v83
    %247 = vmatprep.subr.mxu0 %v86
    %248 = vmatpush1.msra.mxu0 %v85
    %249 = vmatprep.subr.mxu0 %v88
    %250 = vmatpush1.msra.mxu0 %v87
    %251 = vmatprep.subr.mxu0 %v90
    %252 = vmatpush1.msra.mxu0 %v89
    %253 = vmatprep.subr.mxu0 %v92
    %254 = vmatpush1.msra.mxu0 %v91
    %255 = vmatprep.subr.mxu0 %v94
    %256 = vmatpush1.msra.mxu0 %v93
    %257 = vmatprep.subr.mxu0 %v96
    %258 = vmatpush1.msra.mxu0 %v95
    %259 = vmatprep.subr.mxu0 %v98
    %260 = vmatpush1.msra.mxu0 %v97
    %261 = vmatprep.subr.mxu0 %v100
    %262 = vmatpush1.msra.mxu0 %v99
    %263 = vmatprep.subr.mxu0 %v102
    %264 = vmatpush1.msra.mxu0 %v101
    %265 = vmatprep.subr.mxu0 %v104
    %266 = vmatpush1.msra.mxu0 %v103
    %267 = vmatprep.subr.mxu0 %v106
    %268 = vmatpush1.msra.mxu0 %v105
    %269 = vmatprep.mubr.f32.mxu0 %v199
    %270 = vmatmul.mubr.f32.gmra.mrb[0].mxu0 %v191
    %v271 = vpop.f32.mrb[0].mxu0
    %v272 = vadd.f32 %v176, %v271
    %v273 = vpop.f32.mrb[0].mxu0
    %v274 = vadd.f32 %v180, %v273
    %275 = vdwg.mxu0
    %276 = vmatprep.subr.mxu0 %v108
    %277 = vmatpush1.msra.mxu0 %v107
    %278 = vmatprep.subr.mxu0 %v110
    %279 = vmatpush1.msra.mxu0 %v109
    %280 = vmatprep.subr.mxu0 %v112
    %281 = vmatpush1.msra.mxu0 %v111
    %282 = vmatprep.subr.mxu0 %v114
    %283 = vmatpush1.msra.mxu0 %v113
    %284 = vmatprep.subr.mxu0 %v116
    %285 = vmatpush1.msra.mxu0 %v115
    %286 = vmatprep.subr.mxu0 %v118
    %287 = vmatpush1.msra.mxu0 %v117
    %288 = vmatprep.subr.mxu0 %v120
    %289 = vmatpush1.msra.mxu0 %v119
    %290 = vmatprep.subr.mxu0 %v122
    %291 = vmatpush1.msra.mxu0 %v121
    %292 = vmatprep.subr.mxu0 %v124
    %293 = vmatpush1.msra.mxu0 %v123
    %294 = vmatprep.subr.mxu0 %v126
    %295 = vmatpush1.msra.mxu0 %v125
    %296 = vmatprep.subr.mxu0 %v128
    %297 = vmatpush1.msra.mxu0 %v127
    %298 = vmatprep.subr.mxu0 %v130
    %299 = vmatpush1.msra.mxu0 %v129
    %300 = vmatprep.subr.mxu0 %v132
    %301 = vmatpush1.msra.mxu0 %v131
    %302 = vmatprep.subr.mxu0 %v134
    %303 = vmatpush1.msra.mxu0 %v133
    %304 = vmatprep.subr.mxu0 %v136
    %305 = vmatpush1.msra.mxu0 %v135
    %306 = vmatprep.subr.mxu0 %v138
    %307 = vmatpush1.msra.mxu0 %v137
    %308 = vmatprep.subr.mxu0 %v140
    %309 = vmatpush1.msra.mxu0 %v139
    %310 = vmatprep.subr.mxu0 %v142
    %311 = vmatpush1.msra.mxu0 %v141
    %312 = vmatprep.subr.mxu0 %v144
    %313 = vmatpush1.msra.mxu0 %v143
    %314 = vmatprep.subr.mxu0 %v146
    %315 = vmatpush1.msra.mxu0 %v145
    %316 = vmatprep.subr.mxu0 %v148
    %317 = vmatpush1.msra.mxu0 %v147
    %318 = vmatprep.subr.mxu0 %v150
    %319 = vmatpush1.msra.mxu0 %v149
    %320 = vmatprep.subr.mxu0 %v152
    %321 = vmatpush1.msra.mxu0 %v151
    %322 = vmatprep.subr.mxu0 %v154
    %323 = vmatpush1.msra.mxu0 %v153
    %324 = vmatprep.subr.mxu0 %v156
    %325 = vmatpush1.msra.mxu0 %v155
    %326 = vmatprep.subr.mxu0 %v158
    %327 = vmatpush1.msra.mxu0 %v157
    %328 = vmatprep.subr.mxu0 %v160
    %329 = vmatpush1.msra.mxu0 %v159
    %330 = vmatprep.subr.mxu0 %v162
    %331 = vmatpush1.msra.mxu0 %v161
    %332 = vmatprep.subr.mxu0 %v164
    %333 = vmatpush1.msra.mxu0 %v163
    %334 = vmatprep.subr.mxu0 %v166
    %335 = vmatpush1.msra.mxu0 %v165
    %336 = vmatprep.subr.mxu0 %v168
    %337 = vmatpush1.msra.mxu0 %v167
    %338 = vmatprep.subr.mxu0 %v170
    %339 = vmatpush1.msra.mxu0 %v169
    %340 = vmatprep.mubr.f32.mxu0 %v200
    %341 = vmatmul.mubr.f32.gmra.mrb[0].mxu0 %v198
    %v342 = vpop.f32.mrb[0].mxu0
    %v343 = vadd.f32 %v272, %v342
    %v344 = vpop.f32.mrb[0].mxu0
    %v345 = vadd.f32 %v274, %v344
    %346 = vdwg.mxu0
    %v347 = vmax.f32 %v343, 0.0
    %v348 = vmax.f32 %v345, 0.0
    %v349 = vld [vmem:[%s3] sm:$0xff]
    %v350 = vld [vmem:[%s3 + $0x8] sm:$0xff]
    %v351 = vld [vmem:[%s3 + $0x10] sm:$0xff]
    %v352 = vld [vmem:[%s3 + $0x18] sm:$0xff]
    %v353 = vld [vmem:[%s3 + $0x20] sm:$0xff]
    %v354 = vld [vmem:[%s3 + $0x28] sm:$0xff]
    %v355 = vld [vmem:[%s3 + $0x30] sm:$0xff]
    %v356 = vld [vmem:[%s3 + $0x38] sm:$0xff]
    %v357 = vld [vmem:[%s3 + $0x40] sm:$0xff]
    %v358 = vld [vmem:[%s3 + $0x48] sm:$0xff]
    %v359 = vld [vmem:[%s3 + $0x50] sm:$0xff]
    %v360 = vld [vmem:[%s3 + $0x58] sm:$0xff]
    %v361 = vld [vmem:[%s3 + $0x60] sm:$0xff]
    %v362 = vld [vmem:[%s3 + $0x68] sm:$0xff]
    %v363 = vld [vmem:[%s3 + $0x70] sm:$0xff]
    %v364 = vld [vmem:[%s3 + $0x78] sm:$0xff]
    %v365 = vld [vmem:[%s3 + $0x80] sm:$0xff]
    %v366 = vld [vmem:[%s3 + $0x88] sm:$0xff]
    %v367 = vld [vmem:[%s3 + $0x90] sm:$0xff]
    %v368 = vld [vmem:[%s3 + $0x98] sm:$0xff]
    %v369 = vld [vmem:[%s3 + $0xa0] sm:$0xff]
    %v370 = vld [vmem:[%s3 + $0xa8] sm:$0xff]
    %v371 = vld [vmem:[%s3 + $0xb0] sm:$0xff]
    %v372 = vld [vmem:[%s3 + $0xb8] sm:$0xff]
    %v373 = vld [vmem:[%s3 + $0xc0] sm:$0xff]
    %v374 = vld [vmem:[%s3 + $0xc8] sm:$0xff]
    %v375 = vld [vmem:[%s3 + $0xd0] sm:$0xff]
    %v376 = vld [vmem:[%s3 + $0xd8] sm:$0xff]
    %v377 = vld [vmem:[%s3 + $0xe0] sm:$0xff]
    %v378 = vld [vmem:[%s3 + $0xe8] sm:$0xff]
    %v379 = vld [vmem:[%s3 + $0xf0] sm:$0xff]
    %v380 = vld [vmem:[%s3 + $0xf8] sm:$0xff]
    %381 = vmatprep.subr.mxu0 0.0
    %382 = vmatpush1.msra.mxu0 %v349
    %383 = vmatprep.subr.mxu0 0.0
    %384 = vmatpush1.msra.mxu0 %v350
    %385 = vmatprep.subr.mxu0 0.0
    %386 = vmatpush1.msra.mxu0 %v351
    %387 = vmatprep.subr.mxu0 0.0
    %388 = vmatpush1.msra.mxu0 %v352
    %389 = vmatprep.subr.mxu0 0.0
    %390 = vmatpush1.msra.mxu0 %v353
    %391 = vmatprep.subr.mxu0 0.0
    %392 = vmatpush1.msra.mxu0 %v354
    %393 = vmatprep.subr.mxu0 0.0
    %394 = vmatpush1.msra.mxu0 %v355
    %395 = vmatprep.subr.mxu0 0.0
    %396 = vmatpush1.msra.mxu0 %v356
    %397 = vmatprep.subr.mxu0 0.0
    %398 = vmatpush1.msra.mxu0 %v357
    %399 = vmatprep.subr.mxu0 0.0
    %400 = vmatpush1.msra.mxu0 %v358
    %401 = vmatprep.subr.mxu0 0.0
    %402 = vmatpush1.msra.mxu0 %v359
    %403 = vmatprep.subr.mxu0 0.0
    %404 = vmatpush1.msra.mxu0 %v360
    %405 = vmatprep.subr.mxu0 0.0
    %406 = vmatpush1.msra.mxu0 %v361
    %407 = vmatprep.subr.mxu0 0.0
    %408 = vmatpush1.msra.mxu0 %v362
    %409 = vmatprep.subr.mxu0 0.0
    %410 = vmatpush1.msra.mxu0 %v363
    %411 = vmatprep.subr.mxu0 0.0
    %412 = vmatpush1.msra.mxu0 %v364
    %413 = vmatprep.subr.mxu0 0.0
    %414 = vmatpush1.msra.mxu0 %v365
    %415 = vmatprep.subr.mxu0 0.0
    %416 = vmatpush1.msra.mxu0 %v366
    %417 = vmatprep.subr.mxu0 0.0
    %418 = vmatpush1.msra.mxu0 %v367
    %419 = vmatprep.subr.mxu0 0.0
    %420 = vmatpush1.msra.mxu0 %v368
    %421 = vmatprep.subr.mxu0 0.0
    %422 = vmatpush1.msra.mxu0 %v369
    %423 = vmatprep.subr.mxu0 0.0
    %424 = vmatpush1.msra.mxu0 %v370
    %425 = vmatprep.subr.mxu0 0.0
    %426 = vmatpush1.msra.mxu0 %v371
    %427 = vmatprep.subr.mxu0 0.0
    %428 = vmatpush1.msra.mxu0 %v372
    %429 = vmatprep.subr.mxu0 0.0
    %430 = vmatpush1.msra.mxu0 %v373
    %431 = vmatprep.subr.mxu0 0.0
    %432 = vmatpush1.msra.mxu0 %v374
    %433 = vmatprep.subr.mxu0 0.0
    %434 = vmatpush1.msra.mxu0 %v375
    %435 = vmatprep.subr.mxu0 0.0
    %436 = vmatpush1.msra.mxu0 %v376
    %437 = vmatprep.subr.mxu0 0.0
    %438 = vmatpush1.msra.mxu0 %v377
    %439 = vmatprep.subr.mxu0 0.0
    %440 = vmatpush1.msra.mxu0 %v378
    %441 = vmatprep.subr.mxu0 0.0
    %442 = vmatpush1.msra.mxu0 %v379
    %443 = vmatprep.subr.mxu0 0.0
    %444 = vmatpush1.msra.mxu0 %v380
    %445 = vmatprep.mubr.f32.mxu0 %v348
    %446 = vmatmul.mubr.f32.gmra.mrb[0].mxu0 %v347
    %v447 = vpop.f32.mrb[0].mxu0
    %v448 = vadd.f32 0.0, %v447
    %v449 = vpop.f32.mrb[0].mxu0
    %450 = vdwg.mxu0
    %v451 = vld [vmem:[%s4] sm:$0x1]
    %v453 = vlaneseq
    %v454 = vshrl.u32 %v453, 7
    %v455 = vsub.s32 0, %v454
    %v456 = vrot.slane %v451, %v455
    %v458 = vmul.f32 %v448, %v456
    %v459 = vld [vmem:[%s5] sm:$0x1]
    %v461 = vlaneseq
    %v462 = vshrl.u32 %v461, 7
    %v463 = vsub.s32 0, %v462
    %v464 = vrot.slane %v459, %v463
    %v466 = vadd.f32 %v458, %v464
    %v467 = vmax.f32 %v466, 0.0
    %v468 = vld [vmem:[%s6] sm:$0xff]
    %v469 = vld [vmem:[%s6 + $0x8] sm:$0xff]
    %v470 = vld [vmem:[%s6 + $0x10] sm:$0xff]
    %v471 = vld [vmem:[%s6 + $0x18] sm:$0xff]
    %v472 = vld [vmem:[%s6 + $0x20] sm:$0xff]
    %v473 = vld [vmem:[%s6 + $0x28] sm:$0xff]
    %v474 = vld [vmem:[%s6 + $0x30] sm:$0xff]
    %v475 = vld [vmem:[%s6 + $0x38] sm:$0xff]
    %v476 = vld [vmem:[%s7] sm:$0x1]
    %v478 = vlaneseq
    %v479 = vshrl.u32 %v478, 7
    %v480 = vsub.s32 0, %v479
    %v481 = vrot.slane %v476, %v480
    %vm483 = vcmask 523264
    %v485 = vsel %vm483, %v467, 0
    %487 = vmatprep.subr.mxu0 0.0
    %488 = vmatpush1.msra.mxu0 %v468
    %489 = vmatprep.subr.mxu0 0.0
    %490 = vmatpush1.msra.mxu0 %v469
    %491 = vmatprep.subr.mxu0 0.0
    %492 = vmatpush1.msra.mxu0 %v470
    %493 = vmatprep.subr.mxu0 0.0
    %494 = vmatpush1.msra.mxu0 %v471
    %495 = vmatprep.subr.mxu0 0.0
    %496 = vmatpush1.msra.mxu0 %v472
    %497 = vmatprep.subr.mxu0 0.0
    %498 = vmatpush1.msra.mxu0 %v473
    %499 = vmatprep.subr.mxu0 0.0
    %500 = vmatpush1.msra.mxu0 %v474
    %501 = vmatprep.subr.mxu0 0.0
    %502 = vmatpush1.msra.mxu0 %v475
    %503 = vmatprep.subr.mxu0 0.0
    %504 = vmatpush1.msra.mxu0 0.0
    %505 = vmatprep.subr.mxu0 0.0
    %506 = vmatpush1.msra.mxu0 0.0
    %507 = vmatprep.subr.mxu0 0.0
    %508 = vmatpush1.msra.mxu0 0.0
    %509 = vmatprep.subr.mxu0 0.0
    %510 = vmatpush1.msra.mxu0 0.0
    %511 = vmatprep.subr.mxu0 0.0
    %512 = vmatpush1.msra.mxu0 0.0
    %513 = vmatprep.subr.mxu0 0.0
    %514 = vmatpush1.msra.mxu0 0.0
    %515 = vmatprep.subr.mxu0 0.0
    %516 = vmatpush1.msra.mxu0 0.0
    %517 = vmatprep.subr.mxu0 0.0
    %518 = vmatpush1.msra.mxu0 0.0
    %519 = vmatprep.subr.mxu0 0.0
    %520 = vmatpush1.msra.mxu0 0.0
    %521 = vmatprep.subr.mxu0 0.0
    %522 = vmatpush1.msra.mxu0 0.0
    %523 = vmatprep.subr.mxu0 0.0
    %524 = vmatpush1.msra.mxu0 0.0
    %525 = vmatprep.subr.mxu0 0.0
    %526 = vmatpush1.msra.mxu0 0.0
    %527 = vmatprep.subr.mxu0 0.0
    %528 = vmatpush1.msra.mxu0 0.0
    %529 = vmatprep.subr.mxu0 0.0
    %530 = vmatpush1.msra.mxu0 0.0
    %531 = vmatprep.subr.mxu0 0.0
    %532 = vmatpush1.msra.mxu0 0.0
    %533 = vmatprep.subr.mxu0 0.0
    %534 = vmatpush1.msra.mxu0 0.0
    %535 = vmatprep.subr.mxu0 0.0
    %536 = vmatpush1.msra.mxu0 0.0
    %537 = vmatprep.subr.mxu0 0.0
    %538 = vmatpush1.msra.mxu0 0.0
    %539 = vmatprep.subr.mxu0 0.0
    %540 = vmatpush1.msra.mxu0 0.0
    %541 = vmatprep.subr.mxu0 0.0
    %542 = vmatpush1.msra.mxu0 0.0
    %543 = vmatprep.subr.mxu0 0.0
    %544 = vmatpush1.msra.mxu0 0.0
    %545 = vmatprep.subr.mxu0 0.0
    %546 = vmatpush1.msra.mxu0 0.0
    %547 = vmatprep.subr.mxu0 0.0
    %548 = vmatpush1.msra.mxu0 0.0
    %549 = vmatprep.subr.mxu0 0.0
    %550 = vmatpush1.msra.mxu0 0.0
    %551 = vmatprep.mubr.f32.mxu0 0.0
    %552 = vmatmul.mubr.f32.gmra.mrb[0].mxu0 %v485
    %v553 = vpop.f32.mrb[0].mxu0
    %v554 = vadd.f32 %v481, %v553
    %v555 = vpop.f32.mrb[0].mxu0
    %556 = vdwg.mxu0
    %v557 = vmax.f32 %v554, 0.0
    %v558 = vld [vmem:[%s8] sm:$0xff]
    %v559 = vld [vmem:[%s8 + $0x8] sm:$0xff]
    %v560 = vld [vmem:[%s8 + $0x10] sm:$0xff]
    %v561 = vld [vmem:[%s8 + $0x18] sm:$0xff]
    %v562 = vld [vmem:[%s8 + $0x20] sm:$0xff]
    %v563 = vld [vmem:[%s8 + $0x28] sm:$0xff]
    %v564 = vld [vmem:[%s8 + $0x30] sm:$0xff]
    %v565 = vld [vmem:[%s8 + $0x38] sm:$0xff]
    %v566 = vld [vmem:[%s8 + $0x40] sm:$0xff]
    %v567 = vld [vmem:[%s8 + $0x48] sm:$0xff]
    %v568 = vld [vmem:[%s8 + $0x50] sm:$0xff]
    %v569 = vld [vmem:[%s8 + $0x58] sm:$0xff]
    %v570 = vld [vmem:[%s8 + $0x60] sm:$0xff]
    %v571 = vld [vmem:[%s8 + $0x68] sm:$0xff]
    %v572 = vld [vmem:[%s8 + $0x70] sm:$0xff]
    %v573 = vld [vmem:[%s8 + $0x78] sm:$0xff]
    %v574 = vld [vmem:[%s8 + $0x80] sm:$0xff]
    %v575 = vld [vmem:[%s8 + $0x88] sm:$0xff]
    %v576 = vld [vmem:[%s8 + $0x90] sm:$0xff]
    %v577 = vld [vmem:[%s8 + $0x98] sm:$0xff]
    %v578 = vld [vmem:[%s8 + $0xa0] sm:$0xff]
    %v579 = vld [vmem:[%s8 + $0xa8] sm:$0xff]
    %v580 = vld [vmem:[%s8 + $0xb0] sm:$0xff]
    %v581 = vld [vmem:[%s8 + $0xb8] sm:$0xff]
    %v582 = vld [vmem:[%s8 + $0xc0] sm:$0xff]
    %v583 = vld [vmem:[%s8 + $0xc8] sm:$0xff]
    %v584 = vld [vmem:[%s8 + $0xd0] sm:$0xff]
    %v585 = vld [vmem:[%s8 + $0xd8] sm:$0xff]
    %v586 = vld [vmem:[%s8 + $0xe0] sm:$0xff]
    %v587 = vld [vmem:[%s8 + $0xe8] sm:$0xff]
    %v588 = vld [vmem:[%s8 + $0xf0] sm:$0xff]
    %v589 = vld [vmem:[%s8 + $0xf8] sm:$0xff]
    %v590 = vld [vmem:[%s9] sm:$0xf]
    %v592 = vlaneseq
    %v593 = vshrl.u32 %v592, 7
    %v594 = vsub.s32 0, %v593
    %v595 = vrot.slane %v590, %v594
    %v596 = vlaneseq
    %v597 = vshrl.u32 %v596, 7
    %v598 = vsub.s32 1, %v597
    %v599 = vrot.slane %v590, %v598
    %v600 = vlaneseq
    %v601 = vshrl.u32 %v600, 7
    %v602 = vsub.s32 2, %v601
    %v603 = vrot.slane %v590, %v602
    %v604 = vlaneseq
    %v605 = vshrl.u32 %v604, 7
    %v606 = vsub.s32 3, %v605
    %v607 = vrot.slane %v590, %v606
    %v613 = vsel %vm483, %v557, 0
    %615 = vmatprep.subr.mxu0 %v559
    %616 = vmatpush1.msra.mxu0 %v558
    %617 = vmatprep.subr.mxu0 %v563
    %618 = vmatpush1.msra.mxu0 %v562
    %619 = vmatprep.subr.mxu0 %v567
    %620 = vmatpush1.msra.mxu0 %v566
    %621 = vmatprep.subr.mxu0 %v571
    %622 = vmatpush1.msra.mxu0 %v570
    %623 = vmatprep.subr.mxu0 %v575
    %624 = vmatpush1.msra.mxu0 %v574
    %625 = vmatprep.subr.mxu0 %v579
    %626 = vmatpush1.msra.mxu0 %v578
    %627 = vmatprep.subr.mxu0 %v583
    %628 = vmatpush1.msra.mxu0 %v582
    %629 = vmatprep.subr.mxu0 %v587
    %630 = vmatpush1.msra.mxu0 %v586
    %631 = vmatprep.subr.mxu0 0.0
    %632 = vmatpush1.msra.mxu0 0.0
    %633 = vmatprep.subr.mxu0 0.0
    %634 = vmatpush1.msra.mxu0 0.0
    %635 = vmatprep.subr.mxu0 0.0
    %636 = vmatpush1.msra.mxu0 0.0
    %637 = vmatprep.subr.mxu0 0.0
    %638 = vmatpush1.msra.mxu0 0.0
    %639 = vmatprep.subr.mxu0 0.0
    %640 = vmatpush1.msra.mxu0 0.0
    %641 = vmatprep.subr.mxu0 0.0
    %642 = vmatpush1.msra.mxu0 0.0
    %643 = vmatprep.subr.mxu0 0.0
    %644 = vmatpush1.msra.mxu0 0.0
    %645 = vmatprep.subr.mxu0 0.0
    %646 = vmatpush1.msra.mxu0 0.0
    %647 = vmatprep.subr.mxu0 0.0
    %648 = vmatpush1.msra.mxu0 0.0
    %649 = vmatprep.subr.mxu0 0.0
    %650 = vmatpush1.msra.mxu0 0.0
    %651 = vmatprep.subr.mxu0 0.0
    %652 = vmatpush1.msra.mxu0 0.0
    %653 = vmatprep.subr.mxu0 0.0
    %654 = vmatpush1.msra.mxu0 0.0
    %655 = vmatprep.subr.mxu0 0.0
    %656 = vmatpush1.msra.mxu0 0.0
    %657 = vmatprep.subr.mxu0 0.0
    %658 = vmatpush1.msra.mxu0 0.0
    %659 = vmatprep.subr.mxu0 0.0
    %660 = vmatpush1.msra.mxu0 0.0
    %661 = vmatprep.subr.mxu0 0.0
    %662 = vmatpush1.msra.mxu0 0.0
    %663 = vmatprep.subr.mxu0 0.0
    %664 = vmatpush1.msra.mxu0 0.0
    %665 = vmatprep.subr.mxu0 0.0
    %666 = vmatpush1.msra.mxu0 0.0
    %667 = vmatprep.subr.mxu0 0.0
    %668 = vmatpush1.msra.mxu0 0.0
    %669 = vmatprep.subr.mxu0 0.0
    %670 = vmatpush1.msra.mxu0 0.0
    %671 = vmatprep.subr.mxu0 0.0
    %672 = vmatpush1.msra.mxu0 0.0
    %673 = vmatprep.subr.mxu0 0.0
    %674 = vmatpush1.msra.mxu0 0.0
    %675 = vmatprep.subr.mxu0 0.0
    %676 = vmatpush1.msra.mxu0 0.0
    %677 = vmatprep.subr.mxu0 0.0
    %678 = vmatpush1.msra.mxu0 0.0
    %679 = vmatprep.mubr.f32.mxu0 0.0
    %680 = vmatmul.mubr.f32.gmra.mrb[0].mxu0 %v613
    %v681 = vpop.f32.mrb[0].mxu0
    %v682 = vadd.f32 %v595, %v681
    %v683 = vpop.f32.mrb[0].mxu0
    %v684 = vadd.f32 %v599, %v683
    %685 = vdwg.mxu0
    %686 = vmatprep.subr.mxu0 %v561
    %687 = vmatpush1.msra.mxu0 %v560
    %688 = vmatprep.subr.mxu0 %v565
    %689 = vmatpush1.msra.mxu0 %v564
    %690 = vmatprep.subr.mxu0 %v569
    %691 = vmatpush1.msra.mxu0 %v568
    %692 = vmatprep.subr.mxu0 %v573
    %693 = vmatpush1.msra.mxu0 %v572
    %694 = vmatprep.subr.mxu0 %v577
    %695 = vmatpush1.msra.mxu0 %v576
    %696 = vmatprep.subr.mxu0 %v581
    %697 = vmatpush1.msra.mxu0 %v580
    %698 = vmatprep.subr.mxu0 %v585
    %699 = vmatpush1.msra.mxu0 %v584
    %700 = vmatprep.subr.mxu0 %v589
    %701 = vmatpush1.msra.mxu0 %v588
    %702 = vmatprep.subr.mxu0 0.0
    %703 = vmatpush1.msra.mxu0 0.0
    %704 = vmatprep.subr.mxu0 0.0
    %705 = vmatpush1.msra.mxu0 0.0
    %706 = vmatprep.subr.mxu0 0.0
    %707 = vmatpush1.msra.mxu0 0.0
    %708 = vmatprep.subr.mxu0 0.0
    %709 = vmatpush1.msra.mxu0 0.0
    %710 = vmatprep.subr.mxu0 0.0
    %711 = vmatpush1.msra.mxu0 0.0
    %712 = vmatprep.subr.mxu0 0.0
    %713 = vmatpush1.msra.mxu0 0.0
    %714 = vmatprep.subr.mxu0 0.0
    %715 = vmatpush1.msra.mxu0 0.0
    %716 = vmatprep.subr.mxu0 0.0
    %717 = vmatpush1.msra.mxu0 0.0
    %718 = vmatprep.subr.mxu0 0.0
    %719 = vmatpush1.msra.mxu0 0.0
    %720 = vmatprep.subr.mxu0 0.0
    %721 = vmatpush1.msra.mxu0 0.0
    %722 = vmatprep.subr.mxu0 0.0
    %723 = vmatpush1.msra.mxu0 0.0
    %724 = vmatprep.subr.mxu0 0.0
    %725 = vmatpush1.msra.mxu0 0.0
    %726 = vmatprep.subr.mxu0 0.0
    %727 = vmatpush1.msra.mxu0 0.0
    %728 = vmatprep.subr.mxu0 0.0
    %729 = vmatpush1.msra.mxu0 0.0
    %730 = vmatprep.subr.mxu0 0.0
    %731 = vmatpush1.msra.mxu0 0.0
    %732 = vmatprep.subr.mxu0 0.0
    %733 = vmatpush1.msra.mxu0 0.0
    %734 = vmatprep.subr.mxu0 0.0
    %735 = vmatpush1.msra.mxu0 0.0
    %736 = vmatprep.subr.mxu0 0.0
    %737 = vmatpush1.msra.mxu0 0.0
    %738 = vmatprep.subr.mxu0 0.0
    %739 = vmatpush1.msra.mxu0 0.0
    %740 = vmatprep.subr.mxu0 0.0
    %741 = vmatpush1.msra.mxu0 0.0
    %742 = vmatprep.subr.mxu0 0.0
    %743 = vmatpush1.msra.mxu0 0.0
    %744 = vmatprep.subr.mxu0 0.0
    %745 = vmatpush1.msra.mxu0 0.0
    %746 = vmatprep.subr.mxu0 0.0
    %747 = vmatpush1.msra.mxu0 0.0
    %748 = vmatprep.subr.mxu0 0.0
    %749 = vmatpush1.msra.mxu0 0.0
    %750 = vmatprep.mubr.f32.mxu0 0.0
    %751 = vmatmul.mubr.f32.gmra.mrb[0].mxu0 %v613
    %v752 = vpop.f32.mrb[0].mxu0
    %v753 = vadd.f32 %v603, %v752
    %v754 = vpop.f32.mrb[0].mxu0
    %v755 = vadd.f32 %v607, %v754
    %756 = vdwg.mxu0
    %v757 = vmax.f32 %v682, 0.0
    %v758 = vmax.f32 %v684, 0.0
    %v759 = vmax.f32 %v753, 0.0
    %v760 = vmax.f32 %v755, 0.0
    %v761 = vld [vmem:[%s10] sm:$0xff]
    %v762 = vld [vmem:[%s10 + $0x8] sm:$0xff]
    %v763 = vld [vmem:[%s10 + $0x10] sm:$0xff]
    %v764 = vld [vmem:[%s10 + $0x18] sm:$0xff]
    %v765 = vld [vmem:[%s10 + $0x20] sm:$0xff]
    %v766 = vld [vmem:[%s10 + $0x28] sm:$0xff]
    %v767 = vld [vmem:[%s10 + $0x30] sm:$0xff]
    %v768 = vld [vmem:[%s10 + $0x38] sm:$0xff]
    %v769 = vld [vmem:[%s10 + $0x40] sm:$0xff]
    %v770 = vld [vmem:[%s10 + $0x48] sm:$0xff]
    %v771 = vld [vmem:[%s10 + $0x50] sm:$0xff]
    %v772 = vld [vmem:[%s10 + $0x58] sm:$0xff]
    %v773 = vld [vmem:[%s10 + $0x60] sm:$0xff]
    %v774 = vld [vmem:[%s10 + $0x68] sm:$0xff]
    %v775 = vld [vmem:[%s10 + $0x70] sm:$0xff]
    %v776 = vld [vmem:[%s10 + $0x78] sm:$0xff]
    %v777 = vld [vmem:[%s10 + $0x80] sm:$0xff]
    %v778 = vld [vmem:[%s10 + $0x88] sm:$0xff]
    %v779 = vld [vmem:[%s10 + $0x90] sm:$0xff]
    %v780 = vld [vmem:[%s10 + $0x98] sm:$0xff]
    %v781 = vld [vmem:[%s10 + $0xa0] sm:$0xff]
    %v782 = vld [vmem:[%s10 + $0xa8] sm:$0xff]
    %v783 = vld [vmem:[%s10 + $0xb0] sm:$0xff]
    %v784 = vld [vmem:[%s10 + $0xb8] sm:$0xff]
    %v785 = vld [vmem:[%s10 + $0xc0] sm:$0xff]
    %v786 = vld [vmem:[%s10 + $0xc8] sm:$0xff]
    %v787 = vld [vmem:[%s10 + $0xd0] sm:$0xff]
    %v788 = vld [vmem:[%s10 + $0xd8] sm:$0xff]
    %v789 = vld [vmem:[%s10 + $0xe0] sm:$0xff]
    %v790 = vld [vmem:[%s10 + $0xe8] sm:$0xff]
    %v791 = vld [vmem:[%s10 + $0xf0] sm:$0xff]
    %v792 = vld [vmem:[%s10 + $0xf8] sm:$0xff]
    %v793 = vld [vmem:[%s10 + $0x100] sm:$0xff]
    %v794 = vld [vmem:[%s10 + $0x108] sm:$0xff]
    %v795 = vld [vmem:[%s10 + $0x110] sm:$0xff]
    %v796 = vld [vmem:[%s10 + $0x118] sm:$0xff]
    %v797 = vld [vmem:[%s10 + $0x120] sm:$0xff]
    %v798 = vld [vmem:[%s10 + $0x128] sm:$0xff]
    %v799 = vld [vmem:[%s10 + $0x130] sm:$0xff]
    %v800 = vld [vmem:[%s10 + $0x138] sm:$0xff]
    %v801 = vld [vmem:[%s10 + $0x140] sm:$0xff]
    %v802 = vld [vmem:[%s10 + $0x148] sm:$0xff]
    %v803 = vld [vmem:[%s10 + $0x150] sm:$0xff]
    %v804 = vld [vmem:[%s10 + $0x158] sm:$0xff]
    %v805 = vld [vmem:[%s10 + $0x160] sm:$0xff]
    %v806 = vld [vmem:[%s10 + $0x168] sm:$0xff]
    %v807 = vld [vmem:[%s10 + $0x170] sm:$0xff]
    %v808 = vld [vmem:[%s10 + $0x178] sm:$0xff]
    %v809 = vld [vmem:[%s10 + $0x180] sm:$0xff]
    %v810 = vld [vmem:[%s10 + $0x188] sm:$0xff]
    %v811 = vld [vmem:[%s10 + $0x190] sm:$0xff]
    %v812 = vld [vmem:[%s10 + $0x198] sm:$0xff]
    %v813 = vld [vmem:[%s10 + $0x1a0] sm:$0xff]
    %v814 = vld [vmem:[%s10 + $0x1a8] sm:$0xff]
    %v815 = vld [vmem:[%s10 + $0x1b0] sm:$0xff]
    %v816 = vld [vmem:[%s10 + $0x1b8] sm:$0xff]
    %v817 = vld [vmem:[%s10 + $0x1c0] sm:$0xff]
    %v818 = vld [vmem:[%s10 + $0x1c8] sm:$0xff]
    %v819 = vld [vmem:[%s10 + $0x1d0] sm:$0xff]
    %v820 = vld [vmem:[%s10 + $0x1d8] sm:$0xff]
    %v821 = vld [vmem:[%s10 + $0x1e0] sm:$0xff]
    %v822 = vld [vmem:[%s10 + $0x1e8] sm:$0xff]
    %v823 = vld [vmem:[%s10 + $0x1f0] sm:$0xff]
    %v824 = vld [vmem:[%s10 + $0x1f8] sm:$0xff]
    %v825 = vld [vmem:[%s11] sm:$0x1]
    %v827 = vlaneseq
    %v828 = vshrl.u32 %v827, 7
    %v829 = vsub.s32 0, %v828
    %v830 = vrot.slane %v825, %v829
    %832 = vmatprep.subr.mxu0 0.0
    %833 = vmatpush1.msra.mxu0 %v761
    %834 = vmatprep.subr.mxu0 0.0
    %835 = vmatpush1.msra.mxu0 %v762
    %836 = vmatprep.subr.mxu0 0.0
    %837 = vmatpush1.msra.mxu0 %v763
    %838 = vmatprep.subr.mxu0 0.0
    %839 = vmatpush1.msra.mxu0 %v764
    %840 = vmatprep.subr.mxu0 0.0
    %841 = vmatpush1.msra.mxu0 %v765
    %842 = vmatprep.subr.mxu0 0.0
    %843 = vmatpush1.msra.mxu0 %v766
    %844 = vmatprep.subr.mxu0 0.0
    %845 = vmatpush1.msra.mxu0 %v767
    %846 = vmatprep.subr.mxu0 0.0
    %847 = vmatpush1.msra.mxu0 %v768
    %848 = vmatprep.subr.mxu0 0.0
    %849 = vmatpush1.msra.mxu0 %v769
    %850 = vmatprep.subr.mxu0 0.0
    %851 = vmatpush1.msra.mxu0 %v770
    %852 = vmatprep.subr.mxu0 0.0
    %853 = vmatpush1.msra.mxu0 %v771
    %854 = vmatprep.subr.mxu0 0.0
    %855 = vmatpush1.msra.mxu0 %v772
    %856 = vmatprep.subr.mxu0 0.0
    %857 = vmatpush1.msra.mxu0 %v773
    %858 = vmatprep.subr.mxu0 0.0
    %859 = vmatpush1.msra.mxu0 %v774
    %860 = vmatprep.subr.mxu0 0.0
    %861 = vmatpush1.msra.mxu0 %v775
    %862 = vmatprep.subr.mxu0 0.0
    %863 = vmatpush1.msra.mxu0 %v776
    %864 = vmatprep.subr.mxu0 0.0
    %865 = vmatpush1.msra.mxu0 %v777
    %866 = vmatprep.subr.mxu0 0.0
    %867 = vmatpush1.msra.mxu0 %v778
    %868 = vmatprep.subr.mxu0 0.0
    %869 = vmatpush1.msra.mxu0 %v779
    %870 = vmatprep.subr.mxu0 0.0
    %871 = vmatpush1.msra.mxu0 %v780
    %872 = vmatprep.subr.mxu0 0.0
    %873 = vmatpush1.msra.mxu0 %v781
    %874 = vmatprep.subr.mxu0 0.0
    %875 = vmatpush1.msra.mxu0 %v782
    %876 = vmatprep.subr.mxu0 0.0
    %877 = vmatpush1.msra.mxu0 %v783
    %878 = vmatprep.subr.mxu0 0.0
    %879 = vmatpush1.msra.mxu0 %v784
    %880 = vmatprep.subr.mxu0 0.0
    %881 = vmatpush1.msra.mxu0 %v785
    %882 = vmatprep.subr.mxu0 0.0
    %883 = vmatpush1.msra.mxu0 %v786
    %884 = vmatprep.subr.mxu0 0.0
    %885 = vmatpush1.msra.mxu0 %v787
    %886 = vmatprep.subr.mxu0 0.0
    %887 = vmatpush1.msra.mxu0 %v788
    %888 = vmatprep.subr.mxu0 0.0
    %889 = vmatpush1.msra.mxu0 %v789
    %890 = vmatprep.subr.mxu0 0.0
    %891 = vmatpush1.msra.mxu0 %v790
    %892 = vmatprep.subr.mxu0 0.0
    %893 = vmatpush1.msra.mxu0 %v791
    %894 = vmatprep.subr.mxu0 0.0
    %895 = vmatpush1.msra.mxu0 %v792
    %896 = vmatprep.mubr.f32.mxu0 %v758
    %897 = vmatmul.mubr.f32.gmra.mrb[0].mxu0 %v757
    %v898 = vpop.f32.mrb[0].mxu0
    %v899 = vadd.f32 %v830, %v898
    %v900 = vpop.f32.mrb[0].mxu0
    %901 = vdwg.mxu0
    %902 = vmatprep.subr.mxu0 0.0
    %903 = vmatpush1.msra.mxu0 %v793
    %904 = vmatprep.subr.mxu0 0.0
    %905 = vmatpush1.msra.mxu0 %v794
    %906 = vmatprep.subr.mxu0 0.0
    %907 = vmatpush1.msra.mxu0 %v795
    %908 = vmatprep.subr.mxu0 0.0
    %909 = vmatpush1.msra.mxu0 %v796
    %910 = vmatprep.subr.mxu0 0.0
    %911 = vmatpush1.msra.mxu0 %v797
    %912 = vmatprep.subr.mxu0 0.0
    %913 = vmatpush1.msra.mxu0 %v798
    %914 = vmatprep.subr.mxu0 0.0
    %915 = vmatpush1.msra.mxu0 %v799
    %916 = vmatprep.subr.mxu0 0.0
    %917 = vmatpush1.msra.mxu0 %v800
    %918 = vmatprep.subr.mxu0 0.0
    %919 = vmatpush1.msra.mxu0 %v801
    %920 = vmatprep.subr.mxu0 0.0
    %921 = vmatpush1.msra.mxu0 %v802
    %922 = vmatprep.subr.mxu0 0.0
    %923 = vmatpush1.msra.mxu0 %v803
    %924 = vmatprep.subr.mxu0 0.0
    %925 = vmatpush1.msra.mxu0 %v804
    %926 = vmatprep.subr.mxu0 0.0
    %927 = vmatpush1.msra.mxu0 %v805
    %928 = vmatprep.subr.mxu0 0.0
    %929 = vmatpush1.msra.mxu0 %v806
    %930 = vmatprep.subr.mxu0 0.0
    %931 = vmatpush1.msra.mxu0 %v807
    %932 = vmatprep.subr.mxu0 0.0
    %933 = vmatpush1.msra.mxu0 %v808
    %934 = vmatprep.subr.mxu0 0.0
    %935 = vmatpush1.msra.mxu0 %v809
    %936 = vmatprep.subr.mxu0 0.0
    %937 = vmatpush1.msra.mxu0 %v810
    %938 = vmatprep.subr.mxu0 0.0
    %939 = vmatpush1.msra.mxu0 %v811
    %940 = vmatprep.subr.mxu0 0.0
    %941 = vmatpush1.msra.mxu0 %v812
    %942 = vmatprep.subr.mxu0 0.0
    %943 = vmatpush1.msra.mxu0 %v813
    %944 = vmatprep.subr.mxu0 0.0
    %945 = vmatpush1.msra.mxu0 %v814
    %946 = vmatprep.subr.mxu0 0.0
    %947 = vmatpush1.msra.mxu0 %v815
    %948 = vmatprep.subr.mxu0 0.0
    %949 = vmatpush1.msra.mxu0 %v816
    %950 = vmatprep.subr.mxu0 0.0
    %951 = vmatpush1.msra.mxu0 %v817
    %952 = vmatprep.subr.mxu0 0.0
    %953 = vmatpush1.msra.mxu0 %v818
    %954 = vmatprep.subr.mxu0 0.0
    %955 = vmatpush1.msra.mxu0 %v819
    %956 = vmatprep.subr.mxu0 0.0
    %957 = vmatpush1.msra.mxu0 %v820
    %958 = vmatprep.subr.mxu0 0.0
    %959 = vmatpush1.msra.mxu0 %v821
    %960 = vmatprep.subr.mxu0 0.0
    %961 = vmatpush1.msra.mxu0 %v822
    %962 = vmatprep.subr.mxu0 0.0
    %963 = vmatpush1.msra.mxu0 %v823
    %964 = vmatprep.subr.mxu0 0.0
    %965 = vmatpush1.msra.mxu0 %v824
    %966 = vmatprep.mubr.f32.mxu0 %v760
    %967 = vmatmul.mubr.f32.gmra.mrb[0].mxu0 %v759
    %v968 = vpop.f32.mrb[0].mxu0
    %v969 = vadd.f32 %v899, %v968
    %v970 = vpop.f32.mrb[0].mxu0
    %971 = vdwg.mxu0
    %vm972 = vcmask 123904
    %973 = vst.msk [vmem:[#allocation2] sm:$0x3] %vm972, %v969
    // Predicated region
    $region50: #{forward.9} parent=1 // pred_check
      _
    $region51: #{forward.9} parent=1 // pred_check_branch
      %975 = sbr.rel (0) target = $region53
    $region52: #{forward.9} parent=1 // pred_region
      %s977 = ssub.s32 32, 32
      %978 = vsyncadd [#allocation3], %s977
      %s980 = sshll.u32 [#allocation2], 4
      %s981 = int_to_ptr.vmem [resolvable:$true] %s980
      %983 = dma.vmem_to_hbm [thread:$0]  %s981, 32, %s12, [#allocation3]
    $region53: #{forward.9} parent=1 // pred_fallthru
      _
    // Predicated region
    $region54: #{forward.9} parent=1 // pred_check
      _
    $region55: #{forward.9} parent=1 // pred_check_branch
      %985 = sbr.rel (0) target = $region57
    $region56: #{forward.9} parent=1 // pred_region
      %986 = dma.done [#allocation3], 32
    $region57: #{forward.9} parent=1 // pred_fallthru
      _
    %987 = vsyncpa [#allocation3], 1

</llo_original>
